<compile_context>
chip_gen: v7x
topology: tpu7x:2x2x1
jax: 0.10.0
libtpu: 0.0.40
codegen_flags: <defaults>
</compile_context>

<pallas_src>
import math
import functools

import jax
import jax.numpy as jnp
from jax import lax
from jax.experimental import pallas as pl
from jax.experimental.pallas import tpu as pltpu

# ---- scaled-down CLIP config (architecture identical to ClipNet/TextEncoder, sizes reduced) ----
BATCH = 2
IN_CHANNELS = 4
INPUT_SIZE = 16            # images: (BATCH, IN_CHANNELS, INPUT_SIZE, INPUT_SIZE)
CONTEXT_LEN = 16           # original 77
VOCAB = 128                # original 49408
WIDTH = 64                 # transformer_width, original 512
HEADS = 4                  # original 8
LAYERS = 2                 # original 12
EMBED_DIM = 64             # original 512 (shared image/text embedding dim)
EPS = 1e-5                 # nn.LayerNorm default
NEG_INF = -1e30            # large finite negative (exp underflows to exactly 0 in f32)

_LAYER_KEYS = ('ln1_w', 'ln1_b', 'w_qkv', 'b_qkv', 'w_out', 'b_out',
               'ln2_w', 'ln2_b', 'w_fc', 'b_fc', 'w_proj', 'b_proj')


# ----------------------------- fused Pallas kernel -----------------------------

def _layer_norm(v, w, b):
    mu = jnp.mean(v, axis=-1, keepdims=True)
    var = jnp.mean((v - mu) ** 2, axis=-1, keepdims=True)
    return (v - mu) * lax.rsqrt(var + EPS) * w + b


def clip_fused_kernel(x0_ref, eot_ref, scale_ref, img_ref,
                      ln1w_ref, ln1b_ref, wq_ref, wk_ref, wv_ref,
                      bq_ref, bk_ref, bv_ref, wo_ref, bo_ref,
                      ln2w_ref, ln2b_ref, wfc_ref, bfc_ref, wpr_ref, bpr_ref,
                      lnfw_ref, lnfb_ref, tproj_ref, wimg_ref, bimg_ref,
                      out_ref, x_sc,
                      *, n_heads, n_layers, seq_len, batch):
    """Single invocation (no grid): whole text tower + CLIP head, activations stay on-chip."""
    NL, D = x_sc.shape
    hd = D // n_heads
    att_scale = 1.0 / math.sqrt(hd)

    # ---- block-diagonal(batch) + causal additive bias, built from iota compares (VPU) ----
    row = lax.broadcasted_iota(jnp.int32, (NL, NL), 0)
    col = lax.broadcasted_iota(jnp.int32, (NL, NL), 1)
    if seq_len & (seq_len - 1) == 0:                       # power-of-two context -> shift
        shift = (seq_len - 1).bit_length()
        same_batch = (row >> shift) == (col >> shift)
    else:                                                  # general context length
        same_batch = (row // seq_len) == (col // seq_len)
    bias = jnp.where(same_batch & (col <= row), 0.0, NEG_INF).astype(jnp.float32)

    x = x0_ref[...]                                        # (N*L, D) f32 residual stream

    # Static unroll: LAYERS is tiny here. At production depth keep a layer grid
    # (or fori_loop over a leading LAYERS axis) so weights double-buffer from HBM.
    for l in range(n_layers):
        # ---- x = x + attn(ln_1(x)) ----
        xn = _layer_norm(x, ln1w_ref[l], ln1b_ref[l])
        xn_b = xn.astype(jnp.bfloat16)
        attn = jnp.zeros((NL, D), jnp.float32)
        for h in range(n_heads):                           # per-head weight slabs: no lane slicing
            qh = jnp.dot(xn_b, wq_ref[l, h], preferred_element_type=jnp.float32) + bq_ref[l, h]
            kh = jnp.dot(xn_b, wk_ref[l, h], preferred_element_type=jnp.float32) + bk_ref[l, h]
            vh = jnp.dot(xn_b, wv_ref[l, h], preferred_element_type=jnp.float32) + bv_ref[l, h]
            s = lax.dot_general(qh, kh, (((1,), (1,)), ((), ())),
                                preferred_element_type=jnp.float32) * att_scale + bias
            s = s - jnp.max(s, axis=-1, keepdims=True)
            p = jnp.exp(s)
            p = p / jnp.sum(p, axis=-1, keepdims=True)
            ctx = jnp.dot(p.astype(jnp.bfloat16), vh.astype(jnp.bfloat16),
                          preferred_element_type=jnp.float32)
            # accumulate head straight into the output projection (no concat)
            attn = attn + jnp.dot(ctx.astype(jnp.bfloat16), wo_ref[l, h],
                                  preferred_element_type=jnp.float32)
        x = x + attn + bo_ref[l]

        # ---- x = x + mlp(ln_2(x)) ----
        x2n = _layer_norm(x, ln2w_ref[l], ln2b_ref[l])
        hid = jnp.dot(x2n.astype(jnp.bfloat16), wfc_ref[l],
                      preferred_element_type=jnp.float32) + bfc_ref[l]
        hid = hid * jax.nn.sigmoid(1.702 * hid)            # QuickGELU (f32)
        x = x + jnp.dot(hid.astype(jnp.bfloat16), wpr_ref[l],
                        preferred_element_type=jnp.float32) + bpr_ref[l]

    # ---- head: ln_final, EOT gather, text/image projections, normalize, logits ----
    x_sc[...] = x
    rows = [x_sc[pl.ds(eot_ref[i], 1), :] for i in range(batch)]   # SMEM-indexed row gather
    eot_x = jnp.concatenate(rows, axis=0)                          # (N, D)

    txt = jnp.dot(_layer_norm(eot_x, lnfw_ref[...], lnfb_ref[...]).astype(jnp.bfloat16),
                  tproj_ref[...], preferred_element_type=jnp.float32)            # (N, E)
    img = jnp.dot(img_ref[...].astype(jnp.bfloat16), wimg_ref[...],
                  preferred_element_type=jnp.float32) + bimg_ref[...]            # (N, E)

    txt = txt * lax.rsqrt(jnp.sum(txt * txt, axis=-1, keepdims=True))
    img = img * lax.rsqrt(jnp.sum(img * img, axis=-1, keepdims=True))

    ls = jnp.exp(jnp.full((1, 1), scale_ref[0], jnp.float32))       # vector exp of SMEM scalar
    out_ref[...] = ls * lax.dot_general(img, txt, (((1,), (1,)), ((), ())),
                                        preferred_element_type=jnp.float32)


# ----------------------------- wrapper (glue) -----------------------------

def clip_forward(images, text, params):
    tp, ip = params['text'], params['image']
    n, L = text.shape
    D = tp['token_embedding'].shape[1]
    NL = n * L
    hd = D // HEADS
    lyr = tp['layers']
    n_layers = lyr['w_qkv'].shape[0]
    bf16 = jnp.bfloat16

    # Glue (embedding gather + positional add, EOT indices, weight relayout). Everything
    # heavy runs inside the single fused kernel.
    x0 = (tp['token_embedding'][text] + tp['positional_embedding'][None]
          ).reshape(NL, D).astype(jnp.float32)
    eot = (jnp.arange(n, dtype=jnp.int32) * L
           + jnp.argmax(text, axis=-1).astype(jnp.int32))            # flattened EOT row index
    img_flat = images.reshape(n, -1).astype(jnp.float32)

    def heads_in(w):   # (LAYERS, D, D) -> (LAYERS, HEADS, D, hd)
        return w.reshape(n_layers, D, HEADS, hd).transpose(0, 2, 1, 3)

    def heads_b(b):    # (LAYERS, 1, D) -> (LAYERS, HEADS, 1, hd)
        return b.reshape(n_layers, 1, HEADS, hd).transpose(0, 2, 1, 3)

    w_qkv, b_qkv = lyr['w_qkv'], lyr['b_qkv']
    wq = heads_in(w_qkv[:, :, :D]).astype(bf16)
    wk = heads_in(w_qkv[:, :, D:2 * D]).astype(bf16)
    wv = heads_in(w_qkv[:, :, 2 * D:]).astype(bf16)
    bq = heads_b(b_qkv[:, :, :D])
    bk = heads_b(b_qkv[:, :, D:2 * D])
    bv = heads_b(b_qkv[:, :, 2 * D:])
    wo = lyr['w_out'].reshape(n_layers, HEADS, hd, D).astype(bf16)

    inputs = [
        x0, eot, params['logit_scale'], img_flat,
        lyr['ln1_w'], lyr['ln1_b'], wq, wk, wv, bq, bk, bv, wo, lyr['b_out'],
        lyr['ln2_w'], lyr['ln2_b'],
        lyr['w_fc'].astype(bf16), lyr['b_fc'],
        lyr['w_proj'].astype(bf16), lyr['b_proj'],
        tp['ln_final_w'], tp['ln_final_b'], tp['text_projection'].astype(bf16),
        ip['w'].astype(bf16), ip['b'],
    ]
    vmem = pl.BlockSpec(memory_space=pltpu.MemorySpace.VMEM)
    smem = pl.BlockSpec(memory_space=pltpu.MemorySpace.SMEM)
    in_specs = [vmem, smem, smem] + [vmem] * (len(inputs) - 3)

    lpi = pl.pallas_call(
        functools.partial(clip_fused_kernel, n_heads=HEADS, n_layers=n_layers,
                          seq_len=L, batch=n),
        out_shape=jax.ShapeDtypeStruct((n, n), jnp.float32),
        in_specs=in_specs,
        out_specs=vmem,
        scratch_shapes=[pltpu.VMEM((NL, D), jnp.float32)],
    )(*inputs)
    return lpi, lpi.T


# ----------------------------- pure-JAX reference (for validation) -----------------------------

def _ln_ref(x, w, b):
    mu = x.mean(-1, keepdims=True)
    var = ((x - mu) ** 2).mean(-1, keepdims=True)
    return (x - mu) / jnp.sqrt(var + EPS) * w + b


def _block_ref(x, lp, mask):
    n, L, D = x.shape
    hd = D // HEADS
    xn = _ln_ref(x, lp['ln1_w'], lp['ln1_b'])
    qkv = xn @ lp['w_qkv'] + lp['b_qkv']
    q, k, v = jnp.split(qkv, 3, axis=-1)
    q = q.reshape(n, L, HEADS, hd).transpose(0, 2, 1, 3)
    k = k.reshape(n, L, HEADS, hd).transpose(0, 2, 1, 3)
    v = v.reshape(n, L, HEADS, hd).transpose(0, 2, 1, 3)
    s = jnp.einsum('nhqd,nhkd->nhqk', q, k) / math.sqrt(hd) + mask
    s = s - s.max(-1, keepdims=True)
    p = jnp.exp(s)
    p = p / p.sum(-1, keepdims=True)
    ctx = jnp.einsum('nhqk,nhkd->nhqd', p, v).transpose(0, 2, 1, 3).reshape(n, L, D)
    x = x + ctx @ lp['w_out'] + lp['b_out']
    x2 = _ln_ref(x, lp['ln2_w'], lp['ln2_b'])
    h = x2 @ lp['w_fc'] + lp['b_fc']
    h = h * jax.nn.sigmoid(1.702 * h)
    return x + h @ lp['w_proj'] + lp['b_proj']


def clip_forward_ref(images, text, params):
    tp = params['text']
    n, L = text.shape
    mask = jnp.triu(jnp.full((L, L), -jnp.inf, jnp.float32), k=1)
    x = tp['token_embedding'][text] + tp['positional_embedding']
    for i in range(tp['layers']['w_qkv'].shape[0]):
        lp = {k: v[i] for k, v in tp['layers'].items()}
        x = _block_ref(x, lp, mask)
    eot = jnp.argmax(text, axis=-1)
    x_eot = x[jnp.arange(n), eot]
    txt = _ln_ref(x_eot, tp['ln_final_w'], tp['ln_final_b']) @ tp['text_projection']
    img = images.reshape(n, -1) @ params['image']['w'] + params['image']['b']
    img = img / jnp.linalg.norm(img, axis=1, keepdims=True)
    txt = txt / jnp.linalg.norm(txt, axis=1, keepdims=True)
    ls = jnp.exp(params['logit_scale'][0])
    lpi = ls * img @ txt.T
    return lpi, lpi.T


# ----------------------------- deterministic parameter init -----------------------------

def init_params(key):
    keys = jax.random.split(key, 4 + LAYERS)

    def nrm(k, shape, std=0.02):
        w = std * jax.random.normal(k, shape, jnp.float32)
        # Round to bf16-representable values so the kernel's bf16 weights and the f32
        # reference use identical numbers (only the kernel's activation casts differ).
        return w.astype(jnp.bfloat16).astype(jnp.float32)

    per_layer = []
    for i in range(LAYERS):
        lk = jax.random.split(keys[4 + i], 4)
        per_layer.append(dict(
            ln1_w=jnp.ones((1, WIDTH), jnp.float32),
            ln1_b=jnp.zeros((1, WIDTH), jnp.float32),
            w_qkv=nrm(lk[0], (WIDTH, 3 * WIDTH)),          # in_proj_weight.T
            b_qkv=jnp.zeros((1, 3 * WIDTH), jnp.float32),
            w_out=nrm(lk[1], (WIDTH, WIDTH)),              # out_proj.weight.T
            b_out=jnp.zeros((1, WIDTH), jnp.float32),
            ln2_w=jnp.ones((1, WIDTH), jnp.float32),
            ln2_b=jnp.zeros((1, WIDTH), jnp.float32),
            w_fc=nrm(lk[2], (WIDTH, 4 * WIDTH)),           # c_fc.weight.T
            b_fc=jnp.zeros((1, 4 * WIDTH), jnp.float32),
            w_proj=nrm(lk[3], (4 * WIDTH, WIDTH)),         # c_proj.weight.T
            b_proj=jnp.zeros((1, WIDTH), jnp.float32),
        ))
    layers = {k: jnp.stack([lw[k] for lw in per_layer]) for k in _LAYER_KEYS}

    text = dict(
        token_embedding=nrm(keys[0], (VOCAB, WIDTH)),
        positional_embedding=nrm(keys[1], (CONTEXT_LEN, WIDTH), std=0.01),
        ln_final_w=jnp.ones((1, WIDTH), jnp.float32),
        ln_final_b=jnp.zeros((1, WIDTH), jnp.float32),
        text_projection=nrm(keys[2], (WIDTH, EMBED_DIM)),
        layers=layers,
    )
    image = dict(
        w=nrm(keys[3], (IN_CHANNELS * INPUT_SIZE * INPUT_SIZE, EMBED_DIM)),
        b=jnp.zeros((1, EMBED_DIM), jnp.float32),
    )
    return dict(text=text, image=image,
                logit_scale=jnp.full((1,), math.log(1.0 / 0.07), jnp.float32))


# ----------------------------- main -----------------------------

if __name__ == "__main__":
    key = jax.random.PRNGKey(0)
    k_img, k_txt, k_par = jax.random.split(key, 3)
    images = jax.random.normal(k_img, (BATCH, IN_CHANNELS, INPUT_SIZE, INPUT_SIZE), jnp.float32)
    text = jax.random.randint(k_txt, (BATCH, CONTEXT_LEN), 1, VOCAB, dtype=jnp.int32)
    params = init_params(k_par)

    logits_per_image, logits_per_text = clip_forward(images, text, params)
    jax.block_until_ready((logits_per_image, logits_per_text))

    ref_lpi, ref_lpt = clip_forward_ref(images, text, params)
    # bf16 matmul operands (f32 accumulation) -> slightly looser tolerance than pure f32
    assert jnp.allclose(logits_per_image, ref_lpi, atol=1e-1, rtol=2e-2), "logits_per_image mismatch"
    assert jnp.allclose(logits_per_text, ref_lpt, atol=1e-1, rtol=2e-2), "logits_per_text mismatch"

    print("KERNEL_OK")
</pallas_src>

<mosaic_0001>
module attributes {stable_mosaic.version = 11 : i64} {
  func.func @clip_fused_kernel(%arg0: memref<32x64xf32, #tpu.memory_space<vmem>>, %arg1: memref<2xi32, #tpu.memory_space<smem>>, %arg2: memref<1xf32, #tpu.memory_space<smem>>, %arg3: memref<2x1024xf32, #tpu.memory_space<vmem>>, %arg4: memref<2x1x64xf32, #tpu.memory_space<vmem>>, %arg5: memref<2x1x64xf32, #tpu.memory_space<vmem>>, %arg6: memref<2x4x64x16xbf16, #tpu.memory_space<vmem>>, %arg7: memref<2x4x64x16xbf16, #tpu.memory_space<vmem>>, %arg8: memref<2x4x64x16xbf16, #tpu.memory_space<vmem>>, %arg9: memref<2x4x1x16xf32, #tpu.memory_space<vmem>>, %arg10: memref<2x4x1x16xf32, #tpu.memory_space<vmem>>, %arg11: memref<2x4x1x16xf32, #tpu.memory_space<vmem>>, %arg12: memref<2x4x16x64xbf16, #tpu.memory_space<vmem>>, %arg13: memref<2x1x64xf32, #tpu.memory_space<vmem>>, %arg14: memref<2x1x64xf32, #tpu.memory_space<vmem>>, %arg15: memref<2x1x64xf32, #tpu.memory_space<vmem>>, %arg16: memref<2x64x256xbf16, #tpu.memory_space<vmem>>, %arg17: memref<2x1x256xf32, #tpu.memory_space<vmem>>, %arg18: memref<2x256x64xbf16, #tpu.memory_space<vmem>>, %arg19: memref<2x1x64xf32, #tpu.memory_space<vmem>>, %arg20: memref<1x64xf32, #tpu.memory_space<vmem>>, %arg21: memref<1x64xf32, #tpu.memory_space<vmem>>, %arg22: memref<64x64xbf16, #tpu.memory_space<vmem>>, %arg23: memref<1024x64xbf16, #tpu.memory_space<vmem>>, %arg24: memref<1x64xf32, #tpu.memory_space<vmem>>, %arg25: memref<2x2xf32, #tpu.memory_space<vmem>>, %arg26: memref<32x64xf32, #tpu.memory_space<vmem>>) attributes {dimension_semantics = [], scalar_prefetch = 0 : i64, scratch_operands = 1 : i64, tpu.core_type = #tpu.core_type<tc>} {
    %0 = tpu.iota {dimensions = array<i32: 0>} : vector<32x32xi32>
    %1 = tpu.iota {dimensions = array<i32: 1>} : vector<32x32xi32>
    %c4_i32 = arith.constant 4 : i32
    %2 = vector.broadcast %c4_i32 : i32 to vector<32x32xi32>
    %3 = arith.shrsi %0, %2 : vector<32x32xi32>
    %c4_i32_0 = arith.constant 4 : i32
    %4 = vector.broadcast %c4_i32_0 : i32 to vector<32x32xi32>
    %5 = arith.shrsi %1, %4 : vector<32x32xi32>
    %6 = arith.cmpi eq, %3, %5 : vector<32x32xi32>
    %7 = arith.cmpi sle, %1, %0 : vector<32x32xi32>
    %8 = arith.andi %6, %7 : vector<32x32xi1>
    %cst = arith.constant 0.000000e+00 : f32
    %cst_1 = arith.constant -1.000000e+30 : f32
    %9 = vector.broadcast %cst : f32 to vector<32x32xf32>
    %10 = vector.broadcast %cst_1 : f32 to vector<32x32xf32>
    %11 = arith.select %8, %9, %10 : vector<32x32xi1>, vector<32x32xf32>
    %c0 = arith.constant 0 : index
    %c0_2 = arith.constant 0 : index
    %12 = vector.load %arg0[%c0, %c0_2] : memref<32x64xf32, #tpu.memory_space<vmem>>, vector<32x64xf32>
    %c0_3 = arith.constant 0 : index
    %c0_4 = arith.constant 0 : index
    %c0_5 = arith.constant 0 : index
    %13 = vector.load %arg4[%c0_3, %c0_4, %c0_5] : memref<2x1x64xf32, #tpu.memory_space<vmem>>, vector<1x1x64xf32>
    %14 = vector.shape_cast %13 : vector<1x1x64xf32> to vector<1x64xf32>
    %c0_6 = arith.constant 0 : index
    %c0_7 = arith.constant 0 : index
    %c0_8 = arith.constant 0 : index
    %15 = vector.load %arg5[%c0_6, %c0_7, %c0_8] : memref<2x1x64xf32, #tpu.memory_space<vmem>>, vector<1x1x64xf32>
    %16 = vector.shape_cast %15 : vector<1x1x64xf32> to vector<1x64xf32>
    %cst_9 = arith.constant dense<0.000000e+00> : vector<32xf32>
    %17 = vector.multi_reduction <add>, %12, %cst_9 [1] : vector<32x64xf32> to vector<32xf32>
    %18 = vector.shape_cast %17 : vector<32xf32> to vector<32x1xf32>
    %cst_10 = arith.constant 6.400000e+01 : f32
    %19 = vector.broadcast %cst_10 : f32 to vector<32x1xf32>
    %20 = arith.divf %18, %19 : vector<32x1xf32>
    %21 = vector.broadcast %20 : vector<32x1xf32> to vector<32x64xf32>
    %22 = arith.subf %12, %21 : vector<32x64xf32>
    %23 = arith.mulf %22, %22 : vector<32x64xf32>
    %cst_11 = arith.constant dense<0.000000e+00> : vector<32xf32>
    %24 = vector.multi_reduction <add>, %23, %cst_11 [1] : vector<32x64xf32> to vector<32xf32>
    %25 = vector.shape_cast %24 : vector<32xf32> to vector<32x1xf32>
    %cst_12 = arith.constant 6.400000e+01 : f32
    %26 = vector.broadcast %cst_12 : f32 to vector<32x1xf32>
    %27 = arith.divf %25, %26 : vector<32x1xf32>
    %28 = vector.broadcast %20 : vector<32x1xf32> to vector<32x64xf32>
    %29 = arith.subf %12, %28 : vector<32x64xf32>
    %cst_13 = arith.constant 9.99999974E-6 : f32
    %30 = vector.broadcast %cst_13 : f32 to vector<32x1xf32>
    %31 = arith.addf %27, %30 : vector<32x1xf32>
    %32 = math.rsqrt %31 : vector<32x1xf32>
    %33 = vector.broadcast %32 : vector<32x1xf32> to vector<32x64xf32>
    %34 = arith.mulf %29, %33 : vector<32x64xf32>
    %35 = vector.broadcast %14 : vector<1x64xf32> to vector<32x64xf32>
    %36 = arith.mulf %34, %35 : vector<32x64xf32>
    %37 = vector.broadcast %16 : vector<1x64xf32> to vector<32x64xf32>
    %38 = arith.addf %36, %37 : vector<32x64xf32>
    %39 = arith.truncf %38 : vector<32x64xf32> to vector<32x64xbf16>
    %cst_14 = arith.constant 0.000000e+00 : f32
    %40 = vector.broadcast %cst_14 : f32 to vector<32x64xf32>
    %c0_15 = arith.constant 0 : index
    %c0_16 = arith.constant 0 : index
    %c0_17 = arith.constant 0 : index
    %c0_18 = arith.constant 0 : index
    %41 = vector.load %arg6[%c0_15, %c0_16, %c0_17, %c0_18] : memref<2x4x64x16xbf16, #tpu.memory_space<vmem>>, vector<1x1x64x16xbf16>
    %42 = vector.shape_cast %41 : vector<1x1x64x16xbf16> to vector<64x16xbf16>
    %cst_19 = arith.constant dense<0.000000e+00> : vector<32x16xf32>
    %43 = tpu.matmul %39, %42, %cst_19 {dimension_numbers = #tpu.dot_dimension_numbers<[1], [0], [0], [1], [0, 0, 1, 1], [], []>} : vector<32x64xbf16>, vector<64x16xbf16>, vector<32x16xf32> -> vector<32x16xf32>
    %c0_20 = arith.constant 0 : index
    %c0_21 = arith.constant 0 : index
    %c0_22 = arith.constant 0 : index
    %c0_23 = arith.constant 0 : index
    %44 = vector.load %arg9[%c0_20, %c0_21, %c0_22, %c0_23] : memref<2x4x1x16xf32, #tpu.memory_space<vmem>>, vector<1x1x1x16xf32>
    %45 = vector.shape_cast %44 : vector<1x1x1x16xf32> to vector<1x16xf32>
    %46 = vector.broadcast %45 : vector<1x16xf32> to vector<32x16xf32>
    %47 = arith.addf %43, %46 : vector<32x16xf32>
    %c0_24 = arith.constant 0 : index
    %c0_25 = arith.constant 0 : index
    %c0_26 = arith.constant 0 : index
    %c0_27 = arith.constant 0 : index
    %48 = vector.load %arg7[%c0_24, %c0_25, %c0_26, %c0_27] : memref<2x4x64x16xbf16, #tpu.memory_space<vmem>>, vector<1x1x64x16xbf16>
    %49 = vector.shape_cast %48 : vector<1x1x64x16xbf16> to vector<64x16xbf16>
    %cst_28 = arith.constant dense<0.000000e+00> : vector<32x16xf32>
    %50 = tpu.matmul %39, %49, %cst_28 {dimension_numbers = #tpu.dot_dimension_numbers<[1], [0], [0], [1], [0, 0, 1, 1], [], []>} : vector<32x64xbf16>, vector<64x16xbf16>, vector<32x16xf32> -> vector<32x16xf32>
    %c0_29 = arith.constant 0 : index
    %c0_30 = arith.constant 0 : index
    %c0_31 = arith.constant 0 : index
    %c0_32 = arith.constant 0 : index
    %51 = vector.load %arg10[%c0_29, %c0_30, %c0_31, %c0_32] : memref<2x4x1x16xf32, #tpu.memory_space<vmem>>, vector<1x1x1x16xf32>
    %52 = vector.shape_cast %51 : vector<1x1x1x16xf32> to vector<1x16xf32>
    %53 = vector.broadcast %52 : vector<1x16xf32> to vector<32x16xf32>
    %54 = arith.addf %50, %53 : vector<32x16xf32>
    %c0_33 = arith.constant 0 : index
    %c0_34 = arith.constant 0 : index
    %c0_35 = arith.constant 0 : index
    %c0_36 = arith.constant 0 : index
    %55 = vector.load %arg8[%c0_33, %c0_34, %c0_35, %c0_36] : memref<2x4x64x16xbf16, #tpu.memory_space<vmem>>, vector<1x1x64x16xbf16>
    %56 = vector.shape_cast %55 : vector<1x1x64x16xbf16> to vector<64x16xbf16>
    %cst_37 = arith.constant dense<0.000000e+00> : vector<32x16xf32>
    %57 = tpu.matmul %39, %56, %cst_37 {dimension_numbers = #tpu.dot_dimension_numbers<[1], [0], [0], [1], [0, 0, 1, 1], [], []>} : vector<32x64xbf16>, vector<64x16xbf16>, vector<32x16xf32> -> vector<32x16xf32>
    %c0_38 = arith.constant 0 : index
    %c0_39 = arith.constant 0 : index
    %c0_40 = arith.constant 0 : index
    %c0_41 = arith.constant 0 : index
    %58 = vector.load %arg11[%c0_38, %c0_39, %c0_40, %c0_41] : memref<2x4x1x16xf32, #tpu.memory_space<vmem>>, vector<1x1x1x16xf32>
    %59 = vector.shape_cast %58 : vector<1x1x1x16xf32> to vector<1x16xf32>
    %60 = vector.broadcast %59 : vector<1x16xf32> to vector<32x16xf32>
    %61 = arith.addf %57, %60 : vector<32x16xf32>
    %cst_42 = arith.constant dense<0.000000e+00> : vector<32x32xf32>
    %62 = tpu.matmul %47, %54, %cst_42 {dimension_numbers = #tpu.dot_dimension_numbers<[1], [1], [0], [0], [0, 0, 1, 0], [], []>} : vector<32x16xf32>, vector<32x16xf32>, vector<32x32xf32> -> vector<32x32xf32>
    %cst_43 = arith.constant 2.500000e-01 : f32
    %63 = vector.broadcast %cst_43 : f32 to vector<32x32xf32>
    %64 = arith.mulf %62, %63 : vector<32x32xf32>
    %65 = arith.addf %64, %11 : vector<32x32xf32>
    %cst_44 = arith.constant dense<0xFF800000> : vector<32xf32>
    %66 = vector.multi_reduction <maximumf>, %65, %cst_44 [1] : vector<32x32xf32> to vector<32xf32>
    %67 = vector.shape_cast %66 : vector<32xf32> to vector<32x1xf32>
    %68 = vector.broadcast %67 : vector<32x1xf32> to vector<32x32xf32>
    %69 = arith.subf %65, %68 : vector<32x32xf32>
    %70 = math.exp %69 : vector<32x32xf32>
    %cst_45 = arith.constant dense<0.000000e+00> : vector<32xf32>
    %71 = vector.multi_reduction <add>, %70, %cst_45 [1] : vector<32x32xf32> to vector<32xf32>
    %72 = vector.shape_cast %71 : vector<32xf32> to vector<32x1xf32>
    %73 = vector.broadcast %72 : vector<32x1xf32> to vector<32x32xf32>
    %74 = arith.divf %70, %73 : vector<32x32xf32>
    %75 = arith.truncf %74 : vector<32x32xf32> to vector<32x32xbf16>
    %76 = arith.truncf %61 : vector<32x16xf32> to vector<32x16xbf16>
    %cst_46 = arith.constant dense<0.000000e+00> : vector<32x16xf32>
    %77 = tpu.matmul %75, %76, %cst_46 {dimension_numbers = #tpu.dot_dimension_numbers<[1], [0], [0], [1], [0, 0, 1, 1], [], []>} : vector<32x32xbf16>, vector<32x16xbf16>, vector<32x16xf32> -> vector<32x16xf32>
    %78 = arith.truncf %77 : vector<32x16xf32> to vector<32x16xbf16>
    %c0_47 = arith.constant 0 : index
    %c0_48 = arith.constant 0 : index
    %c0_49 = arith.constant 0 : index
    %c0_50 = arith.constant 0 : index
    %79 = vector.load %arg12[%c0_47, %c0_48, %c0_49, %c0_50] : memref<2x4x16x64xbf16, #tpu.memory_space<vmem>>, vector<1x1x16x64xbf16>
    %80 = vector.shape_cast %79 : vector<1x1x16x64xbf16> to vector<16x64xbf16>
    %cst_51 = arith.constant dense<0.000000e+00> : vector<32x64xf32>
    %81 = tpu.matmul %78, %80, %cst_51 {dimension_numbers = #tpu.dot_dimension_numbers<[1], [0], [0], [1], [0, 0, 1, 1], [], []>} : vector<32x16xbf16>, vector<16x64xbf16>, vector<32x64xf32> -> vector<32x64xf32>
    %82 = arith.addf %40, %81 : vector<32x64xf32>
    %c0_52 = arith.constant 0 : index
    %c1 = arith.constant 1 : index
    %c0_53 = arith.constant 0 : index
    %c0_54 = arith.constant 0 : index
    %83 = vector.load %arg6[%c0_52, %c1, %c0_53, %c0_54] : memref<2x4x64x16xbf16, #tpu.memory_space<vmem>>, vector<1x1x64x16xbf16>
    %84 = vector.shape_cast %83 : vector<1x1x64x16xbf16> to vector<64x16xbf16>
    %cst_55 = arith.constant dense<0.000000e+00> : vector<32x16xf32>
    %85 = tpu.matmul %39, %84, %cst_55 {dimension_numbers = #tpu.dot_dimension_numbers<[1], [0], [0], [1], [0, 0, 1, 1], [], []>} : vector<32x64xbf16>, vector<64x16xbf16>, vector<32x16xf32> -> vector<32x16xf32>
    %c0_56 = arith.constant 0 : index
    %c1_57 = arith.constant 1 : index
    %c0_58 = arith.constant 0 : index
    %c0_59 = arith.constant 0 : index
    %86 = vector.load %arg9[%c0_56, %c1_57, %c0_58, %c0_59] : memref<2x4x1x16xf32, #tpu.memory_space<vmem>>, vector<1x1x1x16xf32>
    %87 = vector.shape_cast %86 : vector<1x1x1x16xf32> to vector<1x16xf32>
    %88 = vector.broadcast %87 : vector<1x16xf32> to vector<32x16xf32>
    %89 = arith.addf %85, %88 : vector<32x16xf32>
    %c0_60 = arith.constant 0 : index
    %c1_61 = arith.constant 1 : index
    %c0_62 = arith.constant 0 : index
    %c0_63 = arith.constant 0 : index
    %90 = vector.load %arg7[%c0_60, %c1_61, %c0_62, %c0_63] : memref<2x4x64x16xbf16, #tpu.memory_space<vmem>>, vector<1x1x64x16xbf16>
    %91 = vector.shape_cast %90 : vector<1x1x64x16xbf16> to vector<64x16xbf16>
    %cst_64 = arith.constant dense<0.000000e+00> : vector<32x16xf32>
    %92 = tpu.matmul %39, %91, %cst_64 {dimension_numbers = #tpu.dot_dimension_numbers<[1], [0], [0], [1], [0, 0, 1, 1], [], []>} : vector<32x64xbf16>, vector<64x16xbf16>, vector<32x16xf32> -> vector<32x16xf32>
    %c0_65 = arith.constant 0 : index
    %c1_66 = arith.constant 1 : index
    %c0_67 = arith.constant 0 : index
    %c0_68 = arith.constant 0 : index
    %93 = vector.load %arg10[%c0_65, %c1_66, %c0_67, %c0_68] : memref<2x4x1x16xf32, #tpu.memory_space<vmem>>, vector<1x1x1x16xf32>
    %94 = vector.shape_cast %93 : vector<1x1x1x16xf32> to vector<1x16xf32>
    %95 = vector.broadcast %94 : vector<1x16xf32> to vector<32x16xf32>
    %96 = arith.addf %92, %95 : vector<32x16xf32>
    %c0_69 = arith.constant 0 : index
    %c1_70 = arith.constant 1 : index
    %c0_71 = arith.constant 0 : index
    %c0_72 = arith.constant 0 : index
    %97 = vector.load %arg8[%c0_69, %c1_70, %c0_71, %c0_72] : memref<2x4x64x16xbf16, #tpu.memory_space<vmem>>, vector<1x1x64x16xbf16>
    %98 = vector.shape_cast %97 : vector<1x1x64x16xbf16> to vector<64x16xbf16>
    %cst_73 = arith.constant dense<0.000000e+00> : vector<32x16xf32>
    %99 = tpu.matmul %39, %98, %cst_73 {dimension_numbers = #tpu.dot_dimension_numbers<[1], [0], [0], [1], [0, 0, 1, 1], [], []>} : vector<32x64xbf16>, vector<64x16xbf16>, vector<32x16xf32> -> vector<32x16xf32>
    %c0_74 = arith.constant 0 : index
    %c1_75 = arith.constant 1 : index
    %c0_76 = arith.constant 0 : index
    %c0_77 = arith.constant 0 : index
    %100 = vector.load %arg11[%c0_74, %c1_75, %c0_76, %c0_77] : memref<2x4x1x16xf32, #tpu.memory_space<vmem>>, vector<1x1x1x16xf32>
    %101 = vector.shape_cast %100 : vector<1x1x1x16xf32> to vector<1x16xf32>
    %102 = vector.broadcast %101 : vector<1x16xf32> to vector<32x16xf32>
    %103 = arith.addf %99, %102 : vector<32x16xf32>
    %cst_78 = arith.constant dense<0.000000e+00> : vector<32x32xf32>
    %104 = tpu.matmul %89, %96, %cst_78 {dimension_numbers = #tpu.dot_dimension_numbers<[1], [1], [0], [0], [0, 0, 1, 0], [], []>} : vector<32x16xf32>, vector<32x16xf32>, vector<32x32xf32> -> vector<32x32xf32>
    %cst_79 = arith.constant 2.500000e-01 : f32
    %105 = vector.broadcast %cst_79 : f32 to vector<32x32xf32>
    %106 = arith.mulf %104, %105 : vector<32x32xf32>
    %107 = arith.addf %106, %11 : vector<32x32xf32>
    %cst_80 = arith.constant dense<0xFF800000> : vector<32xf32>
    %108 = vector.multi_reduction <maximumf>, %107, %cst_80 [1] : vector<32x32xf32> to vector<32xf32>
    %109 = vector.shape_cast %108 : vector<32xf32> to vector<32x1xf32>
    %110 = vector.broadcast %109 : vector<32x1xf32> to vector<32x32xf32>
    %111 = arith.subf %107, %110 : vector<32x32xf32>
    %112 = math.exp %111 : vector<32x32xf32>
    %cst_81 = arith.constant dense<0.000000e+00> : vector<32xf32>
    %113 = vector.multi_reduction <add>, %112, %cst_81 [1] : vector<32x32xf32> to vector<32xf32>
    %114 = vector.shape_cast %113 : vector<32xf32> to vector<32x1xf32>
    %115 = vector.broadcast %114 : vector<32x1xf32> to vector<32x32xf32>
    %116 = arith.divf %112, %115 : vector<32x32xf32>
    %117 = arith.truncf %116 : vector<32x32xf32> to vector<32x32xbf16>
    %118 = arith.truncf %103 : vector<32x16xf32> to vector<32x16xbf16>
    %cst_82 = arith.constant dense<0.000000e+00> : vector<32x16xf32>
    %119 = tpu.matmul %117, %118, %cst_82 {dimension_numbers = #tpu.dot_dimension_numbers<[1], [0], [0], [1], [0, 0, 1, 1], [], []>} : vector<32x32xbf16>, vector<32x16xbf16>, vector<32x16xf32> -> vector<32x16xf32>
    %120 = arith.truncf %119 : vector<32x16xf32> to vector<32x16xbf16>
    %c0_83 = arith.constant 0 : index
    %c1_84 = arith.constant 1 : index
    %c0_85 = arith.constant 0 : index
    %c0_86 = arith.constant 0 : index
    %121 = vector.load %arg12[%c0_83, %c1_84, %c0_85, %c0_86] : memref<2x4x16x64xbf16, #tpu.memory_space<vmem>>, vector<1x1x16x64xbf16>
    %122 = vector.shape_cast %121 : vector<1x1x16x64xbf16> to vector<16x64xbf16>
    %cst_87 = arith.constant dense<0.000000e+00> : vector<32x64xf32>
    %123 = tpu.matmul %120, %122, %cst_87 {dimension_numbers = #tpu.dot_dimension_numbers<[1], [0], [0], [1], [0, 0, 1, 1], [], []>} : vector<32x16xbf16>, vector<16x64xbf16>, vector<32x64xf32> -> vector<32x64xf32>
    %124 = arith.addf %82, %123 : vector<32x64xf32>
    %c0_88 = arith.constant 0 : index
    %c2 = arith.constant 2 : index
    %c0_89 = arith.constant 0 : index
    %c0_90 = arith.constant 0 : index
    %125 = vector.load %arg6[%c0_88, %c2, %c0_89, %c0_90] : memref<2x4x64x16xbf16, #tpu.memory_space<vmem>>, vector<1x1x64x16xbf16>
    %126 = vector.shape_cast %125 : vector<1x1x64x16xbf16> to vector<64x16xbf16>
    %cst_91 = arith.constant dense<0.000000e+00> : vector<32x16xf32>
    %127 = tpu.matmul %39, %126, %cst_91 {dimension_numbers = #tpu.dot_dimension_numbers<[1], [0], [0], [1], [0, 0, 1, 1], [], []>} : vector<32x64xbf16>, vector<64x16xbf16>, vector<32x16xf32> -> vector<32x16xf32>
    %c0_92 = arith.constant 0 : index
    %c2_93 = arith.constant 2 : index
    %c0_94 = arith.constant 0 : index
    %c0_95 = arith.constant 0 : index
    %128 = vector.load %arg9[%c0_92, %c2_93, %c0_94, %c0_95] : memref<2x4x1x16xf32, #tpu.memory_space<vmem>>, vector<1x1x1x16xf32>
    %129 = vector.shape_cast %128 : vector<1x1x1x16xf32> to vector<1x16xf32>
    %130 = vector.broadcast %129 : vector<1x16xf32> to vector<32x16xf32>
    %131 = arith.addf %127, %130 : vector<32x16xf32>
    %c0_96 = arith.constant 0 : index
    %c2_97 = arith.constant 2 : index
    %c0_98 = arith.constant 0 : index
    %c0_99 = arith.constant 0 : index
    %132 = vector.load %arg7[%c0_96, %c2_97, %c0_98, %c0_99] : memref<2x4x64x16xbf16, #tpu.memory_space<vmem>>, vector<1x1x64x16xbf16>
    %133 = vector.shape_cast %132 : vector<1x1x64x16xbf16> to vector<64x16xbf16>
    %cst_100 = arith.constant dense<0.000000e+00> : vector<32x16xf32>
    %134 = tpu.matmul %39, %133, %cst_100 {dimension_numbers = #tpu.dot_dimension_numbers<[1], [0], [0], [1], [0, 0, 1, 1], [], []>} : vector<32x64xbf16>, vector<64x16xbf16>, vector<32x16xf32> -> vector<32x16xf32>
    %c0_101 = arith.constant 0 : index
    %c2_102 = arith.constant 2 : index
    %c0_103 = arith.constant 0 : index
    %c0_104 = arith.constant 0 : index
    %135 = vector.load %arg10[%c0_101, %c2_102, %c0_103, %c0_104] : memref<2x4x1x16xf32, #tpu.memory_space<vmem>>, vector<1x1x1x16xf32>
    %136 = vector.shape_cast %135 : vector<1x1x1x16xf32> to vector<1x16xf32>
    %137 = vector.broadcast %136 : vector<1x16xf32> to vector<32x16xf32>
    %138 = arith.addf %134, %137 : vector<32x16xf32>
    %c0_105 = arith.constant 0 : index
    %c2_106 = arith.constant 2 : index
    %c0_107 = arith.constant 0 : index
    %c0_108 = arith.constant 0 : index
    %139 = vector.load %arg8[%c0_105, %c2_106, %c0_107, %c0_108] : memref<2x4x64x16xbf16, #tpu.memory_space<vmem>>, vector<1x1x64x16xbf16>
    %140 = vector.shape_cast %139 : vector<1x1x64x16xbf16> to vector<64x16xbf16>
    %cst_109 = arith.constant dense<0.000000e+00> : vector<32x16xf32>
    %141 = tpu.matmul %39, %140, %cst_109 {dimension_numbers = #tpu.dot_dimension_numbers<[1], [0], [0], [1], [0, 0, 1, 1], [], []>} : vector<32x64xbf16>, vector<64x16xbf16>, vector<32x16xf32> -> vector<32x16xf32>
    %c0_110 = arith.constant 0 : index
    %c2_111 = arith.constant 2 : index
    %c0_112 = arith.constant 0 : index
    %c0_113 = arith.constant 0 : index
    %142 = vector.load %arg11[%c0_110, %c2_111, %c0_112, %c0_113] : memref<2x4x1x16xf32, #tpu.memory_space<vmem>>, vector<1x1x1x16xf32>
    %143 = vector.shape_cast %142 : vector<1x1x1x16xf32> to vector<1x16xf32>
    %144 = vector.broadcast %143 : vector<1x16xf32> to vector<32x16xf32>
    %145 = arith.addf %141, %144 : vector<32x16xf32>
    %cst_114 = arith.constant dense<0.000000e+00> : vector<32x32xf32>
    %146 = tpu.matmul %131, %138, %cst_114 {dimension_numbers = #tpu.dot_dimension_numbers<[1], [1], [0], [0], [0, 0, 1, 0], [], []>} : vector<32x16xf32>, vector<32x16xf32>, vector<32x32xf32> -> vector<32x32xf32>
    %cst_115 = arith.constant 2.500000e-01 : f32
    %147 = vector.broadcast %cst_115 : f32 to vector<32x32xf32>
    %148 = arith.mulf %146, %147 : vector<32x32xf32>
    %149 = arith.addf %148, %11 : vector<32x32xf32>
    %cst_116 = arith.constant dense<0xFF800000> : vector<32xf32>
    %150 = vector.multi_reduction <maximumf>, %149, %cst_116 [1] : vector<32x32xf32> to vector<32xf32>
    %151 = vector.shape_cast %150 : vector<32xf32> to vector<32x1xf32>
    %152 = vector.broadcast %151 : vector<32x1xf32> to vector<32x32xf32>
    %153 = arith.subf %149, %152 : vector<32x32xf32>
    %154 = math.exp %153 : vector<32x32xf32>
    %cst_117 = arith.constant dense<0.000000e+00> : vector<32xf32>
    %155 = vector.multi_reduction <add>, %154, %cst_117 [1] : vector<32x32xf32> to vector<32xf32>
    %156 = vector.shape_cast %155 : vector<32xf32> to vector<32x1xf32>
    %157 = vector.broadcast %156 : vector<32x1xf32> to vector<32x32xf32>
    %158 = arith.divf %154, %157 : vector<32x32xf32>
    %159 = arith.truncf %158 : vector<32x32xf32> to vector<32x32xbf16>
    %160 = arith.truncf %145 : vector<32x16xf32> to vector<32x16xbf16>
    %cst_118 = arith.constant dense<0.000000e+00> : vector<32x16xf32>
    %161 = tpu.matmul %159, %160, %cst_118 {dimension_numbers = #tpu.dot_dimension_numbers<[1], [0], [0], [1], [0, 0, 1, 1], [], []>} : vector<32x32xbf16>, vector<32x16xbf16>, vector<32x16xf32> -> vector<32x16xf32>
    %162 = arith.truncf %161 : vector<32x16xf32> to vector<32x16xbf16>
    %c0_119 = arith.constant 0 : index
    %c2_120 = arith.constant 2 : index
    %c0_121 = arith.constant 0 : index
    %c0_122 = arith.constant 0 : index
    %163 = vector.load %arg12[%c0_119, %c2_120, %c0_121, %c0_122] : memref<2x4x16x64xbf16, #tpu.memory_space<vmem>>, vector<1x1x16x64xbf16>
    %164 = vector.shape_cast %163 : vector<1x1x16x64xbf16> to vector<16x64xbf16>
    %cst_123 = arith.constant dense<0.000000e+00> : vector<32x64xf32>
    %165 = tpu.matmul %162, %164, %cst_123 {dimension_numbers = #tpu.dot_dimension_numbers<[1], [0], [0], [1], [0, 0, 1, 1], [], []>} : vector<32x16xbf16>, vector<16x64xbf16>, vector<32x64xf32> -> vector<32x64xf32>
    %166 = arith.addf %124, %165 : vector<32x64xf32>
    %c0_124 = arith.constant 0 : index
    %c3 = arith.constant 3 : index
    %c0_125 = arith.constant 0 : index
    %c0_126 = arith.constant 0 : index
    %167 = vector.load %arg6[%c0_124, %c3, %c0_125, %c0_126] : memref<2x4x64x16xbf16, #tpu.memory_space<vmem>>, vector<1x1x64x16xbf16>
    %168 = vector.shape_cast %167 : vector<1x1x64x16xbf16> to vector<64x16xbf16>
    %cst_127 = arith.constant dense<0.000000e+00> : vector<32x16xf32>
    %169 = tpu.matmul %39, %168, %cst_127 {dimension_numbers = #tpu.dot_dimension_numbers<[1], [0], [0], [1], [0, 0, 1, 1], [], []>} : vector<32x64xbf16>, vector<64x16xbf16>, vector<32x16xf32> -> vector<32x16xf32>
    %c0_128 = arith.constant 0 : index
    %c3_129 = arith.constant 3 : index
    %c0_130 = arith.constant 0 : index
    %c0_131 = arith.constant 0 : index
    %170 = vector.load %arg9[%c0_128, %c3_129, %c0_130, %c0_131] : memref<2x4x1x16xf32, #tpu.memory_space<vmem>>, vector<1x1x1x16xf32>
    %171 = vector.shape_cast %170 : vector<1x1x1x16xf32> to vector<1x16xf32>
    %172 = vector.broadcast %171 : vector<1x16xf32> to vector<32x16xf32>
    %173 = arith.addf %169, %172 : vector<32x16xf32>
    %c0_132 = arith.constant 0 : index
    %c3_133 = arith.constant 3 : index
    %c0_134 = arith.constant 0 : index
    %c0_135 = arith.constant 0 : index
    %174 = vector.load %arg7[%c0_132, %c3_133, %c0_134, %c0_135] : memref<2x4x64x16xbf16, #tpu.memory_space<vmem>>, vector<1x1x64x16xbf16>
    %175 = vector.shape_cast %174 : vector<1x1x64x16xbf16> to vector<64x16xbf16>
    %cst_136 = arith.constant dense<0.000000e+00> : vector<32x16xf32>
    %176 = tpu.matmul %39, %175, %cst_136 {dimension_numbers = #tpu.dot_dimension_numbers<[1], [0], [0], [1], [0, 0, 1, 1], [], []>} : vector<32x64xbf16>, vector<64x16xbf16>, vector<32x16xf32> -> vector<32x16xf32>
    %c0_137 = arith.constant 0 : index
    %c3_138 = arith.constant 3 : index
    %c0_139 = arith.constant 0 : index
    %c0_140 = arith.constant 0 : index
    %177 = vector.load %arg10[%c0_137, %c3_138, %c0_139, %c0_140] : memref<2x4x1x16xf32, #tpu.memory_space<vmem>>, vector<1x1x1x16xf32>
    %178 = vector.shape_cast %177 : vector<1x1x1x16xf32> to vector<1x16xf32>
    %179 = vector.broadcast %178 : vector<1x16xf32> to vector<32x16xf32>
    %180 = arith.addf %176, %179 : vector<32x16xf32>
    %c0_141 = arith.constant 0 : index
    %c3_142 = arith.constant 3 : index
    %c0_143 = arith.constant 0 : index
    %c0_144 = arith.constant 0 : index
    %181 = vector.load %arg8[%c0_141, %c3_142, %c0_143, %c0_144] : memref<2x4x64x16xbf16, #tpu.memory_space<vmem>>, vector<1x1x64x16xbf16>
    %182 = vector.shape_cast %181 : vector<1x1x64x16xbf16> to vector<64x16xbf16>
    %cst_145 = arith.constant dense<0.000000e+00> : vector<32x16xf32>
    %183 = tpu.matmul %39, %182, %cst_145 {dimension_numbers = #tpu.dot_dimension_numbers<[1], [0], [0], [1], [0, 0, 1, 1], [], []>} : vector<32x64xbf16>, vector<64x16xbf16>, vector<32x16xf32> -> vector<32x16xf32>
    %c0_146 = arith.constant 0 : index
    %c3_147 = arith.constant 3 : index
    %c0_148 = arith.constant 0 : index
    %c0_149 = arith.constant 0 : index
    %184 = vector.load %arg11[%c0_146, %c3_147, %c0_148, %c0_149] : memref<2x4x1x16xf32, #tpu.memory_space<vmem>>, vector<1x1x1x16xf32>
    %185 = vector.shape_cast %184 : vector<1x1x1x16xf32> to vector<1x16xf32>
    %186 = vector.broadcast %185 : vector<1x16xf32> to vector<32x16xf32>
    %187 = arith.addf %183, %186 : vector<32x16xf32>
    %cst_150 = arith.constant dense<0.000000e+00> : vector<32x32xf32>
    %188 = tpu.matmul %173, %180, %cst_150 {dimension_numbers = #tpu.dot_dimension_numbers<[1], [1], [0], [0], [0, 0, 1, 0], [], []>} : vector<32x16xf32>, vector<32x16xf32>, vector<32x32xf32> -> vector<32x32xf32>
    %cst_151 = arith.constant 2.500000e-01 : f32
    %189 = vector.broadcast %cst_151 : f32 to vector<32x32xf32>
    %190 = arith.mulf %188, %189 : vector<32x32xf32>
    %191 = arith.addf %190, %11 : vector<32x32xf32>
    %cst_152 = arith.constant dense<0xFF800000> : vector<32xf32>
    %192 = vector.multi_reduction <maximumf>, %191, %cst_152 [1] : vector<32x32xf32> to vector<32xf32>
    %193 = vector.shape_cast %192 : vector<32xf32> to vector<32x1xf32>
    %194 = vector.broadcast %193 : vector<32x1xf32> to vector<32x32xf32>
    %195 = arith.subf %191, %194 : vector<32x32xf32>
    %196 = math.exp %195 : vector<32x32xf32>
    %cst_153 = arith.constant dense<0.000000e+00> : vector<32xf32>
    %197 = vector.multi_reduction <add>, %196, %cst_153 [1] : vector<32x32xf32> to vector<32xf32>
    %198 = vector.shape_cast %197 : vector<32xf32> to vector<32x1xf32>
    %199 = vector.broadcast %198 : vector<32x1xf32> to vector<32x32xf32>
    %200 = arith.divf %196, %199 : vector<32x32xf32>
    %201 = arith.truncf %200 : vector<32x32xf32> to vector<32x32xbf16>
    %202 = arith.truncf %187 : vector<32x16xf32> to vector<32x16xbf16>
    %cst_154 = arith.constant dense<0.000000e+00> : vector<32x16xf32>
    %203 = tpu.matmul %201, %202, %cst_154 {dimension_numbers = #tpu.dot_dimension_numbers<[1], [0], [0], [1], [0, 0, 1, 1], [], []>} : vector<32x32xbf16>, vector<32x16xbf16>, vector<32x16xf32> -> vector<32x16xf32>
    %204 = arith.truncf %203 : vector<32x16xf32> to vector<32x16xbf16>
    %c0_155 = arith.constant 0 : index
    %c3_156 = arith.constant 3 : index
    %c0_157 = arith.constant 0 : index
    %c0_158 = arith.constant 0 : index
    %205 = vector.load %arg12[%c0_155, %c3_156, %c0_157, %c0_158] : memref<2x4x16x64xbf16, #tpu.memory_space<vmem>>, vector<1x1x16x64xbf16>
    %206 = vector.shape_cast %205 : vector<1x1x16x64xbf16> to vector<16x64xbf16>
    %cst_159 = arith.constant dense<0.000000e+00> : vector<32x64xf32>
    %207 = tpu.matmul %204, %206, %cst_159 {dimension_numbers = #tpu.dot_dimension_numbers<[1], [0], [0], [1], [0, 0, 1, 1], [], []>} : vector<32x16xbf16>, vector<16x64xbf16>, vector<32x64xf32> -> vector<32x64xf32>
    %208 = arith.addf %166, %207 : vector<32x64xf32>
    %209 = arith.addf %12, %208 : vector<32x64xf32>
    %c0_160 = arith.constant 0 : index
    %c0_161 = arith.constant 0 : index
    %c0_162 = arith.constant 0 : index
    %210 = vector.load %arg13[%c0_160, %c0_161, %c0_162] : memref<2x1x64xf32, #tpu.memory_space<vmem>>, vector<1x1x64xf32>
    %211 = vector.shape_cast %210 : vector<1x1x64xf32> to vector<1x64xf32>
    %212 = vector.broadcast %211 : vector<1x64xf32> to vector<32x64xf32>
    %213 = arith.addf %209, %212 : vector<32x64xf32>
    %c0_163 = arith.constant 0 : index
    %c0_164 = arith.constant 0 : index
    %c0_165 = arith.constant 0 : index
    %214 = vector.load %arg14[%c0_163, %c0_164, %c0_165] : memref<2x1x64xf32, #tpu.memory_space<vmem>>, vector<1x1x64xf32>
    %215 = vector.shape_cast %214 : vector<1x1x64xf32> to vector<1x64xf32>
    %c0_166 = arith.constant 0 : index
    %c0_167 = arith.constant 0 : index
    %c0_168 = arith.constant 0 : index
    %216 = vector.load %arg15[%c0_166, %c0_167, %c0_168] : memref<2x1x64xf32, #tpu.memory_space<vmem>>, vector<1x1x64xf32>
    %217 = vector.shape_cast %216 : vector<1x1x64xf32> to vector<1x64xf32>
    %cst_169 = arith.constant dense<0.000000e+00> : vector<32xf32>
    %218 = vector.multi_reduction <add>, %213, %cst_169 [1] : vector<32x64xf32> to vector<32xf32>
    %219 = vector.shape_cast %218 : vector<32xf32> to vector<32x1xf32>
    %cst_170 = arith.constant 6.400000e+01 : f32
    %220 = vector.broadcast %cst_170 : f32 to vector<32x1xf32>
    %221 = arith.divf %219, %220 : vector<32x1xf32>
    %222 = vector.broadcast %221 : vector<32x1xf32> to vector<32x64xf32>
    %223 = arith.subf %213, %222 : vector<32x64xf32>
    %224 = arith.mulf %223, %223 : vector<32x64xf32>
    %cst_171 = arith.constant dense<0.000000e+00> : vector<32xf32>
    %225 = vector.multi_reduction <add>, %224, %cst_171 [1] : vector<32x64xf32> to vector<32xf32>
    %226 = vector.shape_cast %225 : vector<32xf32> to vector<32x1xf32>
    %cst_172 = arith.constant 6.400000e+01 : f32
    %227 = vector.broadcast %cst_172 : f32 to vector<32x1xf32>
    %228 = arith.divf %226, %227 : vector<32x1xf32>
    %229 = vector.broadcast %221 : vector<32x1xf32> to vector<32x64xf32>
    %230 = arith.subf %213, %229 : vector<32x64xf32>
    %cst_173 = arith.constant 9.99999974E-6 : f32
    %231 = vector.broadcast %cst_173 : f32 to vector<32x1xf32>
    %232 = arith.addf %228, %231 : vector<32x1xf32>
    %233 = math.rsqrt %232 : vector<32x1xf32>
    %234 = vector.broadcast %233 : vector<32x1xf32> to vector<32x64xf32>
    %235 = arith.mulf %230, %234 : vector<32x64xf32>
    %236 = vector.broadcast %215 : vector<1x64xf32> to vector<32x64xf32>
    %237 = arith.mulf %235, %236 : vector<32x64xf32>
    %238 = vector.broadcast %217 : vector<1x64xf32> to vector<32x64xf32>
    %239 = arith.addf %237, %238 : vector<32x64xf32>
    %240 = arith.truncf %239 : vector<32x64xf32> to vector<32x64xbf16>
    %c0_174 = arith.constant 0 : index
    %c0_175 = arith.constant 0 : index
    %c0_176 = arith.constant 0 : index
    %241 = vector.load %arg16[%c0_174, %c0_175, %c0_176] : memref<2x64x256xbf16, #tpu.memory_space<vmem>>, vector<1x64x256xbf16>
    %242 = vector.shape_cast %241 : vector<1x64x256xbf16> to vector<64x256xbf16>
    %cst_177 = arith.constant dense<0.000000e+00> : vector<32x256xf32>
    %243 = tpu.matmul %240, %242, %cst_177 {dimension_numbers = #tpu.dot_dimension_numbers<[1], [0], [0], [1], [0, 0, 1, 1], [], []>} : vector<32x64xbf16>, vector<64x256xbf16>, vector<32x256xf32> -> vector<32x256xf32>
    %c0_178 = arith.constant 0 : index
    %c0_179 = arith.constant 0 : index
    %c0_180 = arith.constant 0 : index
    %244 = vector.load %arg17[%c0_178, %c0_179, %c0_180] : memref<2x1x256xf32, #tpu.memory_space<vmem>>, vector<1x1x256xf32>
    %245 = vector.shape_cast %244 : vector<1x1x256xf32> to vector<1x256xf32>
    %246 = vector.broadcast %245 : vector<1x256xf32> to vector<32x256xf32>
    %247 = arith.addf %243, %246 : vector<32x256xf32>
    %cst_181 = arith.constant 1.702000e+00 : f32
    %248 = vector.broadcast %cst_181 : f32 to vector<32x256xf32>
    %249 = arith.mulf %248, %247 : vector<32x256xf32>
    %250 = arith.negf %249 : vector<32x256xf32>
    %251 = math.exp %250 : vector<32x256xf32>
    %cst_182 = arith.constant 1.000000e+00 : f32
    %252 = vector.broadcast %cst_182 : f32 to vector<32x256xf32>
    %253 = arith.addf %252, %251 : vector<32x256xf32>
    %254 = arith.divf %252, %253 : vector<32x256xf32>
    %255 = arith.mulf %247, %254 : vector<32x256xf32>
    %256 = arith.truncf %255 : vector<32x256xf32> to vector<32x256xbf16>
    %c0_183 = arith.constant 0 : index
    %c0_184 = arith.constant 0 : index
    %c0_185 = arith.constant 0 : index
    %257 = vector.load %arg18[%c0_183, %c0_184, %c0_185] : memref<2x256x64xbf16, #tpu.memory_space<vmem>>, vector<1x256x64xbf16>
    %258 = vector.shape_cast %257 : vector<1x256x64xbf16> to vector<256x64xbf16>
    %cst_186 = arith.constant dense<0.000000e+00> : vector<32x64xf32>
    %259 = tpu.matmul %256, %258, %cst_186 {dimension_numbers = #tpu.dot_dimension_numbers<[1], [0], [0], [1], [0, 0, 1, 1], [], []>} : vector<32x256xbf16>, vector<256x64xbf16>, vector<32x64xf32> -> vector<32x64xf32>
    %260 = arith.addf %213, %259 : vector<32x64xf32>
    %c0_187 = arith.constant 0 : index
    %c0_188 = arith.constant 0 : index
    %c0_189 = arith.constant 0 : index
    %261 = vector.load %arg19[%c0_187, %c0_188, %c0_189] : memref<2x1x64xf32, #tpu.memory_space<vmem>>, vector<1x1x64xf32>
    %262 = vector.shape_cast %261 : vector<1x1x64xf32> to vector<1x64xf32>
    %263 = vector.broadcast %262 : vector<1x64xf32> to vector<32x64xf32>
    %264 = arith.addf %260, %263 : vector<32x64xf32>
    %c1_190 = arith.constant 1 : index
    %c0_191 = arith.constant 0 : index
    %c0_192 = arith.constant 0 : index
    %265 = vector.load %arg4[%c1_190, %c0_191, %c0_192] : memref<2x1x64xf32, #tpu.memory_space<vmem>>, vector<1x1x64xf32>
    %266 = vector.shape_cast %265 : vector<1x1x64xf32> to vector<1x64xf32>
    %c1_193 = arith.constant 1 : index
    %c0_194 = arith.constant 0 : index
    %c0_195 = arith.constant 0 : index
    %267 = vector.load %arg5[%c1_193, %c0_194, %c0_195] : memref<2x1x64xf32, #tpu.memory_space<vmem>>, vector<1x1x64xf32>
    %268 = vector.shape_cast %267 : vector<1x1x64xf32> to vector<1x64xf32>
    %cst_196 = arith.constant dense<0.000000e+00> : vector<32xf32>
    %269 = vector.multi_reduction <add>, %264, %cst_196 [1] : vector<32x64xf32> to vector<32xf32>
    %270 = vector.shape_cast %269 : vector<32xf32> to vector<32x1xf32>
    %cst_197 = arith.constant 6.400000e+01 : f32
    %271 = vector.broadcast %cst_197 : f32 to vector<32x1xf32>
    %272 = arith.divf %270, %271 : vector<32x1xf32>
    %273 = vector.broadcast %272 : vector<32x1xf32> to vector<32x64xf32>
    %274 = arith.subf %264, %273 : vector<32x64xf32>
    %275 = arith.mulf %274, %274 : vector<32x64xf32>
    %cst_198 = arith.constant dense<0.000000e+00> : vector<32xf32>
    %276 = vector.multi_reduction <add>, %275, %cst_198 [1] : vector<32x64xf32> to vector<32xf32>
    %277 = vector.shape_cast %276 : vector<32xf32> to vector<32x1xf32>
    %cst_199 = arith.constant 6.400000e+01 : f32
    %278 = vector.broadcast %cst_199 : f32 to vector<32x1xf32>
    %279 = arith.divf %277, %278 : vector<32x1xf32>
    %280 = vector.broadcast %272 : vector<32x1xf32> to vector<32x64xf32>
    %281 = arith.subf %264, %280 : vector<32x64xf32>
    %cst_200 = arith.constant 9.99999974E-6 : f32
    %282 = vector.broadcast %cst_200 : f32 to vector<32x1xf32>
    %283 = arith.addf %279, %282 : vector<32x1xf32>
    %284 = math.rsqrt %283 : vector<32x1xf32>
    %285 = vector.broadcast %284 : vector<32x1xf32> to vector<32x64xf32>
    %286 = arith.mulf %281, %285 : vector<32x64xf32>
    %287 = vector.broadcast %266 : vector<1x64xf32> to vector<32x64xf32>
    %288 = arith.mulf %286, %287 : vector<32x64xf32>
    %289 = vector.broadcast %268 : vector<1x64xf32> to vector<32x64xf32>
    %290 = arith.addf %288, %289 : vector<32x64xf32>
    %291 = arith.truncf %290 : vector<32x64xf32> to vector<32x64xbf16>
    %cst_201 = arith.constant 0.000000e+00 : f32
    %292 = vector.broadcast %cst_201 : f32 to vector<32x64xf32>
    %c1_202 = arith.constant 1 : index
    %c0_203 = arith.constant 0 : index
    %c0_204 = arith.constant 0 : index
    %c0_205 = arith.constant 0 : index
    %293 = vector.load %arg6[%c1_202, %c0_203, %c0_204, %c0_205] : memref<2x4x64x16xbf16, #tpu.memory_space<vmem>>, vector<1x1x64x16xbf16>
    %294 = vector.shape_cast %293 : vector<1x1x64x16xbf16> to vector<64x16xbf16>
    %cst_206 = arith.constant dense<0.000000e+00> : vector<32x16xf32>
    %295 = tpu.matmul %291, %294, %cst_206 {dimension_numbers = #tpu.dot_dimension_numbers<[1], [0], [0], [1], [0, 0, 1, 1], [], []>} : vector<32x64xbf16>, vector<64x16xbf16>, vector<32x16xf32> -> vector<32x16xf32>
    %c1_207 = arith.constant 1 : index
    %c0_208 = arith.constant 0 : index
    %c0_209 = arith.constant 0 : index
    %c0_210 = arith.constant 0 : index
    %296 = vector.load %arg9[%c1_207, %c0_208, %c0_209, %c0_210] : memref<2x4x1x16xf32, #tpu.memory_space<vmem>>, vector<1x1x1x16xf32>
    %297 = vector.shape_cast %296 : vector<1x1x1x16xf32> to vector<1x16xf32>
    %298 = vector.broadcast %297 : vector<1x16xf32> to vector<32x16xf32>
    %299 = arith.addf %295, %298 : vector<32x16xf32>
    %c1_211 = arith.constant 1 : index
    %c0_212 = arith.constant 0 : index
    %c0_213 = arith.constant 0 : index
    %c0_214 = arith.constant 0 : index
    %300 = vector.load %arg7[%c1_211, %c0_212, %c0_213, %c0_214] : memref<2x4x64x16xbf16, #tpu.memory_space<vmem>>, vector<1x1x64x16xbf16>
    %301 = vector.shape_cast %300 : vector<1x1x64x16xbf16> to vector<64x16xbf16>
    %cst_215 = arith.constant dense<0.000000e+00> : vector<32x16xf32>
    %302 = tpu.matmul %291, %301, %cst_215 {dimension_numbers = #tpu.dot_dimension_numbers<[1], [0], [0], [1], [0, 0, 1, 1], [], []>} : vector<32x64xbf16>, vector<64x16xbf16>, vector<32x16xf32> -> vector<32x16xf32>
    %c1_216 = arith.constant 1 : index
    %c0_217 = arith.constant 0 : index
    %c0_218 = arith.constant 0 : index
    %c0_219 = arith.constant 0 : index
    %303 = vector.load %arg10[%c1_216, %c0_217, %c0_218, %c0_219] : memref<2x4x1x16xf32, #tpu.memory_space<vmem>>, vector<1x1x1x16xf32>
    %304 = vector.shape_cast %303 : vector<1x1x1x16xf32> to vector<1x16xf32>
    %305 = vector.broadcast %304 : vector<1x16xf32> to vector<32x16xf32>
    %306 = arith.addf %302, %305 : vector<32x16xf32>
    %c1_220 = arith.constant 1 : index
    %c0_221 = arith.constant 0 : index
    %c0_222 = arith.constant 0 : index
    %c0_223 = arith.constant 0 : index
    %307 = vector.load %arg8[%c1_220, %c0_221, %c0_222, %c0_223] : memref<2x4x64x16xbf16, #tpu.memory_space<vmem>>, vector<1x1x64x16xbf16>
    %308 = vector.shape_cast %307 : vector<1x1x64x16xbf16> to vector<64x16xbf16>
    %cst_224 = arith.constant dense<0.000000e+00> : vector<32x16xf32>
    %309 = tpu.matmul %291, %308, %cst_224 {dimension_numbers = #tpu.dot_dimension_numbers<[1], [0], [0], [1], [0, 0, 1, 1], [], []>} : vector<32x64xbf16>, vector<64x16xbf16>, vector<32x16xf32> -> vector<32x16xf32>
    %c1_225 = arith.constant 1 : index
    %c0_226 = arith.constant 0 : index
    %c0_227 = arith.constant 0 : index
    %c0_228 = arith.constant 0 : index
    %310 = vector.load %arg11[%c1_225, %c0_226, %c0_227, %c0_228] : memref<2x4x1x16xf32, #tpu.memory_space<vmem>>, vector<1x1x1x16xf32>
    %311 = vector.shape_cast %310 : vector<1x1x1x16xf32> to vector<1x16xf32>
    %312 = vector.broadcast %311 : vector<1x16xf32> to vector<32x16xf32>
    %313 = arith.addf %309, %312 : vector<32x16xf32>
    %cst_229 = arith.constant dense<0.000000e+00> : vector<32x32xf32>
    %314 = tpu.matmul %299, %306, %cst_229 {dimension_numbers = #tpu.dot_dimension_numbers<[1], [1], [0], [0], [0, 0, 1, 0], [], []>} : vector<32x16xf32>, vector<32x16xf32>, vector<32x32xf32> -> vector<32x32xf32>
    %cst_230 = arith.constant 2.500000e-01 : f32
    %315 = vector.broadcast %cst_230 : f32 to vector<32x32xf32>
    %316 = arith.mulf %314, %315 : vector<32x32xf32>
    %317 = arith.addf %316, %11 : vector<32x32xf32>
    %cst_231 = arith.constant dense<0xFF800000> : vector<32xf32>
    %318 = vector.multi_reduction <maximumf>, %317, %cst_231 [1] : vector<32x32xf32> to vector<32xf32>
    %319 = vector.shape_cast %318 : vector<32xf32> to vector<32x1xf32>
    %320 = vector.broadcast %319 : vector<32x1xf32> to vector<32x32xf32>
    %321 = arith.subf %317, %320 : vector<32x32xf32>
    %322 = math.exp %321 : vector<32x32xf32>
    %cst_232 = arith.constant dense<0.000000e+00> : vector<32xf32>
    %323 = vector.multi_reduction <add>, %322, %cst_232 [1] : vector<32x32xf32> to vector<32xf32>
    %324 = vector.shape_cast %323 : vector<32xf32> to vector<32x1xf32>
    %325 = vector.broadcast %324 : vector<32x1xf32> to vector<32x32xf32>
    %326 = arith.divf %322, %325 : vector<32x32xf32>
    %327 = arith.truncf %326 : vector<32x32xf32> to vector<32x32xbf16>
    %328 = arith.truncf %313 : vector<32x16xf32> to vector<32x16xbf16>
    %cst_233 = arith.constant dense<0.000000e+00> : vector<32x16xf32>
    %329 = tpu.matmul %327, %328, %cst_233 {dimension_numbers = #tpu.dot_dimension_numbers<[1], [0], [0], [1], [0, 0, 1, 1], [], []>} : vector<32x32xbf16>, vector<32x16xbf16>, vector<32x16xf32> -> vector<32x16xf32>
    %330 = arith.truncf %329 : vector<32x16xf32> to vector<32x16xbf16>
    %c1_234 = arith.constant 1 : index
    %c0_235 = arith.constant 0 : index
    %c0_236 = arith.constant 0 : index
    %c0_237 = arith.constant 0 : index
    %331 = vector.load %arg12[%c1_234, %c0_235, %c0_236, %c0_237] : memref<2x4x16x64xbf16, #tpu.memory_space<vmem>>, vector<1x1x16x64xbf16>
    %332 = vector.shape_cast %331 : vector<1x1x16x64xbf16> to vector<16x64xbf16>
    %cst_238 = arith.constant dense<0.000000e+00> : vector<32x64xf32>
    %333 = tpu.matmul %330, %332, %cst_238 {dimension_numbers = #tpu.dot_dimension_numbers<[1], [0], [0], [1], [0, 0, 1, 1], [], []>} : vector<32x16xbf16>, vector<16x64xbf16>, vector<32x64xf32> -> vector<32x64xf32>
    %334 = arith.addf %292, %333 : vector<32x64xf32>
    %c1_239 = arith.constant 1 : index
    %c1_240 = arith.constant 1 : index
    %c0_241 = arith.constant 0 : index
    %c0_242 = arith.constant 0 : index
    %335 = vector.load %arg6[%c1_239, %c1_240, %c0_241, %c0_242] : memref<2x4x64x16xbf16, #tpu.memory_space<vmem>>, vector<1x1x64x16xbf16>
    %336 = vector.shape_cast %335 : vector<1x1x64x16xbf16> to vector<64x16xbf16>
    %cst_243 = arith.constant dense<0.000000e+00> : vector<32x16xf32>
    %337 = tpu.matmul %291, %336, %cst_243 {dimension_numbers = #tpu.dot_dimension_numbers<[1], [0], [0], [1], [0, 0, 1, 1], [], []>} : vector<32x64xbf16>, vector<64x16xbf16>, vector<32x16xf32> -> vector<32x16xf32>
    %c1_244 = arith.constant 1 : index
    %c1_245 = arith.constant 1 : index
    %c0_246 = arith.constant 0 : index
    %c0_247 = arith.constant 0 : index
    %338 = vector.load %arg9[%c1_244, %c1_245, %c0_246, %c0_247] : memref<2x4x1x16xf32, #tpu.memory_space<vmem>>, vector<1x1x1x16xf32>
    %339 = vector.shape_cast %338 : vector<1x1x1x16xf32> to vector<1x16xf32>
    %340 = vector.broadcast %339 : vector<1x16xf32> to vector<32x16xf32>
    %341 = arith.addf %337, %340 : vector<32x16xf32>
    %c1_248 = arith.constant 1 : index
    %c1_249 = arith.constant 1 : index
    %c0_250 = arith.constant 0 : index
    %c0_251 = arith.constant 0 : index
    %342 = vector.load %arg7[%c1_248, %c1_249, %c0_250, %c0_251] : memref<2x4x64x16xbf16, #tpu.memory_space<vmem>>, vector<1x1x64x16xbf16>
    %343 = vector.shape_cast %342 : vector<1x1x64x16xbf16> to vector<64x16xbf16>
    %cst_252 = arith.constant dense<0.000000e+00> : vector<32x16xf32>
    %344 = tpu.matmul %291, %343, %cst_252 {dimension_numbers = #tpu.dot_dimension_numbers<[1], [0], [0], [1], [0, 0, 1, 1], [], []>} : vector<32x64xbf16>, vector<64x16xbf16>, vector<32x16xf32> -> vector<32x16xf32>
    %c1_253 = arith.constant 1 : index
    %c1_254 = arith.constant 1 : index
    %c0_255 = arith.constant 0 : index
    %c0_256 = arith.constant 0 : index
    %345 = vector.load %arg10[%c1_253, %c1_254, %c0_255, %c0_256] : memref<2x4x1x16xf32, #tpu.memory_space<vmem>>, vector<1x1x1x16xf32>
    %346 = vector.shape_cast %345 : vector<1x1x1x16xf32> to vector<1x16xf32>
    %347 = vector.broadcast %346 : vector<1x16xf32> to vector<32x16xf32>
    %348 = arith.addf %344, %347 : vector<32x16xf32>
    %c1_257 = arith.constant 1 : index
    %c1_258 = arith.constant 1 : index
    %c0_259 = arith.constant 0 : index
    %c0_260 = arith.constant 0 : index
    %349 = vector.load %arg8[%c1_257, %c1_258, %c0_259, %c0_260] : memref<2x4x64x16xbf16, #tpu.memory_space<vmem>>, vector<1x1x64x16xbf16>
    %350 = vector.shape_cast %349 : vector<1x1x64x16xbf16> to vector<64x16xbf16>
    %cst_261 = arith.constant dense<0.000000e+00> : vector<32x16xf32>
    %351 = tpu.matmul %291, %350, %cst_261 {dimension_numbers = #tpu.dot_dimension_numbers<[1], [0], [0], [1], [0, 0, 1, 1], [], []>} : vector<32x64xbf16>, vector<64x16xbf16>, vector<32x16xf32> -> vector<32x16xf32>
    %c1_262 = arith.constant 1 : index
    %c1_263 = arith.constant 1 : index
    %c0_264 = arith.constant 0 : index
    %c0_265 = arith.constant 0 : index
    %352 = vector.load %arg11[%c1_262, %c1_263, %c0_264, %c0_265] : memref<2x4x1x16xf32, #tpu.memory_space<vmem>>, vector<1x1x1x16xf32>
    %353 = vector.shape_cast %352 : vector<1x1x1x16xf32> to vector<1x16xf32>
    %354 = vector.broadcast %353 : vector<1x16xf32> to vector<32x16xf32>
    %355 = arith.addf %351, %354 : vector<32x16xf32>
    %cst_266 = arith.constant dense<0.000000e+00> : vector<32x32xf32>
    %356 = tpu.matmul %341, %348, %cst_266 {dimension_numbers = #tpu.dot_dimension_numbers<[1], [1], [0], [0], [0, 0, 1, 0], [], []>} : vector<32x16xf32>, vector<32x16xf32>, vector<32x32xf32> -> vector<32x32xf32>
    %cst_267 = arith.constant 2.500000e-01 : f32
    %357 = vector.broadcast %cst_267 : f32 to vector<32x32xf32>
    %358 = arith.mulf %356, %357 : vector<32x32xf32>
    %359 = arith.addf %358, %11 : vector<32x32xf32>
    %cst_268 = arith.constant dense<0xFF800000> : vector<32xf32>
    %360 = vector.multi_reduction <maximumf>, %359, %cst_268 [1] : vector<32x32xf32> to vector<32xf32>
    %361 = vector.shape_cast %360 : vector<32xf32> to vector<32x1xf32>
    %362 = vector.broadcast %361 : vector<32x1xf32> to vector<32x32xf32>
    %363 = arith.subf %359, %362 : vector<32x32xf32>
    %364 = math.exp %363 : vector<32x32xf32>
    %cst_269 = arith.constant dense<0.000000e+00> : vector<32xf32>
    %365 = vector.multi_reduction <add>, %364, %cst_269 [1] : vector<32x32xf32> to vector<32xf32>
    %366 = vector.shape_cast %365 : vector<32xf32> to vector<32x1xf32>
    %367 = vector.broadcast %366 : vector<32x1xf32> to vector<32x32xf32>
    %368 = arith.divf %364, %367 : vector<32x32xf32>
    %369 = arith.truncf %368 : vector<32x32xf32> to vector<32x32xbf16>
    %370 = arith.truncf %355 : vector<32x16xf32> to vector<32x16xbf16>
    %cst_270 = arith.constant dense<0.000000e+00> : vector<32x16xf32>
    %371 = tpu.matmul %369, %370, %cst_270 {dimension_numbers = #tpu.dot_dimension_numbers<[1], [0], [0], [1], [0, 0, 1, 1], [], []>} : vector<32x32xbf16>, vector<32x16xbf16>, vector<32x16xf32> -> vector<32x16xf32>
    %372 = arith.truncf %371 : vector<32x16xf32> to vector<32x16xbf16>
    %c1_271 = arith.constant 1 : index
    %c1_272 = arith.constant 1 : index
    %c0_273 = arith.constant 0 : index
    %c0_274 = arith.constant 0 : index
    %373 = vector.load %arg12[%c1_271, %c1_272, %c0_273, %c0_274] : memref<2x4x16x64xbf16, #tpu.memory_space<vmem>>, vector<1x1x16x64xbf16>
    %374 = vector.shape_cast %373 : vector<1x1x16x64xbf16> to vector<16x64xbf16>
    %cst_275 = arith.constant dense<0.000000e+00> : vector<32x64xf32>
    %375 = tpu.matmul %372, %374, %cst_275 {dimension_numbers = #tpu.dot_dimension_numbers<[1], [0], [0], [1], [0, 0, 1, 1], [], []>} : vector<32x16xbf16>, vector<16x64xbf16>, vector<32x64xf32> -> vector<32x64xf32>
    %376 = arith.addf %334, %375 : vector<32x64xf32>
    %c1_276 = arith.constant 1 : index
    %c2_277 = arith.constant 2 : index
    %c0_278 = arith.constant 0 : index
    %c0_279 = arith.constant 0 : index
    %377 = vector.load %arg6[%c1_276, %c2_277, %c0_278, %c0_279] : memref<2x4x64x16xbf16, #tpu.memory_space<vmem>>, vector<1x1x64x16xbf16>
    %378 = vector.shape_cast %377 : vector<1x1x64x16xbf16> to vector<64x16xbf16>
    %cst_280 = arith.constant dense<0.000000e+00> : vector<32x16xf32>
    %379 = tpu.matmul %291, %378, %cst_280 {dimension_numbers = #tpu.dot_dimension_numbers<[1], [0], [0], [1], [0, 0, 1, 1], [], []>} : vector<32x64xbf16>, vector<64x16xbf16>, vector<32x16xf32> -> vector<32x16xf32>
    %c1_281 = arith.constant 1 : index
    %c2_282 = arith.constant 2 : index
    %c0_283 = arith.constant 0 : index
    %c0_284 = arith.constant 0 : index
    %380 = vector.load %arg9[%c1_281, %c2_282, %c0_283, %c0_284] : memref<2x4x1x16xf32, #tpu.memory_space<vmem>>, vector<1x1x1x16xf32>
    %381 = vector.shape_cast %380 : vector<1x1x1x16xf32> to vector<1x16xf32>
    %382 = vector.broadcast %381 : vector<1x16xf32> to vector<32x16xf32>
    %383 = arith.addf %379, %382 : vector<32x16xf32>
    %c1_285 = arith.constant 1 : index
    %c2_286 = arith.constant 2 : index
    %c0_287 = arith.constant 0 : index
    %c0_288 = arith.constant 0 : index
    %384 = vector.load %arg7[%c1_285, %c2_286, %c0_287, %c0_288] : memref<2x4x64x16xbf16, #tpu.memory_space<vmem>>, vector<1x1x64x16xbf16>
    %385 = vector.shape_cast %384 : vector<1x1x64x16xbf16> to vector<64x16xbf16>
    %cst_289 = arith.constant dense<0.000000e+00> : vector<32x16xf32>
    %386 = tpu.matmul %291, %385, %cst_289 {dimension_numbers = #tpu.dot_dimension_numbers<[1], [0], [0], [1], [0, 0, 1, 1], [], []>} : vector<32x64xbf16>, vector<64x16xbf16>, vector<32x16xf32> -> vector<32x16xf32>
    %c1_290 = arith.constant 1 : index
    %c2_291 = arith.constant 2 : index
    %c0_292 = arith.constant 0 : index
    %c0_293 = arith.constant 0 : index
    %387 = vector.load %arg10[%c1_290, %c2_291, %c0_292, %c0_293] : memref<2x4x1x16xf32, #tpu.memory_space<vmem>>, vector<1x1x1x16xf32>
    %388 = vector.shape_cast %387 : vector<1x1x1x16xf32> to vector<1x16xf32>
    %389 = vector.broadcast %388 : vector<1x16xf32> to vector<32x16xf32>
    %390 = arith.addf %386, %389 : vector<32x16xf32>
    %c1_294 = arith.constant 1 : index
    %c2_295 = arith.constant 2 : index
    %c0_296 = arith.constant 0 : index
    %c0_297 = arith.constant 0 : index
    %391 = vector.load %arg8[%c1_294, %c2_295, %c0_296, %c0_297] : memref<2x4x64x16xbf16, #tpu.memory_space<vmem>>, vector<1x1x64x16xbf16>
    %392 = vector.shape_cast %391 : vector<1x1x64x16xbf16> to vector<64x16xbf16>
    %cst_298 = arith.constant dense<0.000000e+00> : vector<32x16xf32>
    %393 = tpu.matmul %291, %392, %cst_298 {dimension_numbers = #tpu.dot_dimension_numbers<[1], [0], [0], [1], [0, 0, 1, 1], [], []>} : vector<32x64xbf16>, vector<64x16xbf16>, vector<32x16xf32> -> vector<32x16xf32>
    %c1_299 = arith.constant 1 : index
    %c2_300 = arith.constant 2 : index
    %c0_301 = arith.constant 0 : index
    %c0_302 = arith.constant 0 : index
    %394 = vector.load %arg11[%c1_299, %c2_300, %c0_301, %c0_302] : memref<2x4x1x16xf32, #tpu.memory_space<vmem>>, vector<1x1x1x16xf32>
    %395 = vector.shape_cast %394 : vector<1x1x1x16xf32> to vector<1x16xf32>
    %396 = vector.broadcast %395 : vector<1x16xf32> to vector<32x16xf32>
    %397 = arith.addf %393, %396 : vector<32x16xf32>
    %cst_303 = arith.constant dense<0.000000e+00> : vector<32x32xf32>
    %398 = tpu.matmul %383, %390, %cst_303 {dimension_numbers = #tpu.dot_dimension_numbers<[1], [1], [0], [0], [0, 0, 1, 0], [], []>} : vector<32x16xf32>, vector<32x16xf32>, vector<32x32xf32> -> vector<32x32xf32>
    %cst_304 = arith.constant 2.500000e-01 : f32
    %399 = vector.broadcast %cst_304 : f32 to vector<32x32xf32>
    %400 = arith.mulf %398, %399 : vector<32x32xf32>
    %401 = arith.addf %400, %11 : vector<32x32xf32>
    %cst_305 = arith.constant dense<0xFF800000> : vector<32xf32>
    %402 = vector.multi_reduction <maximumf>, %401, %cst_305 [1] : vector<32x32xf32> to vector<32xf32>
    %403 = vector.shape_cast %402 : vector<32xf32> to vector<32x1xf32>
    %404 = vector.broadcast %403 : vector<32x1xf32> to vector<32x32xf32>
    %405 = arith.subf %401, %404 : vector<32x32xf32>
    %406 = math.exp %405 : vector<32x32xf32>
    %cst_306 = arith.constant dense<0.000000e+00> : vector<32xf32>
    %407 = vector.multi_reduction <add>, %406, %cst_306 [1] : vector<32x32xf32> to vector<32xf32>
    %408 = vector.shape_cast %407 : vector<32xf32> to vector<32x1xf32>
    %409 = vector.broadcast %408 : vector<32x1xf32> to vector<32x32xf32>
    %410 = arith.divf %406, %409 : vector<32x32xf32>
    %411 = arith.truncf %410 : vector<32x32xf32> to vector<32x32xbf16>
    %412 = arith.truncf %397 : vector<32x16xf32> to vector<32x16xbf16>
    %cst_307 = arith.constant dense<0.000000e+00> : vector<32x16xf32>
    %413 = tpu.matmul %411, %412, %cst_307 {dimension_numbers = #tpu.dot_dimension_numbers<[1], [0], [0], [1], [0, 0, 1, 1], [], []>} : vector<32x32xbf16>, vector<32x16xbf16>, vector<32x16xf32> -> vector<32x16xf32>
    %414 = arith.truncf %413 : vector<32x16xf32> to vector<32x16xbf16>
    %c1_308 = arith.constant 1 : index
    %c2_309 = arith.constant 2 : index
    %c0_310 = arith.constant 0 : index
    %c0_311 = arith.constant 0 : index
    %415 = vector.load %arg12[%c1_308, %c2_309, %c0_310, %c0_311] : memref<2x4x16x64xbf16, #tpu.memory_space<vmem>>, vector<1x1x16x64xbf16>
    %416 = vector.shape_cast %415 : vector<1x1x16x64xbf16> to vector<16x64xbf16>
    %cst_312 = arith.constant dense<0.000000e+00> : vector<32x64xf32>
    %417 = tpu.matmul %414, %416, %cst_312 {dimension_numbers = #tpu.dot_dimension_numbers<[1], [0], [0], [1], [0, 0, 1, 1], [], []>} : vector<32x16xbf16>, vector<16x64xbf16>, vector<32x64xf32> -> vector<32x64xf32>
    %418 = arith.addf %376, %417 : vector<32x64xf32>
    %c1_313 = arith.constant 1 : index
    %c3_314 = arith.constant 3 : index
    %c0_315 = arith.constant 0 : index
    %c0_316 = arith.constant 0 : index
    %419 = vector.load %arg6[%c1_313, %c3_314, %c0_315, %c0_316] : memref<2x4x64x16xbf16, #tpu.memory_space<vmem>>, vector<1x1x64x16xbf16>
    %420 = vector.shape_cast %419 : vector<1x1x64x16xbf16> to vector<64x16xbf16>
    %cst_317 = arith.constant dense<0.000000e+00> : vector<32x16xf32>
    %421 = tpu.matmul %291, %420, %cst_317 {dimension_numbers = #tpu.dot_dimension_numbers<[1], [0], [0], [1], [0, 0, 1, 1], [], []>} : vector<32x64xbf16>, vector<64x16xbf16>, vector<32x16xf32> -> vector<32x16xf32>
    %c1_318 = arith.constant 1 : index
    %c3_319 = arith.constant 3 : index
    %c0_320 = arith.constant 0 : index
    %c0_321 = arith.constant 0 : index
    %422 = vector.load %arg9[%c1_318, %c3_319, %c0_320, %c0_321] : memref<2x4x1x16xf32, #tpu.memory_space<vmem>>, vector<1x1x1x16xf32>
    %423 = vector.shape_cast %422 : vector<1x1x1x16xf32> to vector<1x16xf32>
    %424 = vector.broadcast %423 : vector<1x16xf32> to vector<32x16xf32>
    %425 = arith.addf %421, %424 : vector<32x16xf32>
    %c1_322 = arith.constant 1 : index
    %c3_323 = arith.constant 3 : index
    %c0_324 = arith.constant 0 : index
    %c0_325 = arith.constant 0 : index
    %426 = vector.load %arg7[%c1_322, %c3_323, %c0_324, %c0_325] : memref<2x4x64x16xbf16, #tpu.memory_space<vmem>>, vector<1x1x64x16xbf16>
    %427 = vector.shape_cast %426 : vector<1x1x64x16xbf16> to vector<64x16xbf16>
    %cst_326 = arith.constant dense<0.000000e+00> : vector<32x16xf32>
    %428 = tpu.matmul %291, %427, %cst_326 {dimension_numbers = #tpu.dot_dimension_numbers<[1], [0], [0], [1], [0, 0, 1, 1], [], []>} : vector<32x64xbf16>, vector<64x16xbf16>, vector<32x16xf32> -> vector<32x16xf32>
    %c1_327 = arith.constant 1 : index
    %c3_328 = arith.constant 3 : index
    %c0_329 = arith.constant 0 : index
    %c0_330 = arith.constant 0 : index
    %429 = vector.load %arg10[%c1_327, %c3_328, %c0_329, %c0_330] : memref<2x4x1x16xf32, #tpu.memory_space<vmem>>, vector<1x1x1x16xf32>
    %430 = vector.shape_cast %429 : vector<1x1x1x16xf32> to vector<1x16xf32>
    %431 = vector.broadcast %430 : vector<1x16xf32> to vector<32x16xf32>
    %432 = arith.addf %428, %431 : vector<32x16xf32>
    %c1_331 = arith.constant 1 : index
    %c3_332 = arith.constant 3 : index
    %c0_333 = arith.constant 0 : index
    %c0_334 = arith.constant 0 : index
    %433 = vector.load %arg8[%c1_331, %c3_332, %c0_333, %c0_334] : memref<2x4x64x16xbf16, #tpu.memory_space<vmem>>, vector<1x1x64x16xbf16>
    %434 = vector.shape_cast %433 : vector<1x1x64x16xbf16> to vector<64x16xbf16>
    %cst_335 = arith.constant dense<0.000000e+00> : vector<32x16xf32>
    %435 = tpu.matmul %291, %434, %cst_335 {dimension_numbers = #tpu.dot_dimension_numbers<[1], [0], [0], [1], [0, 0, 1, 1], [], []>} : vector<32x64xbf16>, vector<64x16xbf16>, vector<32x16xf32> -> vector<32x16xf32>
    %c1_336 = arith.constant 1 : index
    %c3_337 = arith.constant 3 : index
    %c0_338 = arith.constant 0 : index
    %c0_339 = arith.constant 0 : index
    %436 = vector.load %arg11[%c1_336, %c3_337, %c0_338, %c0_339] : memref<2x4x1x16xf32, #tpu.memory_space<vmem>>, vector<1x1x1x16xf32>
    %437 = vector.shape_cast %436 : vector<1x1x1x16xf32> to vector<1x16xf32>
    %438 = vector.broadcast %437 : vector<1x16xf32> to vector<32x16xf32>
    %439 = arith.addf %435, %438 : vector<32x16xf32>
    %cst_340 = arith.constant dense<0.000000e+00> : vector<32x32xf32>
    %440 = tpu.matmul %425, %432, %cst_340 {dimension_numbers = #tpu.dot_dimension_numbers<[1], [1], [0], [0], [0, 0, 1, 0], [], []>} : vector<32x16xf32>, vector<32x16xf32>, vector<32x32xf32> -> vector<32x32xf32>
    %cst_341 = arith.constant 2.500000e-01 : f32
    %441 = vector.broadcast %cst_341 : f32 to vector<32x32xf32>
    %442 = arith.mulf %440, %441 : vector<32x32xf32>
    %443 = arith.addf %442, %11 : vector<32x32xf32>
    %cst_342 = arith.constant dense<0xFF800000> : vector<32xf32>
    %444 = vector.multi_reduction <maximumf>, %443, %cst_342 [1] : vector<32x32xf32> to vector<32xf32>
    %445 = vector.shape_cast %444 : vector<32xf32> to vector<32x1xf32>
    %446 = vector.broadcast %445 : vector<32x1xf32> to vector<32x32xf32>
    %447 = arith.subf %443, %446 : vector<32x32xf32>
    %448 = math.exp %447 : vector<32x32xf32>
    %cst_343 = arith.constant dense<0.000000e+00> : vector<32xf32>
    %449 = vector.multi_reduction <add>, %448, %cst_343 [1] : vector<32x32xf32> to vector<32xf32>
    %450 = vector.shape_cast %449 : vector<32xf32> to vector<32x1xf32>
    %451 = vector.broadcast %450 : vector<32x1xf32> to vector<32x32xf32>
    %452 = arith.divf %448, %451 : vector<32x32xf32>
    %453 = arith.truncf %452 : vector<32x32xf32> to vector<32x32xbf16>
    %454 = arith.truncf %439 : vector<32x16xf32> to vector<32x16xbf16>
    %cst_344 = arith.constant dense<0.000000e+00> : vector<32x16xf32>
    %455 = tpu.matmul %453, %454, %cst_344 {dimension_numbers = #tpu.dot_dimension_numbers<[1], [0], [0], [1], [0, 0, 1, 1], [], []>} : vector<32x32xbf16>, vector<32x16xbf16>, vector<32x16xf32> -> vector<32x16xf32>
    %456 = arith.truncf %455 : vector<32x16xf32> to vector<32x16xbf16>
    %c1_345 = arith.constant 1 : index
    %c3_346 = arith.constant 3 : index
    %c0_347 = arith.constant 0 : index
    %c0_348 = arith.constant 0 : index
    %457 = vector.load %arg12[%c1_345, %c3_346, %c0_347, %c0_348] : memref<2x4x16x64xbf16, #tpu.memory_space<vmem>>, vector<1x1x16x64xbf16>
    %458 = vector.shape_cast %457 : vector<1x1x16x64xbf16> to vector<16x64xbf16>
    %cst_349 = arith.constant dense<0.000000e+00> : vector<32x64xf32>
    %459 = tpu.matmul %456, %458, %cst_349 {dimension_numbers = #tpu.dot_dimension_numbers<[1], [0], [0], [1], [0, 0, 1, 1], [], []>} : vector<32x16xbf16>, vector<16x64xbf16>, vector<32x64xf32> -> vector<32x64xf32>
    %460 = arith.addf %418, %459 : vector<32x64xf32>
    %461 = arith.addf %264, %460 : vector<32x64xf32>
    %c1_350 = arith.constant 1 : index
    %c0_351 = arith.constant 0 : index
    %c0_352 = arith.constant 0 : index
    %462 = vector.load %arg13[%c1_350, %c0_351, %c0_352] : memref<2x1x64xf32, #tpu.memory_space<vmem>>, vector<1x1x64xf32>
    %463 = vector.shape_cast %462 : vector<1x1x64xf32> to vector<1x64xf32>
    %464 = vector.broadcast %463 : vector<1x64xf32> to vector<32x64xf32>
    %465 = arith.addf %461, %464 : vector<32x64xf32>
    %c1_353 = arith.constant 1 : index
    %c0_354 = arith.constant 0 : index
    %c0_355 = arith.constant 0 : index
    %466 = vector.load %arg14[%c1_353, %c0_354, %c0_355] : memref<2x1x64xf32, #tpu.memory_space<vmem>>, vector<1x1x64xf32>
    %467 = vector.shape_cast %466 : vector<1x1x64xf32> to vector<1x64xf32>
    %c1_356 = arith.constant 1 : index
    %c0_357 = arith.constant 0 : index
    %c0_358 = arith.constant 0 : index
    %468 = vector.load %arg15[%c1_356, %c0_357, %c0_358] : memref<2x1x64xf32, #tpu.memory_space<vmem>>, vector<1x1x64xf32>
    %469 = vector.shape_cast %468 : vector<1x1x64xf32> to vector<1x64xf32>
    %cst_359 = arith.constant dense<0.000000e+00> : vector<32xf32>
    %470 = vector.multi_reduction <add>, %465, %cst_359 [1] : vector<32x64xf32> to vector<32xf32>
    %471 = vector.shape_cast %470 : vector<32xf32> to vector<32x1xf32>
    %cst_360 = arith.constant 6.400000e+01 : f32
    %472 = vector.broadcast %cst_360 : f32 to vector<32x1xf32>
    %473 = arith.divf %471, %472 : vector<32x1xf32>
    %474 = vector.broadcast %473 : vector<32x1xf32> to vector<32x64xf32>
    %475 = arith.subf %465, %474 : vector<32x64xf32>
    %476 = arith.mulf %475, %475 : vector<32x64xf32>
    %cst_361 = arith.constant dense<0.000000e+00> : vector<32xf32>
    %477 = vector.multi_reduction <add>, %476, %cst_361 [1] : vector<32x64xf32> to vector<32xf32>
    %478 = vector.shape_cast %477 : vector<32xf32> to vector<32x1xf32>
    %cst_362 = arith.constant 6.400000e+01 : f32
    %479 = vector.broadcast %cst_362 : f32 to vector<32x1xf32>
    %480 = arith.divf %478, %479 : vector<32x1xf32>
    %481 = vector.broadcast %473 : vector<32x1xf32> to vector<32x64xf32>
    %482 = arith.subf %465, %481 : vector<32x64xf32>
    %cst_363 = arith.constant 9.99999974E-6 : f32
    %483 = vector.broadcast %cst_363 : f32 to vector<32x1xf32>
    %484 = arith.addf %480, %483 : vector<32x1xf32>
    %485 = math.rsqrt %484 : vector<32x1xf32>
    %486 = vector.broadcast %485 : vector<32x1xf32> to vector<32x64xf32>
    %487 = arith.mulf %482, %486 : vector<32x64xf32>
    %488 = vector.broadcast %467 : vector<1x64xf32> to vector<32x64xf32>
    %489 = arith.mulf %487, %488 : vector<32x64xf32>
    %490 = vector.broadcast %469 : vector<1x64xf32> to vector<32x64xf32>
    %491 = arith.addf %489, %490 : vector<32x64xf32>
    %492 = arith.truncf %491 : vector<32x64xf32> to vector<32x64xbf16>
    %c1_364 = arith.constant 1 : index
    %c0_365 = arith.constant 0 : index
    %c0_366 = arith.constant 0 : index
    %493 = vector.load %arg16[%c1_364, %c0_365, %c0_366] : memref<2x64x256xbf16, #tpu.memory_space<vmem>>, vector<1x64x256xbf16>
    %494 = vector.shape_cast %493 : vector<1x64x256xbf16> to vector<64x256xbf16>
    %cst_367 = arith.constant dense<0.000000e+00> : vector<32x256xf32>
    %495 = tpu.matmul %492, %494, %cst_367 {dimension_numbers = #tpu.dot_dimension_numbers<[1], [0], [0], [1], [0, 0, 1, 1], [], []>} : vector<32x64xbf16>, vector<64x256xbf16>, vector<32x256xf32> -> vector<32x256xf32>
    %c1_368 = arith.constant 1 : index
    %c0_369 = arith.constant 0 : index
    %c0_370 = arith.constant 0 : index
    %496 = vector.load %arg17[%c1_368, %c0_369, %c0_370] : memref<2x1x256xf32, #tpu.memory_space<vmem>>, vector<1x1x256xf32>
    %497 = vector.shape_cast %496 : vector<1x1x256xf32> to vector<1x256xf32>
    %498 = vector.broadcast %497 : vector<1x256xf32> to vector<32x256xf32>
    %499 = arith.addf %495, %498 : vector<32x256xf32>
    %cst_371 = arith.constant 1.702000e+00 : f32
    %500 = vector.broadcast %cst_371 : f32 to vector<32x256xf32>
    %501 = arith.mulf %500, %499 : vector<32x256xf32>
    %502 = arith.negf %501 : vector<32x256xf32>
    %503 = math.exp %502 : vector<32x256xf32>
    %cst_372 = arith.constant 1.000000e+00 : f32
    %504 = vector.broadcast %cst_372 : f32 to vector<32x256xf32>
    %505 = arith.addf %504, %503 : vector<32x256xf32>
    %506 = arith.divf %504, %505 : vector<32x256xf32>
    %507 = arith.mulf %499, %506 : vector<32x256xf32>
    %508 = arith.truncf %507 : vector<32x256xf32> to vector<32x256xbf16>
    %c1_373 = arith.constant 1 : index
    %c0_374 = arith.constant 0 : index
    %c0_375 = arith.constant 0 : index
    %509 = vector.load %arg18[%c1_373, %c0_374, %c0_375] : memref<2x256x64xbf16, #tpu.memory_space<vmem>>, vector<1x256x64xbf16>
    %510 = vector.shape_cast %509 : vector<1x256x64xbf16> to vector<256x64xbf16>
    %cst_376 = arith.constant dense<0.000000e+00> : vector<32x64xf32>
    %511 = tpu.matmul %508, %510, %cst_376 {dimension_numbers = #tpu.dot_dimension_numbers<[1], [0], [0], [1], [0, 0, 1, 1], [], []>} : vector<32x256xbf16>, vector<256x64xbf16>, vector<32x64xf32> -> vector<32x64xf32>
    %512 = arith.addf %465, %511 : vector<32x64xf32>
    %c1_377 = arith.constant 1 : index
    %c0_378 = arith.constant 0 : index
    %c0_379 = arith.constant 0 : index
    %513 = vector.load %arg19[%c1_377, %c0_378, %c0_379] : memref<2x1x64xf32, #tpu.memory_space<vmem>>, vector<1x1x64xf32>
    %514 = vector.shape_cast %513 : vector<1x1x64xf32> to vector<1x64xf32>
    %515 = vector.broadcast %514 : vector<1x64xf32> to vector<32x64xf32>
    %516 = arith.addf %512, %515 : vector<32x64xf32>
    %c0_380 = arith.constant 0 : index
    %c0_381 = arith.constant 0 : index
    %517 = vector.load %arg26[%c0_380, %c0_381] : memref<32x64xf32, #tpu.memory_space<vmem>>, vector<32x64xf32>
    tpu.vector_store %arg26[%c0_380, %c0_381], %516 {strides = array<i32>} : memref<32x64xf32, #tpu.memory_space<vmem>>, vector<32x64xf32>,
    %c0_382 = arith.constant 0 : index
    %518 = memref.load %arg1[%c0_382] : memref<2xi32, #tpu.memory_space<smem>>
    %519 = arith.index_cast %518 : i32 to index
    %c0_383 = arith.constant 0 : index
    %520 = vector.load %arg26[%519, %c0_383] : memref<32x64xf32, #tpu.memory_space<vmem>>, vector<1x64xf32>
    %c1_384 = arith.constant 1 : index
    %521 = memref.load %arg1[%c1_384] : memref<2xi32, #tpu.memory_space<smem>>
    %522 = arith.index_cast %521 : i32 to index
    %c0_385 = arith.constant 0 : index
    %523 = vector.load %arg26[%522, %c0_385] : memref<32x64xf32, #tpu.memory_space<vmem>>, vector<1x64xf32>
    %524 = tpu.concatenate %520, %523 in 0 : vector<1x64xf32>, vector<1x64xf32> -> vector<2x64xf32>
    %c0_386 = arith.constant 0 : index
    %c0_387 = arith.constant 0 : index
    %525 = vector.load %arg20[%c0_386, %c0_387] : memref<1x64xf32, #tpu.memory_space<vmem>>, vector<1x64xf32>
    %c0_388 = arith.constant 0 : index
    %c0_389 = arith.constant 0 : index
    %526 = vector.load %arg21[%c0_388, %c0_389] : memref<1x64xf32, #tpu.memory_space<vmem>>, vector<1x64xf32>
    %cst_390 = arith.constant dense<0.000000e+00> : vector<2xf32>
    %527 = vector.multi_reduction <add>, %524, %cst_390 [1] : vector<2x64xf32> to vector<2xf32>
    %528 = vector.shape_cast %527 : vector<2xf32> to vector<2x1xf32>
    %cst_391 = arith.constant 6.400000e+01 : f32
    %529 = vector.broadcast %cst_391 : f32 to vector<2x1xf32>
    %530 = arith.divf %528, %529 : vector<2x1xf32>
    %531 = vector.broadcast %530 : vector<2x1xf32> to vector<2x64xf32>
    %532 = arith.subf %524, %531 : vector<2x64xf32>
    %533 = arith.mulf %532, %532 : vector<2x64xf32>
    %cst_392 = arith.constant dense<0.000000e+00> : vector<2xf32>
    %534 = vector.multi_reduction <add>, %533, %cst_392 [1] : vector<2x64xf32> to vector<2xf32>
    %535 = vector.shape_cast %534 : vector<2xf32> to vector<2x1xf32>
    %cst_393 = arith.constant 6.400000e+01 : f32
    %536 = vector.broadcast %cst_393 : f32 to vector<2x1xf32>
    %537 = arith.divf %535, %536 : vector<2x1xf32>
    %538 = vector.broadcast %530 : vector<2x1xf32> to vector<2x64xf32>
    %539 = arith.subf %524, %538 : vector<2x64xf32>
    %cst_394 = arith.constant 9.99999974E-6 : f32
    %540 = vector.broadcast %cst_394 : f32 to vector<2x1xf32>
    %541 = arith.addf %537, %540 : vector<2x1xf32>
    %542 = math.rsqrt %541 : vector<2x1xf32>
    %543 = vector.broadcast %542 : vector<2x1xf32> to vector<2x64xf32>
    %544 = arith.mulf %539, %543 : vector<2x64xf32>
    %545 = vector.broadcast %525 : vector<1x64xf32> to vector<2x64xf32>
    %546 = arith.mulf %544, %545 : vector<2x64xf32>
    %547 = vector.broadcast %526 : vector<1x64xf32> to vector<2x64xf32>
    %548 = arith.addf %546, %547 : vector<2x64xf32>
    %549 = arith.truncf %548 : vector<2x64xf32> to vector<2x64xbf16>
    %c0_395 = arith.constant 0 : index
    %c0_396 = arith.constant 0 : index
    %550 = vector.load %arg22[%c0_395, %c0_396] : memref<64x64xbf16, #tpu.memory_space<vmem>>, vector<64x64xbf16>
    %cst_397 = arith.constant dense<0.000000e+00> : vector<2x64xf32>
    %551 = tpu.matmul %549, %550, %cst_397 {dimension_numbers = #tpu.dot_dimension_numbers<[1], [0], [0], [1], [0, 0, 1, 1], [], []>} : vector<2x64xbf16>, vector<64x64xbf16>, vector<2x64xf32> -> vector<2x64xf32>
    %c0_398 = arith.constant 0 : index
    %c0_399 = arith.constant 0 : index
    %552 = vector.load %arg3[%c0_398, %c0_399] : memref<2x1024xf32, #tpu.memory_space<vmem>>, vector<2x1024xf32>
    %553 = arith.truncf %552 : vector<2x1024xf32> to vector<2x1024xbf16>
    %c0_400 = arith.constant 0 : index
    %c0_401 = arith.constant 0 : index
    %554 = vector.load %arg23[%c0_400, %c0_401] : memref<1024x64xbf16, #tpu.memory_space<vmem>>, vector<1024x64xbf16>
    %cst_402 = arith.constant dense<0.000000e+00> : vector<2x64xf32>
    %555 = tpu.matmul %553, %554, %cst_402 {dimension_numbers = #tpu.dot_dimension_numbers<[1], [0], [0], [1], [0, 0, 1, 1], [], []>} : vector<2x1024xbf16>, vector<1024x64xbf16>, vector<2x64xf32> -> vector<2x64xf32>
    %c0_403 = arith.constant 0 : index
    %c0_404 = arith.constant 0 : index
    %556 = vector.load %arg24[%c0_403, %c0_404] : memref<1x64xf32, #tpu.memory_space<vmem>>, vector<1x64xf32>
    %557 = vector.broadcast %556 : vector<1x64xf32> to vector<2x64xf32>
    %558 = arith.addf %555, %557 : vector<2x64xf32>
    %559 = arith.mulf %551, %551 : vector<2x64xf32>
    %cst_405 = arith.constant dense<0.000000e+00> : vector<2xf32>
    %560 = vector.multi_reduction <add>, %559, %cst_405 [1] : vector<2x64xf32> to vector<2xf32>
    %561 = vector.shape_cast %560 : vector<2xf32> to vector<2x1xf32>
    %562 = math.rsqrt %561 : vector<2x1xf32>
    %563 = vector.broadcast %562 : vector<2x1xf32> to vector<2x64xf32>
    %564 = arith.mulf %551, %563 : vector<2x64xf32>
    %565 = arith.mulf %558, %558 : vector<2x64xf32>
    %cst_406 = arith.constant dense<0.000000e+00> : vector<2xf32>
    %566 = vector.multi_reduction <add>, %565, %cst_406 [1] : vector<2x64xf32> to vector<2xf32>
    %567 = vector.shape_cast %566 : vector<2xf32> to vector<2x1xf32>
    %568 = math.rsqrt %567 : vector<2x1xf32>
    %569 = vector.broadcast %568 : vector<2x1xf32> to vector<2x64xf32>
    %570 = arith.mulf %558, %569 : vector<2x64xf32>
    %c0_407 = arith.constant 0 : index
    %571 = memref.load %arg2[%c0_407] : memref<1xf32, #tpu.memory_space<smem>>
    %572 = vector.broadcast %571 : f32 to vector<1x1xf32>
    %573 = math.exp %572 : vector<1x1xf32>
    %cst_408 = arith.constant dense<0.000000e+00> : vector<2x2xf32>
    %574 = tpu.matmul %570, %564, %cst_408 {dimension_numbers = #tpu.dot_dimension_numbers<[1], [1], [0], [0], [0, 0, 1, 0], [], []>} : vector<2x64xf32>, vector<2x64xf32>, vector<2x2xf32> -> vector<2x2xf32>
    %575 = vector.broadcast %573 : vector<1x1xf32> to vector<2x2xf32>
    %576 = arith.mulf %575, %574 : vector<2x2xf32>
    %c0_409 = arith.constant 0 : index
    %c0_410 = arith.constant 0 : index
    %577 = vector.load %arg25[%c0_409, %c0_410] : memref<2x2xf32, #tpu.memory_space<vmem>>, vector<2x2xf32>
    tpu.vector_store %arg25[%c0_409, %c0_410], %576 {strides = array<i32>} : memref<2x2xf32, #tpu.memory_space<vmem>>, vector<2x2xf32>,
    return
  }
}

</mosaic_0001>

<llo_original>
// kernel: tpu_custom_call.1
$region0: #{tpu_custom_call.1}
  #allocation0 [shape = 'u32[]', space=smem, size = 0x4, offset = 0x4, fixed_abs, tag = 'smem constant byte address 0x4 - core index']
  #allocation1 [shape = 'u32[144,128]{1,0:T(1,128)}', space=vmem, size = 0x12000, scoped, tag = 'internal scratch']
  #allocation2 [shape = 'f32[32,64]{1,0:T(8,128)}', space=vmem, size = 0x4000, scoped, tag = 'scratch operand']
  #allocation3 [shape = 'f32[1]{0:T(128)S(6)}', space=smem, size = 0x200, scoped, tag = 'scoped memory for tpu_custom_call.1']
  %s0 = inlined_call_operand.vmem [shape: f32[32,64], index: 0, kind: input, shape index: {}]
  %s1 = inlined_call_operand.vmem [shape: s32[2], index: 1, kind: input, shape index: {}]
  %s2 = inlined_call_operand.<no memory space> [shape: f32[1], index: 2, kind: input, shape index: {}]
  %s3 = inlined_call_operand.vmem [shape: f32[2,1024], index: 3, kind: input, shape index: {}]
  %s4 = inlined_call_operand.vmem [shape: f32[2,1,64], index: 4, kind: input, shape index: {}]
  %s5 = inlined_call_operand.vmem [shape: f32[2,1,64], index: 5, kind: input, shape index: {}]
  %s6 = inlined_call_operand.vmem [shape: bf16[2,4,64,16], index: 6, kind: input, shape index: {}]
  %s7 = inlined_call_operand.vmem [shape: bf16[2,4,64,16], index: 7, kind: input, shape index: {}]
  %s8 = inlined_call_operand.vmem [shape: bf16[2,4,64,16], index: 8, kind: input, shape index: {}]
  %s9 = inlined_call_operand.vmem [shape: f32[2,4,1,16], index: 9, kind: input, shape index: {}]
  %s10 = inlined_call_operand.vmem [shape: f32[2,4,1,16], index: 10, kind: input, shape index: {}]
  %s11 = inlined_call_operand.vmem [shape: f32[2,4,1,16], index: 11, kind: input, shape index: {}]
  %s12 = inlined_call_operand.vmem [shape: bf16[2,4,16,64], index: 12, kind: input, shape index: {}]
  %s13 = inlined_call_operand.vmem [shape: f32[2,1,64], index: 13, kind: input, shape index: {}]
  %s14 = inlined_call_operand.vmem [shape: f32[2,1,64], index: 14, kind: input, shape index: {}]
  %s15 = inlined_call_operand.vmem [shape: f32[2,1,64], index: 15, kind: input, shape index: {}]
  %s16 = inlined_call_operand.vmem [shape: bf16[2,64,256], index: 16, kind: input, shape index: {}]
  %s17 = inlined_call_operand.vmem [shape: f32[2,1,256], index: 17, kind: input, shape index: {}]
  %s18 = inlined_call_operand.vmem [shape: bf16[2,256,64], index: 18, kind: input, shape index: {}]
  %s19 = inlined_call_operand.vmem [shape: f32[2,1,64], index: 19, kind: input, shape index: {}]
  %s20 = inlined_call_operand.vmem [shape: f32[1,64], index: 20, kind: input, shape index: {}]
  %s21 = inlined_call_operand.vmem [shape: f32[1,64], index: 21, kind: input, shape index: {}]
  %s22 = inlined_call_operand.vmem [shape: bf16[64,64], index: 22, kind: input, shape index: {}]
  %s23 = inlined_call_operand.vmem [shape: bf16[1024,64], index: 23, kind: input, shape index: {}]
  %s24 = inlined_call_operand.vmem [shape: f32[1,64], index: 24, kind: input, shape index: {}]
  %s25 = inlined_call_operand.hbm [shape: f32[2,2], index: 25, kind: output, shape index: {}]
  %s26 = sld [smem:[#allocation0]]
  $region114: #{tpu_custom_call.1} parent=0
    _
  %s28 = ssub.s32 1, %s26
  %s29 = scalar_select 0, %s28, %s26
  %30 = sst [smem:[#allocation3]] %s2
  $region1: #{tpu_custom_call.1} parent=0
    #allocation4 [shape = 'u8[512]{0}', space=smem, size = 0x200, scoped, tag = 'input window, operand 1, single buffered']
    #allocation5 [shape = 's32[1]{0}', space=sflag, size = 0x4, scoped, tag = 'scoped memory for tpu_custom_call.1']
    #allocation6 [shape = 's32[1]{0}', space=sflag, size = 0x4, scoped, tag = 'scoped memory for tpu_custom_call.1']
    #allocation7 [shape = 'u8[1024]{0}', space=vmem, size = 0x400, scoped, tag = 'output window, operand 0, single buffered']
    %31 = vsyncpa [#allocation6], 0
    %32 = vsyncpa [#allocation5], 0
    // Predicated region
    $region2: #{tpu_custom_call.1} parent=1 // pred_check
      _
    $region3: #{tpu_custom_call.1} parent=1 // pred_check_branch
      %34 = sbr.rel (0) target = $region5
    $region4: #{tpu_custom_call.1} parent=1 // pred_region
      _
    $region5: #{tpu_custom_call.1} parent=1 // pred_fallthru
      _
    // Predicated region
    $region6: #{tpu_custom_call.1} parent=1 // pred_check
      _
    $region7: #{tpu_custom_call.1} parent=1 // pred_check_branch
      %36 = sbr.rel (0) target = $region9
    $region8: #{tpu_custom_call.1} parent=1 // pred_region
      %s38 = ssub.s32 16, 16
      %39 = vsyncadd [#allocation6], %s38
      %s41 = sshll.u32 %s1, 4
      %s42 = int_to_ptr.vmem [resolvable:$true] %s41
      %44 = dma.vmem_to_smem %s42, 16, [#allocation4], [#allocation6]
    $region9: #{tpu_custom_call.1} parent=1 // pred_fallthru
      _
    // Predicated region
    $region10: #{tpu_custom_call.1} parent=1 // pred_check
      _
    $region11: #{tpu_custom_call.1} parent=1 // pred_check_branch
      %46 = sbr.rel (0) target = $region13
    $region12: #{tpu_custom_call.1} parent=1 // pred_region
      _
    $region13: #{tpu_custom_call.1} parent=1 // pred_fallthru
      _
    // Predicated region
    $region14: #{tpu_custom_call.1} parent=1 // pred_check
      _
    $region15: #{tpu_custom_call.1} parent=1 // pred_check_branch
      %48 = sbr.rel (0) target = $region17
    $region16: #{tpu_custom_call.1} parent=1 // pred_region
      _
    $region17: #{tpu_custom_call.1} parent=1 // pred_fallthru
      _
    // Predicated region
    $region18: #{tpu_custom_call.1} parent=1 // pred_check
      _
    $region19: #{tpu_custom_call.1} parent=1 // pred_check_branch
      %50 = sbr.rel (0) target = $region21
    $region20: #{tpu_custom_call.1} parent=1 // pred_region
      _
    $region21: #{tpu_custom_call.1} parent=1 // pred_fallthru
      _
    // Predicated region
    $region22: #{tpu_custom_call.1} parent=1 // pred_check
      _
    $region23: #{tpu_custom_call.1} parent=1 // pred_check_branch
      %52 = sbr.rel (0) target = $region25
    $region24: #{tpu_custom_call.1} parent=1 // pred_region
      _
    $region25: #{tpu_custom_call.1} parent=1 // pred_fallthru
      _
    // Predicated region
    $region26: #{tpu_custom_call.1} parent=1 // pred_check
      _
    $region27: #{tpu_custom_call.1} parent=1 // pred_check_branch
      %54 = sbr.rel (0) target = $region29
    $region28: #{tpu_custom_call.1} parent=1 // pred_region
      _
    $region29: #{tpu_custom_call.1} parent=1 // pred_fallthru
      _
    // Predicated region
    $region30: #{tpu_custom_call.1} parent=1 // pred_check
      _
    $region31: #{tpu_custom_call.1} parent=1 // pred_check_branch
      %56 = sbr.rel (0) target = $region33
    $region32: #{tpu_custom_call.1} parent=1 // pred_region
      _
    $region33: #{tpu_custom_call.1} parent=1 // pred_fallthru
      _
    // Predicated region
    $region34: #{tpu_custom_call.1} parent=1 // pred_check
      _
    $region35: #{tpu_custom_call.1} parent=1 // pred_check_branch
      %58 = sbr.rel (0) target = $region37
    $region36: #{tpu_custom_call.1} parent=1 // pred_region
      _
    $region37: #{tpu_custom_call.1} parent=1 // pred_fallthru
      _
    // Predicated region
    $region38: #{tpu_custom_call.1} parent=1 // pred_check
      _
    $region39: #{tpu_custom_call.1} parent=1 // pred_check_branch
      %60 = sbr.rel (0) target = $region41
    $region40: #{tpu_custom_call.1} parent=1 // pred_region
      _
    $region41: #{tpu_custom_call.1} parent=1 // pred_fallthru
      _
    // Predicated region
    $region42: #{tpu_custom_call.1} parent=1 // pred_check
      _
    $region43: #{tpu_custom_call.1} parent=1 // pred_check_branch
      %62 = sbr.rel (0) target = $region45
    $region44: #{tpu_custom_call.1} parent=1 // pred_region
      _
    $region45: #{tpu_custom_call.1} parent=1 // pred_fallthru
      _
    // Predicated region
    $region46: #{tpu_custom_call.1} parent=1 // pred_check
      _
    $region47: #{tpu_custom_call.1} parent=1 // pred_check_branch
      %64 = sbr.rel (0) target = $region49
    $region48: #{tpu_custom_call.1} parent=1 // pred_region
      _
    $region49: #{tpu_custom_call.1} parent=1 // pred_fallthru
      _
    // Predicated region
    $region50: #{tpu_custom_call.1} parent=1 // pred_check
      _
    $region51: #{tpu_custom_call.1} parent=1 // pred_check_branch
      %66 = sbr.rel (0) target = $region53
    $region52: #{tpu_custom_call.1} parent=1 // pred_region
      _
    $region53: #{tpu_custom_call.1} parent=1 // pred_fallthru
      _
    // Predicated region
    $region54: #{tpu_custom_call.1} parent=1 // pred_check
      _
    $region55: #{tpu_custom_call.1} parent=1 // pred_check_branch
      %68 = sbr.rel (0) target = $region57
    $region56: #{tpu_custom_call.1} parent=1 // pred_region
      _
    $region57: #{tpu_custom_call.1} parent=1 // pred_fallthru
      _
    // Predicated region
    $region58: #{tpu_custom_call.1} parent=1 // pred_check
      _
    $region59: #{tpu_custom_call.1} parent=1 // pred_check_branch
      %70 = sbr.rel (0) target = $region61
    $region60: #{tpu_custom_call.1} parent=1 // pred_region
      _
    $region61: #{tpu_custom_call.1} parent=1 // pred_fallthru
      _
    // Predicated region
    $region62: #{tpu_custom_call.1} parent=1 // pred_check
      _
    $region63: #{tpu_custom_call.1} parent=1 // pred_check_branch
      %72 = sbr.rel (0) target = $region65
    $region64: #{tpu_custom_call.1} parent=1 // pred_region
      _
    $region65: #{tpu_custom_call.1} parent=1 // pred_fallthru
      _
    // Predicated region
    $region66: #{tpu_custom_call.1} parent=1 // pred_check
      _
    $region67: #{tpu_custom_call.1} parent=1 // pred_check_branch
      %74 = sbr.rel (0) target = $region69
    $region68: #{tpu_custom_call.1} parent=1 // pred_region
      _
    $region69: #{tpu_custom_call.1} parent=1 // pred_fallthru
      _
    // Predicated region
    $region70: #{tpu_custom_call.1} parent=1 // pred_check
      _
    $region71: #{tpu_custom_call.1} parent=1 // pred_check_branch
      %76 = sbr.rel (0) target = $region73
    $region72: #{tpu_custom_call.1} parent=1 // pred_region
      _
    $region73: #{tpu_custom_call.1} parent=1 // pred_fallthru
      _
    // Predicated region
    $region74: #{tpu_custom_call.1} parent=1 // pred_check
      _
    $region75: #{tpu_custom_call.1} parent=1 // pred_check_branch
      %78 = sbr.rel (0) target = $region77
    $region76: #{tpu_custom_call.1} parent=1 // pred_region
      _
    $region77: #{tpu_custom_call.1} parent=1 // pred_fallthru
      _
    // Predicated region
    $region78: #{tpu_custom_call.1} parent=1 // pred_check
      _
    $region79: #{tpu_custom_call.1} parent=1 // pred_check_branch
      %80 = sbr.rel (0) target = $region81
    $region80: #{tpu_custom_call.1} parent=1 // pred_region
      _
    $region81: #{tpu_custom_call.1} parent=1 // pred_fallthru
      _
    // Predicated region
    $region82: #{tpu_custom_call.1} parent=1 // pred_check
      _
    $region83: #{tpu_custom_call.1} parent=1 // pred_check_branch
      %82 = sbr.rel (0) target = $region85
    $region84: #{tpu_custom_call.1} parent=1 // pred_region
      _
    $region85: #{tpu_custom_call.1} parent=1 // pred_fallthru
      _
    // Predicated region
    $region86: #{tpu_custom_call.1} parent=1 // pred_check
      _
    $region87: #{tpu_custom_call.1} parent=1 // pred_check_branch
      %84 = sbr.rel (0) target = $region89
    $region88: #{tpu_custom_call.1} parent=1 // pred_region
      _
    $region89: #{tpu_custom_call.1} parent=1 // pred_fallthru
      _
    // Predicated region
    $region90: #{tpu_custom_call.1} parent=1 // pred_check
      _
    $region91: #{tpu_custom_call.1} parent=1 // pred_check_branch
      %86 = sbr.rel (0) target = $region93
    $region92: #{tpu_custom_call.1} parent=1 // pred_region
      _
    $region93: #{tpu_custom_call.1} parent=1 // pred_fallthru
      _
    // Predicated region
    $region94: #{tpu_custom_call.1} parent=1 // pred_check
      _
    $region95: #{tpu_custom_call.1} parent=1 // pred_check_branch
      %88 = sbr.rel (0) target = $region97
    $region96: #{tpu_custom_call.1} parent=1 // pred_region
      _
    $region97: #{tpu_custom_call.1} parent=1 // pred_fallthru
      _
    // Predicated region
    $region98: #{tpu_custom_call.1} parent=1 // pred_check
      _
    $region99: #{tpu_custom_call.1} parent=1 // pred_check_branch
      %90 = sbr.rel (0) target = $region101
    $region100: #{tpu_custom_call.1} parent=1 // pred_region
      _
    $region101: #{tpu_custom_call.1} parent=1 // pred_fallthru
      _
    // Predicated region
    $region102: #{tpu_custom_call.1} parent=1 // pred_check
      _
    $region103: #{tpu_custom_call.1} parent=1 // pred_check_branch
      %92 = sbr.rel (0) target = $region105
    $region104: #{tpu_custom_call.1} parent=1 // pred_region
      %93 = dma.done [#allocation6], 16
    $region105: #{tpu_custom_call.1} parent=1 // pred_fallthru
      _
    %94 = sfence
    %v96 = vlaneseq
    %v97 = vshrl.u32 %v96, 7
    %v98 = vadd.s32 %v97, 8
    %v99 = vadd.s32 %v97, 16
    %v100 = vadd.s32 %v97, 24
    %v101 = vlaneseq
    %v102 = vand.u32 %v101, 127
    %v103 = vshra.s32 %v97, 4
    %v104 = vshra.s32 %v98, 4
    %v105 = vshra.s32 %v99, 4
    %v106 = vshra.s32 %v100, 4
    %v107 = vshra.s32 %v102, 4
    %vm108 = vcmp.eq.s32.totalorder %v103, %v107
    %vm109 = vcmp.eq.s32.totalorder %v104, %v107
    %vm110 = vcmp.eq.s32.totalorder %v105, %v107
    %vm111 = vcmp.eq.s32.totalorder %v106, %v107
    %vm112 = vcmp.le.s32.totalorder %v102, %v97
    %vm113 = vcmp.le.s32.totalorder %v102, %v98
    %vm114 = vcmp.le.s32.totalorder %v102, %v99
    %vm115 = vcmp.le.s32.totalorder %v102, %v100
    %vm116 = vmand %vm108, %vm112
    %vm117 = vmand %vm109, %vm113
    %vm118 = vmand %vm110, %vm114
    %vm119 = vmand %vm111, %vm115
    %v120 = vsel %vm116, 0.0, -1e+30
    %v121 = vsel %vm117, 0.0, -1e+30
    %v122 = vsel %vm118, 0.0, -1e+30
    %v123 = vsel %vm119, 0.0, -1e+30
    %v124 = vld [vmem:[%s0] sm:$0xff]
    %v125 = vld [vmem:[%s0 + $0x8] sm:$0xff]
    %v126 = vld [vmem:[%s0 + $0x10] sm:$0xff]
    %v127 = vld [vmem:[%s0 + $0x18] sm:$0xff]
    %v128 = vld [vmem:[%s4] sm:$0x1]
    %v129 = vld [vmem:[%s5] sm:$0x1]
    %vm130 = vcmask 523264
    %v131 = vsel %vm130, %v124, 0.0
    %132 = vadd.xlane.f32.xlu0 %v131
    %v133 = vpop.xlane.xlu0 %132
    %v134 = vsel %vm130, %v125, 0.0
    %135 = vadd.xlane.f32.xlu0 %v134
    %v136 = vpop.xlane.xlu0 %135
    %v137 = vsel %vm130, %v126, 0.0
    %138 = vadd.xlane.f32.xlu0 %v137
    %v139 = vpop.xlane.xlu0 %138
    %v140 = vsel %vm130, %v127, 0.0
    %141 = vadd.xlane.f32.xlu0 %v140
    %v142 = vpop.xlane.xlu0 %141
    %v143 = vrcp.pop 64.0
    %v144 = vmul.f32 %v133, %v143
    %v145 = vmul.f32 %v136, %v143
    %v146 = vmul.f32 %v139, %v143
    %v147 = vmul.f32 %v142, %v143
    %v148 = vsub.f32 %v124, %v144
    %v149 = vsub.f32 %v125, %v145
    %v150 = vsub.f32 %v126, %v146
    %v151 = vsub.f32 %v127, %v147
    %v152 = vmul.f32 %v148, %v148
    %v153 = vmul.f32 %v149, %v149
    %v154 = vmul.f32 %v150, %v150
    %v155 = vmul.f32 %v151, %v151
    %v156 = vsel %vm130, %v152, 0.0
    %157 = vadd.xlane.f32.xlu0 %v156
    %v158 = vpop.xlane.xlu0 %157
    %v159 = vsel %vm130, %v153, 0.0
    %160 = vadd.xlane.f32.xlu0 %v159
    %v161 = vpop.xlane.xlu0 %160
    %v162 = vsel %vm130, %v154, 0.0
    %163 = vadd.xlane.f32.xlu0 %v162
    %v164 = vpop.xlane.xlu0 %163
    %v165 = vsel %vm130, %v155, 0.0
    %166 = vadd.xlane.f32.xlu0 %v165
    %v167 = vpop.xlane.xlu0 %166
    %v168 = vmul.f32 %v158, %v143
    %v169 = vmul.f32 %v161, %v143
    %v170 = vmul.f32 %v164, %v143
    %v171 = vmul.f32 %v167, %v143
    %v172 = vadd.f32 %v168, 1e-05
    %v173 = vadd.f32 %v169, 1e-05
    %v174 = vadd.f32 %v170, 1e-05
    %v175 = vadd.f32 %v171, 1e-05
    %v176 = vrsqrt.pop %v172
    %v177 = vrsqrt.pop %v173
    %v178 = vrsqrt.pop %v174
    %v179 = vrsqrt.pop %v175
    %v180 = vmul.f32 %v148, %v176
    %v181 = vmul.f32 %v149, %v177
    %v182 = vmul.f32 %v150, %v178
    %v183 = vmul.f32 %v151, %v179
    %v185 = vlaneseq
    %v186 = vshrl.u32 %v185, 7
    %v187 = vsub.s32 0, %v186
    %v188 = vrot.slane %v128, %v187
    %v190 = vmul.f32 %v180, %v188
    %v191 = vmul.f32 %v181, %v188
    %v192 = vmul.f32 %v182, %v188
    %v193 = vmul.f32 %v183, %v188
    %v195 = vlaneseq
    %v196 = vshrl.u32 %v195, 7
    %v197 = vsub.s32 0, %v196
    %v198 = vrot.slane %v129, %v197
    %v200 = vadd.f32 %v190, %v198
    %v201 = vadd.f32 %v191, %v198
    %v202 = vadd.f32 %v192, %v198
    %v203 = vadd.f32 %v193, %v198
    %v204 = vpack.c.bf16 %v201, %v200
    %v205 = vpack.c.bf16 %v203, %v202
    %v206 = vld [vmem:[%s6] sm:$0xf]
    %v207 = vld [vmem:[%s6 + $0x4] sm:$0xf]
    %v208 = vld [vmem:[%s6 + $0x8] sm:$0xf]
    %v209 = vld [vmem:[%s6 + $0xc] sm:$0xf]
    %v210 = vld [vmem:[%s6 + $0x10] sm:$0xf]
    %v211 = vld [vmem:[%s6 + $0x14] sm:$0xf]
    %v212 = vld [vmem:[%s6 + $0x18] sm:$0xf]
    %v213 = vld [vmem:[%s6 + $0x1c] sm:$0xf]
    %v214 = vld [vmem:[%s9] sm:$0x1]
    %v216 = vlaneseq
    %v217 = vshrl.u32 %v216, 7
    %v218 = vsub.s32 0, %v217
    %v219 = vrot.slane %v214, %v218
    %v229 = vunpack.c.l.b16 %v206
    %v230 = vunpack.c.l.b16 %v207
    %v231 = vunpack.c.l.b16 %v208
    %v232 = vunpack.c.l.b16 %v209
    %v233 = vunpack.c.l.b16 %v210
    %v234 = vunpack.c.l.b16 %v211
    %v235 = vunpack.c.l.b16 %v212
    %v236 = vunpack.c.l.b16 %v213
    %v237 = vpack.c.b16 %v230, %v229
    %v238 = vpack.c.b16 %v232, %v231
    %v239 = vpack.c.b16 %v234, %v233
    %v240 = vpack.c.b16 %v236, %v235
    %v246 = vsel %vm130, %v204, 0
    %v249 = vsel %vm130, %v205, 0
    %251 = vmatprep.subr.bf16.mxu0 0
    %252 = vmatpush1.bf16.msra.mxu0 %v237
    %253 = vmatprep.subr.bf16.mxu0 0
    %254 = vmatpush1.bf16.msra.mxu0 %v238
    %255 = vmatprep.subr.bf16.mxu0 0
    %256 = vmatpush1.bf16.msra.mxu0 %v239
    %257 = vmatprep.subr.bf16.mxu0 0
    %258 = vmatpush1.bf16.msra.mxu0 %v240
    %259 = vmatprep.subr.bf16.mxu0 0
    %260 = vmatpush1.bf16.msra.mxu0 0
    %261 = vmatprep.subr.bf16.mxu0 0
    %262 = vmatpush1.bf16.msra.mxu0 0
    %263 = vmatprep.subr.bf16.mxu0 0
    %264 = vmatpush1.bf16.msra.mxu0 0
    %265 = vmatprep.subr.bf16.mxu0 0
    %266 = vmatpush1.bf16.msra.mxu0 0
    %267 = vmatprep.subr.bf16.mxu0 0
    %268 = vmatpush1.bf16.msra.mxu0 0
    %269 = vmatprep.subr.bf16.mxu0 0
    %270 = vmatpush1.bf16.msra.mxu0 0
    %271 = vmatprep.subr.bf16.mxu0 0
    %272 = vmatpush1.bf16.msra.mxu0 0
    %273 = vmatprep.subr.bf16.mxu0 0
    %274 = vmatpush1.bf16.msra.mxu0 0
    %275 = vmatprep.subr.bf16.mxu0 0
    %276 = vmatpush1.bf16.msra.mxu0 0
    %277 = vmatprep.subr.bf16.mxu0 0
    %278 = vmatpush1.bf16.msra.mxu0 0
    %279 = vmatprep.subr.bf16.mxu0 0
    %280 = vmatpush1.bf16.msra.mxu0 0
    %281 = vmatprep.subr.bf16.mxu0 0
    %282 = vmatpush1.bf16.msra.mxu0 0
    %283 = vmatprep.mubr.bf16.mxu0 0
    %284 = vmatmul.mubr.bf16.gmra.mrb[0].mxu0 %v246
    %v285 = vpop.f32.mrb[0].mxu0
    %v286 = vadd.f32 %v219, %v285
    %v287 = vpop.f32.mrb[0].mxu0
    %v288 = vpop.f32.mrb[0].mxu0
    %v289 = vadd.f32 %v219, %v288
    %v290 = vpop.f32.mrb[0].mxu0
    %291 = vmatprep.mubr.bf16.mxu0 0
    %292 = vmatmul.mubr.bf16.gmra.mrb[0].mxu0 %v249
    %v293 = vpop.f32.mrb[0].mxu0
    %v294 = vadd.f32 %v219, %v293
    %v295 = vpop.f32.mrb[0].mxu0
    %v296 = vpop.f32.mrb[0].mxu0
    %v297 = vadd.f32 %v219, %v296
    %v298 = vpop.f32.mrb[0].mxu0
    %299 = vdwg.mxu0
    %v300 = vld [vmem:[%s7] sm:$0xf]
    %v301 = vld [vmem:[%s7 + $0x4] sm:$0xf]
    %v302 = vld [vmem:[%s7 + $0x8] sm:$0xf]
    %v303 = vld [vmem:[%s7 + $0xc] sm:$0xf]
    %v304 = vld [vmem:[%s7 + $0x10] sm:$0xf]
    %v305 = vld [vmem:[%s7 + $0x14] sm:$0xf]
    %v306 = vld [vmem:[%s7 + $0x18] sm:$0xf]
    %v307 = vld [vmem:[%s7 + $0x1c] sm:$0xf]
    %v308 = vld [vmem:[%s10] sm:$0x1]
    %v310 = vlaneseq
    %v311 = vshrl.u32 %v310, 7
    %v312 = vsub.s32 0, %v311
    %v313 = vrot.slane %v308, %v312
    %v323 = vunpack.c.l.b16 %v300
    %v324 = vunpack.c.l.b16 %v301
    %v325 = vunpack.c.l.b16 %v302
    %v326 = vunpack.c.l.b16 %v303
    %v327 = vunpack.c.l.b16 %v304
    %v328 = vunpack.c.l.b16 %v305
    %v329 = vunpack.c.l.b16 %v306
    %v330 = vunpack.c.l.b16 %v307
    %v331 = vpack.c.b16 %v324, %v323
    %v332 = vpack.c.b16 %v326, %v325
    %v333 = vpack.c.b16 %v328, %v327
    %v334 = vpack.c.b16 %v330, %v329
    %339 = vmatprep.subr.bf16.mxu0 0
    %340 = vmatpush1.bf16.msra.mxu0 %v331
    %341 = vmatprep.subr.bf16.mxu0 0
    %342 = vmatpush1.bf16.msra.mxu0 %v332
    %343 = vmatprep.subr.bf16.mxu0 0
    %344 = vmatpush1.bf16.msra.mxu0 %v333
    %345 = vmatprep.subr.bf16.mxu0 0
    %346 = vmatpush1.bf16.msra.mxu0 %v334
    %347 = vmatprep.subr.bf16.mxu0 0
    %348 = vmatpush1.bf16.msra.mxu0 0
    %349 = vmatprep.subr.bf16.mxu0 0
    %350 = vmatpush1.bf16.msra.mxu0 0
    %351 = vmatprep.subr.bf16.mxu0 0
    %352 = vmatpush1.bf16.msra.mxu0 0
    %353 = vmatprep.subr.bf16.mxu0 0
    %354 = vmatpush1.bf16.msra.mxu0 0
    %355 = vmatprep.subr.bf16.mxu0 0
    %356 = vmatpush1.bf16.msra.mxu0 0
    %357 = vmatprep.subr.bf16.mxu0 0
    %358 = vmatpush1.bf16.msra.mxu0 0
    %359 = vmatprep.subr.bf16.mxu0 0
    %360 = vmatpush1.bf16.msra.mxu0 0
    %361 = vmatprep.subr.bf16.mxu0 0
    %362 = vmatpush1.bf16.msra.mxu0 0
    %363 = vmatprep.subr.bf16.mxu0 0
    %364 = vmatpush1.bf16.msra.mxu0 0
    %365 = vmatprep.subr.bf16.mxu0 0
    %366 = vmatpush1.bf16.msra.mxu0 0
    %367 = vmatprep.subr.bf16.mxu0 0
    %368 = vmatpush1.bf16.msra.mxu0 0
    %369 = vmatprep.subr.bf16.mxu0 0
    %370 = vmatpush1.bf16.msra.mxu0 0
    %371 = vmatprep.mubr.bf16.mxu0 0
    %372 = vmatmul.mubr.bf16.gmra.mrb[0].mxu0 %v246
    %v373 = vpop.f32.mrb[0].mxu0
    %v374 = vadd.f32 %v313, %v373
    %v375 = vpop.f32.mrb[0].mxu0
    %v376 = vpop.f32.mrb[0].mxu0
    %v377 = vadd.f32 %v313, %v376
    %v378 = vpop.f32.mrb[0].mxu0
    %379 = vmatprep.mubr.bf16.mxu0 0
    %380 = vmatmul.mubr.bf16.gmra.mrb[0].mxu0 %v249
    %v381 = vpop.f32.mrb[0].mxu0
    %v382 = vadd.f32 %v313, %v381
    %v383 = vpop.f32.mrb[0].mxu0
    %v384 = vpop.f32.mrb[0].mxu0
    %v385 = vadd.f32 %v313, %v384
    %v386 = vpop.f32.mrb[0].mxu0
    %387 = vdwg.mxu0
    %v388 = vld [vmem:[%s8] sm:$0xf]
    %v389 = vld [vmem:[%s8 + $0x4] sm:$0xf]
    %v390 = vld [vmem:[%s8 + $0x8] sm:$0xf]
    %v391 = vld [vmem:[%s8 + $0xc] sm:$0xf]
    %v392 = vld [vmem:[%s8 + $0x10] sm:$0xf]
    %v393 = vld [vmem:[%s8 + $0x14] sm:$0xf]
    %v394 = vld [vmem:[%s8 + $0x18] sm:$0xf]
    %v395 = vld [vmem:[%s8 + $0x1c] sm:$0xf]
    %v396 = vld [vmem:[%s11] sm:$0x1]
    %v398 = vlaneseq
    %v399 = vshrl.u32 %v398, 7
    %v400 = vsub.s32 0, %v399
    %v401 = vrot.slane %v396, %v400
    %v411 = vunpack.c.l.b16 %v388
    %v412 = vunpack.c.l.b16 %v389
    %v413 = vunpack.c.l.b16 %v390
    %v414 = vunpack.c.l.b16 %v391
    %v415 = vunpack.c.l.b16 %v392
    %v416 = vunpack.c.l.b16 %v393
    %v417 = vunpack.c.l.b16 %v394
    %v418 = vunpack.c.l.b16 %v395
    %v419 = vpack.c.b16 %v412, %v411
    %v420 = vpack.c.b16 %v414, %v413
    %v421 = vpack.c.b16 %v416, %v415
    %v422 = vpack.c.b16 %v418, %v417
    %427 = vmatprep.subr.bf16.mxu0 0
    %428 = vmatpush1.bf16.msra.mxu0 %v419
    %429 = vmatprep.subr.bf16.mxu0 0
    %430 = vmatpush1.bf16.msra.mxu0 %v420
    %431 = vmatprep.subr.bf16.mxu0 0
    %432 = vmatpush1.bf16.msra.mxu0 %v421
    %433 = vmatprep.subr.bf16.mxu0 0
    %434 = vmatpush1.bf16.msra.mxu0 %v422
    %435 = vmatprep.subr.bf16.mxu0 0
    %436 = vmatpush1.bf16.msra.mxu0 0
    %437 = vmatprep.subr.bf16.mxu0 0
    %438 = vmatpush1.bf16.msra.mxu0 0
    %439 = vmatprep.subr.bf16.mxu0 0
    %440 = vmatpush1.bf16.msra.mxu0 0
    %441 = vmatprep.subr.bf16.mxu0 0
    %442 = vmatpush1.bf16.msra.mxu0 0
    %443 = vmatprep.subr.bf16.mxu0 0
    %444 = vmatpush1.bf16.msra.mxu0 0
    %445 = vmatprep.subr.bf16.mxu0 0
    %446 = vmatpush1.bf16.msra.mxu0 0
    %447 = vmatprep.subr.bf16.mxu0 0
    %448 = vmatpush1.bf16.msra.mxu0 0
    %449 = vmatprep.subr.bf16.mxu0 0
    %450 = vmatpush1.bf16.msra.mxu0 0
    %451 = vmatprep.subr.bf16.mxu0 0
    %452 = vmatpush1.bf16.msra.mxu0 0
    %453 = vmatprep.subr.bf16.mxu0 0
    %454 = vmatpush1.bf16.msra.mxu0 0
    %455 = vmatprep.subr.bf16.mxu0 0
    %456 = vmatpush1.bf16.msra.mxu0 0
    %457 = vmatprep.subr.bf16.mxu0 0
    %458 = vmatpush1.bf16.msra.mxu0 0
    %459 = vmatprep.mubr.bf16.mxu0 0
    %460 = vmatmul.mubr.bf16.gmra.mrb[0].mxu0 %v246
    %v461 = vpop.f32.mrb[0].mxu0
    %v462 = vadd.f32 %v401, %v461
    %v463 = vpop.f32.mrb[0].mxu0
    %v464 = vpop.f32.mrb[0].mxu0
    %v465 = vadd.f32 %v401, %v464
    %v466 = vpop.f32.mrb[0].mxu0
    %467 = vmatprep.mubr.bf16.mxu0 0
    %468 = vmatmul.mubr.bf16.gmra.mrb[0].mxu0 %v249
    %v469 = vpop.f32.mrb[0].mxu0
    %v470 = vadd.f32 %v401, %v469
    %v471 = vpop.f32.mrb[0].mxu0
    %v472 = vpop.f32.mrb[0].mxu0
    %v473 = vadd.f32 %v401, %v472
    %v474 = vpop.f32.mrb[0].mxu0
    %475 = vdwg.mxu0
    %vm476 = vcmask 130048
    %v478 = vsel %vm476, %v286, 0
    %v481 = vsel %vm476, %v289, 0
    %v484 = vsel %vm476, %v294, 0
    %v487 = vsel %vm476, %v297, 0
    %v490 = vsel %vm476, %v374, 0
    %v493 = vsel %vm476, %v377, 0
    %v496 = vsel %vm476, %v382, 0
    %v499 = vsel %vm476, %v385, 0
    %501 = vmatprep.subr.mxu0 0.0
    %502 = vmatpush1.xpose.msra.mxu0 %v490
    %503 = vmatprep.subr.mxu0 0.0
    %504 = vmatpush1.xpose.msra.mxu0 %v493
    %505 = vmatprep.subr.mxu0 0.0
    %506 = vmatpush1.xpose.msra.mxu0 %v496
    %507 = vmatprep.subr.mxu0 0.0
    %508 = vmatpush1.xpose.msra.mxu0 %v499
    %509 = vmatprep.subr.mxu0 0.0
    %510 = vmatpush1.xpose.msra.mxu0 0.0
    %511 = vmatprep.subr.mxu0 0.0
    %512 = vmatpush1.xpose.msra.mxu0 0.0
    %513 = vmatprep.subr.mxu0 0.0
    %514 = vmatpush1.xpose.msra.mxu0 0.0
    %515 = vmatprep.subr.mxu0 0.0
    %516 = vmatpush1.xpose.msra.mxu0 0.0
    %517 = vmatprep.subr.mxu0 0.0
    %518 = vmatpush1.xpose.msra.mxu0 0.0
    %519 = vmatprep.subr.mxu0 0.0
    %520 = vmatpush1.xpose.msra.mxu0 0.0
    %521 = vmatprep.subr.mxu0 0.0
    %522 = vmatpush1.xpose.msra.mxu0 0.0
    %523 = vmatprep.subr.mxu0 0.0
    %524 = vmatpush1.xpose.msra.mxu0 0.0
    %525 = vmatprep.subr.mxu0 0.0
    %526 = vmatpush1.xpose.msra.mxu0 0.0
    %527 = vmatprep.subr.mxu0 0.0
    %528 = vmatpush1.xpose.msra.mxu0 0.0
    %529 = vmatprep.subr.mxu0 0.0
    %530 = vmatpush1.xpose.msra.mxu0 0.0
    %531 = vmatprep.subr.mxu0 0.0
    %532 = vmatpush1.xpose.msra.mxu0 0.0
    %533 = vmatprep.subr.mxu0 0.0
    %534 = vmatpush1.xpose.msra.mxu0 0.0
    %535 = vmatprep.subr.mxu0 0.0
    %536 = vmatpush1.xpose.msra.mxu0 0.0
    %537 = vmatprep.subr.mxu0 0.0
    %538 = vmatpush1.xpose.msra.mxu0 0.0
    %539 = vmatprep.subr.mxu0 0.0
    %540 = vmatpush1.xpose.msra.mxu0 0.0
    %541 = vmatprep.subr.mxu0 0.0
    %542 = vmatpush1.xpose.msra.mxu0 0.0
    %543 = vmatprep.subr.mxu0 0.0
    %544 = vmatpush1.xpose.msra.mxu0 0.0
    %545 = vmatprep.subr.mxu0 0.0
    %546 = vmatpush1.xpose.msra.mxu0 0.0
    %547 = vmatprep.subr.mxu0 0.0
    %548 = vmatpush1.xpose.msra.mxu0 0.0
    %549 = vmatprep.subr.mxu0 0.0
    %550 = vmatpush1.xpose.msra.mxu0 0.0
    %551 = vmatprep.subr.mxu0 0.0
    %552 = vmatpush1.xpose.msra.mxu0 0.0
    %553 = vmatprep.subr.mxu0 0.0
    %554 = vmatpush1.xpose.msra.mxu0 0.0
    %555 = vmatprep.subr.mxu0 0.0
    %556 = vmatpush1.xpose.msra.mxu0 0.0
    %557 = vmatprep.subr.mxu0 0.0
    %558 = vmatpush1.xpose.msra.mxu0 0.0
    %559 = vmatprep.subr.mxu0 0.0
    %560 = vmatpush1.xpose.msra.mxu0 0.0
    %561 = vmatprep.subr.mxu0 0.0
    %562 = vmatpush1.xpose.msra.mxu0 0.0
    %563 = vmatprep.subr.mxu0 0.0
    %564 = vmatpush1.xpose.msra.mxu0 0.0
    %565 = vmatprep.mubr.f32.mxu0 0.0
    %566 = vmatmul.mubr.f32.gmra.mrb[0].mxu0 %v478
    %v567 = vpop.f32.mrb[0].mxu0
    %v568 = vadd.f32 0.0, %v567
    %v569 = vpop.f32.mrb[0].mxu0
    %570 = vmatprep.mubr.f32.mxu0 0.0
    %571 = vmatmul.mubr.f32.gmra.mrb[0].mxu0 %v481
    %v572 = vpop.f32.mrb[0].mxu0
    %v573 = vadd.f32 0.0, %v572
    %v574 = vpop.f32.mrb[0].mxu0
    %575 = vmatprep.mubr.f32.mxu0 0.0
    %576 = vmatmul.mubr.f32.gmra.mrb[0].mxu0 %v484
    %v577 = vpop.f32.mrb[0].mxu0
    %v578 = vadd.f32 0.0, %v577
    %v579 = vpop.f32.mrb[0].mxu0
    %580 = vmatprep.mubr.f32.mxu0 0.0
    %581 = vmatmul.mubr.f32.gmra.mrb[0].mxu0 %v487
    %v582 = vpop.f32.mrb[0].mxu0
    %v583 = vadd.f32 0.0, %v582
    %v584 = vpop.f32.mrb[0].mxu0
    %585 = vdwg.mxu0
    %v586 = vmul.f32 %v568, 0.25
    %v587 = vmul.f32 %v573, 0.25
    %v588 = vmul.f32 %v578, 0.25
    %v589 = vmul.f32 %v583, 0.25
    %v590 = vadd.f32 %v586, %v120
    %v591 = vadd.f32 %v587, %v121
    %v592 = vadd.f32 %v588, %v122
    %v593 = vadd.f32 %v589, %v123
    %vm594 = vcmask 261120
    %v595 = vsel %vm594, %v590, -inf
    %596 = vmax.xlane.f32.xlu0 %v595
    %v597 = vpop.xlane.xlu0 %596
    %v598 = vsel %vm594, %v591, -inf
    %599 = vmax.xlane.f32.xlu0 %v598
    %v600 = vpop.xlane.xlu0 %599
    %v601 = vsel %vm594, %v592, -inf
    %602 = vmax.xlane.f32.xlu0 %v601
    %v603 = vpop.xlane.xlu0 %602
    %v604 = vsel %vm594, %v593, -inf
    %605 = vmax.xlane.f32.xlu0 %v604
    %v606 = vpop.xlane.xlu0 %605
    %v607 = vsub.f32 %v590, %v597
    %v608 = vsub.f32 %v591, %v600
    %v609 = vsub.f32 %v592, %v603
    %v610 = vsub.f32 %v593, %v606
    %v611 = vmul.f32 %v607, 1.442695
    %v612 = vpow.pop %v611
    %v613 = vmul.f32 %v608, 1.442695
    %v614 = vpow.pop %v613
    %v615 = vmul.f32 %v609, 1.442695
    %v616 = vpow.pop %v615
    %v617 = vmul.f32 %v610, 1.442695
    %v618 = vpow.pop %v617
    %v619 = vsel %vm594, %v612, 0.0
    %620 = vadd.xlane.f32.xlu0 %v619
    %v621 = vpop.xlane.xlu0 %620
    %v622 = vsel %vm594, %v614, 0.0
    %623 = vadd.xlane.f32.xlu0 %v622
    %v624 = vpop.xlane.xlu0 %623
    %v625 = vsel %vm594, %v616, 0.0
    %626 = vadd.xlane.f32.xlu0 %v625
    %v627 = vpop.xlane.xlu0 %626
    %v628 = vsel %vm594, %v618, 0.0
    %629 = vadd.xlane.f32.xlu0 %v628
    %v630 = vpop.xlane.xlu0 %629
    %v631 = vrcp.pop %v621
    %v632 = vmul.f32 %v612, %v631
    %v633 = vrcp.pop %v624
    %v634 = vmul.f32 %v614, %v633
    %v635 = vrcp.pop %v627
    %v636 = vmul.f32 %v616, %v635
    %v637 = vrcp.pop %v630
    %v638 = vmul.f32 %v618, %v637
    %v639 = vpack.c.bf16 %v634, %v632
    %v640 = vpack.c.bf16 %v638, %v636
    %v641 = vpack.c.bf16 %v465, %v462
    %v642 = vpack.c.bf16 %v473, %v470
    %v644 = vsel %vm594, %v639, 0
    %v647 = vsel %vm594, %v640, 0
    %649 = vmatprep.subr.bf16.mxu0 0
    %650 = vmatpush1.bf16.msra.mxu0 %v641
    %651 = vmatprep.subr.bf16.mxu0 0
    %652 = vmatpush1.bf16.msra.mxu0 %v642
    %653 = vmatprep.subr.bf16.mxu0 0
    %654 = vmatpush1.bf16.msra.mxu0 0
    %655 = vmatprep.subr.bf16.mxu0 0
    %656 = vmatpush1.bf16.msra.mxu0 0
    %657 = vmatprep.subr.bf16.mxu0 0
    %658 = vmatpush1.bf16.msra.mxu0 0
    %659 = vmatprep.subr.bf16.mxu0 0
    %660 = vmatpush1.bf16.msra.mxu0 0
    %661 = vmatprep.subr.bf16.mxu0 0
    %662 = vmatpush1.bf16.msra.mxu0 0
    %663 = vmatprep.subr.bf16.mxu0 0
    %664 = vmatpush1.bf16.msra.mxu0 0
    %665 = vmatprep.subr.bf16.mxu0 0
    %666 = vmatpush1.bf16.msra.mxu0 0
    %667 = vmatprep.subr.bf16.mxu0 0
    %668 = vmatpush1.bf16.msra.mxu0 0
    %669 = vmatprep.subr.bf16.mxu0 0
    %670 = vmatpush1.bf16.msra.mxu0 0
    %671 = vmatprep.subr.bf16.mxu0 0
    %672 = vmatpush1.bf16.msra.mxu0 0
    %673 = vmatprep.subr.bf16.mxu0 0
    %674 = vmatpush1.bf16.msra.mxu0 0
    %675 = vmatprep.subr.bf16.mxu0 0
    %676 = vmatpush1.bf16.msra.mxu0 0
    %677 = vmatprep.subr.bf16.mxu0 0
    %678 = vmatpush1.bf16.msra.mxu0 0
    %679 = vmatprep.subr.bf16.mxu0 0
    %680 = vmatpush1.bf16.msra.mxu0 0
    %681 = vmatprep.mubr.bf16.mxu0 0
    %682 = vmatmul.mubr.bf16.gmra.mrb[0].mxu0 %v644
    %v683 = vpop.f32.mrb[0].mxu0
    %v684 = vadd.f32 0.0, %v683
    %v685 = vpop.f32.mrb[0].mxu0
    %v686 = vpop.f32.mrb[0].mxu0
    %v687 = vadd.f32 0.0, %v686
    %v688 = vpop.f32.mrb[0].mxu0
    %689 = vmatprep.mubr.bf16.mxu0 0
    %690 = vmatmul.mubr.bf16.gmra.mrb[0].mxu0 %v647
    %v691 = vpop.f32.mrb[0].mxu0
    %v692 = vadd.f32 0.0, %v691
    %v693 = vpop.f32.mrb[0].mxu0
    %v694 = vpop.f32.mrb[0].mxu0
    %v695 = vadd.f32 0.0, %v694
    %v696 = vpop.f32.mrb[0].mxu0
    %697 = vdwg.mxu0
    %v698 = vpack.c.bf16 %v687, %v684
    %v699 = vpack.c.bf16 %v695, %v692
    %v700 = vld [vmem:[%s12] sm:$0xf]
    %v701 = vld [vmem:[%s12 + $0x4] sm:$0xf]
    %s702 = scalar_lea.vmem %s6, 32
    %v703 = vld [vmem:[%s702] sm:$0xf]
    %v704 = vld [vmem:[%s702 + $0x4] sm:$0xf]
    %v705 = vld [vmem:[%s702 + $0x8] sm:$0xf]
    %v706 = vld [vmem:[%s702 + $0xc] sm:$0xf]
    %v707 = vld [vmem:[%s702 + $0x10] sm:$0xf]
    %v708 = vld [vmem:[%s702 + $0x14] sm:$0xf]
    %v709 = vld [vmem:[%s702 + $0x18] sm:$0xf]
    %v710 = vld [vmem:[%s702 + $0x1c] sm:$0xf]
    %s711 = scalar_lea.vmem %s9, 1
    %v712 = vld [vmem:[%s711] sm:$0x1]
    %v714 = vlaneseq
    %v715 = vshrl.u32 %v714, 7
    %v716 = vsub.s32 0, %v715
    %v717 = vrot.slane %v712, %v716
    %v727 = vunpack.c.l.b16 %v703
    %v728 = vunpack.c.l.b16 %v704
    %v729 = vunpack.c.l.b16 %v705
    %v730 = vunpack.c.l.b16 %v706
    %v731 = vunpack.c.l.b16 %v707
    %v732 = vunpack.c.l.b16 %v708
    %v733 = vunpack.c.l.b16 %v709
    %v734 = vunpack.c.l.b16 %v710
    %v735 = vpack.c.b16 %v728, %v727
    %v736 = vpack.c.b16 %v730, %v729
    %v737 = vpack.c.b16 %v732, %v731
    %v738 = vpack.c.b16 %v734, %v733
    %743 = vmatprep.subr.bf16.mxu0 0
    %744 = vmatpush1.bf16.msra.mxu0 %v735
    %745 = vmatprep.subr.bf16.mxu0 0
    %746 = vmatpush1.bf16.msra.mxu0 %v736
    %747 = vmatprep.subr.bf16.mxu0 0
    %748 = vmatpush1.bf16.msra.mxu0 %v737
    %749 = vmatprep.subr.bf16.mxu0 0
    %750 = vmatpush1.bf16.msra.mxu0 %v738
    %751 = vmatprep.subr.bf16.mxu0 0
    %752 = vmatpush1.bf16.msra.mxu0 0
    %753 = vmatprep.subr.bf16.mxu0 0
    %754 = vmatpush1.bf16.msra.mxu0 0
    %755 = vmatprep.subr.bf16.mxu0 0
    %756 = vmatpush1.bf16.msra.mxu0 0
    %757 = vmatprep.subr.bf16.mxu0 0
    %758 = vmatpush1.bf16.msra.mxu0 0
    %759 = vmatprep.subr.bf16.mxu0 0
    %760 = vmatpush1.bf16.msra.mxu0 0
    %761 = vmatprep.subr.bf16.mxu0 0
    %762 = vmatpush1.bf16.msra.mxu0 0
    %763 = vmatprep.subr.bf16.mxu0 0
    %764 = vmatpush1.bf16.msra.mxu0 0
    %765 = vmatprep.subr.bf16.mxu0 0
    %766 = vmatpush1.bf16.msra.mxu0 0
    %767 = vmatprep.subr.bf16.mxu0 0
    %768 = vmatpush1.bf16.msra.mxu0 0
    %769 = vmatprep.subr.bf16.mxu0 0
    %770 = vmatpush1.bf16.msra.mxu0 0
    %771 = vmatprep.subr.bf16.mxu0 0
    %772 = vmatpush1.bf16.msra.mxu0 0
    %773 = vmatprep.subr.bf16.mxu0 0
    %774 = vmatpush1.bf16.msra.mxu0 0
    %775 = vmatprep.mubr.bf16.mxu0 0
    %776 = vmatmul.mubr.bf16.gmra.mrb[0].mxu0 %v246
    %v777 = vpop.f32.mrb[0].mxu0
    %v778 = vadd.f32 %v717, %v777
    %v779 = vpop.f32.mrb[0].mxu0
    %v780 = vpop.f32.mrb[0].mxu0
    %v781 = vadd.f32 %v717, %v780
    %v782 = vpop.f32.mrb[0].mxu0
    %783 = vmatprep.mubr.bf16.mxu0 0
    %784 = vmatmul.mubr.bf16.gmra.mrb[0].mxu0 %v249
    %v785 = vpop.f32.mrb[0].mxu0
    %v786 = vadd.f32 %v717, %v785
    %v787 = vpop.f32.mrb[0].mxu0
    %v788 = vpop.f32.mrb[0].mxu0
    %v789 = vadd.f32 %v717, %v788
    %v790 = vpop.f32.mrb[0].mxu0
    %791 = vdwg.mxu0
    %s792 = scalar_lea.vmem %s7, 32
    %v793 = vld [vmem:[%s792] sm:$0xf]
    %v794 = vld [vmem:[%s792 + $0x4] sm:$0xf]
    %v795 = vld [vmem:[%s792 + $0x8] sm:$0xf]
    %v796 = vld [vmem:[%s792 + $0xc] sm:$0xf]
    %v797 = vld [vmem:[%s792 + $0x10] sm:$0xf]
    %v798 = vld [vmem:[%s792 + $0x14] sm:$0xf]
    %v799 = vld [vmem:[%s792 + $0x18] sm:$0xf]
    %v800 = vld [vmem:[%s792 + $0x1c] sm:$0xf]
    %s801 = scalar_lea.vmem %s10, 1
    %v802 = vld [vmem:[%s801] sm:$0x1]
    %v804 = vlaneseq
    %v805 = vshrl.u32 %v804, 7
    %v806 = vsub.s32 0, %v805
    %v807 = vrot.slane %v802, %v806
    %v817 = vunpack.c.l.b16 %v793
    %v818 = vunpack.c.l.b16 %v794
    %v819 = vunpack.c.l.b16 %v795
    %v820 = vunpack.c.l.b16 %v796
    %v821 = vunpack.c.l.b16 %v797
    %v822 = vunpack.c.l.b16 %v798
    %v823 = vunpack.c.l.b16 %v799
    %v824 = vunpack.c.l.b16 %v800
    %v825 = vpack.c.b16 %v818, %v817
    %v826 = vpack.c.b16 %v820, %v819
    %v827 = vpack.c.b16 %v822, %v821
    %v828 = vpack.c.b16 %v824, %v823
    %833 = vmatprep.subr.bf16.mxu0 0
    %834 = vmatpush1.bf16.msra.mxu0 %v825
    %835 = vmatprep.subr.bf16.mxu0 0
    %836 = vmatpush1.bf16.msra.mxu0 %v826
    %837 = vmatprep.subr.bf16.mxu0 0
    %838 = vmatpush1.bf16.msra.mxu0 %v827
    %839 = vmatprep.subr.bf16.mxu0 0
    %840 = vmatpush1.bf16.msra.mxu0 %v828
    %841 = vmatprep.subr.bf16.mxu0 0
    %842 = vmatpush1.bf16.msra.mxu0 0
    %843 = vmatprep.subr.bf16.mxu0 0
    %844 = vmatpush1.bf16.msra.mxu0 0
    %845 = vmatprep.subr.bf16.mxu0 0
    %846 = vmatpush1.bf16.msra.mxu0 0
    %847 = vmatprep.subr.bf16.mxu0 0
    %848 = vmatpush1.bf16.msra.mxu0 0
    %849 = vmatprep.subr.bf16.mxu0 0
    %850 = vmatpush1.bf16.msra.mxu0 0
    %851 = vmatprep.subr.bf16.mxu0 0
    %852 = vmatpush1.bf16.msra.mxu0 0
    %853 = vmatprep.subr.bf16.mxu0 0
    %854 = vmatpush1.bf16.msra.mxu0 0
    %855 = vmatprep.subr.bf16.mxu0 0
    %856 = vmatpush1.bf16.msra.mxu0 0
    %857 = vmatprep.subr.bf16.mxu0 0
    %858 = vmatpush1.bf16.msra.mxu0 0
    %859 = vmatprep.subr.bf16.mxu0 0
    %860 = vmatpush1.bf16.msra.mxu0 0
    %861 = vmatprep.subr.bf16.mxu0 0
    %862 = vmatpush1.bf16.msra.mxu0 0
    %863 = vmatprep.subr.bf16.mxu0 0
    %864 = vmatpush1.bf16.msra.mxu0 0
    %865 = vmatprep.mubr.bf16.mxu0 0
    %866 = vmatmul.mubr.bf16.gmra.mrb[0].mxu0 %v246
    %v867 = vpop.f32.mrb[0].mxu0
    %v868 = vadd.f32 %v807, %v867
    %v869 = vpop.f32.mrb[0].mxu0
    %v870 = vpop.f32.mrb[0].mxu0
    %v871 = vadd.f32 %v807, %v870
    %v872 = vpop.f32.mrb[0].mxu0
    %873 = vmatprep.mubr.bf16.mxu0 0
    %874 = vmatmul.mubr.bf16.gmra.mrb[0].mxu0 %v249
    %v875 = vpop.f32.mrb[0].mxu0
    %v876 = vadd.f32 %v807, %v875
    %v877 = vpop.f32.mrb[0].mxu0
    %v878 = vpop.f32.mrb[0].mxu0
    %v879 = vadd.f32 %v807, %v878
    %v880 = vpop.f32.mrb[0].mxu0
    %881 = vdwg.mxu0
    %s882 = scalar_lea.vmem %s8, 32
    %v883 = vld [vmem:[%s882] sm:$0xf]
    %v884 = vld [vmem:[%s882 + $0x4] sm:$0xf]
    %v885 = vld [vmem:[%s882 + $0x8] sm:$0xf]
    %v886 = vld [vmem:[%s882 + $0xc] sm:$0xf]
    %v887 = vld [vmem:[%s882 + $0x10] sm:$0xf]
    %v888 = vld [vmem:[%s882 + $0x14] sm:$0xf]
    %v889 = vld [vmem:[%s882 + $0x18] sm:$0xf]
    %v890 = vld [vmem:[%s882 + $0x1c] sm:$0xf]
    %s891 = scalar_lea.vmem %s11, 1
    %v892 = vld [vmem:[%s891] sm:$0x1]
    %v894 = vlaneseq
    %v895 = vshrl.u32 %v894, 7
    %v896 = vsub.s32 0, %v895
    %v897 = vrot.slane %v892, %v896
    %v907 = vunpack.c.l.b16 %v883
    %v908 = vunpack.c.l.b16 %v884
    %v909 = vunpack.c.l.b16 %v885
    %v910 = vunpack.c.l.b16 %v886
    %v911 = vunpack.c.l.b16 %v887
    %v912 = vunpack.c.l.b16 %v888
    %v913 = vunpack.c.l.b16 %v889
    %v914 = vunpack.c.l.b16 %v890
    %v915 = vpack.c.b16 %v908, %v907
    %v916 = vpack.c.b16 %v910, %v909
    %v917 = vpack.c.b16 %v912, %v911
    %v918 = vpack.c.b16 %v914, %v913
    %923 = vmatprep.subr.bf16.mxu0 0
    %924 = vmatpush1.bf16.msra.mxu0 %v915
    %925 = vmatprep.subr.bf16.mxu0 0
    %926 = vmatpush1.bf16.msra.mxu0 %v916
    %927 = vmatprep.subr.bf16.mxu0 0
    %928 = vmatpush1.bf16.msra.mxu0 %v917
    %929 = vmatprep.subr.bf16.mxu0 0
    %930 = vmatpush1.bf16.msra.mxu0 %v918
    %931 = vmatprep.subr.bf16.mxu0 0
    %932 = vmatpush1.bf16.msra.mxu0 0
    %933 = vmatprep.subr.bf16.mxu0 0
    %934 = vmatpush1.bf16.msra.mxu0 0
    %935 = vmatprep.subr.bf16.mxu0 0
    %936 = vmatpush1.bf16.msra.mxu0 0
    %937 = vmatprep.subr.bf16.mxu0 0
    %938 = vmatpush1.bf16.msra.mxu0 0
    %939 = vmatprep.subr.bf16.mxu0 0
    %940 = vmatpush1.bf16.msra.mxu0 0
    %941 = vmatprep.subr.bf16.mxu0 0
    %942 = vmatpush1.bf16.msra.mxu0 0
    %943 = vmatprep.subr.bf16.mxu0 0
    %944 = vmatpush1.bf16.msra.mxu0 0
    %945 = vmatprep.subr.bf16.mxu0 0
    %946 = vmatpush1.bf16.msra.mxu0 0
    %947 = vmatprep.subr.bf16.mxu0 0
    %948 = vmatpush1.bf16.msra.mxu0 0
    %949 = vmatprep.subr.bf16.mxu0 0
    %950 = vmatpush1.bf16.msra.mxu0 0
    %951 = vmatprep.subr.bf16.mxu0 0
    %952 = vmatpush1.bf16.msra.mxu0 0
    %953 = vmatprep.subr.bf16.mxu0 0
    %954 = vmatpush1.bf16.msra.mxu0 0
    %955 = vmatprep.mubr.bf16.mxu0 0
    %956 = vmatmul.mubr.bf16.gmra.mrb[0].mxu0 %v246
    %v957 = vpop.f32.mrb[0].mxu0
    %v958 = vadd.f32 %v897, %v957
    %v959 = vpop.f32.mrb[0].mxu0
    %v960 = vpop.f32.mrb[0].mxu0
    %v961 = vadd.f32 %v897, %v960
    %v962 = vpop.f32.mrb[0].mxu0
    %963 = vmatprep.mubr.bf16.mxu0 0
    %964 = vmatmul.mubr.bf16.gmra.mrb[0].mxu0 %v249
    %v965 = vpop.f32.mrb[0].mxu0
    %v966 = vadd.f32 %v897, %v965
    %v967 = vpop.f32.mrb[0].mxu0
    %v968 = vpop.f32.mrb[0].mxu0
    %v969 = vadd.f32 %v897, %v968
    %v970 = vpop.f32.mrb[0].mxu0
    %971 = vdwg.mxu0
    %v973 = vsel %vm476, %v778, 0
    %v976 = vsel %vm476, %v781, 0
    %v979 = vsel %vm476, %v786, 0
    %v982 = vsel %vm476, %v789, 0
    %v985 = vsel %vm476, %v868, 0
    %v988 = vsel %vm476, %v871, 0
    %v991 = vsel %vm476, %v876, 0
    %v994 = vsel %vm476, %v879, 0
    %996 = vmatprep.subr.mxu0 0.0
    %997 = vmatpush1.xpose.msra.mxu0 %v985
    %998 = vmatprep.subr.mxu0 0.0
    %999 = vmatpush1.xpose.msra.mxu0 %v988
    %1000 = vmatprep.subr.mxu0 0.0
    %1001 = vmatpush1.xpose.msra.mxu0 %v991
    %1002 = vmatprep.subr.mxu0 0.0
    %1003 = vmatpush1.xpose.msra.mxu0 %v994
    %1004 = vmatprep.subr.mxu0 0.0
    %1005 = vmatpush1.xpose.msra.mxu0 0.0
    %1006 = vmatprep.subr.mxu0 0.0
    %1007 = vmatpush1.xpose.msra.mxu0 0.0
    %1008 = vmatprep.subr.mxu0 0.0
    %1009 = vmatpush1.xpose.msra.mxu0 0.0
    %1010 = vmatprep.subr.mxu0 0.0
    %1011 = vmatpush1.xpose.msra.mxu0 0.0
    %1012 = vmatprep.subr.mxu0 0.0
    %1013 = vmatpush1.xpose.msra.mxu0 0.0
    %1014 = vmatprep.subr.mxu0 0.0
    %1015 = vmatpush1.xpose.msra.mxu0 0.0
    %1016 = vmatprep.subr.mxu0 0.0
    %1017 = vmatpush1.xpose.msra.mxu0 0.0
    %1018 = vmatprep.subr.mxu0 0.0
    %1019 = vmatpush1.xpose.msra.mxu0 0.0
    %1020 = vmatprep.subr.mxu0 0.0
    %1021 = vmatpush1.xpose.msra.mxu0 0.0
    %1022 = vmatprep.subr.mxu0 0.0
    %1023 = vmatpush1.xpose.msra.mxu0 0.0
    %1024 = vmatprep.subr.mxu0 0.0
    %1025 = vmatpush1.xpose.msra.mxu0 0.0
    %1026 = vmatprep.subr.mxu0 0.0
    %1027 = vmatpush1.xpose.msra.mxu0 0.0
    %1028 = vmatprep.subr.mxu0 0.0
    %1029 = vmatpush1.xpose.msra.mxu0 0.0
    %1030 = vmatprep.subr.mxu0 0.0
    %1031 = vmatpush1.xpose.msra.mxu0 0.0
    %1032 = vmatprep.subr.mxu0 0.0
    %1033 = vmatpush1.xpose.msra.mxu0 0.0
    %1034 = vmatprep.subr.mxu0 0.0
    %1035 = vmatpush1.xpose.msra.mxu0 0.0
    %1036 = vmatprep.subr.mxu0 0.0
    %1037 = vmatpush1.xpose.msra.mxu0 0.0
    %1038 = vmatprep.subr.mxu0 0.0
    %1039 = vmatpush1.xpose.msra.mxu0 0.0
    %1040 = vmatprep.subr.mxu0 0.0
    %1041 = vmatpush1.xpose.msra.mxu0 0.0
    %1042 = vmatprep.subr.mxu0 0.0
    %1043 = vmatpush1.xpose.msra.mxu0 0.0
    %1044 = vmatprep.subr.mxu0 0.0
    %1045 = vmatpush1.xpose.msra.mxu0 0.0
    %1046 = vmatprep.subr.mxu0 0.0
    %1047 = vmatpush1.xpose.msra.mxu0 0.0
    %1048 = vmatprep.subr.mxu0 0.0
    %1049 = vmatpush1.xpose.msra.mxu0 0.0
    %1050 = vmatprep.subr.mxu0 0.0
    %1051 = vmatpush1.xpose.msra.mxu0 0.0
    %1052 = vmatprep.subr.mxu0 0.0
    %1053 = vmatpush1.xpose.msra.mxu0 0.0
    %1054 = vmatprep.subr.mxu0 0.0
    %1055 = vmatpush1.xpose.msra.mxu0 0.0
    %1056 = vmatprep.subr.mxu0 0.0
    %1057 = vmatpush1.xpose.msra.mxu0 0.0
    %1058 = vmatprep.subr.mxu0 0.0
    %1059 = vmatpush1.xpose.msra.mxu0 0.0
    %1060 = vmatprep.mubr.f32.mxu0 0.0
    %1061 = vmatmul.mubr.f32.gmra.mrb[0].mxu0 %v973
    %v1062 = vpop.f32.mrb[0].mxu0
    %v1063 = vadd.f32 0.0, %v1062
    %v1064 = vpop.f32.mrb[0].mxu0
    %1065 = vmatprep.mubr.f32.mxu0 0.0
    %1066 = vmatmul.mubr.f32.gmra.mrb[0].mxu0 %v976
    %v1067 = vpop.f32.mrb[0].mxu0
    %v1068 = vadd.f32 0.0, %v1067
    %v1069 = vpop.f32.mrb[0].mxu0
    %1070 = vmatprep.mubr.f32.mxu0 0.0
    %1071 = vmatmul.mubr.f32.gmra.mrb[0].mxu0 %v979
    %v1072 = vpop.f32.mrb[0].mxu0
    %v1073 = vadd.f32 0.0, %v1072
    %v1074 = vpop.f32.mrb[0].mxu0
    %1075 = vmatprep.mubr.f32.mxu0 0.0
    %1076 = vmatmul.mubr.f32.gmra.mrb[0].mxu0 %v982
    %v1077 = vpop.f32.mrb[0].mxu0
    %v1078 = vadd.f32 0.0, %v1077
    %v1079 = vpop.f32.mrb[0].mxu0
    %1080 = vdwg.mxu0
    %v1081 = vmul.f32 %v1063, 0.25
    %v1082 = vmul.f32 %v1068, 0.25
    %v1083 = vmul.f32 %v1073, 0.25
    %v1084 = vmul.f32 %v1078, 0.25
    %v1085 = vadd.f32 %v1081, %v120
    %v1086 = vadd.f32 %v1082, %v121
    %v1087 = vadd.f32 %v1083, %v122
    %v1088 = vadd.f32 %v1084, %v123
    %v1089 = vsel %vm594, %v1085, -inf
    %1090 = vmax.xlane.f32.xlu0 %v1089
    %v1091 = vpop.xlane.xlu0 %1090
    %v1092 = vsel %vm594, %v1086, -inf
    %1093 = vmax.xlane.f32.xlu0 %v1092
    %v1094 = vpop.xlane.xlu0 %1093
    %v1095 = vsel %vm594, %v1087, -inf
    %1096 = vmax.xlane.f32.xlu0 %v1095
    %v1097 = vpop.xlane.xlu0 %1096
    %v1098 = vsel %vm594, %v1088, -inf
    %1099 = vmax.xlane.f32.xlu0 %v1098
    %v1100 = vpop.xlane.xlu0 %1099
    %v1101 = vsub.f32 %v1085, %v1091
    %v1102 = vsub.f32 %v1086, %v1094
    %v1103 = vsub.f32 %v1087, %v1097
    %v1104 = vsub.f32 %v1088, %v1100
    %v1105 = vmul.f32 %v1101, 1.442695
    %v1106 = vpow.pop %v1105
    %v1107 = vmul.f32 %v1102, 1.442695
    %v1108 = vpow.pop %v1107
    %v1109 = vmul.f32 %v1103, 1.442695
    %v1110 = vpow.pop %v1109
    %v1111 = vmul.f32 %v1104, 1.442695
    %v1112 = vpow.pop %v1111
    %v1113 = vsel %vm594, %v1106, 0.0
    %1114 = vadd.xlane.f32.xlu0 %v1113
    %v1115 = vpop.xlane.xlu0 %1114
    %v1116 = vsel %vm594, %v1108, 0.0
    %1117 = vadd.xlane.f32.xlu0 %v1116
    %v1118 = vpop.xlane.xlu0 %1117
    %v1119 = vsel %vm594, %v1110, 0.0
    %1120 = vadd.xlane.f32.xlu0 %v1119
    %v1121 = vpop.xlane.xlu0 %1120
    %v1122 = vsel %vm594, %v1112, 0.0
    %1123 = vadd.xlane.f32.xlu0 %v1122
    %v1124 = vpop.xlane.xlu0 %1123
    %v1125 = vrcp.pop %v1115
    %v1126 = vmul.f32 %v1106, %v1125
    %v1127 = vrcp.pop %v1118
    %v1128 = vmul.f32 %v1108, %v1127
    %v1129 = vrcp.pop %v1121
    %v1130 = vmul.f32 %v1110, %v1129
    %v1131 = vrcp.pop %v1124
    %v1132 = vmul.f32 %v1112, %v1131
    %v1133 = vpack.c.bf16 %v1128, %v1126
    %v1134 = vpack.c.bf16 %v1132, %v1130
    %v1135 = vpack.c.bf16 %v961, %v958
    %v1136 = vpack.c.bf16 %v969, %v966
    %v1138 = vsel %vm594, %v1133, 0
    %v1141 = vsel %vm594, %v1134, 0
    %1143 = vmatprep.subr.bf16.mxu0 0
    %1144 = vmatpush1.bf16.msra.mxu0 %v1135
    %1145 = vmatprep.subr.bf16.mxu0 0
    %1146 = vmatpush1.bf16.msra.mxu0 %v1136
    %1147 = vmatprep.subr.bf16.mxu0 0
    %1148 = vmatpush1.bf16.msra.mxu0 0
    %1149 = vmatprep.subr.bf16.mxu0 0
    %1150 = vmatpush1.bf16.msra.mxu0 0
    %1151 = vmatprep.subr.bf16.mxu0 0
    %1152 = vmatpush1.bf16.msra.mxu0 0
    %1153 = vmatprep.subr.bf16.mxu0 0
    %1154 = vmatpush1.bf16.msra.mxu0 0
    %1155 = vmatprep.subr.bf16.mxu0 0
    %1156 = vmatpush1.bf16.msra.mxu0 0
    %1157 = vmatprep.subr.bf16.mxu0 0
    %1158 = vmatpush1.bf16.msra.mxu0 0
    %1159 = vmatprep.subr.bf16.mxu0 0
    %1160 = vmatpush1.bf16.msra.mxu0 0
    %1161 = vmatprep.subr.bf16.mxu0 0
    %1162 = vmatpush1.bf16.msra.mxu0 0
    %1163 = vmatprep.subr.bf16.mxu0 0
    %1164 = vmatpush1.bf16.msra.mxu0 0
    %1165 = vmatprep.subr.bf16.mxu0 0
    %1166 = vmatpush1.bf16.msra.mxu0 0
    %1167 = vmatprep.subr.bf16.mxu0 0
    %1168 = vmatpush1.bf16.msra.mxu0 0
    %1169 = vmatprep.subr.bf16.mxu0 0
    %1170 = vmatpush1.bf16.msra.mxu0 0
    %1171 = vmatprep.subr.bf16.mxu0 0
    %1172 = vmatpush1.bf16.msra.mxu0 0
    %1173 = vmatprep.subr.bf16.mxu0 0
    %1174 = vmatpush1.bf16.msra.mxu0 0
    %1175 = vmatprep.mubr.bf16.mxu0 0
    %1176 = vmatmul.mubr.bf16.gmra.mrb[0].mxu0 %v1138
    %v1177 = vpop.f32.mrb[0].mxu0
    %v1178 = vadd.f32 0.0, %v1177
    %v1179 = vpop.f32.mrb[0].mxu0
    %v1180 = vpop.f32.mrb[0].mxu0
    %v1181 = vadd.f32 0.0, %v1180
    %v1182 = vpop.f32.mrb[0].mxu0
    %1183 = vmatprep.mubr.bf16.mxu0 0
    %1184 = vmatmul.mubr.bf16.gmra.mrb[0].mxu0 %v1141
    %v1185 = vpop.f32.mrb[0].mxu0
    %v1186 = vadd.f32 0.0, %v1185
    %v1187 = vpop.f32.mrb[0].mxu0
    %v1188 = vpop.f32.mrb[0].mxu0
    %v1189 = vadd.f32 0.0, %v1188
    %v1190 = vpop.f32.mrb[0].mxu0
    %1191 = vdwg.mxu0
    %v1192 = vpack.c.bf16 %v1181, %v1178
    %v1193 = vpack.c.bf16 %v1189, %v1186
    %s1194 = scalar_lea.vmem %s12, 8
    %v1195 = vld [vmem:[%s1194] sm:$0xf]
    %v1196 = vld [vmem:[%s1194 + $0x4] sm:$0xf]
    %v1199 = vunpack.c.l.b16 %v1195
    %v1200 = vunpack.c.l.b16 %v1196
    %v1201 = vpack.c.b16 %v1200, %v1199
    %v1204 = vsel %vm476, %v1192, 0
    %v1207 = vsel %vm476, %v1193, 0
    %1209 = vmatprep.subr.bf16.mxu0 0
    %1210 = vmatpush1.bf16.msra.mxu0 %v1201
    %1211 = vmatprep.subr.bf16.mxu0 0
    %1212 = vmatpush1.bf16.msra.mxu0 0
    %1213 = vmatprep.subr.bf16.mxu0 0
    %1214 = vmatpush1.bf16.msra.mxu0 0
    %1215 = vmatprep.subr.bf16.mxu0 0
    %1216 = vmatpush1.bf16.msra.mxu0 0
    %1217 = vmatprep.subr.bf16.mxu0 0
    %1218 = vmatpush1.bf16.msra.mxu0 0
    %1219 = vmatprep.subr.bf16.mxu0 0
    %1220 = vmatpush1.bf16.msra.mxu0 0
    %1221 = vmatprep.subr.bf16.mxu0 0
    %1222 = vmatpush1.bf16.msra.mxu0 0
    %1223 = vmatprep.subr.bf16.mxu0 0
    %1224 = vmatpush1.bf16.msra.mxu0 0
    %1225 = vmatprep.subr.bf16.mxu0 0
    %1226 = vmatpush1.bf16.msra.mxu0 0
    %1227 = vmatprep.subr.bf16.mxu0 0
    %1228 = vmatpush1.bf16.msra.mxu0 0
    %1229 = vmatprep.subr.bf16.mxu0 0
    %1230 = vmatpush1.bf16.msra.mxu0 0
    %1231 = vmatprep.subr.bf16.mxu0 0
    %1232 = vmatpush1.bf16.msra.mxu0 0
    %1233 = vmatprep.subr.bf16.mxu0 0
    %1234 = vmatpush1.bf16.msra.mxu0 0
    %1235 = vmatprep.subr.bf16.mxu0 0
    %1236 = vmatpush1.bf16.msra.mxu0 0
    %1237 = vmatprep.subr.bf16.mxu0 0
    %1238 = vmatpush1.bf16.msra.mxu0 0
    %1239 = vmatprep.subr.bf16.mxu0 0
    %1240 = vmatpush1.bf16.msra.mxu0 0
    %1241 = vmatprep.mubr.bf16.mxu0 0
    %1242 = vmatmul.mubr.bf16.gmra.mrb[0].mxu0 %v1204
    %v1243 = vpop.f32.mrb[0].mxu0
    %v1244 = vadd.f32 0.0, %v1243
    %v1245 = vpop.f32.mrb[0].mxu0
    %v1246 = vpop.f32.mrb[0].mxu0
    %v1247 = vadd.f32 0.0, %v1246
    %v1248 = vpop.f32.mrb[0].mxu0
    %1249 = vmatprep.mubr.bf16.mxu0 0
    %1250 = vmatmul.mubr.bf16.gmra.mrb[0].mxu0 %v1207
    %v1251 = vpop.f32.mrb[0].mxu0
    %v1252 = vadd.f32 0.0, %v1251
    %v1253 = vpop.f32.mrb[0].mxu0
    %v1254 = vpop.f32.mrb[0].mxu0
    %v1255 = vadd.f32 0.0, %v1254
    %v1256 = vpop.f32.mrb[0].mxu0
    %1257 = vdwg.mxu0
    %v1260 = vunpack.c.l.b16 %v700
    %v1261 = vunpack.c.l.b16 %v701
    %v1262 = vpack.c.b16 %v1261, %v1260
    %v1265 = vsel %vm476, %v698, 0
    %v1268 = vsel %vm476, %v699, 0
    %1270 = vmatprep.subr.bf16.mxu0 0
    %1271 = vmatpush1.bf16.msra.mxu0 %v1262
    %1272 = vmatprep.subr.bf16.mxu0 0
    %1273 = vmatpush1.bf16.msra.mxu0 0
    %1274 = vmatprep.subr.bf16.mxu0 0
    %1275 = vmatpush1.bf16.msra.mxu0 0
    %1276 = vmatprep.subr.bf16.mxu0 0
    %1277 = vmatpush1.bf16.msra.mxu0 0
    %1278 = vmatprep.subr.bf16.mxu0 0
    %1279 = vmatpush1.bf16.msra.mxu0 0
    %1280 = vmatprep.subr.bf16.mxu0 0
    %1281 = vmatpush1.bf16.msra.mxu0 0
    %1282 = vmatprep.subr.bf16.mxu0 0
    %1283 = vmatpush1.bf16.msra.mxu0 0
    %1284 = vmatprep.subr.bf16.mxu0 0
    %1285 = vmatpush1.bf16.msra.mxu0 0
    %1286 = vmatprep.subr.bf16.mxu0 0
    %1287 = vmatpush1.bf16.msra.mxu0 0
    %1288 = vmatprep.subr.bf16.mxu0 0
    %1289 = vmatpush1.bf16.msra.mxu0 0
    %1290 = vmatprep.subr.bf16.mxu0 0
    %1291 = vmatpush1.bf16.msra.mxu0 0
    %1292 = vmatprep.subr.bf16.mxu0 0
    %1293 = vmatpush1.bf16.msra.mxu0 0
    %1294 = vmatprep.subr.bf16.mxu0 0
    %1295 = vmatpush1.bf16.msra.mxu0 0
    %1296 = vmatprep.subr.bf16.mxu0 0
    %1297 = vmatpush1.bf16.msra.mxu0 0
    %1298 = vmatprep.subr.bf16.mxu0 0
    %1299 = vmatpush1.bf16.msra.mxu0 0
    %1300 = vmatprep.subr.bf16.mxu0 0
    %1301 = vmatpush1.bf16.msra.mxu0 0
    %1302 = vmatprep.mubr.bf16.mxu0 0
    %1303 = vmatmul.mubr.bf16.gmra.mrb[0].mxu0 %v1265
    %v1304 = vpop.f32.mrb[0].mxu0
    %v1305 = vadd.f32 %v1244, %v1304
    %v1306 = vpop.f32.mrb[0].mxu0
    %v1307 = vpop.f32.mrb[0].mxu0
    %v1308 = vadd.f32 %v1247, %v1307
    %v1309 = vpop.f32.mrb[0].mxu0
    %1310 = vmatprep.mubr.bf16.mxu0 0
    %1311 = vmatmul.mubr.bf16.gmra.mrb[0].mxu0 %v1268
    %v1312 = vpop.f32.mrb[0].mxu0
    %v1313 = vadd.f32 %v1252, %v1312
    %v1314 = vpop.f32.mrb[0].mxu0
    %v1315 = vpop.f32.mrb[0].mxu0
    %v1316 = vadd.f32 %v1255, %v1315
    %v1317 = vpop.f32.mrb[0].mxu0
    %1318 = vdwg.mxu0
    %s1319 = scalar_lea.vmem %s6, 64
    %v1320 = vld [vmem:[%s1319] sm:$0xf]
    %v1321 = vld [vmem:[%s1319 + $0x4] sm:$0xf]
    %v1322 = vld [vmem:[%s1319 + $0x8] sm:$0xf]
    %v1323 = vld [vmem:[%s1319 + $0xc] sm:$0xf]
    %v1324 = vld [vmem:[%s1319 + $0x10] sm:$0xf]
    %v1325 = vld [vmem:[%s1319 + $0x14] sm:$0xf]
    %v1326 = vld [vmem:[%s1319 + $0x18] sm:$0xf]
    %v1327 = vld [vmem:[%s1319 + $0x1c] sm:$0xf]
    %s1328 = scalar_lea.vmem %s9, 2
    %v1329 = vld [vmem:[%s1328] sm:$0x1]
    %v1331 = vlaneseq
    %v1332 = vshrl.u32 %v1331, 7
    %v1333 = vsub.s32 0, %v1332
    %v1334 = vrot.slane %v1329, %v1333
    %v1344 = vunpack.c.l.b16 %v1320
    %v1345 = vunpack.c.l.b16 %v1321
    %v1346 = vunpack.c.l.b16 %v1322
    %v1347 = vunpack.c.l.b16 %v1323
    %v1348 = vunpack.c.l.b16 %v1324
    %v1349 = vunpack.c.l.b16 %v1325
    %v1350 = vunpack.c.l.b16 %v1326
    %v1351 = vunpack.c.l.b16 %v1327
    %v1352 = vpack.c.b16 %v1345, %v1344
    %v1353 = vpack.c.b16 %v1347, %v1346
    %v1354 = vpack.c.b16 %v1349, %v1348
    %v1355 = vpack.c.b16 %v1351, %v1350
    %1360 = vmatprep.subr.bf16.mxu0 0
    %1361 = vmatpush1.bf16.msra.mxu0 %v1352
    %1362 = vmatprep.subr.bf16.mxu0 0
    %1363 = vmatpush1.bf16.msra.mxu0 %v1353
    %1364 = vmatprep.subr.bf16.mxu0 0
    %1365 = vmatpush1.bf16.msra.mxu0 %v1354
    %1366 = vmatprep.subr.bf16.mxu0 0
    %1367 = vmatpush1.bf16.msra.mxu0 %v1355
    %1368 = vmatprep.subr.bf16.mxu0 0
    %1369 = vmatpush1.bf16.msra.mxu0 0
    %1370 = vmatprep.subr.bf16.mxu0 0
    %1371 = vmatpush1.bf16.msra.mxu0 0
    %1372 = vmatprep.subr.bf16.mxu0 0
    %1373 = vmatpush1.bf16.msra.mxu0 0
    %1374 = vmatprep.subr.bf16.mxu0 0
    %1375 = vmatpush1.bf16.msra.mxu0 0
    %1376 = vmatprep.subr.bf16.mxu0 0
    %1377 = vmatpush1.bf16.msra.mxu0 0
    %1378 = vmatprep.subr.bf16.mxu0 0
    %1379 = vmatpush1.bf16.msra.mxu0 0
    %1380 = vmatprep.subr.bf16.mxu0 0
    %1381 = vmatpush1.bf16.msra.mxu0 0
    %1382 = vmatprep.subr.bf16.mxu0 0
    %1383 = vmatpush1.bf16.msra.mxu0 0
    %1384 = vmatprep.subr.bf16.mxu0 0
    %1385 = vmatpush1.bf16.msra.mxu0 0
    %1386 = vmatprep.subr.bf16.mxu0 0
    %1387 = vmatpush1.bf16.msra.mxu0 0
    %1388 = vmatprep.subr.bf16.mxu0 0
    %1389 = vmatpush1.bf16.msra.mxu0 0
    %1390 = vmatprep.subr.bf16.mxu0 0
    %1391 = vmatpush1.bf16.msra.mxu0 0
    %1392 = vmatprep.mubr.bf16.mxu0 0
    %1393 = vmatmul.mubr.bf16.gmra.mrb[0].mxu0 %v246
    %v1394 = vpop.f32.mrb[0].mxu0
    %v1395 = vadd.f32 %v1334, %v1394
    %v1396 = vpop.f32.mrb[0].mxu0
    %v1397 = vpop.f32.mrb[0].mxu0
    %v1398 = vadd.f32 %v1334, %v1397
    %v1399 = vpop.f32.mrb[0].mxu0
    %1400 = vmatprep.mubr.bf16.mxu0 0
    %1401 = vmatmul.mubr.bf16.gmra.mrb[0].mxu0 %v249
    %v1402 = vpop.f32.mrb[0].mxu0
    %v1403 = vadd.f32 %v1334, %v1402
    %v1404 = vpop.f32.mrb[0].mxu0
    %v1405 = vpop.f32.mrb[0].mxu0
    %v1406 = vadd.f32 %v1334, %v1405
    %v1407 = vpop.f32.mrb[0].mxu0
    %1408 = vdwg.mxu0
    %s1409 = scalar_lea.vmem %s7, 64
    %v1410 = vld [vmem:[%s1409] sm:$0xf]
    %v1411 = vld [vmem:[%s1409 + $0x4] sm:$0xf]
    %v1412 = vld [vmem:[%s1409 + $0x8] sm:$0xf]
    %v1413 = vld [vmem:[%s1409 + $0xc] sm:$0xf]
    %v1414 = vld [vmem:[%s1409 + $0x10] sm:$0xf]
    %v1415 = vld [vmem:[%s1409 + $0x14] sm:$0xf]
    %v1416 = vld [vmem:[%s1409 + $0x18] sm:$0xf]
    %v1417 = vld [vmem:[%s1409 + $0x1c] sm:$0xf]
    %s1418 = scalar_lea.vmem %s10, 2
    %v1419 = vld [vmem:[%s1418] sm:$0x1]
    %v1421 = vlaneseq
    %v1422 = vshrl.u32 %v1421, 7
    %v1423 = vsub.s32 0, %v1422
    %v1424 = vrot.slane %v1419, %v1423
    %v1434 = vunpack.c.l.b16 %v1410
    %v1435 = vunpack.c.l.b16 %v1411
    %v1436 = vunpack.c.l.b16 %v1412
    %v1437 = vunpack.c.l.b16 %v1413
    %v1438 = vunpack.c.l.b16 %v1414
    %v1439 = vunpack.c.l.b16 %v1415
    %v1440 = vunpack.c.l.b16 %v1416
    %v1441 = vunpack.c.l.b16 %v1417
    %v1442 = vpack.c.b16 %v1435, %v1434
    %v1443 = vpack.c.b16 %v1437, %v1436
    %v1444 = vpack.c.b16 %v1439, %v1438
    %v1445 = vpack.c.b16 %v1441, %v1440
    %1450 = vmatprep.subr.bf16.mxu0 0
    %1451 = vmatpush1.bf16.msra.mxu0 %v1442
    %1452 = vmatprep.subr.bf16.mxu0 0
    %1453 = vmatpush1.bf16.msra.mxu0 %v1443
    %1454 = vmatprep.subr.bf16.mxu0 0
    %1455 = vmatpush1.bf16.msra.mxu0 %v1444
    %1456 = vmatprep.subr.bf16.mxu0 0
    %1457 = vmatpush1.bf16.msra.mxu0 %v1445
    %1458 = vmatprep.subr.bf16.mxu0 0
    %1459 = vmatpush1.bf16.msra.mxu0 0
    %1460 = vmatprep.subr.bf16.mxu0 0
    %1461 = vmatpush1.bf16.msra.mxu0 0
    %1462 = vmatprep.subr.bf16.mxu0 0
    %1463 = vmatpush1.bf16.msra.mxu0 0
    %1464 = vmatprep.subr.bf16.mxu0 0
    %1465 = vmatpush1.bf16.msra.mxu0 0
    %1466 = vmatprep.subr.bf16.mxu0 0
    %1467 = vmatpush1.bf16.msra.mxu0 0
    %1468 = vmatprep.subr.bf16.mxu0 0
    %1469 = vmatpush1.bf16.msra.mxu0 0
    %1470 = vmatprep.subr.bf16.mxu0 0
    %1471 = vmatpush1.bf16.msra.mxu0 0
    %1472 = vmatprep.subr.bf16.mxu0 0
    %1473 = vmatpush1.bf16.msra.mxu0 0
    %1474 = vmatprep.subr.bf16.mxu0 0
    %1475 = vmatpush1.bf16.msra.mxu0 0
    %1476 = vmatprep.subr.bf16.mxu0 0
    %1477 = vmatpush1.bf16.msra.mxu0 0
    %1478 = vmatprep.subr.bf16.mxu0 0
    %1479 = vmatpush1.bf16.msra.mxu0 0
    %1480 = vmatprep.subr.bf16.mxu0 0
    %1481 = vmatpush1.bf16.msra.mxu0 0
    %1482 = vmatprep.mubr.bf16.mxu0 0
    %1483 = vmatmul.mubr.bf16.gmra.mrb[0].mxu0 %v246
    %v1484 = vpop.f32.mrb[0].mxu0
    %v1485 = vadd.f32 %v1424, %v1484
    %v1486 = vpop.f32.mrb[0].mxu0
    %v1487 = vpop.f32.mrb[0].mxu0
    %v1488 = vadd.f32 %v1424, %v1487
    %v1489 = vpop.f32.mrb[0].mxu0
    %1490 = vmatprep.mubr.bf16.mxu0 0
    %1491 = vmatmul.mubr.bf16.gmra.mrb[0].mxu0 %v249
    %v1492 = vpop.f32.mrb[0].mxu0
    %v1493 = vadd.f32 %v1424, %v1492
    %v1494 = vpop.f32.mrb[0].mxu0
    %v1495 = vpop.f32.mrb[0].mxu0
    %v1496 = vadd.f32 %v1424, %v1495
    %v1497 = vpop.f32.mrb[0].mxu0
    %1498 = vdwg.mxu0
    %s1499 = scalar_lea.vmem %s8, 64
    %v1500 = vld [vmem:[%s1499] sm:$0xf]
    %v1501 = vld [vmem:[%s1499 + $0x4] sm:$0xf]
    %v1502 = vld [vmem:[%s1499 + $0x8] sm:$0xf]
    %v1503 = vld [vmem:[%s1499 + $0xc] sm:$0xf]
    %v1504 = vld [vmem:[%s1499 + $0x10] sm:$0xf]
    %v1505 = vld [vmem:[%s1499 + $0x14] sm:$0xf]
    %v1506 = vld [vmem:[%s1499 + $0x18] sm:$0xf]
    %v1507 = vld [vmem:[%s1499 + $0x1c] sm:$0xf]
    %s1508 = scalar_lea.vmem %s11, 2
    %v1509 = vld [vmem:[%s1508] sm:$0x1]
    %v1511 = vlaneseq
    %v1512 = vshrl.u32 %v1511, 7
    %v1513 = vsub.s32 0, %v1512
    %v1514 = vrot.slane %v1509, %v1513
    %v1524 = vunpack.c.l.b16 %v1500
    %v1525 = vunpack.c.l.b16 %v1501
    %v1526 = vunpack.c.l.b16 %v1502
    %v1527 = vunpack.c.l.b16 %v1503
    %v1528 = vunpack.c.l.b16 %v1504
    %v1529 = vunpack.c.l.b16 %v1505
    %v1530 = vunpack.c.l.b16 %v1506
    %v1531 = vunpack.c.l.b16 %v1507
    %v1532 = vpack.c.b16 %v1525, %v1524
    %v1533 = vpack.c.b16 %v1527, %v1526
    %v1534 = vpack.c.b16 %v1529, %v1528
    %v1535 = vpack.c.b16 %v1531, %v1530
    %1540 = vmatprep.subr.bf16.mxu0 0
    %1541 = vmatpush1.bf16.msra.mxu0 %v1532
    %1542 = vmatprep.subr.bf16.mxu0 0
    %1543 = vmatpush1.bf16.msra.mxu0 %v1533
    %1544 = vmatprep.subr.bf16.mxu0 0
    %1545 = vmatpush1.bf16.msra.mxu0 %v1534
    %1546 = vmatprep.subr.bf16.mxu0 0
    %1547 = vmatpush1.bf16.msra.mxu0 %v1535
    %1548 = vmatprep.subr.bf16.mxu0 0
    %1549 = vmatpush1.bf16.msra.mxu0 0
    %1550 = vmatprep.subr.bf16.mxu0 0
    %1551 = vmatpush1.bf16.msra.mxu0 0
    %1552 = vmatprep.subr.bf16.mxu0 0
    %1553 = vmatpush1.bf16.msra.mxu0 0
    %1554 = vmatprep.subr.bf16.mxu0 0
    %1555 = vmatpush1.bf16.msra.mxu0 0
    %1556 = vmatprep.subr.bf16.mxu0 0
    %1557 = vmatpush1.bf16.msra.mxu0 0
    %1558 = vmatprep.subr.bf16.mxu0 0
    %1559 = vmatpush1.bf16.msra.mxu0 0
    %1560 = vmatprep.subr.bf16.mxu0 0
    %1561 = vmatpush1.bf16.msra.mxu0 0
    %1562 = vmatprep.subr.bf16.mxu0 0
    %1563 = vmatpush1.bf16.msra.mxu0 0
    %1564 = vmatprep.subr.bf16.mxu0 0
    %1565 = vmatpush1.bf16.msra.mxu0 0
    %1566 = vmatprep.subr.bf16.mxu0 0
    %1567 = vmatpush1.bf16.msra.mxu0 0
    %1568 = vmatprep.subr.bf16.mxu0 0
    %1569 = vmatpush1.bf16.msra.mxu0 0
    %1570 = vmatprep.subr.bf16.mxu0 0
    %1571 = vmatpush1.bf16.msra.mxu0 0
    %1572 = vmatprep.mubr.bf16.mxu0 0
    %1573 = vmatmul.mubr.bf16.gmra.mrb[0].mxu0 %v246
    %v1574 = vpop.f32.mrb[0].mxu0
    %v1575 = vadd.f32 %v1514, %v1574
    %v1576 = vpop.f32.mrb[0].mxu0
    %v1577 = vpop.f32.mrb[0].mxu0
    %v1578 = vadd.f32 %v1514, %v1577
    %v1579 = vpop.f32.mrb[0].mxu0
    %1580 = vmatprep.mubr.bf16.mxu0 0
    %1581 = vmatmul.mubr.bf16.gmra.mrb[0].mxu0 %v249
    %v1582 = vpop.f32.mrb[0].mxu0
    %v1583 = vadd.f32 %v1514, %v1582
    %v1584 = vpop.f32.mrb[0].mxu0
    %v1585 = vpop.f32.mrb[0].mxu0
    %v1586 = vadd.f32 %v1514, %v1585
    %v1587 = vpop.f32.mrb[0].mxu0
    %1588 = vdwg.mxu0
    %v1590 = vsel %vm476, %v1395, 0
    %v1593 = vsel %vm476, %v1398, 0
    %v1596 = vsel %vm476, %v1403, 0
    %v1599 = vsel %vm476, %v1406, 0
    %v1602 = vsel %vm476, %v1485, 0
    %v1605 = vsel %vm476, %v1488, 0
    %v1608 = vsel %vm476, %v1493, 0
    %v1611 = vsel %vm476, %v1496, 0
    %1613 = vmatprep.subr.mxu0 0.0
    %1614 = vmatpush1.xpose.msra.mxu0 %v1602
    %1615 = vmatprep.subr.mxu0 0.0
    %1616 = vmatpush1.xpose.msra.mxu0 %v1605
    %1617 = vmatprep.subr.mxu0 0.0
    %1618 = vmatpush1.xpose.msra.mxu0 %v1608
    %1619 = vmatprep.subr.mxu0 0.0
    %1620 = vmatpush1.xpose.msra.mxu0 %v1611
    %1621 = vmatprep.subr.mxu0 0.0
    %1622 = vmatpush1.xpose.msra.mxu0 0.0
    %1623 = vmatprep.subr.mxu0 0.0
    %1624 = vmatpush1.xpose.msra.mxu0 0.0
    %1625 = vmatprep.subr.mxu0 0.0
    %1626 = vmatpush1.xpose.msra.mxu0 0.0
    %1627 = vmatprep.subr.mxu0 0.0
    %1628 = vmatpush1.xpose.msra.mxu0 0.0
    %1629 = vmatprep.subr.mxu0 0.0
    %1630 = vmatpush1.xpose.msra.mxu0 0.0
    %1631 = vmatprep.subr.mxu0 0.0
    %1632 = vmatpush1.xpose.msra.mxu0 0.0
    %1633 = vmatprep.subr.mxu0 0.0
    %1634 = vmatpush1.xpose.msra.mxu0 0.0
    %1635 = vmatprep.subr.mxu0 0.0
    %1636 = vmatpush1.xpose.msra.mxu0 0.0
    %1637 = vmatprep.subr.mxu0 0.0
    %1638 = vmatpush1.xpose.msra.mxu0 0.0
    %1639 = vmatprep.subr.mxu0 0.0
    %1640 = vmatpush1.xpose.msra.mxu0 0.0
    %1641 = vmatprep.subr.mxu0 0.0
    %1642 = vmatpush1.xpose.msra.mxu0 0.0
    %1643 = vmatprep.subr.mxu0 0.0
    %1644 = vmatpush1.xpose.msra.mxu0 0.0
    %1645 = vmatprep.subr.mxu0 0.0
    %1646 = vmatpush1.xpose.msra.mxu0 0.0
    %1647 = vmatprep.subr.mxu0 0.0
    %1648 = vmatpush1.xpose.msra.mxu0 0.0
    %1649 = vmatprep.subr.mxu0 0.0
    %1650 = vmatpush1.xpose.msra.mxu0 0.0
    %1651 = vmatprep.subr.mxu0 0.0
    %1652 = vmatpush1.xpose.msra.mxu0 0.0
    %1653 = vmatprep.subr.mxu0 0.0
    %1654 = vmatpush1.xpose.msra.mxu0 0.0
    %1655 = vmatprep.subr.mxu0 0.0
    %1656 = vmatpush1.xpose.msra.mxu0 0.0
    %1657 = vmatprep.subr.mxu0 0.0
    %1658 = vmatpush1.xpose.msra.mxu0 0.0
    %1659 = vmatprep.subr.mxu0 0.0
    %1660 = vmatpush1.xpose.msra.mxu0 0.0
    %1661 = vmatprep.subr.mxu0 0.0
    %1662 = vmatpush1.xpose.msra.mxu0 0.0
    %1663 = vmatprep.subr.mxu0 0.0
    %1664 = vmatpush1.xpose.msra.mxu0 0.0
    %1665 = vmatprep.subr.mxu0 0.0
    %1666 = vmatpush1.xpose.msra.mxu0 0.0
    %1667 = vmatprep.subr.mxu0 0.0
    %1668 = vmatpush1.xpose.msra.mxu0 0.0
    %1669 = vmatprep.subr.mxu0 0.0
    %1670 = vmatpush1.xpose.msra.mxu0 0.0
    %1671 = vmatprep.subr.mxu0 0.0
    %1672 = vmatpush1.xpose.msra.mxu0 0.0
    %1673 = vmatprep.subr.mxu0 0.0
    %1674 = vmatpush1.xpose.msra.mxu0 0.0
    %1675 = vmatprep.subr.mxu0 0.0
    %1676 = vmatpush1.xpose.msra.mxu0 0.0
    %1677 = vmatprep.mubr.f32.mxu0 0.0
    %1678 = vmatmul.mubr.f32.gmra.mrb[0].mxu0 %v1590
    %v1679 = vpop.f32.mrb[0].mxu0
    %v1680 = vadd.f32 0.0, %v1679
    %v1681 = vpop.f32.mrb[0].mxu0
    %1682 = vmatprep.mubr.f32.mxu0 0.0
    %1683 = vmatmul.mubr.f32.gmra.mrb[0].mxu0 %v1593
    %v1684 = vpop.f32.mrb[0].mxu0
    %v1685 = vadd.f32 0.0, %v1684
    %v1686 = vpop.f32.mrb[0].mxu0
    %1687 = vmatprep.mubr.f32.mxu0 0.0
    %1688 = vmatmul.mubr.f32.gmra.mrb[0].mxu0 %v1596
    %v1689 = vpop.f32.mrb[0].mxu0
    %v1690 = vadd.f32 0.0, %v1689
    %v1691 = vpop.f32.mrb[0].mxu0
    %1692 = vmatprep.mubr.f32.mxu0 0.0
    %1693 = vmatmul.mubr.f32.gmra.mrb[0].mxu0 %v1599
    %v1694 = vpop.f32.mrb[0].mxu0
    %v1695 = vadd.f32 0.0, %v1694
    %v1696 = vpop.f32.mrb[0].mxu0
    %1697 = vdwg.mxu0
    %v1698 = vmul.f32 %v1680, 0.25
    %v1699 = vmul.f32 %v1685, 0.25
    %v1700 = vmul.f32 %v1690, 0.25
    %v1701 = vmul.f32 %v1695, 0.25
    %v1702 = vadd.f32 %v1698, %v120
    %v1703 = vadd.f32 %v1699, %v121
    %v1704 = vadd.f32 %v1700, %v122
    %v1705 = vadd.f32 %v1701, %v123
    %v1706 = vsel %vm594, %v1702, -inf
    %1707 = vmax.xlane.f32.xlu0 %v1706
    %v1708 = vpop.xlane.xlu0 %1707
    %v1709 = vsel %vm594, %v1703, -inf
    %1710 = vmax.xlane.f32.xlu0 %v1709
    %v1711 = vpop.xlane.xlu0 %1710
    %v1712 = vsel %vm594, %v1704, -inf
    %1713 = vmax.xlane.f32.xlu0 %v1712
    %v1714 = vpop.xlane.xlu0 %1713
    %v1715 = vsel %vm594, %v1705, -inf
    %1716 = vmax.xlane.f32.xlu0 %v1715
    %v1717 = vpop.xlane.xlu0 %1716
    %v1718 = vsub.f32 %v1702, %v1708
    %v1719 = vsub.f32 %v1703, %v1711
    %v1720 = vsub.f32 %v1704, %v1714
    %v1721 = vsub.f32 %v1705, %v1717
    %v1722 = vmul.f32 %v1718, 1.442695
    %v1723 = vpow.pop %v1722
    %v1724 = vmul.f32 %v1719, 1.442695
    %v1725 = vpow.pop %v1724
    %v1726 = vmul.f32 %v1720, 1.442695
    %v1727 = vpow.pop %v1726
    %v1728 = vmul.f32 %v1721, 1.442695
    %v1729 = vpow.pop %v1728
    %v1730 = vsel %vm594, %v1723, 0.0
    %1731 = vadd.xlane.f32.xlu0 %v1730
    %v1732 = vpop.xlane.xlu0 %1731
    %v1733 = vsel %vm594, %v1725, 0.0
    %1734 = vadd.xlane.f32.xlu0 %v1733
    %v1735 = vpop.xlane.xlu0 %1734
    %v1736 = vsel %vm594, %v1727, 0.0
    %1737 = vadd.xlane.f32.xlu0 %v1736
    %v1738 = vpop.xlane.xlu0 %1737
    %v1739 = vsel %vm594, %v1729, 0.0
    %1740 = vadd.xlane.f32.xlu0 %v1739
    %v1741 = vpop.xlane.xlu0 %1740
    %v1742 = vrcp.pop %v1732
    %v1743 = vmul.f32 %v1723, %v1742
    %v1744 = vrcp.pop %v1735
    %v1745 = vmul.f32 %v1725, %v1744
    %v1746 = vrcp.pop %v1738
    %v1747 = vmul.f32 %v1727, %v1746
    %v1748 = vrcp.pop %v1741
    %v1749 = vmul.f32 %v1729, %v1748
    %v1750 = vpack.c.bf16 %v1745, %v1743
    %v1751 = vpack.c.bf16 %v1749, %v1747
    %v1752 = vpack.c.bf16 %v1578, %v1575
    %v1753 = vpack.c.bf16 %v1586, %v1583
    %v1755 = vsel %vm594, %v1750, 0
    %v1758 = vsel %vm594, %v1751, 0
    %1760 = vmatprep.subr.bf16.mxu0 0
    %1761 = vmatpush1.bf16.msra.mxu0 %v1752
    %1762 = vmatprep.subr.bf16.mxu0 0
    %1763 = vmatpush1.bf16.msra.mxu0 %v1753
    %1764 = vmatprep.subr.bf16.mxu0 0
    %1765 = vmatpush1.bf16.msra.mxu0 0
    %1766 = vmatprep.subr.bf16.mxu0 0
    %1767 = vmatpush1.bf16.msra.mxu0 0
    %1768 = vmatprep.subr.bf16.mxu0 0
    %1769 = vmatpush1.bf16.msra.mxu0 0
    %1770 = vmatprep.subr.bf16.mxu0 0
    %1771 = vmatpush1.bf16.msra.mxu0 0
    %1772 = vmatprep.subr.bf16.mxu0 0
    %1773 = vmatpush1.bf16.msra.mxu0 0
    %1774 = vmatprep.subr.bf16.mxu0 0
    %1775 = vmatpush1.bf16.msra.mxu0 0
    %1776 = vmatprep.subr.bf16.mxu0 0
    %1777 = vmatpush1.bf16.msra.mxu0 0
    %1778 = vmatprep.subr.bf16.mxu0 0
    %1779 = vmatpush1.bf16.msra.mxu0 0
    %1780 = vmatprep.subr.bf16.mxu0 0
    %1781 = vmatpush1.bf16.msra.mxu0 0
    %1782 = vmatprep.subr.bf16.mxu0 0
    %1783 = vmatpush1.bf16.msra.mxu0 0
    %1784 = vmatprep.subr.bf16.mxu0 0
    %1785 = vmatpush1.bf16.msra.mxu0 0
    %1786 = vmatprep.subr.bf16.mxu0 0
    %1787 = vmatpush1.bf16.msra.mxu0 0
    %1788 = vmatprep.subr.bf16.mxu0 0
    %1789 = vmatpush1.bf16.msra.mxu0 0
    %1790 = vmatprep.subr.bf16.mxu0 0
    %1791 = vmatpush1.bf16.msra.mxu0 0
    %1792 = vmatprep.mubr.bf16.mxu0 0
    %1793 = vmatmul.mubr.bf16.gmra.mrb[0].mxu0 %v1755
    %v1794 = vpop.f32.mrb[0].mxu0
    %v1795 = vadd.f32 0.0, %v1794
    %v1796 = vpop.f32.mrb[0].mxu0
    %v1797 = vpop.f32.mrb[0].mxu0
    %v1798 = vadd.f32 0.0, %v1797
    %v1799 = vpop.f32.mrb[0].mxu0
    %1800 = vmatprep.mubr.bf16.mxu0 0
    %1801 = vmatmul.mubr.bf16.gmra.mrb[0].mxu0 %v1758
    %v1802 = vpop.f32.mrb[0].mxu0
    %v1803 = vadd.f32 0.0, %v1802
    %v1804 = vpop.f32.mrb[0].mxu0
    %v1805 = vpop.f32.mrb[0].mxu0
    %v1806 = vadd.f32 0.0, %v1805
    %v1807 = vpop.f32.mrb[0].mxu0
    %1808 = vdwg.mxu0
    %v1809 = vpack.c.bf16 %v1798, %v1795
    %v1810 = vpack.c.bf16 %v1806, %v1803
    %s1811 = scalar_lea.vmem %s12, 16
    %v1812 = vld [vmem:[%s1811] sm:$0xf]
    %v1813 = vld [vmem:[%s1811 + $0x4] sm:$0xf]
    %v1816 = vunpack.c.l.b16 %v1812
    %v1817 = vunpack.c.l.b16 %v1813
    %v1818 = vpack.c.b16 %v1817, %v1816
    %v1821 = vsel %vm476, %v1809, 0
    %v1824 = vsel %vm476, %v1810, 0
    %1826 = vmatprep.subr.bf16.mxu0 0
    %1827 = vmatpush1.bf16.msra.mxu0 %v1818
    %1828 = vmatprep.subr.bf16.mxu0 0
    %1829 = vmatpush1.bf16.msra.mxu0 0
    %1830 = vmatprep.subr.bf16.mxu0 0
    %1831 = vmatpush1.bf16.msra.mxu0 0
    %1832 = vmatprep.subr.bf16.mxu0 0
    %1833 = vmatpush1.bf16.msra.mxu0 0
    %1834 = vmatprep.subr.bf16.mxu0 0
    %1835 = vmatpush1.bf16.msra.mxu0 0
    %1836 = vmatprep.subr.bf16.mxu0 0
    %1837 = vmatpush1.bf16.msra.mxu0 0
    %1838 = vmatprep.subr.bf16.mxu0 0
    %1839 = vmatpush1.bf16.msra.mxu0 0
    %1840 = vmatprep.subr.bf16.mxu0 0
    %1841 = vmatpush1.bf16.msra.mxu0 0
    %1842 = vmatprep.subr.bf16.mxu0 0
    %1843 = vmatpush1.bf16.msra.mxu0 0
    %1844 = vmatprep.subr.bf16.mxu0 0
    %1845 = vmatpush1.bf16.msra.mxu0 0
    %1846 = vmatprep.subr.bf16.mxu0 0
    %1847 = vmatpush1.bf16.msra.mxu0 0
    %1848 = vmatprep.subr.bf16.mxu0 0
    %1849 = vmatpush1.bf16.msra.mxu0 0
    %1850 = vmatprep.subr.bf16.mxu0 0
    %1851 = vmatpush1.bf16.msra.mxu0 0
    %1852 = vmatprep.subr.bf16.mxu0 0
    %1853 = vmatpush1.bf16.msra.mxu0 0
    %1854 = vmatprep.subr.bf16.mxu0 0
    %1855 = vmatpush1.bf16.msra.mxu0 0
    %1856 = vmatprep.subr.bf16.mxu0 0
    %1857 = vmatpush1.bf16.msra.mxu0 0
    %1858 = vmatprep.mubr.bf16.mxu0 0
    %1859 = vmatmul.mubr.bf16.gmra.mrb[0].mxu0 %v1821
    %v1860 = vpop.f32.mrb[0].mxu0
    %v1861 = vadd.f32 0.0, %v1860
    %v1862 = vpop.f32.mrb[0].mxu0
    %v1863 = vpop.f32.mrb[0].mxu0
    %v1864 = vadd.f32 0.0, %v1863
    %v1865 = vpop.f32.mrb[0].mxu0
    %1866 = vmatprep.mubr.bf16.mxu0 0
    %1867 = vmatmul.mubr.bf16.gmra.mrb[0].mxu0 %v1824
    %v1868 = vpop.f32.mrb[0].mxu0
    %v1869 = vadd.f32 0.0, %v1868
    %v1870 = vpop.f32.mrb[0].mxu0
    %v1871 = vpop.f32.mrb[0].mxu0
    %v1872 = vadd.f32 0.0, %v1871
    %v1873 = vpop.f32.mrb[0].mxu0
    %1874 = vdwg.mxu0
    %v1875 = vadd.f32 %v1305, %v1861
    %v1876 = vadd.f32 %v1308, %v1864
    %v1877 = vadd.f32 %v1313, %v1869
    %v1878 = vadd.f32 %v1316, %v1872
    %s1879 = scalar_lea.vmem %s6, 96
    %v1880 = vld [vmem:[%s1879] sm:$0xf]
    %v1881 = vld [vmem:[%s1879 + $0x4] sm:$0xf]
    %v1882 = vld [vmem:[%s1879 + $0x8] sm:$0xf]
    %v1883 = vld [vmem:[%s1879 + $0xc] sm:$0xf]
    %v1884 = vld [vmem:[%s1879 + $0x10] sm:$0xf]
    %v1885 = vld [vmem:[%s1879 + $0x14] sm:$0xf]
    %v1886 = vld [vmem:[%s1879 + $0x18] sm:$0xf]
    %v1887 = vld [vmem:[%s1879 + $0x1c] sm:$0xf]
    %s1888 = scalar_lea.vmem %s9, 3
    %v1889 = vld [vmem:[%s1888] sm:$0x1]
    %v1891 = vlaneseq
    %v1892 = vshrl.u32 %v1891, 7
    %v1893 = vsub.s32 0, %v1892
    %v1894 = vrot.slane %v1889, %v1893
    %v1904 = vunpack.c.l.b16 %v1880
    %v1905 = vunpack.c.l.b16 %v1881
    %v1906 = vunpack.c.l.b16 %v1882
    %v1907 = vunpack.c.l.b16 %v1883
    %v1908 = vunpack.c.l.b16 %v1884
    %v1909 = vunpack.c.l.b16 %v1885
    %v1910 = vunpack.c.l.b16 %v1886
    %v1911 = vunpack.c.l.b16 %v1887
    %v1912 = vpack.c.b16 %v1905, %v1904
    %v1913 = vpack.c.b16 %v1907, %v1906
    %v1914 = vpack.c.b16 %v1909, %v1908
    %v1915 = vpack.c.b16 %v1911, %v1910
    %1920 = vmatprep.subr.bf16.mxu0 0
    %1921 = vmatpush1.bf16.msra.mxu0 %v1912
    %1922 = vmatprep.subr.bf16.mxu0 0
    %1923 = vmatpush1.bf16.msra.mxu0 %v1913
    %1924 = vmatprep.subr.bf16.mxu0 0
    %1925 = vmatpush1.bf16.msra.mxu0 %v1914
    %1926 = vmatprep.subr.bf16.mxu0 0
    %1927 = vmatpush1.bf16.msra.mxu0 %v1915
    %1928 = vmatprep.subr.bf16.mxu0 0
    %1929 = vmatpush1.bf16.msra.mxu0 0
    %1930 = vmatprep.subr.bf16.mxu0 0
    %1931 = vmatpush1.bf16.msra.mxu0 0
    %1932 = vmatprep.subr.bf16.mxu0 0
    %1933 = vmatpush1.bf16.msra.mxu0 0
    %1934 = vmatprep.subr.bf16.mxu0 0
    %1935 = vmatpush1.bf16.msra.mxu0 0
    %1936 = vmatprep.subr.bf16.mxu0 0
    %1937 = vmatpush1.bf16.msra.mxu0 0
    %1938 = vmatprep.subr.bf16.mxu0 0
    %1939 = vmatpush1.bf16.msra.mxu0 0
    %1940 = vmatprep.subr.bf16.mxu0 0
    %1941 = vmatpush1.bf16.msra.mxu0 0
    %1942 = vmatprep.subr.bf16.mxu0 0
    %1943 = vmatpush1.bf16.msra.mxu0 0
    %1944 = vmatprep.subr.bf16.mxu0 0
    %1945 = vmatpush1.bf16.msra.mxu0 0
    %1946 = vmatprep.subr.bf16.mxu0 0
    %1947 = vmatpush1.bf16.msra.mxu0 0
    %1948 = vmatprep.subr.bf16.mxu0 0
    %1949 = vmatpush1.bf16.msra.mxu0 0
    %1950 = vmatprep.subr.bf16.mxu0 0
    %1951 = vmatpush1.bf16.msra.mxu0 0
    %1952 = vmatprep.mubr.bf16.mxu0 0
    %1953 = vmatmul.mubr.bf16.gmra.mrb[0].mxu0 %v246
    %v1954 = vpop.f32.mrb[0].mxu0
    %v1955 = vadd.f32 %v1894, %v1954
    %v1956 = vpop.f32.mrb[0].mxu0
    %v1957 = vpop.f32.mrb[0].mxu0
    %v1958 = vadd.f32 %v1894, %v1957
    %v1959 = vpop.f32.mrb[0].mxu0
    %1960 = vmatprep.mubr.bf16.mxu0 0
    %1961 = vmatmul.mubr.bf16.gmra.mrb[0].mxu0 %v249
    %v1962 = vpop.f32.mrb[0].mxu0
    %v1963 = vadd.f32 %v1894, %v1962
    %v1964 = vpop.f32.mrb[0].mxu0
    %v1965 = vpop.f32.mrb[0].mxu0
    %v1966 = vadd.f32 %v1894, %v1965
    %v1967 = vpop.f32.mrb[0].mxu0
    %1968 = vdwg.mxu0
    %s1969 = scalar_lea.vmem %s7, 96
    %v1970 = vld [vmem:[%s1969] sm:$0xf]
    %v1971 = vld [vmem:[%s1969 + $0x4] sm:$0xf]
    %v1972 = vld [vmem:[%s1969 + $0x8] sm:$0xf]
    %v1973 = vld [vmem:[%s1969 + $0xc] sm:$0xf]
    %v1974 = vld [vmem:[%s1969 + $0x10] sm:$0xf]
    %v1975 = vld [vmem:[%s1969 + $0x14] sm:$0xf]
    %v1976 = vld [vmem:[%s1969 + $0x18] sm:$0xf]
    %v1977 = vld [vmem:[%s1969 + $0x1c] sm:$0xf]
    %s1978 = scalar_lea.vmem %s10, 3
    %v1979 = vld [vmem:[%s1978] sm:$0x1]
    %v1981 = vlaneseq
    %v1982 = vshrl.u32 %v1981, 7
    %v1983 = vsub.s32 0, %v1982
    %v1984 = vrot.slane %v1979, %v1983
    %v1994 = vunpack.c.l.b16 %v1970
    %v1995 = vunpack.c.l.b16 %v1971
    %v1996 = vunpack.c.l.b16 %v1972
    %v1997 = vunpack.c.l.b16 %v1973
    %v1998 = vunpack.c.l.b16 %v1974
    %v1999 = vunpack.c.l.b16 %v1975
    %v2000 = vunpack.c.l.b16 %v1976
    %v2001 = vunpack.c.l.b16 %v1977
    %v2002 = vpack.c.b16 %v1995, %v1994
    %v2003 = vpack.c.b16 %v1997, %v1996
    %v2004 = vpack.c.b16 %v1999, %v1998
    %v2005 = vpack.c.b16 %v2001, %v2000
    %2010 = vmatprep.subr.bf16.mxu0 0
    %2011 = vmatpush1.bf16.msra.mxu0 %v2002
    %2012 = vmatprep.subr.bf16.mxu0 0
    %2013 = vmatpush1.bf16.msra.mxu0 %v2003
    %2014 = vmatprep.subr.bf16.mxu0 0
    %2015 = vmatpush1.bf16.msra.mxu0 %v2004
    %2016 = vmatprep.subr.bf16.mxu0 0
    %2017 = vmatpush1.bf16.msra.mxu0 %v2005
    %2018 = vmatprep.subr.bf16.mxu0 0
    %2019 = vmatpush1.bf16.msra.mxu0 0
    %2020 = vmatprep.subr.bf16.mxu0 0
    %2021 = vmatpush1.bf16.msra.mxu0 0
    %2022 = vmatprep.subr.bf16.mxu0 0
    %2023 = vmatpush1.bf16.msra.mxu0 0
    %2024 = vmatprep.subr.bf16.mxu0 0
    %2025 = vmatpush1.bf16.msra.mxu0 0
    %2026 = vmatprep.subr.bf16.mxu0 0
    %2027 = vmatpush1.bf16.msra.mxu0 0
    %2028 = vmatprep.subr.bf16.mxu0 0
    %2029 = vmatpush1.bf16.msra.mxu0 0
    %2030 = vmatprep.subr.bf16.mxu0 0
    %2031 = vmatpush1.bf16.msra.mxu0 0
    %2032 = vmatprep.subr.bf16.mxu0 0
    %2033 = vmatpush1.bf16.msra.mxu0 0
    %2034 = vmatprep.subr.bf16.mxu0 0
    %2035 = vmatpush1.bf16.msra.mxu0 0
    %2036 = vmatprep.subr.bf16.mxu0 0
    %2037 = vmatpush1.bf16.msra.mxu0 0
    %2038 = vmatprep.subr.bf16.mxu0 0
    %2039 = vmatpush1.bf16.msra.mxu0 0
    %2040 = vmatprep.subr.bf16.mxu0 0
    %2041 = vmatpush1.bf16.msra.mxu0 0
    %2042 = vmatprep.mubr.bf16.mxu0 0
    %2043 = vmatmul.mubr.bf16.gmra.mrb[0].mxu0 %v246
    %v2044 = vpop.f32.mrb[0].mxu0
    %v2045 = vadd.f32 %v1984, %v2044
    %v2046 = vpop.f32.mrb[0].mxu0
    %v2047 = vpop.f32.mrb[0].mxu0
    %v2048 = vadd.f32 %v1984, %v2047
    %v2049 = vpop.f32.mrb[0].mxu0
    %2050 = vmatprep.mubr.bf16.mxu0 0
    %2051 = vmatmul.mubr.bf16.gmra.mrb[0].mxu0 %v249
    %v2052 = vpop.f32.mrb[0].mxu0
    %v2053 = vadd.f32 %v1984, %v2052
    %v2054 = vpop.f32.mrb[0].mxu0
    %v2055 = vpop.f32.mrb[0].mxu0
    %v2056 = vadd.f32 %v1984, %v2055
    %v2057 = vpop.f32.mrb[0].mxu0
    %2058 = vdwg.mxu0
    %s2059 = scalar_lea.vmem %s8, 96
    %v2060 = vld [vmem:[%s2059] sm:$0xf]
    %v2061 = vld [vmem:[%s2059 + $0x4] sm:$0xf]
    %v2062 = vld [vmem:[%s2059 + $0x8] sm:$0xf]
    %v2063 = vld [vmem:[%s2059 + $0xc] sm:$0xf]
    %v2064 = vld [vmem:[%s2059 + $0x10] sm:$0xf]
    %v2065 = vld [vmem:[%s2059 + $0x14] sm:$0xf]
    %v2066 = vld [vmem:[%s2059 + $0x18] sm:$0xf]
    %v2067 = vld [vmem:[%s2059 + $0x1c] sm:$0xf]
    %s2068 = scalar_lea.vmem %s11, 3
    %v2069 = vld [vmem:[%s2068] sm:$0x1]
    %v2071 = vlaneseq
    %v2072 = vshrl.u32 %v2071, 7
    %v2073 = vsub.s32 0, %v2072
    %v2074 = vrot.slane %v2069, %v2073
    %v2084 = vunpack.c.l.b16 %v2060
    %v2085 = vunpack.c.l.b16 %v2061
    %v2086 = vunpack.c.l.b16 %v2062
    %v2087 = vunpack.c.l.b16 %v2063
    %v2088 = vunpack.c.l.b16 %v2064
    %v2089 = vunpack.c.l.b16 %v2065
    %v2090 = vunpack.c.l.b16 %v2066
    %v2091 = vunpack.c.l.b16 %v2067
    %v2092 = vpack.c.b16 %v2085, %v2084
    %v2093 = vpack.c.b16 %v2087, %v2086
    %v2094 = vpack.c.b16 %v2089, %v2088
    %v2095 = vpack.c.b16 %v2091, %v2090
    %2100 = vmatprep.subr.bf16.mxu0 0
    %2101 = vmatpush1.bf16.msra.mxu0 %v2092
    %2102 = vmatprep.subr.bf16.mxu0 0
    %2103 = vmatpush1.bf16.msra.mxu0 %v2093
    %2104 = vmatprep.subr.bf16.mxu0 0
    %2105 = vmatpush1.bf16.msra.mxu0 %v2094
    %2106 = vmatprep.subr.bf16.mxu0 0
    %2107 = vmatpush1.bf16.msra.mxu0 %v2095
    %2108 = vmatprep.subr.bf16.mxu0 0
    %2109 = vmatpush1.bf16.msra.mxu0 0
    %2110 = vmatprep.subr.bf16.mxu0 0
    %2111 = vmatpush1.bf16.msra.mxu0 0
    %2112 = vmatprep.subr.bf16.mxu0 0
    %2113 = vmatpush1.bf16.msra.mxu0 0
    %2114 = vmatprep.subr.bf16.mxu0 0
    %2115 = vmatpush1.bf16.msra.mxu0 0
    %2116 = vmatprep.subr.bf16.mxu0 0
    %2117 = vmatpush1.bf16.msra.mxu0 0
    %2118 = vmatprep.subr.bf16.mxu0 0
    %2119 = vmatpush1.bf16.msra.mxu0 0
    %2120 = vmatprep.subr.bf16.mxu0 0
    %2121 = vmatpush1.bf16.msra.mxu0 0
    %2122 = vmatprep.subr.bf16.mxu0 0
    %2123 = vmatpush1.bf16.msra.mxu0 0
    %2124 = vmatprep.subr.bf16.mxu0 0
    %2125 = vmatpush1.bf16.msra.mxu0 0
    %2126 = vmatprep.subr.bf16.mxu0 0
    %2127 = vmatpush1.bf16.msra.mxu0 0
    %2128 = vmatprep.subr.bf16.mxu0 0
    %2129 = vmatpush1.bf16.msra.mxu0 0
    %2130 = vmatprep.subr.bf16.mxu0 0
    %2131 = vmatpush1.bf16.msra.mxu0 0
    %2132 = vmatprep.mubr.bf16.mxu0 0
    %2133 = vmatmul.mubr.bf16.gmra.mrb[0].mxu0 %v246
    %v2134 = vpop.f32.mrb[0].mxu0
    %v2135 = vadd.f32 %v2074, %v2134
    %v2136 = vpop.f32.mrb[0].mxu0
    %v2137 = vpop.f32.mrb[0].mxu0
    %v2138 = vadd.f32 %v2074, %v2137
    %v2139 = vpop.f32.mrb[0].mxu0
    %2140 = vmatprep.mubr.bf16.mxu0 0
    %2141 = vmatmul.mubr.bf16.gmra.mrb[0].mxu0 %v249
    %v2142 = vpop.f32.mrb[0].mxu0
    %v2143 = vadd.f32 %v2074, %v2142
    %v2144 = vpop.f32.mrb[0].mxu0
    %v2145 = vpop.f32.mrb[0].mxu0
    %v2146 = vadd.f32 %v2074, %v2145
    %v2147 = vpop.f32.mrb[0].mxu0
    %2148 = vdwg.mxu0
    %v2150 = vsel %vm476, %v1955, 0
    %v2153 = vsel %vm476, %v1958, 0
    %v2156 = vsel %vm476, %v1963, 0
    %v2159 = vsel %vm476, %v1966, 0
    %v2162 = vsel %vm476, %v2045, 0
    %v2165 = vsel %vm476, %v2048, 0
    %v2168 = vsel %vm476, %v2053, 0
    %v2171 = vsel %vm476, %v2056, 0
    %2173 = vmatprep.subr.mxu0 0.0
    %2174 = vmatpush1.xpose.msra.mxu0 %v2162
    %2175 = vmatprep.subr.mxu0 0.0
    %2176 = vmatpush1.xpose.msra.mxu0 %v2165
    %2177 = vmatprep.subr.mxu0 0.0
    %2178 = vmatpush1.xpose.msra.mxu0 %v2168
    %2179 = vmatprep.subr.mxu0 0.0
    %2180 = vmatpush1.xpose.msra.mxu0 %v2171
    %2181 = vmatprep.subr.mxu0 0.0
    %2182 = vmatpush1.xpose.msra.mxu0 0.0
    %2183 = vmatprep.subr.mxu0 0.0
    %2184 = vmatpush1.xpose.msra.mxu0 0.0
    %2185 = vmatprep.subr.mxu0 0.0
    %2186 = vmatpush1.xpose.msra.mxu0 0.0
    %2187 = vmatprep.subr.mxu0 0.0
    %2188 = vmatpush1.xpose.msra.mxu0 0.0
    %2189 = vmatprep.subr.mxu0 0.0
    %2190 = vmatpush1.xpose.msra.mxu0 0.0
    %2191 = vmatprep.subr.mxu0 0.0
    %2192 = vmatpush1.xpose.msra.mxu0 0.0
    %2193 = vmatprep.subr.mxu0 0.0
    %2194 = vmatpush1.xpose.msra.mxu0 0.0
    %2195 = vmatprep.subr.mxu0 0.0
    %2196 = vmatpush1.xpose.msra.mxu0 0.0
    %2197 = vmatprep.subr.mxu0 0.0
    %2198 = vmatpush1.xpose.msra.mxu0 0.0
    %2199 = vmatprep.subr.mxu0 0.0
    %2200 = vmatpush1.xpose.msra.mxu0 0.0
    %2201 = vmatprep.subr.mxu0 0.0
    %2202 = vmatpush1.xpose.msra.mxu0 0.0
    %2203 = vmatprep.subr.mxu0 0.0
    %2204 = vmatpush1.xpose.msra.mxu0 0.0
    %2205 = vmatprep.subr.mxu0 0.0
    %2206 = vmatpush1.xpose.msra.mxu0 0.0
    %2207 = vmatprep.subr.mxu0 0.0
    %2208 = vmatpush1.xpose.msra.mxu0 0.0
    %2209 = vmatprep.subr.mxu0 0.0
    %2210 = vmatpush1.xpose.msra.mxu0 0.0
    %2211 = vmatprep.subr.mxu0 0.0
    %2212 = vmatpush1.xpose.msra.mxu0 0.0
    %2213 = vmatprep.subr.mxu0 0.0
    %2214 = vmatpush1.xpose.msra.mxu0 0.0
    %2215 = vmatprep.subr.mxu0 0.0
    %2216 = vmatpush1.xpose.msra.mxu0 0.0
    %2217 = vmatprep.subr.mxu0 0.0
    %2218 = vmatpush1.xpose.msra.mxu0 0.0
    %2219 = vmatprep.subr.mxu0 0.0
    %2220 = vmatpush1.xpose.msra.mxu0 0.0
    %2221 = vmatprep.subr.mxu0 0.0
    %2222 = vmatpush1.xpose.msra.mxu0 0.0
    %2223 = vmatprep.subr.mxu0 0.0
    %2224 = vmatpush1.xpose.msra.mxu0 0.0
    %2225 = vmatprep.subr.mxu0 0.0
    %2226 = vmatpush1.xpose.msra.mxu0 0.0
    %2227 = vmatprep.subr.mxu0 0.0
    %2228 = vmatpush1.xpose.msra.mxu0 0.0
    %2229 = vmatprep.subr.mxu0 0.0
    %2230 = vmatpush1.xpose.msra.mxu0 0.0
    %2231 = vmatprep.subr.mxu0 0.0
    %2232 = vmatpush1.xpose.msra.mxu0 0.0
    %2233 = vmatprep.subr.mxu0 0.0
    %2234 = vmatpush1.xpose.msra.mxu0 0.0
    %2235 = vmatprep.subr.mxu0 0.0
    %2236 = vmatpush1.xpose.msra.mxu0 0.0
    %2237 = vmatprep.mubr.f32.mxu0 0.0
    %2238 = vmatmul.mubr.f32.gmra.mrb[0].mxu0 %v2150
    %v2239 = vpop.f32.mrb[0].mxu0
    %v2240 = vadd.f32 0.0, %v2239
    %v2241 = vpop.f32.mrb[0].mxu0
    %2242 = vmatprep.mubr.f32.mxu0 0.0
    %2243 = vmatmul.mubr.f32.gmra.mrb[0].mxu0 %v2153
    %v2244 = vpop.f32.mrb[0].mxu0
    %v2245 = vadd.f32 0.0, %v2244
    %v2246 = vpop.f32.mrb[0].mxu0
    %2247 = vmatprep.mubr.f32.mxu0 0.0
    %2248 = vmatmul.mubr.f32.gmra.mrb[0].mxu0 %v2156
    %v2249 = vpop.f32.mrb[0].mxu0
    %v2250 = vadd.f32 0.0, %v2249
    %v2251 = vpop.f32.mrb[0].mxu0
    %2252 = vmatprep.mubr.f32.mxu0 0.0
    %2253 = vmatmul.mubr.f32.gmra.mrb[0].mxu0 %v2159
    %v2254 = vpop.f32.mrb[0].mxu0
    %v2255 = vadd.f32 0.0, %v2254
    %v2256 = vpop.f32.mrb[0].mxu0
    %2257 = vdwg.mxu0
    %v2258 = vmul.f32 %v2240, 0.25
    %v2259 = vmul.f32 %v2245, 0.25
    %v2260 = vmul.f32 %v2250, 0.25
    %v2261 = vmul.f32 %v2255, 0.25
    %v2262 = vadd.f32 %v2258, %v120
    %v2263 = vadd.f32 %v2259, %v121
    %v2264 = vadd.f32 %v2260, %v122
    %v2265 = vadd.f32 %v2261, %v123
    %v2266 = vsel %vm594, %v2262, -inf
    %2267 = vmax.xlane.f32.xlu0 %v2266
    %v2268 = vpop.xlane.xlu0 %2267
    %v2269 = vsel %vm594, %v2263, -inf
    %2270 = vmax.xlane.f32.xlu0 %v2269
    %v2271 = vpop.xlane.xlu0 %2270
    %v2272 = vsel %vm594, %v2264, -inf
    %2273 = vmax.xlane.f32.xlu0 %v2272
    %v2274 = vpop.xlane.xlu0 %2273
    %v2275 = vsel %vm594, %v2265, -inf
    %2276 = vmax.xlane.f32.xlu0 %v2275
    %v2277 = vpop.xlane.xlu0 %2276
    %v2278 = vsub.f32 %v2262, %v2268
    %v2279 = vsub.f32 %v2263, %v2271
    %v2280 = vsub.f32 %v2264, %v2274
    %v2281 = vsub.f32 %v2265, %v2277
    %v2282 = vmul.f32 %v2278, 1.442695
    %v2283 = vpow.pop %v2282
    %v2284 = vmul.f32 %v2279, 1.442695
    %v2285 = vpow.pop %v2284
    %v2286 = vmul.f32 %v2280, 1.442695
    %v2287 = vpow.pop %v2286
    %v2288 = vmul.f32 %v2281, 1.442695
    %v2289 = vpow.pop %v2288
    %v2290 = vsel %vm594, %v2283, 0.0
    %2291 = vadd.xlane.f32.xlu0 %v2290
    %v2292 = vpop.xlane.xlu0 %2291
    %v2293 = vsel %vm594, %v2285, 0.0
    %2294 = vadd.xlane.f32.xlu0 %v2293
    %v2295 = vpop.xlane.xlu0 %2294
    %v2296 = vsel %vm594, %v2287, 0.0
    %2297 = vadd.xlane.f32.xlu0 %v2296
    %v2298 = vpop.xlane.xlu0 %2297
    %v2299 = vsel %vm594, %v2289, 0.0
    %2300 = vadd.xlane.f32.xlu0 %v2299
    %v2301 = vpop.xlane.xlu0 %2300
    %v2302 = vrcp.pop %v2292
    %v2303 = vmul.f32 %v2283, %v2302
    %v2304 = vrcp.pop %v2295
    %v2305 = vmul.f32 %v2285, %v2304
    %v2306 = vrcp.pop %v2298
    %v2307 = vmul.f32 %v2287, %v2306
    %v2308 = vrcp.pop %v2301
    %v2309 = vmul.f32 %v2289, %v2308
    %v2310 = vpack.c.bf16 %v2305, %v2303
    %v2311 = vpack.c.bf16 %v2309, %v2307
    %v2312 = vpack.c.bf16 %v2138, %v2135
    %v2313 = vpack.c.bf16 %v2146, %v2143
    %v2315 = vsel %vm594, %v2310, 0
    %v2318 = vsel %vm594, %v2311, 0
    %2320 = vmatprep.subr.bf16.mxu0 0
    %2321 = vmatpush1.bf16.msra.mxu0 %v2312
    %2322 = vmatprep.subr.bf16.mxu0 0
    %2323 = vmatpush1.bf16.msra.mxu0 %v2313
    %2324 = vmatprep.subr.bf16.mxu0 0
    %2325 = vmatpush1.bf16.msra.mxu0 0
    %2326 = vmatprep.subr.bf16.mxu0 0
    %2327 = vmatpush1.bf16.msra.mxu0 0
    %2328 = vmatprep.subr.bf16.mxu0 0
    %2329 = vmatpush1.bf16.msra.mxu0 0
    %2330 = vmatprep.subr.bf16.mxu0 0
    %2331 = vmatpush1.bf16.msra.mxu0 0
    %2332 = vmatprep.subr.bf16.mxu0 0
    %2333 = vmatpush1.bf16.msra.mxu0 0
    %2334 = vmatprep.subr.bf16.mxu0 0
    %2335 = vmatpush1.bf16.msra.mxu0 0
    %2336 = vmatprep.subr.bf16.mxu0 0
    %2337 = vmatpush1.bf16.msra.mxu0 0
    %2338 = vmatprep.subr.bf16.mxu0 0
    %2339 = vmatpush1.bf16.msra.mxu0 0
    %2340 = vmatprep.subr.bf16.mxu0 0
    %2341 = vmatpush1.bf16.msra.mxu0 0
    %2342 = vmatprep.subr.bf16.mxu0 0
    %2343 = vmatpush1.bf16.msra.mxu0 0
    %2344 = vmatprep.subr.bf16.mxu0 0
    %2345 = vmatpush1.bf16.msra.mxu0 0
    %2346 = vmatprep.subr.bf16.mxu0 0
    %2347 = vmatpush1.bf16.msra.mxu0 0
    %2348 = vmatprep.subr.bf16.mxu0 0
    %2349 = vmatpush1.bf16.msra.mxu0 0
    %2350 = vmatprep.subr.bf16.mxu0 0
    %2351 = vmatpush1.bf16.msra.mxu0 0
    %2352 = vmatprep.mubr.bf16.mxu0 0
    %2353 = vmatmul.mubr.bf16.gmra.mrb[0].mxu0 %v2315
    %v2354 = vpop.f32.mrb[0].mxu0
    %v2355 = vadd.f32 0.0, %v2354
    %v2356 = vpop.f32.mrb[0].mxu0
    %v2357 = vpop.f32.mrb[0].mxu0
    %v2358 = vadd.f32 0.0, %v2357
    %v2359 = vpop.f32.mrb[0].mxu0
    %2360 = vmatprep.mubr.bf16.mxu0 0
    %2361 = vmatmul.mubr.bf16.gmra.mrb[0].mxu0 %v2318
    %v2362 = vpop.f32.mrb[0].mxu0
    %v2363 = vadd.f32 0.0, %v2362
    %v2364 = vpop.f32.mrb[0].mxu0
    %v2365 = vpop.f32.mrb[0].mxu0
    %v2366 = vadd.f32 0.0, %v2365
    %v2367 = vpop.f32.mrb[0].mxu0
    %2368 = vdwg.mxu0
    %v2369 = vpack.c.bf16 %v2358, %v2355
    %v2370 = vpack.c.bf16 %v2366, %v2363
    %s2371 = scalar_lea.vmem %s12, 24
    %v2372 = vld [vmem:[%s2371] sm:$0xf]
    %v2373 = vld [vmem:[%s2371 + $0x4] sm:$0xf]
    %v2376 = vunpack.c.l.b16 %v2372
    %v2377 = vunpack.c.l.b16 %v2373
    %v2378 = vpack.c.b16 %v2377, %v2376
    %v2381 = vsel %vm476, %v2369, 0
    %v2384 = vsel %vm476, %v2370, 0
    %2386 = vmatprep.subr.bf16.mxu0 0
    %2387 = vmatpush1.bf16.msra.mxu0 %v2378
    %2388 = vmatprep.subr.bf16.mxu0 0
    %2389 = vmatpush1.bf16.msra.mxu0 0
    %2390 = vmatprep.subr.bf16.mxu0 0
    %2391 = vmatpush1.bf16.msra.mxu0 0
    %2392 = vmatprep.subr.bf16.mxu0 0
    %2393 = vmatpush1.bf16.msra.mxu0 0
    %2394 = vmatprep.subr.bf16.mxu0 0
    %2395 = vmatpush1.bf16.msra.mxu0 0
    %2396 = vmatprep.subr.bf16.mxu0 0
    %2397 = vmatpush1.bf16.msra.mxu0 0
    %2398 = vmatprep.subr.bf16.mxu0 0
    %2399 = vmatpush1.bf16.msra.mxu0 0
    %2400 = vmatprep.subr.bf16.mxu0 0
    %2401 = vmatpush1.bf16.msra.mxu0 0
    %2402 = vmatprep.subr.bf16.mxu0 0
    %2403 = vmatpush1.bf16.msra.mxu0 0
    %2404 = vmatprep.subr.bf16.mxu0 0
    %2405 = vmatpush1.bf16.msra.mxu0 0
    %2406 = vmatprep.subr.bf16.mxu0 0
    %2407 = vmatpush1.bf16.msra.mxu0 0
    %2408 = vmatprep.subr.bf16.mxu0 0
    %2409 = vmatpush1.bf16.msra.mxu0 0
    %2410 = vmatprep.subr.bf16.mxu0 0
    %2411 = vmatpush1.bf16.msra.mxu0 0
    %2412 = vmatprep.subr.bf16.mxu0 0
    %2413 = vmatpush1.bf16.msra.mxu0 0
    %2414 = vmatprep.subr.bf16.mxu0 0
    %2415 = vmatpush1.bf16.msra.mxu0 0
    %2416 = vmatprep.subr.bf16.mxu0 0
    %2417 = vmatpush1.bf16.msra.mxu0 0
    %2418 = vmatprep.mubr.bf16.mxu0 0
    %2419 = vmatmul.mubr.bf16.gmra.mrb[0].mxu0 %v2381
    %v2420 = vpop.f32.mrb[0].mxu0
    %v2421 = vadd.f32 0.0, %v2420
    %v2422 = vpop.f32.mrb[0].mxu0
    %v2423 = vpop.f32.mrb[0].mxu0
    %v2424 = vadd.f32 0.0, %v2423
    %v2425 = vpop.f32.mrb[0].mxu0
    %2426 = vmatprep.mubr.bf16.mxu0 0
    %2427 = vmatmul.mubr.bf16.gmra.mrb[0].mxu0 %v2384
    %v2428 = vpop.f32.mrb[0].mxu0
    %v2429 = vadd.f32 0.0, %v2428
    %v2430 = vpop.f32.mrb[0].mxu0
    %v2431 = vpop.f32.mrb[0].mxu0
    %v2432 = vadd.f32 0.0, %v2431
    %v2433 = vpop.f32.mrb[0].mxu0
    %2434 = vdwg.mxu0
    %v2435 = vadd.f32 %v1875, %v2421
    %v2436 = vadd.f32 %v1876, %v2424
    %v2437 = vadd.f32 %v1877, %v2429
    %v2438 = vadd.f32 %v1878, %v2432
    %v2439 = vadd.f32 %v124, %v2435
    %v2440 = vadd.f32 %v125, %v2436
    %v2441 = vadd.f32 %v126, %v2437
    %v2442 = vadd.f32 %v127, %v2438
    %v2443 = vld [vmem:[%s13] sm:$0x1]
    %v2445 = vlaneseq
    %v2446 = vshrl.u32 %v2445, 7
    %v2447 = vsub.s32 0, %v2446
    %v2448 = vrot.slane %v2443, %v2447
    %v2450 = vadd.f32 %v2439, %v2448
    %v2451 = vadd.f32 %v2440, %v2448
    %v2452 = vadd.f32 %v2441, %v2448
    %v2453 = vadd.f32 %v2442, %v2448
    %v2454 = vld [vmem:[%s14] sm:$0x1]
    %v2455 = vld [vmem:[%s15] sm:$0x1]
    %v2456 = vsel %vm130, %v2450, 0.0
    %2457 = vadd.xlane.f32.xlu0 %v2456
    %v2458 = vpop.xlane.xlu0 %2457
    %v2459 = vsel %vm130, %v2451, 0.0
    %2460 = vadd.xlane.f32.xlu0 %v2459
    %v2461 = vpop.xlane.xlu0 %2460
    %v2462 = vsel %vm130, %v2452, 0.0
    %2463 = vadd.xlane.f32.xlu0 %v2462
    %v2464 = vpop.xlane.xlu0 %2463
    %v2465 = vsel %vm130, %v2453, 0.0
    %2466 = vadd.xlane.f32.xlu0 %v2465
    %v2467 = vpop.xlane.xlu0 %2466
    %v2468 = vmul.f32 %v2458, %v143
    %v2469 = vmul.f32 %v2461, %v143
    %v2470 = vmul.f32 %v2464, %v143
    %v2471 = vmul.f32 %v2467, %v143
    %v2472 = vsub.f32 %v2450, %v2468
    %v2473 = vsub.f32 %v2451, %v2469
    %v2474 = vsub.f32 %v2452, %v2470
    %v2475 = vsub.f32 %v2453, %v2471
    %v2476 = vmul.f32 %v2472, %v2472
    %v2477 = vmul.f32 %v2473, %v2473
    %v2478 = vmul.f32 %v2474, %v2474
    %v2479 = vmul.f32 %v2475, %v2475
    %v2480 = vsel %vm130, %v2476, 0.0
    %2481 = vadd.xlane.f32.xlu0 %v2480
    %v2482 = vpop.xlane.xlu0 %2481
    %v2483 = vsel %vm130, %v2477, 0.0
    %2484 = vadd.xlane.f32.xlu0 %v2483
    %v2485 = vpop.xlane.xlu0 %2484
    %v2486 = vsel %vm130, %v2478, 0.0
    %2487 = vadd.xlane.f32.xlu0 %v2486
    %v2488 = vpop.xlane.xlu0 %2487
    %v2489 = vsel %vm130, %v2479, 0.0
    %2490 = vadd.xlane.f32.xlu0 %v2489
    %v2491 = vpop.xlane.xlu0 %2490
    %v2492 = vmul.f32 %v2482, %v143
    %v2493 = vmul.f32 %v2485, %v143
    %v2494 = vmul.f32 %v2488, %v143
    %v2495 = vmul.f32 %v2491, %v143
    %v2496 = vadd.f32 %v2492, 1e-05
    %v2497 = vadd.f32 %v2493, 1e-05
    %v2498 = vadd.f32 %v2494, 1e-05
    %v2499 = vadd.f32 %v2495, 1e-05
    %v2500 = vrsqrt.pop %v2496
    %v2501 = vrsqrt.pop %v2497
    %v2502 = vrsqrt.pop %v2498
    %v2503 = vrsqrt.pop %v2499
    %v2504 = vmul.f32 %v2472, %v2500
    %v2505 = vmul.f32 %v2473, %v2501
    %v2506 = vmul.f32 %v2474, %v2502
    %v2507 = vmul.f32 %v2475, %v2503
    %v2509 = vlaneseq
    %v2510 = vshrl.u32 %v2509, 7
    %v2511 = vsub.s32 0, %v2510
    %v2512 = vrot.slane %v2454, %v2511
    %v2514 = vmul.f32 %v2504, %v2512
    %v2515 = vmul.f32 %v2505, %v2512
    %v2516 = vmul.f32 %v2506, %v2512
    %v2517 = vmul.f32 %v2507, %v2512
    %v2519 = vlaneseq
    %v2520 = vshrl.u32 %v2519, 7
    %v2521 = vsub.s32 0, %v2520
    %v2522 = vrot.slane %v2455, %v2521
    %v2524 = vadd.f32 %v2514, %v2522
    %v2525 = vadd.f32 %v2515, %v2522
    %v2526 = vadd.f32 %v2516, %v2522
    %v2527 = vadd.f32 %v2517, %v2522
    %v2528 = vpack.c.bf16 %v2525, %v2524
    %v2529 = vpack.c.bf16 %v2527, %v2526
    %v2530 = vld [vmem:[%s16] sm:$0xff]
    %v2531 = vld [vmem:[%s16 + $0x8] sm:$0xff]
    %v2532 = vld [vmem:[%s16 + $0x10] sm:$0xff]
    %v2533 = vld [vmem:[%s16 + $0x18] sm:$0xff]
    %v2534 = vld [vmem:[%s16 + $0x20] sm:$0xff]
    %v2535 = vld [vmem:[%s16 + $0x28] sm:$0xff]
    %v2536 = vld [vmem:[%s16 + $0x30] sm:$0xff]
    %v2537 = vld [vmem:[%s16 + $0x38] sm:$0xff]
    %v2538 = vld [vmem:[%s17] sm:$0x3]
    %v2540 = vlaneseq
    %v2541 = vshrl.u32 %v2540, 7
    %v2542 = vsub.s32 0, %v2541
    %v2543 = vrot.slane %v2538, %v2542
    %v2544 = vlaneseq
    %v2545 = vshrl.u32 %v2544, 7
    %v2546 = vsub.s32 1, %v2545
    %v2547 = vrot.slane %v2538, %v2546
    %v2558 = vunpack.c.l.b16 %v2530
    %v2559 = vunpack.c.h.b16 %v2530
    %v2560 = vunpack.c.l.b16 %v2531
    %v2561 = vunpack.c.h.b16 %v2531
    %v2562 = vunpack.c.l.b16 %v2532
    %v2563 = vunpack.c.h.b16 %v2532
    %v2564 = vunpack.c.l.b16 %v2533
    %v2565 = vunpack.c.h.b16 %v2533
    %v2566 = vunpack.c.l.b16 %v2534
    %v2567 = vunpack.c.h.b16 %v2534
    %v2568 = vunpack.c.l.b16 %v2535
    %v2569 = vunpack.c.h.b16 %v2535
    %v2570 = vunpack.c.l.b16 %v2536
    %v2571 = vunpack.c.h.b16 %v2536
    %v2572 = vunpack.c.l.b16 %v2537
    %v2573 = vunpack.c.h.b16 %v2537
    %v2574 = vpack.c.b16 %v2560, %v2558
    %v2575 = vpack.c.b16 %v2561, %v2559
    %v2576 = vpack.c.b16 %v2564, %v2562
    %v2577 = vpack.c.b16 %v2565, %v2563
    %v2578 = vpack.c.b16 %v2568, %v2566
    %v2579 = vpack.c.b16 %v2569, %v2567
    %v2580 = vpack.c.b16 %v2572, %v2570
    %v2581 = vpack.c.b16 %v2573, %v2571
    %v2591 = vsel %vm130, %v2528, 0
    %v2594 = vsel %vm130, %v2529, 0
    %2596 = vmatprep.subr.bf16.mxu0 %v2575
    %2597 = vmatpush1.bf16.msra.mxu0 %v2574
    %2598 = vmatprep.subr.bf16.mxu0 %v2577
    %2599 = vmatpush1.bf16.msra.mxu0 %v2576
    %2600 = vmatprep.subr.bf16.mxu0 %v2579
    %2601 = vmatpush1.bf16.msra.mxu0 %v2578
    %2602 = vmatprep.subr.bf16.mxu0 %v2581
    %2603 = vmatpush1.bf16.msra.mxu0 %v2580
    %2604 = vmatprep.subr.bf16.mxu0 0
    %2605 = vmatpush1.bf16.msra.mxu0 0
    %2606 = vmatprep.subr.bf16.mxu0 0
    %2607 = vmatpush1.bf16.msra.mxu0 0
    %2608 = vmatprep.subr.bf16.mxu0 0
    %2609 = vmatpush1.bf16.msra.mxu0 0
    %2610 = vmatprep.subr.bf16.mxu0 0
    %2611 = vmatpush1.bf16.msra.mxu0 0
    %2612 = vmatprep.subr.bf16.mxu0 0
    %2613 = vmatpush1.bf16.msra.mxu0 0
    %2614 = vmatprep.subr.bf16.mxu0 0
    %2615 = vmatpush1.bf16.msra.mxu0 0
    %2616 = vmatprep.subr.bf16.mxu0 0
    %2617 = vmatpush1.bf16.msra.mxu0 0
    %2618 = vmatprep.subr.bf16.mxu0 0
    %2619 = vmatpush1.bf16.msra.mxu0 0
    %2620 = vmatprep.subr.bf16.mxu0 0
    %2621 = vmatpush1.bf16.msra.mxu0 0
    %2622 = vmatprep.subr.bf16.mxu0 0
    %2623 = vmatpush1.bf16.msra.mxu0 0
    %2624 = vmatprep.subr.bf16.mxu0 0
    %2625 = vmatpush1.bf16.msra.mxu0 0
    %2626 = vmatprep.subr.bf16.mxu0 0
    %2627 = vmatpush1.bf16.msra.mxu0 0
    %2628 = vmatprep.mubr.bf16.mxu0 0
    %2629 = vmatmul.mubr.bf16.gmra.mrb[0].mxu0 %v2591
    %v2630 = vpop.f32.mrb[0].mxu0
    %v2631 = vadd.f32 %v2543, %v2630
    %v2632 = vpop.f32.mrb[0].mxu0
    %v2633 = vadd.f32 %v2547, %v2632
    %v2634 = vpop.f32.mrb[0].mxu0
    %v2635 = vadd.f32 %v2543, %v2634
    %v2636 = vpop.f32.mrb[0].mxu0
    %v2637 = vadd.f32 %v2547, %v2636
    %2638 = vmatprep.mubr.bf16.mxu0 0
    %2639 = vmatmul.mubr.bf16.gmra.mrb[0].mxu0 %v2594
    %v2640 = vpop.f32.mrb[0].mxu0
    %v2641 = vadd.f32 %v2543, %v2640
    %v2642 = vpop.f32.mrb[0].mxu0
    %v2643 = vadd.f32 %v2547, %v2642
    %v2644 = vpop.f32.mrb[0].mxu0
    %v2645 = vadd.f32 %v2543, %v2644
    %v2646 = vpop.f32.mrb[0].mxu0
    %v2647 = vadd.f32 %v2547, %v2646
    %2648 = vdwg.mxu0
    %v2649 = vmul.f32 %v2631, 1.702
    %v2650 = vmul.f32 %v2633, 1.702
    %v2651 = vmul.f32 %v2635, 1.702
    %v2652 = vmul.f32 %v2637, 1.702
    %v2653 = vmul.f32 %v2641, 1.702
    %v2654 = vmul.f32 %v2643, 1.702
    %v2655 = vmul.f32 %v2645, 1.702
    %v2656 = vmul.f32 %v2647, 1.702
    %v2657 = vxor.u32 %v2649, 2147483648
    %v2658 = vxor.u32 %v2650, 2147483648
    %v2659 = vxor.u32 %v2651, 2147483648
    %v2660 = vxor.u32 %v2652, 2147483648
    %v2661 = vxor.u32 %v2653, 2147483648
    %v2662 = vxor.u32 %v2654, 2147483648
    %v2663 = vxor.u32 %v2655, 2147483648
    %v2664 = vxor.u32 %v2656, 2147483648
    %v2665 = vmul.f32 %v2657, 1.442695
    %v2666 = vpow.pop %v2665
    %v2667 = vmul.f32 %v2658, 1.442695
    %v2668 = vpow.pop %v2667
    %v2669 = vmul.f32 %v2659, 1.442695
    %v2670 = vpow.pop %v2669
    %v2671 = vmul.f32 %v2660, 1.442695
    %v2672 = vpow.pop %v2671
    %v2673 = vmul.f32 %v2661, 1.442695
    %v2674 = vpow.pop %v2673
    %v2675 = vmul.f32 %v2662, 1.442695
    %v2676 = vpow.pop %v2675
    %v2677 = vmul.f32 %v2663, 1.442695
    %v2678 = vpow.pop %v2677
    %v2679 = vmul.f32 %v2664, 1.442695
    %v2680 = vpow.pop %v2679
    %v2681 = vadd.f32 %v2666, 1.0
    %v2682 = vadd.f32 %v2668, 1.0
    %v2683 = vadd.f32 %v2670, 1.0
    %v2684 = vadd.f32 %v2672, 1.0
    %v2685 = vadd.f32 %v2674, 1.0
    %v2686 = vadd.f32 %v2676, 1.0
    %v2687 = vadd.f32 %v2678, 1.0
    %v2688 = vadd.f32 %v2680, 1.0
    %v2689 = vrcp.pop %v2681
    %v2690 = vmul.f32 1.0, %v2689
    %v2691 = vrcp.pop %v2682
    %v2692 = vmul.f32 1.0, %v2691
    %v2693 = vrcp.pop %v2683
    %v2694 = vmul.f32 1.0, %v2693
    %v2695 = vrcp.pop %v2684
    %v2696 = vmul.f32 1.0, %v2695
    %v2697 = vrcp.pop %v2685
    %v2698 = vmul.f32 1.0, %v2697
    %v2699 = vrcp.pop %v2686
    %v2700 = vmul.f32 1.0, %v2699
    %v2701 = vrcp.pop %v2687
    %v2702 = vmul.f32 1.0, %v2701
    %v2703 = vrcp.pop %v2688
    %v2704 = vmul.f32 1.0, %v2703
    %v2705 = vmul.f32 %v2631, %v2690
    %v2706 = vmul.f32 %v2633, %v2692
    %v2707 = vmul.f32 %v2635, %v2694
    %v2708 = vmul.f32 %v2637, %v2696
    %v2709 = vmul.f32 %v2641, %v2698
    %v2710 = vmul.f32 %v2643, %v2700
    %v2711 = vmul.f32 %v2645, %v2702
    %v2712 = vmul.f32 %v2647, %v2704
    %v2713 = vpack.c.bf16 %v2707, %v2705
    %v2714 = vpack.c.bf16 %v2708, %v2706
    %v2715 = vpack.c.bf16 %v2711, %v2709
    %v2716 = vpack.c.bf16 %v2712, %v2710
    %v2717 = vld [vmem:[%s18] sm:$0xf]
    %v2718 = vld [vmem:[%s18 + $0x4] sm:$0xf]
    %v2719 = vld [vmem:[%s18 + $0x8] sm:$0xf]
    %v2720 = vld [vmem:[%s18 + $0xc] sm:$0xf]
    %v2721 = vld [vmem:[%s18 + $0x10] sm:$0xf]
    %v2722 = vld [vmem:[%s18 + $0x14] sm:$0xf]
    %v2723 = vld [vmem:[%s18 + $0x18] sm:$0xf]
    %v2724 = vld [vmem:[%s18 + $0x1c] sm:$0xf]
    %v2725 = vld [vmem:[%s18 + $0x20] sm:$0xf]
    %v2726 = vld [vmem:[%s18 + $0x24] sm:$0xf]
    %v2727 = vld [vmem:[%s18 + $0x28] sm:$0xf]
    %v2728 = vld [vmem:[%s18 + $0x2c] sm:$0xf]
    %v2729 = vld [vmem:[%s18 + $0x30] sm:$0xf]
    %v2730 = vld [vmem:[%s18 + $0x34] sm:$0xf]
    %v2731 = vld [vmem:[%s18 + $0x38] sm:$0xf]
    %v2732 = vld [vmem:[%s18 + $0x3c] sm:$0xf]
    %v2733 = vld [vmem:[%s18 + $0x40] sm:$0xf]
    %v2734 = vld [vmem:[%s18 + $0x44] sm:$0xf]
    %v2735 = vld [vmem:[%s18 + $0x48] sm:$0xf]
    %v2736 = vld [vmem:[%s18 + $0x4c] sm:$0xf]
    %v2737 = vld [vmem:[%s18 + $0x50] sm:$0xf]
    %v2738 = vld [vmem:[%s18 + $0x54] sm:$0xf]
    %v2739 = vld [vmem:[%s18 + $0x58] sm:$0xf]
    %v2740 = vld [vmem:[%s18 + $0x5c] sm:$0xf]
    %v2741 = vld [vmem:[%s18 + $0x60] sm:$0xf]
    %v2742 = vld [vmem:[%s18 + $0x64] sm:$0xf]
    %v2743 = vld [vmem:[%s18 + $0x68] sm:$0xf]
    %v2744 = vld [vmem:[%s18 + $0x6c] sm:$0xf]
    %v2745 = vld [vmem:[%s18 + $0x70] sm:$0xf]
    %v2746 = vld [vmem:[%s18 + $0x74] sm:$0xf]
    %v2747 = vld [vmem:[%s18 + $0x78] sm:$0xf]
    %v2748 = vld [vmem:[%s18 + $0x7c] sm:$0xf]
    %v2781 = vunpack.c.l.b16 %v2717
    %v2782 = vunpack.c.l.b16 %v2718
    %v2783 = vunpack.c.l.b16 %v2719
    %v2784 = vunpack.c.l.b16 %v2720
    %v2785 = vunpack.c.l.b16 %v2721
    %v2786 = vunpack.c.l.b16 %v2722
    %v2787 = vunpack.c.l.b16 %v2723
    %v2788 = vunpack.c.l.b16 %v2724
    %v2789 = vunpack.c.l.b16 %v2725
    %v2790 = vunpack.c.l.b16 %v2726
    %v2791 = vunpack.c.l.b16 %v2727
    %v2792 = vunpack.c.l.b16 %v2728
    %v2793 = vunpack.c.l.b16 %v2729
    %v2794 = vunpack.c.l.b16 %v2730
    %v2795 = vunpack.c.l.b16 %v2731
    %v2796 = vunpack.c.l.b16 %v2732
    %v2797 = vunpack.c.l.b16 %v2733
    %v2798 = vunpack.c.l.b16 %v2734
    %v2799 = vunpack.c.l.b16 %v2735
    %v2800 = vunpack.c.l.b16 %v2736
    %v2801 = vunpack.c.l.b16 %v2737
    %v2802 = vunpack.c.l.b16 %v2738
    %v2803 = vunpack.c.l.b16 %v2739
    %v2804 = vunpack.c.l.b16 %v2740
    %v2805 = vunpack.c.l.b16 %v2741
    %v2806 = vunpack.c.l.b16 %v2742
    %v2807 = vunpack.c.l.b16 %v2743
    %v2808 = vunpack.c.l.b16 %v2744
    %v2809 = vunpack.c.l.b16 %v2745
    %v2810 = vunpack.c.l.b16 %v2746
    %v2811 = vunpack.c.l.b16 %v2747
    %v2812 = vunpack.c.l.b16 %v2748
    %v2813 = vpack.c.b16 %v2782, %v2781
    %v2814 = vpack.c.b16 %v2784, %v2783
    %v2815 = vpack.c.b16 %v2786, %v2785
    %v2816 = vpack.c.b16 %v2788, %v2787
    %v2817 = vpack.c.b16 %v2790, %v2789
    %v2818 = vpack.c.b16 %v2792, %v2791
    %v2819 = vpack.c.b16 %v2794, %v2793
    %v2820 = vpack.c.b16 %v2796, %v2795
    %v2821 = vpack.c.b16 %v2798, %v2797
    %v2822 = vpack.c.b16 %v2800, %v2799
    %v2823 = vpack.c.b16 %v2802, %v2801
    %v2824 = vpack.c.b16 %v2804, %v2803
    %v2825 = vpack.c.b16 %v2806, %v2805
    %v2826 = vpack.c.b16 %v2808, %v2807
    %v2827 = vpack.c.b16 %v2810, %v2809
    %v2828 = vpack.c.b16 %v2812, %v2811
    %2845 = vmatprep.subr.bf16.mxu0 0
    %2846 = vmatpush1.bf16.msra.mxu0 %v2813
    %2847 = vmatprep.subr.bf16.mxu0 0
    %2848 = vmatpush1.bf16.msra.mxu0 %v2814
    %2849 = vmatprep.subr.bf16.mxu0 0
    %2850 = vmatpush1.bf16.msra.mxu0 %v2815
    %2851 = vmatprep.subr.bf16.mxu0 0
    %2852 = vmatpush1.bf16.msra.mxu0 %v2816
    %2853 = vmatprep.subr.bf16.mxu0 0
    %2854 = vmatpush1.bf16.msra.mxu0 %v2817
    %2855 = vmatprep.subr.bf16.mxu0 0
    %2856 = vmatpush1.bf16.msra.mxu0 %v2818
    %2857 = vmatprep.subr.bf16.mxu0 0
    %2858 = vmatpush1.bf16.msra.mxu0 %v2819
    %2859 = vmatprep.subr.bf16.mxu0 0
    %2860 = vmatpush1.bf16.msra.mxu0 %v2820
    %2861 = vmatprep.subr.bf16.mxu0 0
    %2862 = vmatpush1.bf16.msra.mxu0 %v2821
    %2863 = vmatprep.subr.bf16.mxu0 0
    %2864 = vmatpush1.bf16.msra.mxu0 %v2822
    %2865 = vmatprep.subr.bf16.mxu0 0
    %2866 = vmatpush1.bf16.msra.mxu0 %v2823
    %2867 = vmatprep.subr.bf16.mxu0 0
    %2868 = vmatpush1.bf16.msra.mxu0 %v2824
    %2869 = vmatprep.subr.bf16.mxu0 0
    %2870 = vmatpush1.bf16.msra.mxu0 %v2825
    %2871 = vmatprep.subr.bf16.mxu0 0
    %2872 = vmatpush1.bf16.msra.mxu0 %v2826
    %2873 = vmatprep.subr.bf16.mxu0 0
    %2874 = vmatpush1.bf16.msra.mxu0 %v2827
    %2875 = vmatprep.subr.bf16.mxu0 0
    %2876 = vmatpush1.bf16.msra.mxu0 %v2828
    %2877 = vmatprep.mubr.bf16.mxu0 %v2714
    %2878 = vmatmul.mubr.bf16.gmra.mrb[0].mxu0 %v2713
    %v2879 = vpop.f32.mrb[0].mxu0
    %v2880 = vadd.f32 0.0, %v2879
    %v2881 = vpop.f32.mrb[0].mxu0
    %v2882 = vpop.f32.mrb[0].mxu0
    %v2883 = vadd.f32 0.0, %v2882
    %v2884 = vpop.f32.mrb[0].mxu0
    %2885 = vmatprep.mubr.bf16.mxu0 %v2716
    %2886 = vmatmul.mubr.bf16.gmra.mrb[0].mxu0 %v2715
    %v2887 = vpop.f32.mrb[0].mxu0
    %v2888 = vadd.f32 0.0, %v2887
    %v2889 = vpop.f32.mrb[0].mxu0
    %v2890 = vpop.f32.mrb[0].mxu0
    %v2891 = vadd.f32 0.0, %v2890
    %v2892 = vpop.f32.mrb[0].mxu0
    %2893 = vdwg.mxu0
    %v2894 = vadd.f32 %v2450, %v2880
    %v2895 = vadd.f32 %v2451, %v2883
    %v2896 = vadd.f32 %v2452, %v2888
    %v2897 = vadd.f32 %v2453, %v2891
    %v2898 = vld [vmem:[%s19] sm:$0x1]
    %v2900 = vlaneseq
    %v2901 = vshrl.u32 %v2900, 7
    %v2902 = vsub.s32 0, %v2901
    %v2903 = vrot.slane %v2898, %v2902
    %v2905 = vadd.f32 %v2894, %v2903
    %v2906 = vadd.f32 %v2895, %v2903
    %v2907 = vadd.f32 %v2896, %v2903
    %v2908 = vadd.f32 %v2897, %v2903
    %s2909 = scalar_lea.vmem %s4, 1
    %v2910 = vld [vmem:[%s2909] sm:$0x1]
    %s2911 = scalar_lea.vmem %s5, 1
    %v2912 = vld [vmem:[%s2911] sm:$0x1]
    %v2913 = vsel %vm130, %v2905, 0.0
    %2914 = vadd.xlane.f32.xlu0 %v2913
    %v2915 = vpop.xlane.xlu0 %2914
    %v2916 = vsel %vm130, %v2906, 0.0
    %2917 = vadd.xlane.f32.xlu0 %v2916
    %v2918 = vpop.xlane.xlu0 %2917
    %v2919 = vsel %vm130, %v2907, 0.0
    %2920 = vadd.xlane.f32.xlu0 %v2919
    %v2921 = vpop.xlane.xlu0 %2920
    %v2922 = vsel %vm130, %v2908, 0.0
    %2923 = vadd.xlane.f32.xlu0 %v2922
    %v2924 = vpop.xlane.xlu0 %2923
    %v2925 = vmul.f32 %v2915, %v143
    %v2926 = vmul.f32 %v2918, %v143
    %v2927 = vmul.f32 %v2921, %v143
    %v2928 = vmul.f32 %v2924, %v143
    %v2929 = vsub.f32 %v2905, %v2925
    %v2930 = vsub.f32 %v2906, %v2926
    %v2931 = vsub.f32 %v2907, %v2927
    %v2932 = vsub.f32 %v2908, %v2928
    %v2933 = vmul.f32 %v2929, %v2929
    %v2934 = vmul.f32 %v2930, %v2930
    %v2935 = vmul.f32 %v2931, %v2931
    %v2936 = vmul.f32 %v2932, %v2932
    %v2937 = vsel %vm130, %v2933, 0.0
    %2938 = vadd.xlane.f32.xlu0 %v2937
    %v2939 = vpop.xlane.xlu0 %2938
    %v2940 = vsel %vm130, %v2934, 0.0
    %2941 = vadd.xlane.f32.xlu0 %v2940
    %v2942 = vpop.xlane.xlu0 %2941
    %v2943 = vsel %vm130, %v2935, 0.0
    %2944 = vadd.xlane.f32.xlu0 %v2943
    %v2945 = vpop.xlane.xlu0 %2944
    %v2946 = vsel %vm130, %v2936, 0.0
    %2947 = vadd.xlane.f32.xlu0 %v2946
    %v2948 = vpop.xlane.xlu0 %2947
    %v2949 = vmul.f32 %v2939, %v143
    %v2950 = vmul.f32 %v2942, %v143
    %v2951 = vmul.f32 %v2945, %v143
    %v2952 = vmul.f32 %v2948, %v143
    %v2953 = vadd.f32 %v2949, 1e-05
    %v2954 = vadd.f32 %v2950, 1e-05
    %v2955 = vadd.f32 %v2951, 1e-05
    %v2956 = vadd.f32 %v2952, 1e-05
    %v2957 = vrsqrt.pop %v2953
    %v2958 = vrsqrt.pop %v2954
    %v2959 = vrsqrt.pop %v2955
    %v2960 = vrsqrt.pop %v2956
    %v2961 = vmul.f32 %v2929, %v2957
    %v2962 = vmul.f32 %v2930, %v2958
    %v2963 = vmul.f32 %v2931, %v2959
    %v2964 = vmul.f32 %v2932, %v2960
    %v2966 = vlaneseq
    %v2967 = vshrl.u32 %v2966, 7
    %v2968 = vsub.s32 0, %v2967
    %v2969 = vrot.slane %v2910, %v2968
    %v2971 = vmul.f32 %v2961, %v2969
    %v2972 = vmul.f32 %v2962, %v2969
    %v2973 = vmul.f32 %v2963, %v2969
    %v2974 = vmul.f32 %v2964, %v2969
    %v2976 = vlaneseq
    %v2977 = vshrl.u32 %v2976, 7
    %v2978 = vsub.s32 0, %v2977
    %v2979 = vrot.slane %v2912, %v2978
    %v2981 = vadd.f32 %v2971, %v2979
    %v2982 = vadd.f32 %v2972, %v2979
    %v2983 = vadd.f32 %v2973, %v2979
    %v2984 = vadd.f32 %v2974, %v2979
    %v2985 = vpack.c.bf16 %v2982, %v2981
    %v2986 = vpack.c.bf16 %v2984, %v2983
    %s2987 = scalar_lea.vmem %s6, 128
    %v2988 = vld [vmem:[%s2987] sm:$0xf]
    %v2989 = vld [vmem:[%s2987 + $0x4] sm:$0xf]
    %v2990 = vld [vmem:[%s2987 + $0x8] sm:$0xf]
    %v2991 = vld [vmem:[%s2987 + $0xc] sm:$0xf]
    %v2992 = vld [vmem:[%s2987 + $0x10] sm:$0xf]
    %v2993 = vld [vmem:[%s2987 + $0x14] sm:$0xf]
    %v2994 = vld [vmem:[%s2987 + $0x18] sm:$0xf]
    %v2995 = vld [vmem:[%s2987 + $0x1c] sm:$0xf]
    %s2996 = scalar_lea.vmem %s9, 4
    %v2997 = vld [vmem:[%s2996] sm:$0x1]
    %v2999 = vlaneseq
    %v3000 = vshrl.u32 %v2999, 7
    %v3001 = vsub.s32 0, %v3000
    %v3002 = vrot.slane %v2997, %v3001
    %v3012 = vunpack.c.l.b16 %v2988
    %v3013 = vunpack.c.l.b16 %v2989
    %v3014 = vunpack.c.l.b16 %v2990
    %v3015 = vunpack.c.l.b16 %v2991
    %v3016 = vunpack.c.l.b16 %v2992
    %v3017 = vunpack.c.l.b16 %v2993
    %v3018 = vunpack.c.l.b16 %v2994
    %v3019 = vunpack.c.l.b16 %v2995
    %v3020 = vpack.c.b16 %v3013, %v3012
    %v3021 = vpack.c.b16 %v3015, %v3014
    %v3022 = vpack.c.b16 %v3017, %v3016
    %v3023 = vpack.c.b16 %v3019, %v3018
    %v3029 = vsel %vm130, %v2985, 0
    %v3032 = vsel %vm130, %v2986, 0
    %3034 = vmatprep.subr.bf16.mxu0 0
    %3035 = vmatpush1.bf16.msra.mxu0 %v3020
    %3036 = vmatprep.subr.bf16.mxu0 0
    %3037 = vmatpush1.bf16.msra.mxu0 %v3021
    %3038 = vmatprep.subr.bf16.mxu0 0
    %3039 = vmatpush1.bf16.msra.mxu0 %v3022
    %3040 = vmatprep.subr.bf16.mxu0 0
    %3041 = vmatpush1.bf16.msra.mxu0 %v3023
    %3042 = vmatprep.subr.bf16.mxu0 0
    %3043 = vmatpush1.bf16.msra.mxu0 0
    %3044 = vmatprep.subr.bf16.mxu0 0
    %3045 = vmatpush1.bf16.msra.mxu0 0
    %3046 = vmatprep.subr.bf16.mxu0 0
    %3047 = vmatpush1.bf16.msra.mxu0 0
    %3048 = vmatprep.subr.bf16.mxu0 0
    %3049 = vmatpush1.bf16.msra.mxu0 0
    %3050 = vmatprep.subr.bf16.mxu0 0
    %3051 = vmatpush1.bf16.msra.mxu0 0
    %3052 = vmatprep.subr.bf16.mxu0 0
    %3053 = vmatpush1.bf16.msra.mxu0 0
    %3054 = vmatprep.subr.bf16.mxu0 0
    %3055 = vmatpush1.bf16.msra.mxu0 0
    %3056 = vmatprep.subr.bf16.mxu0 0
    %3057 = vmatpush1.bf16.msra.mxu0 0
    %3058 = vmatprep.subr.bf16.mxu0 0
    %3059 = vmatpush1.bf16.msra.mxu0 0
    %3060 = vmatprep.subr.bf16.mxu0 0
    %3061 = vmatpush1.bf16.msra.mxu0 0
    %3062 = vmatprep.subr.bf16.mxu0 0
    %3063 = vmatpush1.bf16.msra.mxu0 0
    %3064 = vmatprep.subr.bf16.mxu0 0
    %3065 = vmatpush1.bf16.msra.mxu0 0
    %3066 = vmatprep.mubr.bf16.mxu0 0
    %3067 = vmatmul.mubr.bf16.gmra.mrb[0].mxu0 %v3029
    %v3068 = vpop.f32.mrb[0].mxu0
    %v3069 = vadd.f32 %v3002, %v3068
    %v3070 = vpop.f32.mrb[0].mxu0
    %v3071 = vpop.f32.mrb[0].mxu0
    %v3072 = vadd.f32 %v3002, %v3071
    %v3073 = vpop.f32.mrb[0].mxu0
    %3074 = vmatprep.mubr.bf16.mxu0 0
    %3075 = vmatmul.mubr.bf16.gmra.mrb[0].mxu0 %v3032
    %v3076 = vpop.f32.mrb[0].mxu0
    %v3077 = vadd.f32 %v3002, %v3076
    %v3078 = vpop.f32.mrb[0].mxu0
    %v3079 = vpop.f32.mrb[0].mxu0
    %v3080 = vadd.f32 %v3002, %v3079
    %v3081 = vpop.f32.mrb[0].mxu0
    %3082 = vdwg.mxu0
    %s3083 = scalar_lea.vmem %s7, 128
    %v3084 = vld [vmem:[%s3083] sm:$0xf]
    %v3085 = vld [vmem:[%s3083 + $0x4] sm:$0xf]
    %v3086 = vld [vmem:[%s3083 + $0x8] sm:$0xf]
    %v3087 = vld [vmem:[%s3083 + $0xc] sm:$0xf]
    %v3088 = vld [vmem:[%s3083 + $0x10] sm:$0xf]
    %v3089 = vld [vmem:[%s3083 + $0x14] sm:$0xf]
    %v3090 = vld [vmem:[%s3083 + $0x18] sm:$0xf]
    %v3091 = vld [vmem:[%s3083 + $0x1c] sm:$0xf]
    %s3092 = scalar_lea.vmem %s10, 4
    %v3093 = vld [vmem:[%s3092] sm:$0x1]
    %v3095 = vlaneseq
    %v3096 = vshrl.u32 %v3095, 7
    %v3097 = vsub.s32 0, %v3096
    %v3098 = vrot.slane %v3093, %v3097
    %v3108 = vunpack.c.l.b16 %v3084
    %v3109 = vunpack.c.l.b16 %v3085
    %v3110 = vunpack.c.l.b16 %v3086
    %v3111 = vunpack.c.l.b16 %v3087
    %v3112 = vunpack.c.l.b16 %v3088
    %v3113 = vunpack.c.l.b16 %v3089
    %v3114 = vunpack.c.l.b16 %v3090
    %v3115 = vunpack.c.l.b16 %v3091
    %v3116 = vpack.c.b16 %v3109, %v3108
    %v3117 = vpack.c.b16 %v3111, %v3110
    %v3118 = vpack.c.b16 %v3113, %v3112
    %v3119 = vpack.c.b16 %v3115, %v3114
    %3124 = vmatprep.subr.bf16.mxu0 0
    %3125 = vmatpush1.bf16.msra.mxu0 %v3116
    %3126 = vmatprep.subr.bf16.mxu0 0
    %3127 = vmatpush1.bf16.msra.mxu0 %v3117
    %3128 = vmatprep.subr.bf16.mxu0 0
    %3129 = vmatpush1.bf16.msra.mxu0 %v3118
    %3130 = vmatprep.subr.bf16.mxu0 0
    %3131 = vmatpush1.bf16.msra.mxu0 %v3119
    %3132 = vmatprep.subr.bf16.mxu0 0
    %3133 = vmatpush1.bf16.msra.mxu0 0
    %3134 = vmatprep.subr.bf16.mxu0 0
    %3135 = vmatpush1.bf16.msra.mxu0 0
    %3136 = vmatprep.subr.bf16.mxu0 0
    %3137 = vmatpush1.bf16.msra.mxu0 0
    %3138 = vmatprep.subr.bf16.mxu0 0
    %3139 = vmatpush1.bf16.msra.mxu0 0
    %3140 = vmatprep.subr.bf16.mxu0 0
    %3141 = vmatpush1.bf16.msra.mxu0 0
    %3142 = vmatprep.subr.bf16.mxu0 0
    %3143 = vmatpush1.bf16.msra.mxu0 0
    %3144 = vmatprep.subr.bf16.mxu0 0
    %3145 = vmatpush1.bf16.msra.mxu0 0
    %3146 = vmatprep.subr.bf16.mxu0 0
    %3147 = vmatpush1.bf16.msra.mxu0 0
    %3148 = vmatprep.subr.bf16.mxu0 0
    %3149 = vmatpush1.bf16.msra.mxu0 0
    %3150 = vmatprep.subr.bf16.mxu0 0
    %3151 = vmatpush1.bf16.msra.mxu0 0
    %3152 = vmatprep.subr.bf16.mxu0 0
    %3153 = vmatpush1.bf16.msra.mxu0 0
    %3154 = vmatprep.subr.bf16.mxu0 0
    %3155 = vmatpush1.bf16.msra.mxu0 0
    %3156 = vmatprep.mubr.bf16.mxu0 0
    %3157 = vmatmul.mubr.bf16.gmra.mrb[0].mxu0 %v3029
    %v3158 = vpop.f32.mrb[0].mxu0
    %v3159 = vadd.f32 %v3098, %v3158
    %v3160 = vpop.f32.mrb[0].mxu0
    %v3161 = vpop.f32.mrb[0].mxu0
    %v3162 = vadd.f32 %v3098, %v3161
    %v3163 = vpop.f32.mrb[0].mxu0
    %3164 = vmatprep.mubr.bf16.mxu0 0
    %3165 = vmatmul.mubr.bf16.gmra.mrb[0].mxu0 %v3032
    %v3166 = vpop.f32.mrb[0].mxu0
    %v3167 = vadd.f32 %v3098, %v3166
    %v3168 = vpop.f32.mrb[0].mxu0
    %v3169 = vpop.f32.mrb[0].mxu0
    %v3170 = vadd.f32 %v3098, %v3169
    %v3171 = vpop.f32.mrb[0].mxu0
    %3172 = vdwg.mxu0
    %s3173 = scalar_lea.vmem %s8, 128
    %v3174 = vld [vmem:[%s3173] sm:$0xf]
    %v3175 = vld [vmem:[%s3173 + $0x4] sm:$0xf]
    %v3176 = vld [vmem:[%s3173 + $0x8] sm:$0xf]
    %v3177 = vld [vmem:[%s3173 + $0xc] sm:$0xf]
    %v3178 = vld [vmem:[%s3173 + $0x10] sm:$0xf]
    %v3179 = vld [vmem:[%s3173 + $0x14] sm:$0xf]
    %v3180 = vld [vmem:[%s3173 + $0x18] sm:$0xf]
    %v3181 = vld [vmem:[%s3173 + $0x1c] sm:$0xf]
    %s3182 = scalar_lea.vmem %s11, 4
    %v3183 = vld [vmem:[%s3182] sm:$0x1]
    %v3185 = vlaneseq
    %v3186 = vshrl.u32 %v3185, 7
    %v3187 = vsub.s32 0, %v3186
    %v3188 = vrot.slane %v3183, %v3187
    %v3198 = vunpack.c.l.b16 %v3174
    %v3199 = vunpack.c.l.b16 %v3175
    %v3200 = vunpack.c.l.b16 %v3176
    %v3201 = vunpack.c.l.b16 %v3177
    %v3202 = vunpack.c.l.b16 %v3178
    %v3203 = vunpack.c.l.b16 %v3179
    %v3204 = vunpack.c.l.b16 %v3180
    %v3205 = vunpack.c.l.b16 %v3181
    %v3206 = vpack.c.b16 %v3199, %v3198
    %v3207 = vpack.c.b16 %v3201, %v3200
    %v3208 = vpack.c.b16 %v3203, %v3202
    %v3209 = vpack.c.b16 %v3205, %v3204
    %3214 = vmatprep.subr.bf16.mxu0 0
    %3215 = vmatpush1.bf16.msra.mxu0 %v3206
    %3216 = vmatprep.subr.bf16.mxu0 0
    %3217 = vmatpush1.bf16.msra.mxu0 %v3207
    %3218 = vmatprep.subr.bf16.mxu0 0
    %3219 = vmatpush1.bf16.msra.mxu0 %v3208
    %3220 = vmatprep.subr.bf16.mxu0 0
    %3221 = vmatpush1.bf16.msra.mxu0 %v3209
    %3222 = vmatprep.subr.bf16.mxu0 0
    %3223 = vmatpush1.bf16.msra.mxu0 0
    %3224 = vmatprep.subr.bf16.mxu0 0
    %3225 = vmatpush1.bf16.msra.mxu0 0
    %3226 = vmatprep.subr.bf16.mxu0 0
    %3227 = vmatpush1.bf16.msra.mxu0 0
    %3228 = vmatprep.subr.bf16.mxu0 0
    %3229 = vmatpush1.bf16.msra.mxu0 0
    %3230 = vmatprep.subr.bf16.mxu0 0
    %3231 = vmatpush1.bf16.msra.mxu0 0
    %3232 = vmatprep.subr.bf16.mxu0 0
    %3233 = vmatpush1.bf16.msra.mxu0 0
    %3234 = vmatprep.subr.bf16.mxu0 0
    %3235 = vmatpush1.bf16.msra.mxu0 0
    %3236 = vmatprep.subr.bf16.mxu0 0
    %3237 = vmatpush1.bf16.msra.mxu0 0
    %3238 = vmatprep.subr.bf16.mxu0 0
    %3239 = vmatpush1.bf16.msra.mxu0 0
    %3240 = vmatprep.subr.bf16.mxu0 0
    %3241 = vmatpush1.bf16.msra.mxu0 0
    %3242 = vmatprep.subr.bf16.mxu0 0
    %3243 = vmatpush1.bf16.msra.mxu0 0
    %3244 = vmatprep.subr.bf16.mxu0 0
    %3245 = vmatpush1.bf16.msra.mxu0 0
    %3246 = vmatprep.mubr.bf16.mxu0 0
    %3247 = vmatmul.mubr.bf16.gmra.mrb[0].mxu0 %v3029
    %v3248 = vpop.f32.mrb[0].mxu0
    %v3249 = vadd.f32 %v3188, %v3248
    %v3250 = vpop.f32.mrb[0].mxu0
    %v3251 = vpop.f32.mrb[0].mxu0
    %v3252 = vadd.f32 %v3188, %v3251
    %v3253 = vpop.f32.mrb[0].mxu0
    %3254 = vmatprep.mubr.bf16.mxu0 0
    %3255 = vmatmul.mubr.bf16.gmra.mrb[0].mxu0 %v3032
    %v3256 = vpop.f32.mrb[0].mxu0
    %v3257 = vadd.f32 %v3188, %v3256
    %v3258 = vpop.f32.mrb[0].mxu0
    %v3259 = vpop.f32.mrb[0].mxu0
    %v3260 = vadd.f32 %v3188, %v3259
    %v3261 = vpop.f32.mrb[0].mxu0
    %3262 = vdwg.mxu0
    %v3264 = vsel %vm476, %v3069, 0
    %v3267 = vsel %vm476, %v3072, 0
    %v3270 = vsel %vm476, %v3077, 0
    %v3273 = vsel %vm476, %v3080, 0
    %v3276 = vsel %vm476, %v3159, 0
    %v3279 = vsel %vm476, %v3162, 0
    %v3282 = vsel %vm476, %v3167, 0
    %v3285 = vsel %vm476, %v3170, 0
    %3287 = vmatprep.subr.mxu0 0.0
    %3288 = vmatpush1.xpose.msra.mxu0 %v3276
    %3289 = vmatprep.subr.mxu0 0.0
    %3290 = vmatpush1.xpose.msra.mxu0 %v3279
    %3291 = vmatprep.subr.mxu0 0.0
    %3292 = vmatpush1.xpose.msra.mxu0 %v3282
    %3293 = vmatprep.subr.mxu0 0.0
    %3294 = vmatpush1.xpose.msra.mxu0 %v3285
    %3295 = vmatprep.subr.mxu0 0.0
    %3296 = vmatpush1.xpose.msra.mxu0 0.0
    %3297 = vmatprep.subr.mxu0 0.0
    %3298 = vmatpush1.xpose.msra.mxu0 0.0
    %3299 = vmatprep.subr.mxu0 0.0
    %3300 = vmatpush1.xpose.msra.mxu0 0.0
    %3301 = vmatprep.subr.mxu0 0.0
    %3302 = vmatpush1.xpose.msra.mxu0 0.0
    %3303 = vmatprep.subr.mxu0 0.0
    %3304 = vmatpush1.xpose.msra.mxu0 0.0
    %3305 = vmatprep.subr.mxu0 0.0
    %3306 = vmatpush1.xpose.msra.mxu0 0.0
    %3307 = vmatprep.subr.mxu0 0.0
    %3308 = vmatpush1.xpose.msra.mxu0 0.0
    %3309 = vmatprep.subr.mxu0 0.0
    %3310 = vmatpush1.xpose.msra.mxu0 0.0
    %3311 = vmatprep.subr.mxu0 0.0
    %3312 = vmatpush1.xpose.msra.mxu0 0.0
    %3313 = vmatprep.subr.mxu0 0.0
    %3314 = vmatpush1.xpose.msra.mxu0 0.0
    %3315 = vmatprep.subr.mxu0 0.0
    %3316 = vmatpush1.xpose.msra.mxu0 0.0
    %3317 = vmatprep.subr.mxu0 0.0
    %3318 = vmatpush1.xpose.msra.mxu0 0.0
    %3319 = vmatprep.subr.mxu0 0.0
    %3320 = vmatpush1.xpose.msra.mxu0 0.0
    %3321 = vmatprep.subr.mxu0 0.0
    %3322 = vmatpush1.xpose.msra.mxu0 0.0
    %3323 = vmatprep.subr.mxu0 0.0
    %3324 = vmatpush1.xpose.msra.mxu0 0.0
    %3325 = vmatprep.subr.mxu0 0.0
    %3326 = vmatpush1.xpose.msra.mxu0 0.0
    %3327 = vmatprep.subr.mxu0 0.0
    %3328 = vmatpush1.xpose.msra.mxu0 0.0
    %3329 = vmatprep.subr.mxu0 0.0
    %3330 = vmatpush1.xpose.msra.mxu0 0.0
    %3331 = vmatprep.subr.mxu0 0.0
    %3332 = vmatpush1.xpose.msra.mxu0 0.0
    %3333 = vmatprep.subr.mxu0 0.0
    %3334 = vmatpush1.xpose.msra.mxu0 0.0
    %3335 = vmatprep.subr.mxu0 0.0
    %3336 = vmatpush1.xpose.msra.mxu0 0.0
    %3337 = vmatprep.subr.mxu0 0.0
    %3338 = vmatpush1.xpose.msra.mxu0 0.0
    %3339 = vmatprep.subr.mxu0 0.0
    %3340 = vmatpush1.xpose.msra.mxu0 0.0
    %3341 = vmatprep.subr.mxu0 0.0
    %3342 = vmatpush1.xpose.msra.mxu0 0.0
    %3343 = vmatprep.subr.mxu0 0.0
    %3344 = vmatpush1.xpose.msra.mxu0 0.0
    %3345 = vmatprep.subr.mxu0 0.0
    %3346 = vmatpush1.xpose.msra.mxu0 0.0
    %3347 = vmatprep.subr.mxu0 0.0
    %3348 = vmatpush1.xpose.msra.mxu0 0.0
    %3349 = vmatprep.subr.mxu0 0.0
    %3350 = vmatpush1.xpose.msra.mxu0 0.0
    %3351 = vmatprep.mubr.f32.mxu0 0.0
    %3352 = vmatmul.mubr.f32.gmra.mrb[0].mxu0 %v3264
    %v3353 = vpop.f32.mrb[0].mxu0
    %v3354 = vadd.f32 0.0, %v3353
    %v3355 = vpop.f32.mrb[0].mxu0
    %3356 = vmatprep.mubr.f32.mxu0 0.0
    %3357 = vmatmul.mubr.f32.gmra.mrb[0].mxu0 %v3267
    %v3358 = vpop.f32.mrb[0].mxu0
    %v3359 = vadd.f32 0.0, %v3358
    %v3360 = vpop.f32.mrb[0].mxu0
    %3361 = vmatprep.mubr.f32.mxu0 0.0
    %3362 = vmatmul.mubr.f32.gmra.mrb[0].mxu0 %v3270
    %v3363 = vpop.f32.mrb[0].mxu0
    %v3364 = vadd.f32 0.0, %v3363
    %v3365 = vpop.f32.mrb[0].mxu0
    %3366 = vmatprep.mubr.f32.mxu0 0.0
    %3367 = vmatmul.mubr.f32.gmra.mrb[0].mxu0 %v3273
    %v3368 = vpop.f32.mrb[0].mxu0
    %v3369 = vadd.f32 0.0, %v3368
    %v3370 = vpop.f32.mrb[0].mxu0
    %3371 = vdwg.mxu0
    %v3372 = vmul.f32 %v3354, 0.25
    %v3373 = vmul.f32 %v3359, 0.25
    %v3374 = vmul.f32 %v3364, 0.25
    %v3375 = vmul.f32 %v3369, 0.25
    %v3376 = vadd.f32 %v3372, %v120
    %v3377 = vadd.f32 %v3373, %v121
    %v3378 = vadd.f32 %v3374, %v122
    %v3379 = vadd.f32 %v3375, %v123
    %v3380 = vsel %vm594, %v3376, -inf
    %3381 = vmax.xlane.f32.xlu0 %v3380
    %v3382 = vpop.xlane.xlu0 %3381
    %v3383 = vsel %vm594, %v3377, -inf
    %3384 = vmax.xlane.f32.xlu0 %v3383
    %v3385 = vpop.xlane.xlu0 %3384
    %v3386 = vsel %vm594, %v3378, -inf
    %3387 = vmax.xlane.f32.xlu0 %v3386
    %v3388 = vpop.xlane.xlu0 %3387
    %v3389 = vsel %vm594, %v3379, -inf
    %3390 = vmax.xlane.f32.xlu0 %v3389
    %v3391 = vpop.xlane.xlu0 %3390
    %v3392 = vsub.f32 %v3376, %v3382
    %v3393 = vsub.f32 %v3377, %v3385
    %v3394 = vsub.f32 %v3378, %v3388
    %v3395 = vsub.f32 %v3379, %v3391
    %v3396 = vmul.f32 %v3392, 1.442695
    %v3397 = vpow.pop %v3396
    %v3398 = vmul.f32 %v3393, 1.442695
    %v3399 = vpow.pop %v3398
    %v3400 = vmul.f32 %v3394, 1.442695
    %v3401 = vpow.pop %v3400
    %v3402 = vmul.f32 %v3395, 1.442695
    %v3403 = vpow.pop %v3402
    %v3404 = vsel %vm594, %v3397, 0.0
    %3405 = vadd.xlane.f32.xlu0 %v3404
    %v3406 = vpop.xlane.xlu0 %3405
    %v3407 = vsel %vm594, %v3399, 0.0
    %3408 = vadd.xlane.f32.xlu0 %v3407
    %v3409 = vpop.xlane.xlu0 %3408
    %v3410 = vsel %vm594, %v3401, 0.0
    %3411 = vadd.xlane.f32.xlu0 %v3410
    %v3412 = vpop.xlane.xlu0 %3411
    %v3413 = vsel %vm594, %v3403, 0.0
    %3414 = vadd.xlane.f32.xlu0 %v3413
    %v3415 = vpop.xlane.xlu0 %3414
    %v3416 = vrcp.pop %v3406
    %v3417 = vmul.f32 %v3397, %v3416
    %v3418 = vrcp.pop %v3409
    %v3419 = vmul.f32 %v3399, %v3418
    %v3420 = vrcp.pop %v3412
    %v3421 = vmul.f32 %v3401, %v3420
    %v3422 = vrcp.pop %v3415
    %v3423 = vmul.f32 %v3403, %v3422
    %v3424 = vpack.c.bf16 %v3419, %v3417
    %v3425 = vpack.c.bf16 %v3423, %v3421
    %v3426 = vpack.c.bf16 %v3252, %v3249
    %v3427 = vpack.c.bf16 %v3260, %v3257
    %v3429 = vsel %vm594, %v3424, 0
    %v3432 = vsel %vm594, %v3425, 0
    %3434 = vmatprep.subr.bf16.mxu0 0
    %3435 = vmatpush1.bf16.msra.mxu0 %v3426
    %3436 = vmatprep.subr.bf16.mxu0 0
    %3437 = vmatpush1.bf16.msra.mxu0 %v3427
    %3438 = vmatprep.subr.bf16.mxu0 0
    %3439 = vmatpush1.bf16.msra.mxu0 0
    %3440 = vmatprep.subr.bf16.mxu0 0
    %3441 = vmatpush1.bf16.msra.mxu0 0
    %3442 = vmatprep.subr.bf16.mxu0 0
    %3443 = vmatpush1.bf16.msra.mxu0 0
    %3444 = vmatprep.subr.bf16.mxu0 0
    %3445 = vmatpush1.bf16.msra.mxu0 0
    %3446 = vmatprep.subr.bf16.mxu0 0
    %3447 = vmatpush1.bf16.msra.mxu0 0
    %3448 = vmatprep.subr.bf16.mxu0 0
    %3449 = vmatpush1.bf16.msra.mxu0 0
    %3450 = vmatprep.subr.bf16.mxu0 0
    %3451 = vmatpush1.bf16.msra.mxu0 0
    %3452 = vmatprep.subr.bf16.mxu0 0
    %3453 = vmatpush1.bf16.msra.mxu0 0
    %3454 = vmatprep.subr.bf16.mxu0 0
    %3455 = vmatpush1.bf16.msra.mxu0 0
    %3456 = vmatprep.subr.bf16.mxu0 0
    %3457 = vmatpush1.bf16.msra.mxu0 0
    %3458 = vmatprep.subr.bf16.mxu0 0
    %3459 = vmatpush1.bf16.msra.mxu0 0
    %3460 = vmatprep.subr.bf16.mxu0 0
    %3461 = vmatpush1.bf16.msra.mxu0 0
    %3462 = vmatprep.subr.bf16.mxu0 0
    %3463 = vmatpush1.bf16.msra.mxu0 0
    %3464 = vmatprep.subr.bf16.mxu0 0
    %3465 = vmatpush1.bf16.msra.mxu0 0
    %3466 = vmatprep.mubr.bf16.mxu0 0
    %3467 = vmatmul.mubr.bf16.gmra.mrb[0].mxu0 %v3429
    %v3468 = vpop.f32.mrb[0].mxu0
    %v3469 = vadd.f32 0.0, %v3468
    %v3470 = vpop.f32.mrb[0].mxu0
    %v3471 = vpop.f32.mrb[0].mxu0
    %v3472 = vadd.f32 0.0, %v3471
    %v3473 = vpop.f32.mrb[0].mxu0
    %3474 = vmatprep.mubr.bf16.mxu0 0
    %3475 = vmatmul.mubr.bf16.gmra.mrb[0].mxu0 %v3432
    %v3476 = vpop.f32.mrb[0].mxu0
    %v3477 = vadd.f32 0.0, %v3476
    %v3478 = vpop.f32.mrb[0].mxu0
    %v3479 = vpop.f32.mrb[0].mxu0
    %v3480 = vadd.f32 0.0, %v3479
    %v3481 = vpop.f32.mrb[0].mxu0
    %3482 = vdwg.mxu0
    %v3483 = vpack.c.bf16 %v3472, %v3469
    %v3484 = vpack.c.bf16 %v3480, %v3477
    %s3485 = scalar_lea.vmem %s12, 32
    %v3486 = vld [vmem:[%s3485] sm:$0xf]
    %v3487 = vld [vmem:[%s3485 + $0x4] sm:$0xf]
    %s3488 = scalar_lea.vmem %s6, 160
    %v3489 = vld [vmem:[%s3488] sm:$0xf]
    %v3490 = vld [vmem:[%s3488 + $0x4] sm:$0xf]
    %v3491 = vld [vmem:[%s3488 + $0x8] sm:$0xf]
    %v3492 = vld [vmem:[%s3488 + $0xc] sm:$0xf]
    %v3493 = vld [vmem:[%s3488 + $0x10] sm:$0xf]
    %v3494 = vld [vmem:[%s3488 + $0x14] sm:$0xf]
    %v3495 = vld [vmem:[%s3488 + $0x18] sm:$0xf]
    %v3496 = vld [vmem:[%s3488 + $0x1c] sm:$0xf]
    %s3497 = scalar_lea.vmem %s9, 5
    %v3498 = vld [vmem:[%s3497] sm:$0x1]
    %v3500 = vlaneseq
    %v3501 = vshrl.u32 %v3500, 7
    %v3502 = vsub.s32 0, %v3501
    %v3503 = vrot.slane %v3498, %v3502
    %v3513 = vunpack.c.l.b16 %v3489
    %v3514 = vunpack.c.l.b16 %v3490
    %v3515 = vunpack.c.l.b16 %v3491
    %v3516 = vunpack.c.l.b16 %v3492
    %v3517 = vunpack.c.l.b16 %v3493
    %v3518 = vunpack.c.l.b16 %v3494
    %v3519 = vunpack.c.l.b16 %v3495
    %v3520 = vunpack.c.l.b16 %v3496
    %v3521 = vpack.c.b16 %v3514, %v3513
    %v3522 = vpack.c.b16 %v3516, %v3515
    %v3523 = vpack.c.b16 %v3518, %v3517
    %v3524 = vpack.c.b16 %v3520, %v3519
    %3529 = vmatprep.subr.bf16.mxu0 0
    %3530 = vmatpush1.bf16.msra.mxu0 %v3521
    %3531 = vmatprep.subr.bf16.mxu0 0
    %3532 = vmatpush1.bf16.msra.mxu0 %v3522
    %3533 = vmatprep.subr.bf16.mxu0 0
    %3534 = vmatpush1.bf16.msra.mxu0 %v3523
    %3535 = vmatprep.subr.bf16.mxu0 0
    %3536 = vmatpush1.bf16.msra.mxu0 %v3524
    %3537 = vmatprep.subr.bf16.mxu0 0
    %3538 = vmatpush1.bf16.msra.mxu0 0
    %3539 = vmatprep.subr.bf16.mxu0 0
    %3540 = vmatpush1.bf16.msra.mxu0 0
    %3541 = vmatprep.subr.bf16.mxu0 0
    %3542 = vmatpush1.bf16.msra.mxu0 0
    %3543 = vmatprep.subr.bf16.mxu0 0
    %3544 = vmatpush1.bf16.msra.mxu0 0
    %3545 = vmatprep.subr.bf16.mxu0 0
    %3546 = vmatpush1.bf16.msra.mxu0 0
    %3547 = vmatprep.subr.bf16.mxu0 0
    %3548 = vmatpush1.bf16.msra.mxu0 0
    %3549 = vmatprep.subr.bf16.mxu0 0
    %3550 = vmatpush1.bf16.msra.mxu0 0
    %3551 = vmatprep.subr.bf16.mxu0 0
    %3552 = vmatpush1.bf16.msra.mxu0 0
    %3553 = vmatprep.subr.bf16.mxu0 0
    %3554 = vmatpush1.bf16.msra.mxu0 0
    %3555 = vmatprep.subr.bf16.mxu0 0
    %3556 = vmatpush1.bf16.msra.mxu0 0
    %3557 = vmatprep.subr.bf16.mxu0 0
    %3558 = vmatpush1.bf16.msra.mxu0 0
    %3559 = vmatprep.subr.bf16.mxu0 0
    %3560 = vmatpush1.bf16.msra.mxu0 0
    %3561 = vmatprep.mubr.bf16.mxu0 0
    %3562 = vmatmul.mubr.bf16.gmra.mrb[0].mxu0 %v3029
    %v3563 = vpop.f32.mrb[0].mxu0
    %v3564 = vadd.f32 %v3503, %v3563
    %v3565 = vpop.f32.mrb[0].mxu0
    %v3566 = vpop.f32.mrb[0].mxu0
    %v3567 = vadd.f32 %v3503, %v3566
    %v3568 = vpop.f32.mrb[0].mxu0
    %3569 = vmatprep.mubr.bf16.mxu0 0
    %3570 = vmatmul.mubr.bf16.gmra.mrb[0].mxu0 %v3032
    %v3571 = vpop.f32.mrb[0].mxu0
    %v3572 = vadd.f32 %v3503, %v3571
    %v3573 = vpop.f32.mrb[0].mxu0
    %v3574 = vpop.f32.mrb[0].mxu0
    %v3575 = vadd.f32 %v3503, %v3574
    %v3576 = vpop.f32.mrb[0].mxu0
    %3577 = vdwg.mxu0
    %s3578 = scalar_lea.vmem %s7, 160
    %v3579 = vld [vmem:[%s3578] sm:$0xf]
    %v3580 = vld [vmem:[%s3578 + $0x4] sm:$0xf]
    %v3581 = vld [vmem:[%s3578 + $0x8] sm:$0xf]
    %v3582 = vld [vmem:[%s3578 + $0xc] sm:$0xf]
    %v3583 = vld [vmem:[%s3578 + $0x10] sm:$0xf]
    %v3584 = vld [vmem:[%s3578 + $0x14] sm:$0xf]
    %v3585 = vld [vmem:[%s3578 + $0x18] sm:$0xf]
    %v3586 = vld [vmem:[%s3578 + $0x1c] sm:$0xf]
    %s3587 = scalar_lea.vmem %s10, 5
    %v3588 = vld [vmem:[%s3587] sm:$0x1]
    %v3590 = vlaneseq
    %v3591 = vshrl.u32 %v3590, 7
    %v3592 = vsub.s32 0, %v3591
    %v3593 = vrot.slane %v3588, %v3592
    %v3603 = vunpack.c.l.b16 %v3579
    %v3604 = vunpack.c.l.b16 %v3580
    %v3605 = vunpack.c.l.b16 %v3581
    %v3606 = vunpack.c.l.b16 %v3582
    %v3607 = vunpack.c.l.b16 %v3583
    %v3608 = vunpack.c.l.b16 %v3584
    %v3609 = vunpack.c.l.b16 %v3585
    %v3610 = vunpack.c.l.b16 %v3586
    %v3611 = vpack.c.b16 %v3604, %v3603
    %v3612 = vpack.c.b16 %v3606, %v3605
    %v3613 = vpack.c.b16 %v3608, %v3607
    %v3614 = vpack.c.b16 %v3610, %v3609
    %3619 = vmatprep.subr.bf16.mxu0 0
    %3620 = vmatpush1.bf16.msra.mxu0 %v3611
    %3621 = vmatprep.subr.bf16.mxu0 0
    %3622 = vmatpush1.bf16.msra.mxu0 %v3612
    %3623 = vmatprep.subr.bf16.mxu0 0
    %3624 = vmatpush1.bf16.msra.mxu0 %v3613
    %3625 = vmatprep.subr.bf16.mxu0 0
    %3626 = vmatpush1.bf16.msra.mxu0 %v3614
    %3627 = vmatprep.subr.bf16.mxu0 0
    %3628 = vmatpush1.bf16.msra.mxu0 0
    %3629 = vmatprep.subr.bf16.mxu0 0
    %3630 = vmatpush1.bf16.msra.mxu0 0
    %3631 = vmatprep.subr.bf16.mxu0 0
    %3632 = vmatpush1.bf16.msra.mxu0 0
    %3633 = vmatprep.subr.bf16.mxu0 0
    %3634 = vmatpush1.bf16.msra.mxu0 0
    %3635 = vmatprep.subr.bf16.mxu0 0
    %3636 = vmatpush1.bf16.msra.mxu0 0
    %3637 = vmatprep.subr.bf16.mxu0 0
    %3638 = vmatpush1.bf16.msra.mxu0 0
    %3639 = vmatprep.subr.bf16.mxu0 0
    %3640 = vmatpush1.bf16.msra.mxu0 0
    %3641 = vmatprep.subr.bf16.mxu0 0
    %3642 = vmatpush1.bf16.msra.mxu0 0
    %3643 = vmatprep.subr.bf16.mxu0 0
    %3644 = vmatpush1.bf16.msra.mxu0 0
    %3645 = vmatprep.subr.bf16.mxu0 0
    %3646 = vmatpush1.bf16.msra.mxu0 0
    %3647 = vmatprep.subr.bf16.mxu0 0
    %3648 = vmatpush1.bf16.msra.mxu0 0
    %3649 = vmatprep.subr.bf16.mxu0 0
    %3650 = vmatpush1.bf16.msra.mxu0 0
    %3651 = vmatprep.mubr.bf16.mxu0 0
    %3652 = vmatmul.mubr.bf16.gmra.mrb[0].mxu0 %v3029
    %v3653 = vpop.f32.mrb[0].mxu0
    %v3654 = vadd.f32 %v3593, %v3653
    %v3655 = vpop.f32.mrb[0].mxu0
    %v3656 = vpop.f32.mrb[0].mxu0
    %v3657 = vadd.f32 %v3593, %v3656
    %v3658 = vpop.f32.mrb[0].mxu0
    %3659 = vmatprep.mubr.bf16.mxu0 0
    %3660 = vmatmul.mubr.bf16.gmra.mrb[0].mxu0 %v3032
    %v3661 = vpop.f32.mrb[0].mxu0
    %v3662 = vadd.f32 %v3593, %v3661
    %v3663 = vpop.f32.mrb[0].mxu0
    %v3664 = vpop.f32.mrb[0].mxu0
    %v3665 = vadd.f32 %v3593, %v3664
    %v3666 = vpop.f32.mrb[0].mxu0
    %3667 = vdwg.mxu0
    %s3668 = scalar_lea.vmem %s8, 160
    %v3669 = vld [vmem:[%s3668] sm:$0xf]
    %v3670 = vld [vmem:[%s3668 + $0x4] sm:$0xf]
    %v3671 = vld [vmem:[%s3668 + $0x8] sm:$0xf]
    %v3672 = vld [vmem:[%s3668 + $0xc] sm:$0xf]
    %v3673 = vld [vmem:[%s3668 + $0x10] sm:$0xf]
    %v3674 = vld [vmem:[%s3668 + $0x14] sm:$0xf]
    %v3675 = vld [vmem:[%s3668 + $0x18] sm:$0xf]
    %v3676 = vld [vmem:[%s3668 + $0x1c] sm:$0xf]
    %s3677 = scalar_lea.vmem %s11, 5
    %v3678 = vld [vmem:[%s3677] sm:$0x1]
    %v3680 = vlaneseq
    %v3681 = vshrl.u32 %v3680, 7
    %v3682 = vsub.s32 0, %v3681
    %v3683 = vrot.slane %v3678, %v3682
    %v3693 = vunpack.c.l.b16 %v3669
    %v3694 = vunpack.c.l.b16 %v3670
    %v3695 = vunpack.c.l.b16 %v3671
    %v3696 = vunpack.c.l.b16 %v3672
    %v3697 = vunpack.c.l.b16 %v3673
    %v3698 = vunpack.c.l.b16 %v3674
    %v3699 = vunpack.c.l.b16 %v3675
    %v3700 = vunpack.c.l.b16 %v3676
    %v3701 = vpack.c.b16 %v3694, %v3693
    %v3702 = vpack.c.b16 %v3696, %v3695
    %v3703 = vpack.c.b16 %v3698, %v3697
    %v3704 = vpack.c.b16 %v3700, %v3699
    %3709 = vmatprep.subr.bf16.mxu0 0
    %3710 = vmatpush1.bf16.msra.mxu0 %v3701
    %3711 = vmatprep.subr.bf16.mxu0 0
    %3712 = vmatpush1.bf16.msra.mxu0 %v3702
    %3713 = vmatprep.subr.bf16.mxu0 0
    %3714 = vmatpush1.bf16.msra.mxu0 %v3703
    %3715 = vmatprep.subr.bf16.mxu0 0
    %3716 = vmatpush1.bf16.msra.mxu0 %v3704
    %3717 = vmatprep.subr.bf16.mxu0 0
    %3718 = vmatpush1.bf16.msra.mxu0 0
    %3719 = vmatprep.subr.bf16.mxu0 0
    %3720 = vmatpush1.bf16.msra.mxu0 0
    %3721 = vmatprep.subr.bf16.mxu0 0
    %3722 = vmatpush1.bf16.msra.mxu0 0
    %3723 = vmatprep.subr.bf16.mxu0 0
    %3724 = vmatpush1.bf16.msra.mxu0 0
    %3725 = vmatprep.subr.bf16.mxu0 0
    %3726 = vmatpush1.bf16.msra.mxu0 0
    %3727 = vmatprep.subr.bf16.mxu0 0
    %3728 = vmatpush1.bf16.msra.mxu0 0
    %3729 = vmatprep.subr.bf16.mxu0 0
    %3730 = vmatpush1.bf16.msra.mxu0 0
    %3731 = vmatprep.subr.bf16.mxu0 0
    %3732 = vmatpush1.bf16.msra.mxu0 0
    %3733 = vmatprep.subr.bf16.mxu0 0
    %3734 = vmatpush1.bf16.msra.mxu0 0
    %3735 = vmatprep.subr.bf16.mxu0 0
    %3736 = vmatpush1.bf16.msra.mxu0 0
    %3737 = vmatprep.subr.bf16.mxu0 0
    %3738 = vmatpush1.bf16.msra.mxu0 0
    %3739 = vmatprep.subr.bf16.mxu0 0
    %3740 = vmatpush1.bf16.msra.mxu0 0
    %3741 = vmatprep.mubr.bf16.mxu0 0
    %3742 = vmatmul.mubr.bf16.gmra.mrb[0].mxu0 %v3029
    %v3743 = vpop.f32.mrb[0].mxu0
    %v3744 = vadd.f32 %v3683, %v3743
    %v3745 = vpop.f32.mrb[0].mxu0
    %v3746 = vpop.f32.mrb[0].mxu0
    %v3747 = vadd.f32 %v3683, %v3746
    %v3748 = vpop.f32.mrb[0].mxu0
    %3749 = vmatprep.mubr.bf16.mxu0 0
    %3750 = vmatmul.mubr.bf16.gmra.mrb[0].mxu0 %v3032
    %v3751 = vpop.f32.mrb[0].mxu0
    %v3752 = vadd.f32 %v3683, %v3751
    %v3753 = vpop.f32.mrb[0].mxu0
    %v3754 = vpop.f32.mrb[0].mxu0
    %v3755 = vadd.f32 %v3683, %v3754
    %v3756 = vpop.f32.mrb[0].mxu0
    %3757 = vdwg.mxu0
    %v3759 = vsel %vm476, %v3564, 0
    %v3762 = vsel %vm476, %v3567, 0
    %v3765 = vsel %vm476, %v3572, 0
    %v3768 = vsel %vm476, %v3575, 0
    %v3771 = vsel %vm476, %v3654, 0
    %v3774 = vsel %vm476, %v3657, 0
    %v3777 = vsel %vm476, %v3662, 0
    %v3780 = vsel %vm476, %v3665, 0
    %3782 = vmatprep.subr.mxu0 0.0
    %3783 = vmatpush1.xpose.msra.mxu0 %v3771
    %3784 = vmatprep.subr.mxu0 0.0
    %3785 = vmatpush1.xpose.msra.mxu0 %v3774
    %3786 = vmatprep.subr.mxu0 0.0
    %3787 = vmatpush1.xpose.msra.mxu0 %v3777
    %3788 = vmatprep.subr.mxu0 0.0
    %3789 = vmatpush1.xpose.msra.mxu0 %v3780
    %3790 = vmatprep.subr.mxu0 0.0
    %3791 = vmatpush1.xpose.msra.mxu0 0.0
    %3792 = vmatprep.subr.mxu0 0.0
    %3793 = vmatpush1.xpose.msra.mxu0 0.0
    %3794 = vmatprep.subr.mxu0 0.0
    %3795 = vmatpush1.xpose.msra.mxu0 0.0
    %3796 = vmatprep.subr.mxu0 0.0
    %3797 = vmatpush1.xpose.msra.mxu0 0.0
    %3798 = vmatprep.subr.mxu0 0.0
    %3799 = vmatpush1.xpose.msra.mxu0 0.0
    %3800 = vmatprep.subr.mxu0 0.0
    %3801 = vmatpush1.xpose.msra.mxu0 0.0
    %3802 = vmatprep.subr.mxu0 0.0
    %3803 = vmatpush1.xpose.msra.mxu0 0.0
    %3804 = vmatprep.subr.mxu0 0.0
    %3805 = vmatpush1.xpose.msra.mxu0 0.0
    %3806 = vmatprep.subr.mxu0 0.0
    %3807 = vmatpush1.xpose.msra.mxu0 0.0
    %3808 = vmatprep.subr.mxu0 0.0
    %3809 = vmatpush1.xpose.msra.mxu0 0.0
    %3810 = vmatprep.subr.mxu0 0.0
    %3811 = vmatpush1.xpose.msra.mxu0 0.0
    %3812 = vmatprep.subr.mxu0 0.0
    %3813 = vmatpush1.xpose.msra.mxu0 0.0
    %3814 = vmatprep.subr.mxu0 0.0
    %3815 = vmatpush1.xpose.msra.mxu0 0.0
    %3816 = vmatprep.subr.mxu0 0.0
    %3817 = vmatpush1.xpose.msra.mxu0 0.0
    %3818 = vmatprep.subr.mxu0 0.0
    %3819 = vmatpush1.xpose.msra.mxu0 0.0
    %3820 = vmatprep.subr.mxu0 0.0
    %3821 = vmatpush1.xpose.msra.mxu0 0.0
    %3822 = vmatprep.subr.mxu0 0.0
    %3823 = vmatpush1.xpose.msra.mxu0 0.0
    %3824 = vmatprep.subr.mxu0 0.0
    %3825 = vmatpush1.xpose.msra.mxu0 0.0
    %3826 = vmatprep.subr.mxu0 0.0
    %3827 = vmatpush1.xpose.msra.mxu0 0.0
    %3828 = vmatprep.subr.mxu0 0.0
    %3829 = vmatpush1.xpose.msra.mxu0 0.0
    %3830 = vmatprep.subr.mxu0 0.0
    %3831 = vmatpush1.xpose.msra.mxu0 0.0
    %3832 = vmatprep.subr.mxu0 0.0
    %3833 = vmatpush1.xpose.msra.mxu0 0.0
    %3834 = vmatprep.subr.mxu0 0.0
    %3835 = vmatpush1.xpose.msra.mxu0 0.0
    %3836 = vmatprep.subr.mxu0 0.0
    %3837 = vmatpush1.xpose.msra.mxu0 0.0
    %3838 = vmatprep.subr.mxu0 0.0
    %3839 = vmatpush1.xpose.msra.mxu0 0.0
    %3840 = vmatprep.subr.mxu0 0.0
    %3841 = vmatpush1.xpose.msra.mxu0 0.0
    %3842 = vmatprep.subr.mxu0 0.0
    %3843 = vmatpush1.xpose.msra.mxu0 0.0
    %3844 = vmatprep.subr.mxu0 0.0
    %3845 = vmatpush1.xpose.msra.mxu0 0.0
    %3846 = vmatprep.mubr.f32.mxu0 0.0
    %3847 = vmatmul.mubr.f32.gmra.mrb[0].mxu0 %v3759
    %v3848 = vpop.f32.mrb[0].mxu0
    %v3849 = vadd.f32 0.0, %v3848
    %v3850 = vpop.f32.mrb[0].mxu0
    %3851 = vmatprep.mubr.f32.mxu0 0.0
    %3852 = vmatmul.mubr.f32.gmra.mrb[0].mxu0 %v3762
    %v3853 = vpop.f32.mrb[0].mxu0
    %v3854 = vadd.f32 0.0, %v3853
    %v3855 = vpop.f32.mrb[0].mxu0
    %3856 = vmatprep.mubr.f32.mxu0 0.0
    %3857 = vmatmul.mubr.f32.gmra.mrb[0].mxu0 %v3765
    %v3858 = vpop.f32.mrb[0].mxu0
    %v3859 = vadd.f32 0.0, %v3858
    %v3860 = vpop.f32.mrb[0].mxu0
    %3861 = vmatprep.mubr.f32.mxu0 0.0
    %3862 = vmatmul.mubr.f32.gmra.mrb[0].mxu0 %v3768
    %v3863 = vpop.f32.mrb[0].mxu0
    %v3864 = vadd.f32 0.0, %v3863
    %v3865 = vpop.f32.mrb[0].mxu0
    %3866 = vdwg.mxu0
    %v3867 = vmul.f32 %v3849, 0.25
    %v3868 = vmul.f32 %v3854, 0.25
    %v3869 = vmul.f32 %v3859, 0.25
    %v3870 = vmul.f32 %v3864, 0.25
    %v3871 = vadd.f32 %v3867, %v120
    %v3872 = vadd.f32 %v3868, %v121
    %v3873 = vadd.f32 %v3869, %v122
    %v3874 = vadd.f32 %v3870, %v123
    %v3875 = vsel %vm594, %v3871, -inf
    %3876 = vmax.xlane.f32.xlu0 %v3875
    %v3877 = vpop.xlane.xlu0 %3876
    %v3878 = vsel %vm594, %v3872, -inf
    %3879 = vmax.xlane.f32.xlu0 %v3878
    %v3880 = vpop.xlane.xlu0 %3879
    %v3881 = vsel %vm594, %v3873, -inf
    %3882 = vmax.xlane.f32.xlu0 %v3881
    %v3883 = vpop.xlane.xlu0 %3882
    %v3884 = vsel %vm594, %v3874, -inf
    %3885 = vmax.xlane.f32.xlu0 %v3884
    %v3886 = vpop.xlane.xlu0 %3885
    %v3887 = vsub.f32 %v3871, %v3877
    %v3888 = vsub.f32 %v3872, %v3880
    %v3889 = vsub.f32 %v3873, %v3883
    %v3890 = vsub.f32 %v3874, %v3886
    %v3891 = vmul.f32 %v3887, 1.442695
    %v3892 = vpow.pop %v3891
    %v3893 = vmul.f32 %v3888, 1.442695
    %v3894 = vpow.pop %v3893
    %v3895 = vmul.f32 %v3889, 1.442695
    %v3896 = vpow.pop %v3895
    %v3897 = vmul.f32 %v3890, 1.442695
    %v3898 = vpow.pop %v3897
    %v3899 = vsel %vm594, %v3892, 0.0
    %3900 = vadd.xlane.f32.xlu0 %v3899
    %v3901 = vpop.xlane.xlu0 %3900
    %v3902 = vsel %vm594, %v3894, 0.0
    %3903 = vadd.xlane.f32.xlu0 %v3902
    %v3904 = vpop.xlane.xlu0 %3903
    %v3905 = vsel %vm594, %v3896, 0.0
    %3906 = vadd.xlane.f32.xlu0 %v3905
    %v3907 = vpop.xlane.xlu0 %3906
    %v3908 = vsel %vm594, %v3898, 0.0
    %3909 = vadd.xlane.f32.xlu0 %v3908
    %v3910 = vpop.xlane.xlu0 %3909
    %v3911 = vrcp.pop %v3901
    %v3912 = vmul.f32 %v3892, %v3911
    %v3913 = vrcp.pop %v3904
    %v3914 = vmul.f32 %v3894, %v3913
    %v3915 = vrcp.pop %v3907
    %v3916 = vmul.f32 %v3896, %v3915
    %v3917 = vrcp.pop %v3910
    %v3918 = vmul.f32 %v3898, %v3917
    %v3919 = vpack.c.bf16 %v3914, %v3912
    %v3920 = vpack.c.bf16 %v3918, %v3916
    %v3921 = vpack.c.bf16 %v3747, %v3744
    %v3922 = vpack.c.bf16 %v3755, %v3752
    %v3924 = vsel %vm594, %v3919, 0
    %v3927 = vsel %vm594, %v3920, 0
    %3929 = vmatprep.subr.bf16.mxu0 0
    %3930 = vmatpush1.bf16.msra.mxu0 %v3921
    %3931 = vmatprep.subr.bf16.mxu0 0
    %3932 = vmatpush1.bf16.msra.mxu0 %v3922
    %3933 = vmatprep.subr.bf16.mxu0 0
    %3934 = vmatpush1.bf16.msra.mxu0 0
    %3935 = vmatprep.subr.bf16.mxu0 0
    %3936 = vmatpush1.bf16.msra.mxu0 0
    %3937 = vmatprep.subr.bf16.mxu0 0
    %3938 = vmatpush1.bf16.msra.mxu0 0
    %3939 = vmatprep.subr.bf16.mxu0 0
    %3940 = vmatpush1.bf16.msra.mxu0 0
    %3941 = vmatprep.subr.bf16.mxu0 0
    %3942 = vmatpush1.bf16.msra.mxu0 0
    %3943 = vmatprep.subr.bf16.mxu0 0
    %3944 = vmatpush1.bf16.msra.mxu0 0
    %3945 = vmatprep.subr.bf16.mxu0 0
    %3946 = vmatpush1.bf16.msra.mxu0 0
    %3947 = vmatprep.subr.bf16.mxu0 0
    %3948 = vmatpush1.bf16.msra.mxu0 0
    %3949 = vmatprep.subr.bf16.mxu0 0
    %3950 = vmatpush1.bf16.msra.mxu0 0
    %3951 = vmatprep.subr.bf16.mxu0 0
    %3952 = vmatpush1.bf16.msra.mxu0 0
    %3953 = vmatprep.subr.bf16.mxu0 0
    %3954 = vmatpush1.bf16.msra.mxu0 0
    %3955 = vmatprep.subr.bf16.mxu0 0
    %3956 = vmatpush1.bf16.msra.mxu0 0
    %3957 = vmatprep.subr.bf16.mxu0 0
    %3958 = vmatpush1.bf16.msra.mxu0 0
    %3959 = vmatprep.subr.bf16.mxu0 0
    %3960 = vmatpush1.bf16.msra.mxu0 0
    %3961 = vmatprep.mubr.bf16.mxu0 0
    %3962 = vmatmul.mubr.bf16.gmra.mrb[0].mxu0 %v3924
    %v3963 = vpop.f32.mrb[0].mxu0
    %v3964 = vadd.f32 0.0, %v3963
    %v3965 = vpop.f32.mrb[0].mxu0
    %v3966 = vpop.f32.mrb[0].mxu0
    %v3967 = vadd.f32 0.0, %v3966
    %v3968 = vpop.f32.mrb[0].mxu0
    %3969 = vmatprep.mubr.bf16.mxu0 0
    %3970 = vmatmul.mubr.bf16.gmra.mrb[0].mxu0 %v3927
    %v3971 = vpop.f32.mrb[0].mxu0
    %v3972 = vadd.f32 0.0, %v3971
    %v3973 = vpop.f32.mrb[0].mxu0
    %v3974 = vpop.f32.mrb[0].mxu0
    %v3975 = vadd.f32 0.0, %v3974
    %v3976 = vpop.f32.mrb[0].mxu0
    %3977 = vdwg.mxu0
    %v3978 = vpack.c.bf16 %v3967, %v3964
    %v3979 = vpack.c.bf16 %v3975, %v3972
    %s3980 = scalar_lea.vmem %s12, 40
    %v3981 = vld [vmem:[%s3980] sm:$0xf]
    %v3982 = vld [vmem:[%s3980 + $0x4] sm:$0xf]
    %v3985 = vunpack.c.l.b16 %v3981
    %v3986 = vunpack.c.l.b16 %v3982
    %v3987 = vpack.c.b16 %v3986, %v3985
    %v3990 = vsel %vm476, %v3978, 0
    %v3993 = vsel %vm476, %v3979, 0
    %3995 = vmatprep.subr.bf16.mxu0 0
    %3996 = vmatpush1.bf16.msra.mxu0 %v3987
    %3997 = vmatprep.subr.bf16.mxu0 0
    %3998 = vmatpush1.bf16.msra.mxu0 0
    %3999 = vmatprep.subr.bf16.mxu0 0
    %4000 = vmatpush1.bf16.msra.mxu0 0
    %4001 = vmatprep.subr.bf16.mxu0 0
    %4002 = vmatpush1.bf16.msra.mxu0 0
    %4003 = vmatprep.subr.bf16.mxu0 0
    %4004 = vmatpush1.bf16.msra.mxu0 0
    %4005 = vmatprep.subr.bf16.mxu0 0
    %4006 = vmatpush1.bf16.msra.mxu0 0
    %4007 = vmatprep.subr.bf16.mxu0 0
    %4008 = vmatpush1.bf16.msra.mxu0 0
    %4009 = vmatprep.subr.bf16.mxu0 0
    %4010 = vmatpush1.bf16.msra.mxu0 0
    %4011 = vmatprep.subr.bf16.mxu0 0
    %4012 = vmatpush1.bf16.msra.mxu0 0
    %4013 = vmatprep.subr.bf16.mxu0 0
    %4014 = vmatpush1.bf16.msra.mxu0 0
    %4015 = vmatprep.subr.bf16.mxu0 0
    %4016 = vmatpush1.bf16.msra.mxu0 0
    %4017 = vmatprep.subr.bf16.mxu0 0
    %4018 = vmatpush1.bf16.msra.mxu0 0
    %4019 = vmatprep.subr.bf16.mxu0 0
    %4020 = vmatpush1.bf16.msra.mxu0 0
    %4021 = vmatprep.subr.bf16.mxu0 0
    %4022 = vmatpush1.bf16.msra.mxu0 0
    %4023 = vmatprep.subr.bf16.mxu0 0
    %4024 = vmatpush1.bf16.msra.mxu0 0
    %4025 = vmatprep.subr.bf16.mxu0 0
    %4026 = vmatpush1.bf16.msra.mxu0 0
    %4027 = vmatprep.mubr.bf16.mxu0 0
    %4028 = vmatmul.mubr.bf16.gmra.mrb[0].mxu0 %v3990
    %v4029 = vpop.f32.mrb[0].mxu0
    %v4030 = vadd.f32 0.0, %v4029
    %v4031 = vpop.f32.mrb[0].mxu0
    %v4032 = vpop.f32.mrb[0].mxu0
    %v4033 = vadd.f32 0.0, %v4032
    %v4034 = vpop.f32.mrb[0].mxu0
    %4035 = vmatprep.mubr.bf16.mxu0 0
    %4036 = vmatmul.mubr.bf16.gmra.mrb[0].mxu0 %v3993
    %v4037 = vpop.f32.mrb[0].mxu0
    %v4038 = vadd.f32 0.0, %v4037
    %v4039 = vpop.f32.mrb[0].mxu0
    %v4040 = vpop.f32.mrb[0].mxu0
    %v4041 = vadd.f32 0.0, %v4040
    %v4042 = vpop.f32.mrb[0].mxu0
    %4043 = vdwg.mxu0
    %v4046 = vunpack.c.l.b16 %v3486
    %v4047 = vunpack.c.l.b16 %v3487
    %v4048 = vpack.c.b16 %v4047, %v4046
    %v4051 = vsel %vm476, %v3483, 0
    %v4054 = vsel %vm476, %v3484, 0
    %4056 = vmatprep.subr.bf16.mxu0 0
    %4057 = vmatpush1.bf16.msra.mxu0 %v4048
    %4058 = vmatprep.subr.bf16.mxu0 0
    %4059 = vmatpush1.bf16.msra.mxu0 0
    %4060 = vmatprep.subr.bf16.mxu0 0
    %4061 = vmatpush1.bf16.msra.mxu0 0
    %4062 = vmatprep.subr.bf16.mxu0 0
    %4063 = vmatpush1.bf16.msra.mxu0 0
    %4064 = vmatprep.subr.bf16.mxu0 0
    %4065 = vmatpush1.bf16.msra.mxu0 0
    %4066 = vmatprep.subr.bf16.mxu0 0
    %4067 = vmatpush1.bf16.msra.mxu0 0
    %4068 = vmatprep.subr.bf16.mxu0 0
    %4069 = vmatpush1.bf16.msra.mxu0 0
    %4070 = vmatprep.subr.bf16.mxu0 0
    %4071 = vmatpush1.bf16.msra.mxu0 0
    %4072 = vmatprep.subr.bf16.mxu0 0
    %4073 = vmatpush1.bf16.msra.mxu0 0
    %4074 = vmatprep.subr.bf16.mxu0 0
    %4075 = vmatpush1.bf16.msra.mxu0 0
    %4076 = vmatprep.subr.bf16.mxu0 0
    %4077 = vmatpush1.bf16.msra.mxu0 0
    %4078 = vmatprep.subr.bf16.mxu0 0
    %4079 = vmatpush1.bf16.msra.mxu0 0
    %4080 = vmatprep.subr.bf16.mxu0 0
    %4081 = vmatpush1.bf16.msra.mxu0 0
    %4082 = vmatprep.subr.bf16.mxu0 0
    %4083 = vmatpush1.bf16.msra.mxu0 0
    %4084 = vmatprep.subr.bf16.mxu0 0
    %4085 = vmatpush1.bf16.msra.mxu0 0
    %4086 = vmatprep.subr.bf16.mxu0 0
    %4087 = vmatpush1.bf16.msra.mxu0 0
    %4088 = vmatprep.mubr.bf16.mxu0 0
    %4089 = vmatmul.mubr.bf16.gmra.mrb[0].mxu0 %v4051
    %v4090 = vpop.f32.mrb[0].mxu0
    %v4091 = vadd.f32 %v4030, %v4090
    %v4092 = vpop.f32.mrb[0].mxu0
    %v4093 = vpop.f32.mrb[0].mxu0
    %v4094 = vadd.f32 %v4033, %v4093
    %v4095 = vpop.f32.mrb[0].mxu0
    %4096 = vmatprep.mubr.bf16.mxu0 0
    %4097 = vmatmul.mubr.bf16.gmra.mrb[0].mxu0 %v4054
    %v4098 = vpop.f32.mrb[0].mxu0
    %v4099 = vadd.f32 %v4038, %v4098
    %v4100 = vpop.f32.mrb[0].mxu0
    %v4101 = vpop.f32.mrb[0].mxu0
    %v4102 = vadd.f32 %v4041, %v4101
    %v4103 = vpop.f32.mrb[0].mxu0
    %4104 = vdwg.mxu0
    %s4105 = scalar_lea.vmem %s6, 192
    %v4106 = vld [vmem:[%s4105] sm:$0xf]
    %v4107 = vld [vmem:[%s4105 + $0x4] sm:$0xf]
    %v4108 = vld [vmem:[%s4105 + $0x8] sm:$0xf]
    %v4109 = vld [vmem:[%s4105 + $0xc] sm:$0xf]
    %v4110 = vld [vmem:[%s4105 + $0x10] sm:$0xf]
    %v4111 = vld [vmem:[%s4105 + $0x14] sm:$0xf]
    %v4112 = vld [vmem:[%s4105 + $0x18] sm:$0xf]
    %v4113 = vld [vmem:[%s4105 + $0x1c] sm:$0xf]
    %s4114 = scalar_lea.vmem %s9, 6
    %v4115 = vld [vmem:[%s4114] sm:$0x1]
    %v4117 = vlaneseq
    %v4118 = vshrl.u32 %v4117, 7
    %v4119 = vsub.s32 0, %v4118
    %v4120 = vrot.slane %v4115, %v4119
    %v4130 = vunpack.c.l.b16 %v4106
    %v4131 = vunpack.c.l.b16 %v4107
    %v4132 = vunpack.c.l.b16 %v4108
    %v4133 = vunpack.c.l.b16 %v4109
    %v4134 = vunpack.c.l.b16 %v4110
    %v4135 = vunpack.c.l.b16 %v4111
    %v4136 = vunpack.c.l.b16 %v4112
    %v4137 = vunpack.c.l.b16 %v4113
    %v4138 = vpack.c.b16 %v4131, %v4130
    %v4139 = vpack.c.b16 %v4133, %v4132
    %v4140 = vpack.c.b16 %v4135, %v4134
    %v4141 = vpack.c.b16 %v4137, %v4136
    %4146 = vmatprep.subr.bf16.mxu0 0
    %4147 = vmatpush1.bf16.msra.mxu0 %v4138
    %4148 = vmatprep.subr.bf16.mxu0 0
    %4149 = vmatpush1.bf16.msra.mxu0 %v4139
    %4150 = vmatprep.subr.bf16.mxu0 0
    %4151 = vmatpush1.bf16.msra.mxu0 %v4140
    %4152 = vmatprep.subr.bf16.mxu0 0
    %4153 = vmatpush1.bf16.msra.mxu0 %v4141
    %4154 = vmatprep.subr.bf16.mxu0 0
    %4155 = vmatpush1.bf16.msra.mxu0 0
    %4156 = vmatprep.subr.bf16.mxu0 0
    %4157 = vmatpush1.bf16.msra.mxu0 0
    %4158 = vmatprep.subr.bf16.mxu0 0
    %4159 = vmatpush1.bf16.msra.mxu0 0
    %4160 = vmatprep.subr.bf16.mxu0 0
    %4161 = vmatpush1.bf16.msra.mxu0 0
    %4162 = vmatprep.subr.bf16.mxu0 0
    %4163 = vmatpush1.bf16.msra.mxu0 0
    %4164 = vmatprep.subr.bf16.mxu0 0
    %4165 = vmatpush1.bf16.msra.mxu0 0
    %4166 = vmatprep.subr.bf16.mxu0 0
    %4167 = vmatpush1.bf16.msra.mxu0 0
    %4168 = vmatprep.subr.bf16.mxu0 0
    %4169 = vmatpush1.bf16.msra.mxu0 0
    %4170 = vmatprep.subr.bf16.mxu0 0
    %4171 = vmatpush1.bf16.msra.mxu0 0
    %4172 = vmatprep.subr.bf16.mxu0 0
    %4173 = vmatpush1.bf16.msra.mxu0 0
    %4174 = vmatprep.subr.bf16.mxu0 0
    %4175 = vmatpush1.bf16.msra.mxu0 0
    %4176 = vmatprep.subr.bf16.mxu0 0
    %4177 = vmatpush1.bf16.msra.mxu0 0
    %4178 = vmatprep.mubr.bf16.mxu0 0
    %4179 = vmatmul.mubr.bf16.gmra.mrb[0].mxu0 %v3029
    %v4180 = vpop.f32.mrb[0].mxu0
    %v4181 = vadd.f32 %v4120, %v4180
    %v4182 = vpop.f32.mrb[0].mxu0
    %v4183 = vpop.f32.mrb[0].mxu0
    %v4184 = vadd.f32 %v4120, %v4183
    %v4185 = vpop.f32.mrb[0].mxu0
    %4186 = vmatprep.mubr.bf16.mxu0 0
    %4187 = vmatmul.mubr.bf16.gmra.mrb[0].mxu0 %v3032
    %v4188 = vpop.f32.mrb[0].mxu0
    %v4189 = vadd.f32 %v4120, %v4188
    %v4190 = vpop.f32.mrb[0].mxu0
    %v4191 = vpop.f32.mrb[0].mxu0
    %v4192 = vadd.f32 %v4120, %v4191
    %v4193 = vpop.f32.mrb[0].mxu0
    %4194 = vdwg.mxu0
    %s4195 = scalar_lea.vmem %s7, 192
    %v4196 = vld [vmem:[%s4195] sm:$0xf]
    %v4197 = vld [vmem:[%s4195 + $0x4] sm:$0xf]
    %v4198 = vld [vmem:[%s4195 + $0x8] sm:$0xf]
    %v4199 = vld [vmem:[%s4195 + $0xc] sm:$0xf]
    %v4200 = vld [vmem:[%s4195 + $0x10] sm:$0xf]
    %v4201 = vld [vmem:[%s4195 + $0x14] sm:$0xf]
    %v4202 = vld [vmem:[%s4195 + $0x18] sm:$0xf]
    %v4203 = vld [vmem:[%s4195 + $0x1c] sm:$0xf]
    %s4204 = scalar_lea.vmem %s10, 6
    %v4205 = vld [vmem:[%s4204] sm:$0x1]
    %v4207 = vlaneseq
    %v4208 = vshrl.u32 %v4207, 7
    %v4209 = vsub.s32 0, %v4208
    %v4210 = vrot.slane %v4205, %v4209
    %v4220 = vunpack.c.l.b16 %v4196
    %v4221 = vunpack.c.l.b16 %v4197
    %v4222 = vunpack.c.l.b16 %v4198
    %v4223 = vunpack.c.l.b16 %v4199
    %v4224 = vunpack.c.l.b16 %v4200
    %v4225 = vunpack.c.l.b16 %v4201
    %v4226 = vunpack.c.l.b16 %v4202
    %v4227 = vunpack.c.l.b16 %v4203
    %v4228 = vpack.c.b16 %v4221, %v4220
    %v4229 = vpack.c.b16 %v4223, %v4222
    %v4230 = vpack.c.b16 %v4225, %v4224
    %v4231 = vpack.c.b16 %v4227, %v4226
    %4236 = vmatprep.subr.bf16.mxu0 0
    %4237 = vmatpush1.bf16.msra.mxu0 %v4228
    %4238 = vmatprep.subr.bf16.mxu0 0
    %4239 = vmatpush1.bf16.msra.mxu0 %v4229
    %4240 = vmatprep.subr.bf16.mxu0 0
    %4241 = vmatpush1.bf16.msra.mxu0 %v4230
    %4242 = vmatprep.subr.bf16.mxu0 0
    %4243 = vmatpush1.bf16.msra.mxu0 %v4231
    %4244 = vmatprep.subr.bf16.mxu0 0
    %4245 = vmatpush1.bf16.msra.mxu0 0
    %4246 = vmatprep.subr.bf16.mxu0 0
    %4247 = vmatpush1.bf16.msra.mxu0 0
    %4248 = vmatprep.subr.bf16.mxu0 0
    %4249 = vmatpush1.bf16.msra.mxu0 0
    %4250 = vmatprep.subr.bf16.mxu0 0
    %4251 = vmatpush1.bf16.msra.mxu0 0
    %4252 = vmatprep.subr.bf16.mxu0 0
    %4253 = vmatpush1.bf16.msra.mxu0 0
    %4254 = vmatprep.subr.bf16.mxu0 0
    %4255 = vmatpush1.bf16.msra.mxu0 0
    %4256 = vmatprep.subr.bf16.mxu0 0
    %4257 = vmatpush1.bf16.msra.mxu0 0
    %4258 = vmatprep.subr.bf16.mxu0 0
    %4259 = vmatpush1.bf16.msra.mxu0 0
    %4260 = vmatprep.subr.bf16.mxu0 0
    %4261 = vmatpush1.bf16.msra.mxu0 0
    %4262 = vmatprep.subr.bf16.mxu0 0
    %4263 = vmatpush1.bf16.msra.mxu0 0
    %4264 = vmatprep.subr.bf16.mxu0 0
    %4265 = vmatpush1.bf16.msra.mxu0 0
    %4266 = vmatprep.subr.bf16.mxu0 0
    %4267 = vmatpush1.bf16.msra.mxu0 0
    %4268 = vmatprep.mubr.bf16.mxu0 0
    %4269 = vmatmul.mubr.bf16.gmra.mrb[0].mxu0 %v3029
    %v4270 = vpop.f32.mrb[0].mxu0
    %v4271 = vadd.f32 %v4210, %v4270
    %v4272 = vpop.f32.mrb[0].mxu0
    %v4273 = vpop.f32.mrb[0].mxu0
    %v4274 = vadd.f32 %v4210, %v4273
    %v4275 = vpop.f32.mrb[0].mxu0
    %4276 = vmatprep.mubr.bf16.mxu0 0
    %4277 = vmatmul.mubr.bf16.gmra.mrb[0].mxu0 %v3032
    %v4278 = vpop.f32.mrb[0].mxu0
    %v4279 = vadd.f32 %v4210, %v4278
    %v4280 = vpop.f32.mrb[0].mxu0
    %v4281 = vpop.f32.mrb[0].mxu0
    %v4282 = vadd.f32 %v4210, %v4281
    %v4283 = vpop.f32.mrb[0].mxu0
    %4284 = vdwg.mxu0
    %s4285 = scalar_lea.vmem %s8, 192
    %v4286 = vld [vmem:[%s4285] sm:$0xf]
    %v4287 = vld [vmem:[%s4285 + $0x4] sm:$0xf]
    %v4288 = vld [vmem:[%s4285 + $0x8] sm:$0xf]
    %v4289 = vld [vmem:[%s4285 + $0xc] sm:$0xf]
    %v4290 = vld [vmem:[%s4285 + $0x10] sm:$0xf]
    %v4291 = vld [vmem:[%s4285 + $0x14] sm:$0xf]
    %v4292 = vld [vmem:[%s4285 + $0x18] sm:$0xf]
    %v4293 = vld [vmem:[%s4285 + $0x1c] sm:$0xf]
    %s4294 = scalar_lea.vmem %s11, 6
    %v4295 = vld [vmem:[%s4294] sm:$0x1]
    %v4297 = vlaneseq
    %v4298 = vshrl.u32 %v4297, 7
    %v4299 = vsub.s32 0, %v4298
    %v4300 = vrot.slane %v4295, %v4299
    %v4310 = vunpack.c.l.b16 %v4286
    %v4311 = vunpack.c.l.b16 %v4287
    %v4312 = vunpack.c.l.b16 %v4288
    %v4313 = vunpack.c.l.b16 %v4289
    %v4314 = vunpack.c.l.b16 %v4290
    %v4315 = vunpack.c.l.b16 %v4291
    %v4316 = vunpack.c.l.b16 %v4292
    %v4317 = vunpack.c.l.b16 %v4293
    %v4318 = vpack.c.b16 %v4311, %v4310
    %v4319 = vpack.c.b16 %v4313, %v4312
    %v4320 = vpack.c.b16 %v4315, %v4314
    %v4321 = vpack.c.b16 %v4317, %v4316
    %4326 = vmatprep.subr.bf16.mxu0 0
    %4327 = vmatpush1.bf16.msra.mxu0 %v4318
    %4328 = vmatprep.subr.bf16.mxu0 0
    %4329 = vmatpush1.bf16.msra.mxu0 %v4319
    %4330 = vmatprep.subr.bf16.mxu0 0
    %4331 = vmatpush1.bf16.msra.mxu0 %v4320
    %4332 = vmatprep.subr.bf16.mxu0 0
    %4333 = vmatpush1.bf16.msra.mxu0 %v4321
    %4334 = vmatprep.subr.bf16.mxu0 0
    %4335 = vmatpush1.bf16.msra.mxu0 0
    %4336 = vmatprep.subr.bf16.mxu0 0
    %4337 = vmatpush1.bf16.msra.mxu0 0
    %4338 = vmatprep.subr.bf16.mxu0 0
    %4339 = vmatpush1.bf16.msra.mxu0 0
    %4340 = vmatprep.subr.bf16.mxu0 0
    %4341 = vmatpush1.bf16.msra.mxu0 0
    %4342 = vmatprep.subr.bf16.mxu0 0
    %4343 = vmatpush1.bf16.msra.mxu0 0
    %4344 = vmatprep.subr.bf16.mxu0 0
    %4345 = vmatpush1.bf16.msra.mxu0 0
    %4346 = vmatprep.subr.bf16.mxu0 0
    %4347 = vmatpush1.bf16.msra.mxu0 0
    %4348 = vmatprep.subr.bf16.mxu0 0
    %4349 = vmatpush1.bf16.msra.mxu0 0
    %4350 = vmatprep.subr.bf16.mxu0 0
    %4351 = vmatpush1.bf16.msra.mxu0 0
    %4352 = vmatprep.subr.bf16.mxu0 0
    %4353 = vmatpush1.bf16.msra.mxu0 0
    %4354 = vmatprep.subr.bf16.mxu0 0
    %4355 = vmatpush1.bf16.msra.mxu0 0
    %4356 = vmatprep.subr.bf16.mxu0 0
    %4357 = vmatpush1.bf16.msra.mxu0 0
    %4358 = vmatprep.mubr.bf16.mxu0 0
    %4359 = vmatmul.mubr.bf16.gmra.mrb[0].mxu0 %v3029
    %v4360 = vpop.f32.mrb[0].mxu0
    %v4361 = vadd.f32 %v4300, %v4360
    %v4362 = vpop.f32.mrb[0].mxu0
    %v4363 = vpop.f32.mrb[0].mxu0
    %v4364 = vadd.f32 %v4300, %v4363
    %v4365 = vpop.f32.mrb[0].mxu0
    %4366 = vmatprep.mubr.bf16.mxu0 0
    %4367 = vmatmul.mubr.bf16.gmra.mrb[0].mxu0 %v3032
    %v4368 = vpop.f32.mrb[0].mxu0
    %v4369 = vadd.f32 %v4300, %v4368
    %v4370 = vpop.f32.mrb[0].mxu0
    %v4371 = vpop.f32.mrb[0].mxu0
    %v4372 = vadd.f32 %v4300, %v4371
    %v4373 = vpop.f32.mrb[0].mxu0
    %4374 = vdwg.mxu0
    %v4376 = vsel %vm476, %v4181, 0
    %v4379 = vsel %vm476, %v4184, 0
    %v4382 = vsel %vm476, %v4189, 0
    %v4385 = vsel %vm476, %v4192, 0
    %v4388 = vsel %vm476, %v4271, 0
    %v4391 = vsel %vm476, %v4274, 0
    %v4394 = vsel %vm476, %v4279, 0
    %v4397 = vsel %vm476, %v4282, 0
    %4399 = vmatprep.subr.mxu0 0.0
    %4400 = vmatpush1.xpose.msra.mxu0 %v4388
    %4401 = vmatprep.subr.mxu0 0.0
    %4402 = vmatpush1.xpose.msra.mxu0 %v4391
    %4403 = vmatprep.subr.mxu0 0.0
    %4404 = vmatpush1.xpose.msra.mxu0 %v4394
    %4405 = vmatprep.subr.mxu0 0.0
    %4406 = vmatpush1.xpose.msra.mxu0 %v4397
    %4407 = vmatprep.subr.mxu0 0.0
    %4408 = vmatpush1.xpose.msra.mxu0 0.0
    %4409 = vmatprep.subr.mxu0 0.0
    %4410 = vmatpush1.xpose.msra.mxu0 0.0
    %4411 = vmatprep.subr.mxu0 0.0
    %4412 = vmatpush1.xpose.msra.mxu0 0.0
    %4413 = vmatprep.subr.mxu0 0.0
    %4414 = vmatpush1.xpose.msra.mxu0 0.0
    %4415 = vmatprep.subr.mxu0 0.0
    %4416 = vmatpush1.xpose.msra.mxu0 0.0
    %4417 = vmatprep.subr.mxu0 0.0
    %4418 = vmatpush1.xpose.msra.mxu0 0.0
    %4419 = vmatprep.subr.mxu0 0.0
    %4420 = vmatpush1.xpose.msra.mxu0 0.0
    %4421 = vmatprep.subr.mxu0 0.0
    %4422 = vmatpush1.xpose.msra.mxu0 0.0
    %4423 = vmatprep.subr.mxu0 0.0
    %4424 = vmatpush1.xpose.msra.mxu0 0.0
    %4425 = vmatprep.subr.mxu0 0.0
    %4426 = vmatpush1.xpose.msra.mxu0 0.0
    %4427 = vmatprep.subr.mxu0 0.0
    %4428 = vmatpush1.xpose.msra.mxu0 0.0
    %4429 = vmatprep.subr.mxu0 0.0
    %4430 = vmatpush1.xpose.msra.mxu0 0.0
    %4431 = vmatprep.subr.mxu0 0.0
    %4432 = vmatpush1.xpose.msra.mxu0 0.0
    %4433 = vmatprep.subr.mxu0 0.0
    %4434 = vmatpush1.xpose.msra.mxu0 0.0
    %4435 = vmatprep.subr.mxu0 0.0
    %4436 = vmatpush1.xpose.msra.mxu0 0.0
    %4437 = vmatprep.subr.mxu0 0.0
    %4438 = vmatpush1.xpose.msra.mxu0 0.0
    %4439 = vmatprep.subr.mxu0 0.0
    %4440 = vmatpush1.xpose.msra.mxu0 0.0
    %4441 = vmatprep.subr.mxu0 0.0
    %4442 = vmatpush1.xpose.msra.mxu0 0.0
    %4443 = vmatprep.subr.mxu0 0.0
    %4444 = vmatpush1.xpose.msra.mxu0 0.0
    %4445 = vmatprep.subr.mxu0 0.0
    %4446 = vmatpush1.xpose.msra.mxu0 0.0
    %4447 = vmatprep.subr.mxu0 0.0
    %4448 = vmatpush1.xpose.msra.mxu0 0.0
    %4449 = vmatprep.subr.mxu0 0.0
    %4450 = vmatpush1.xpose.msra.mxu0 0.0
    %4451 = vmatprep.subr.mxu0 0.0
    %4452 = vmatpush1.xpose.msra.mxu0 0.0
    %4453 = vmatprep.subr.mxu0 0.0
    %4454 = vmatpush1.xpose.msra.mxu0 0.0
    %4455 = vmatprep.subr.mxu0 0.0
    %4456 = vmatpush1.xpose.msra.mxu0 0.0
    %4457 = vmatprep.subr.mxu0 0.0
    %4458 = vmatpush1.xpose.msra.mxu0 0.0
    %4459 = vmatprep.subr.mxu0 0.0
    %4460 = vmatpush1.xpose.msra.mxu0 0.0
    %4461 = vmatprep.subr.mxu0 0.0
    %4462 = vmatpush1.xpose.msra.mxu0 0.0
    %4463 = vmatprep.mubr.f32.mxu0 0.0
    %4464 = vmatmul.mubr.f32.gmra.mrb[0].mxu0 %v4376
    %v4465 = vpop.f32.mrb[0].mxu0
    %v4466 = vadd.f32 0.0, %v4465
    %v4467 = vpop.f32.mrb[0].mxu0
    %4468 = vmatprep.mubr.f32.mxu0 0.0
    %4469 = vmatmul.mubr.f32.gmra.mrb[0].mxu0 %v4379
    %v4470 = vpop.f32.mrb[0].mxu0
    %v4471 = vadd.f32 0.0, %v4470
    %v4472 = vpop.f32.mrb[0].mxu0
    %4473 = vmatprep.mubr.f32.mxu0 0.0
    %4474 = vmatmul.mubr.f32.gmra.mrb[0].mxu0 %v4382
    %v4475 = vpop.f32.mrb[0].mxu0
    %v4476 = vadd.f32 0.0, %v4475
    %v4477 = vpop.f32.mrb[0].mxu0
    %4478 = vmatprep.mubr.f32.mxu0 0.0
    %4479 = vmatmul.mubr.f32.gmra.mrb[0].mxu0 %v4385
    %v4480 = vpop.f32.mrb[0].mxu0
    %v4481 = vadd.f32 0.0, %v4480
    %v4482 = vpop.f32.mrb[0].mxu0
    %4483 = vdwg.mxu0
    %v4484 = vmul.f32 %v4466, 0.25
    %v4485 = vmul.f32 %v4471, 0.25
    %v4486 = vmul.f32 %v4476, 0.25
    %v4487 = vmul.f32 %v4481, 0.25
    %v4488 = vadd.f32 %v4484, %v120
    %v4489 = vadd.f32 %v4485, %v121
    %v4490 = vadd.f32 %v4486, %v122
    %v4491 = vadd.f32 %v4487, %v123
    %v4492 = vsel %vm594, %v4488, -inf
    %4493 = vmax.xlane.f32.xlu0 %v4492
    %v4494 = vpop.xlane.xlu0 %4493
    %v4495 = vsel %vm594, %v4489, -inf
    %4496 = vmax.xlane.f32.xlu0 %v4495
    %v4497 = vpop.xlane.xlu0 %4496
    %v4498 = vsel %vm594, %v4490, -inf
    %4499 = vmax.xlane.f32.xlu0 %v4498
    %v4500 = vpop.xlane.xlu0 %4499
    %v4501 = vsel %vm594, %v4491, -inf
    %4502 = vmax.xlane.f32.xlu0 %v4501
    %v4503 = vpop.xlane.xlu0 %4502
    %v4504 = vsub.f32 %v4488, %v4494
    %v4505 = vsub.f32 %v4489, %v4497
    %v4506 = vsub.f32 %v4490, %v4500
    %v4507 = vsub.f32 %v4491, %v4503
    %v4508 = vmul.f32 %v4504, 1.442695
    %v4509 = vpow.pop %v4508
    %v4510 = vmul.f32 %v4505, 1.442695
    %v4511 = vpow.pop %v4510
    %v4512 = vmul.f32 %v4506, 1.442695
    %v4513 = vpow.pop %v4512
    %v4514 = vmul.f32 %v4507, 1.442695
    %v4515 = vpow.pop %v4514
    %v4516 = vsel %vm594, %v4509, 0.0
    %4517 = vadd.xlane.f32.xlu0 %v4516
    %v4518 = vpop.xlane.xlu0 %4517
    %v4519 = vsel %vm594, %v4511, 0.0
    %4520 = vadd.xlane.f32.xlu0 %v4519
    %v4521 = vpop.xlane.xlu0 %4520
    %v4522 = vsel %vm594, %v4513, 0.0
    %4523 = vadd.xlane.f32.xlu0 %v4522
    %v4524 = vpop.xlane.xlu0 %4523
    %v4525 = vsel %vm594, %v4515, 0.0
    %4526 = vadd.xlane.f32.xlu0 %v4525
    %v4527 = vpop.xlane.xlu0 %4526
    %v4528 = vrcp.pop %v4518
    %v4529 = vmul.f32 %v4509, %v4528
    %v4530 = vrcp.pop %v4521
    %v4531 = vmul.f32 %v4511, %v4530
    %v4532 = vrcp.pop %v4524
    %v4533 = vmul.f32 %v4513, %v4532
    %v4534 = vrcp.pop %v4527
    %v4535 = vmul.f32 %v4515, %v4534
    %v4536 = vpack.c.bf16 %v4531, %v4529
    %v4537 = vpack.c.bf16 %v4535, %v4533
    %v4538 = vpack.c.bf16 %v4364, %v4361
    %v4539 = vpack.c.bf16 %v4372, %v4369
    %v4541 = vsel %vm594, %v4536, 0
    %v4544 = vsel %vm594, %v4537, 0
    %4546 = vmatprep.subr.bf16.mxu0 0
    %4547 = vmatpush1.bf16.msra.mxu0 %v4538
    %4548 = vmatprep.subr.bf16.mxu0 0
    %4549 = vmatpush1.bf16.msra.mxu0 %v4539
    %4550 = vmatprep.subr.bf16.mxu0 0
    %4551 = vmatpush1.bf16.msra.mxu0 0
    %4552 = vmatprep.subr.bf16.mxu0 0
    %4553 = vmatpush1.bf16.msra.mxu0 0
    %4554 = vmatprep.subr.bf16.mxu0 0
    %4555 = vmatpush1.bf16.msra.mxu0 0
    %4556 = vmatprep.subr.bf16.mxu0 0
    %4557 = vmatpush1.bf16.msra.mxu0 0
    %4558 = vmatprep.subr.bf16.mxu0 0
    %4559 = vmatpush1.bf16.msra.mxu0 0
    %4560 = vmatprep.subr.bf16.mxu0 0
    %4561 = vmatpush1.bf16.msra.mxu0 0
    %4562 = vmatprep.subr.bf16.mxu0 0
    %4563 = vmatpush1.bf16.msra.mxu0 0
    %4564 = vmatprep.subr.bf16.mxu0 0
    %4565 = vmatpush1.bf16.msra.mxu0 0
    %4566 = vmatprep.subr.bf16.mxu0 0
    %4567 = vmatpush1.bf16.msra.mxu0 0
    %4568 = vmatprep.subr.bf16.mxu0 0
    %4569 = vmatpush1.bf16.msra.mxu0 0
    %4570 = vmatprep.subr.bf16.mxu0 0
    %4571 = vmatpush1.bf16.msra.mxu0 0
    %4572 = vmatprep.subr.bf16.mxu0 0
    %4573 = vmatpush1.bf16.msra.mxu0 0
    %4574 = vmatprep.subr.bf16.mxu0 0
    %4575 = vmatpush1.bf16.msra.mxu0 0
    %4576 = vmatprep.subr.bf16.mxu0 0
    %4577 = vmatpush1.bf16.msra.mxu0 0
    %4578 = vmatprep.mubr.bf16.mxu0 0
    %4579 = vmatmul.mubr.bf16.gmra.mrb[0].mxu0 %v4541
    %v4580 = vpop.f32.mrb[0].mxu0
    %v4581 = vadd.f32 0.0, %v4580
    %v4582 = vpop.f32.mrb[0].mxu0
    %v4583 = vpop.f32.mrb[0].mxu0
    %v4584 = vadd.f32 0.0, %v4583
    %v4585 = vpop.f32.mrb[0].mxu0
    %4586 = vmatprep.mubr.bf16.mxu0 0
    %4587 = vmatmul.mubr.bf16.gmra.mrb[0].mxu0 %v4544
    %v4588 = vpop.f32.mrb[0].mxu0
    %v4589 = vadd.f32 0.0, %v4588
    %v4590 = vpop.f32.mrb[0].mxu0
    %v4591 = vpop.f32.mrb[0].mxu0
    %v4592 = vadd.f32 0.0, %v4591
    %v4593 = vpop.f32.mrb[0].mxu0
    %4594 = vdwg.mxu0
    %v4595 = vpack.c.bf16 %v4584, %v4581
    %v4596 = vpack.c.bf16 %v4592, %v4589
    %s4597 = scalar_lea.vmem %s12, 48
    %v4598 = vld [vmem:[%s4597] sm:$0xf]
    %v4599 = vld [vmem:[%s4597 + $0x4] sm:$0xf]
    %v4602 = vunpack.c.l.b16 %v4598
    %v4603 = vunpack.c.l.b16 %v4599
    %v4604 = vpack.c.b16 %v4603, %v4602
    %v4607 = vsel %vm476, %v4595, 0
    %v4610 = vsel %vm476, %v4596, 0
    %4612 = vmatprep.subr.bf16.mxu0 0
    %4613 = vmatpush1.bf16.msra.mxu0 %v4604
    %4614 = vmatprep.subr.bf16.mxu0 0
    %4615 = vmatpush1.bf16.msra.mxu0 0
    %4616 = vmatprep.subr.bf16.mxu0 0
    %4617 = vmatpush1.bf16.msra.mxu0 0
    %4618 = vmatprep.subr.bf16.mxu0 0
    %4619 = vmatpush1.bf16.msra.mxu0 0
    %4620 = vmatprep.subr.bf16.mxu0 0
    %4621 = vmatpush1.bf16.msra.mxu0 0
    %4622 = vmatprep.subr.bf16.mxu0 0
    %4623 = vmatpush1.bf16.msra.mxu0 0
    %4624 = vmatprep.subr.bf16.mxu0 0
    %4625 = vmatpush1.bf16.msra.mxu0 0
    %4626 = vmatprep.subr.bf16.mxu0 0
    %4627 = vmatpush1.bf16.msra.mxu0 0
    %4628 = vmatprep.subr.bf16.mxu0 0
    %4629 = vmatpush1.bf16.msra.mxu0 0
    %4630 = vmatprep.subr.bf16.mxu0 0
    %4631 = vmatpush1.bf16.msra.mxu0 0
    %4632 = vmatprep.subr.bf16.mxu0 0
    %4633 = vmatpush1.bf16.msra.mxu0 0
    %4634 = vmatprep.subr.bf16.mxu0 0
    %4635 = vmatpush1.bf16.msra.mxu0 0
    %4636 = vmatprep.subr.bf16.mxu0 0
    %4637 = vmatpush1.bf16.msra.mxu0 0
    %4638 = vmatprep.subr.bf16.mxu0 0
    %4639 = vmatpush1.bf16.msra.mxu0 0
    %4640 = vmatprep.subr.bf16.mxu0 0
    %4641 = vmatpush1.bf16.msra.mxu0 0
    %4642 = vmatprep.subr.bf16.mxu0 0
    %4643 = vmatpush1.bf16.msra.mxu0 0
    %4644 = vmatprep.mubr.bf16.mxu0 0
    %4645 = vmatmul.mubr.bf16.gmra.mrb[0].mxu0 %v4607
    %v4646 = vpop.f32.mrb[0].mxu0
    %v4647 = vadd.f32 0.0, %v4646
    %v4648 = vpop.f32.mrb[0].mxu0
    %v4649 = vpop.f32.mrb[0].mxu0
    %v4650 = vadd.f32 0.0, %v4649
    %v4651 = vpop.f32.mrb[0].mxu0
    %4652 = vmatprep.mubr.bf16.mxu0 0
    %4653 = vmatmul.mubr.bf16.gmra.mrb[0].mxu0 %v4610
    %v4654 = vpop.f32.mrb[0].mxu0
    %v4655 = vadd.f32 0.0, %v4654
    %v4656 = vpop.f32.mrb[0].mxu0
    %v4657 = vpop.f32.mrb[0].mxu0
    %v4658 = vadd.f32 0.0, %v4657
    %v4659 = vpop.f32.mrb[0].mxu0
    %4660 = vdwg.mxu0
    %v4661 = vadd.f32 %v4091, %v4647
    %v4662 = vadd.f32 %v4094, %v4650
    %v4663 = vadd.f32 %v4099, %v4655
    %v4664 = vadd.f32 %v4102, %v4658
    %s4665 = scalar_lea.vmem %s6, 224
    %v4666 = vld [vmem:[%s4665] sm:$0xf]
    %v4667 = vld [vmem:[%s4665 + $0x4] sm:$0xf]
    %v4668 = vld [vmem:[%s4665 + $0x8] sm:$0xf]
    %v4669 = vld [vmem:[%s4665 + $0xc] sm:$0xf]
    %v4670 = vld [vmem:[%s4665 + $0x10] sm:$0xf]
    %v4671 = vld [vmem:[%s4665 + $0x14] sm:$0xf]
    %v4672 = vld [vmem:[%s4665 + $0x18] sm:$0xf]
    %v4673 = vld [vmem:[%s4665 + $0x1c] sm:$0xf]
    %s4674 = scalar_lea.vmem %s9, 7
    %v4675 = vld [vmem:[%s4674] sm:$0x1]
    %v4677 = vlaneseq
    %v4678 = vshrl.u32 %v4677, 7
    %v4679 = vsub.s32 0, %v4678
    %v4680 = vrot.slane %v4675, %v4679
    %v4690 = vunpack.c.l.b16 %v4666
    %v4691 = vunpack.c.l.b16 %v4667
    %v4692 = vunpack.c.l.b16 %v4668
    %v4693 = vunpack.c.l.b16 %v4669
    %v4694 = vunpack.c.l.b16 %v4670
    %v4695 = vunpack.c.l.b16 %v4671
    %v4696 = vunpack.c.l.b16 %v4672
    %v4697 = vunpack.c.l.b16 %v4673
    %v4698 = vpack.c.b16 %v4691, %v4690
    %v4699 = vpack.c.b16 %v4693, %v4692
    %v4700 = vpack.c.b16 %v4695, %v4694
    %v4701 = vpack.c.b16 %v4697, %v4696
    %4706 = vmatprep.subr.bf16.mxu0 0
    %4707 = vmatpush1.bf16.msra.mxu0 %v4698
    %4708 = vmatprep.subr.bf16.mxu0 0
    %4709 = vmatpush1.bf16.msra.mxu0 %v4699
    %4710 = vmatprep.subr.bf16.mxu0 0
    %4711 = vmatpush1.bf16.msra.mxu0 %v4700
    %4712 = vmatprep.subr.bf16.mxu0 0
    %4713 = vmatpush1.bf16.msra.mxu0 %v4701
    %4714 = vmatprep.subr.bf16.mxu0 0
    %4715 = vmatpush1.bf16.msra.mxu0 0
    %4716 = vmatprep.subr.bf16.mxu0 0
    %4717 = vmatpush1.bf16.msra.mxu0 0
    %4718 = vmatprep.subr.bf16.mxu0 0
    %4719 = vmatpush1.bf16.msra.mxu0 0
    %4720 = vmatprep.subr.bf16.mxu0 0
    %4721 = vmatpush1.bf16.msra.mxu0 0
    %4722 = vmatprep.subr.bf16.mxu0 0
    %4723 = vmatpush1.bf16.msra.mxu0 0
    %4724 = vmatprep.subr.bf16.mxu0 0
    %4725 = vmatpush1.bf16.msra.mxu0 0
    %4726 = vmatprep.subr.bf16.mxu0 0
    %4727 = vmatpush1.bf16.msra.mxu0 0
    %4728 = vmatprep.subr.bf16.mxu0 0
    %4729 = vmatpush1.bf16.msra.mxu0 0
    %4730 = vmatprep.subr.bf16.mxu0 0
    %4731 = vmatpush1.bf16.msra.mxu0 0
    %4732 = vmatprep.subr.bf16.mxu0 0
    %4733 = vmatpush1.bf16.msra.mxu0 0
    %4734 = vmatprep.subr.bf16.mxu0 0
    %4735 = vmatpush1.bf16.msra.mxu0 0
    %4736 = vmatprep.subr.bf16.mxu0 0
    %4737 = vmatpush1.bf16.msra.mxu0 0
    %4738 = vmatprep.mubr.bf16.mxu0 0
    %4739 = vmatmul.mubr.bf16.gmra.mrb[0].mxu0 %v3029
    %v4740 = vpop.f32.mrb[0].mxu0
    %v4741 = vadd.f32 %v4680, %v4740
    %v4742 = vpop.f32.mrb[0].mxu0
    %v4743 = vpop.f32.mrb[0].mxu0
    %v4744 = vadd.f32 %v4680, %v4743
    %v4745 = vpop.f32.mrb[0].mxu0
    %4746 = vmatprep.mubr.bf16.mxu0 0
    %4747 = vmatmul.mubr.bf16.gmra.mrb[0].mxu0 %v3032
    %v4748 = vpop.f32.mrb[0].mxu0
    %v4749 = vadd.f32 %v4680, %v4748
    %v4750 = vpop.f32.mrb[0].mxu0
    %v4751 = vpop.f32.mrb[0].mxu0
    %v4752 = vadd.f32 %v4680, %v4751
    %v4753 = vpop.f32.mrb[0].mxu0
    %4754 = vdwg.mxu0
    %s4755 = scalar_lea.vmem %s7, 224
    %v4756 = vld [vmem:[%s4755] sm:$0xf]
    %v4757 = vld [vmem:[%s4755 + $0x4] sm:$0xf]
    %v4758 = vld [vmem:[%s4755 + $0x8] sm:$0xf]
    %v4759 = vld [vmem:[%s4755 + $0xc] sm:$0xf]
    %v4760 = vld [vmem:[%s4755 + $0x10] sm:$0xf]
    %v4761 = vld [vmem:[%s4755 + $0x14] sm:$0xf]
    %v4762 = vld [vmem:[%s4755 + $0x18] sm:$0xf]
    %v4763 = vld [vmem:[%s4755 + $0x1c] sm:$0xf]
    %s4764 = scalar_lea.vmem %s10, 7
    %v4765 = vld [vmem:[%s4764] sm:$0x1]
    %v4767 = vlaneseq
    %v4768 = vshrl.u32 %v4767, 7
    %v4769 = vsub.s32 0, %v4768
    %v4770 = vrot.slane %v4765, %v4769
    %v4780 = vunpack.c.l.b16 %v4756
    %v4781 = vunpack.c.l.b16 %v4757
    %v4782 = vunpack.c.l.b16 %v4758
    %v4783 = vunpack.c.l.b16 %v4759
    %v4784 = vunpack.c.l.b16 %v4760
    %v4785 = vunpack.c.l.b16 %v4761
    %v4786 = vunpack.c.l.b16 %v4762
    %v4787 = vunpack.c.l.b16 %v4763
    %v4788 = vpack.c.b16 %v4781, %v4780
    %v4789 = vpack.c.b16 %v4783, %v4782
    %v4790 = vpack.c.b16 %v4785, %v4784
    %v4791 = vpack.c.b16 %v4787, %v4786
    %4796 = vmatprep.subr.bf16.mxu0 0
    %4797 = vmatpush1.bf16.msra.mxu0 %v4788
    %4798 = vmatprep.subr.bf16.mxu0 0
    %4799 = vmatpush1.bf16.msra.mxu0 %v4789
    %4800 = vmatprep.subr.bf16.mxu0 0
    %4801 = vmatpush1.bf16.msra.mxu0 %v4790
    %4802 = vmatprep.subr.bf16.mxu0 0
    %4803 = vmatpush1.bf16.msra.mxu0 %v4791
    %4804 = vmatprep.subr.bf16.mxu0 0
    %4805 = vmatpush1.bf16.msra.mxu0 0
    %4806 = vmatprep.subr.bf16.mxu0 0
    %4807 = vmatpush1.bf16.msra.mxu0 0
    %4808 = vmatprep.subr.bf16.mxu0 0
    %4809 = vmatpush1.bf16.msra.mxu0 0
    %4810 = vmatprep.subr.bf16.mxu0 0
    %4811 = vmatpush1.bf16.msra.mxu0 0
    %4812 = vmatprep.subr.bf16.mxu0 0
    %4813 = vmatpush1.bf16.msra.mxu0 0
    %4814 = vmatprep.subr.bf16.mxu0 0
    %4815 = vmatpush1.bf16.msra.mxu0 0
    %4816 = vmatprep.subr.bf16.mxu0 0
    %4817 = vmatpush1.bf16.msra.mxu0 0
    %4818 = vmatprep.subr.bf16.mxu0 0
    %4819 = vmatpush1.bf16.msra.mxu0 0
    %4820 = vmatprep.subr.bf16.mxu0 0
    %4821 = vmatpush1.bf16.msra.mxu0 0
    %4822 = vmatprep.subr.bf16.mxu0 0
    %4823 = vmatpush1.bf16.msra.mxu0 0
    %4824 = vmatprep.subr.bf16.mxu0 0
    %4825 = vmatpush1.bf16.msra.mxu0 0
    %4826 = vmatprep.subr.bf16.mxu0 0
    %4827 = vmatpush1.bf16.msra.mxu0 0
    %4828 = vmatprep.mubr.bf16.mxu0 0
    %4829 = vmatmul.mubr.bf16.gmra.mrb[0].mxu0 %v3029
    %v4830 = vpop.f32.mrb[0].mxu0
    %v4831 = vadd.f32 %v4770, %v4830
    %v4832 = vpop.f32.mrb[0].mxu0
    %v4833 = vpop.f32.mrb[0].mxu0
    %v4834 = vadd.f32 %v4770, %v4833
    %v4835 = vpop.f32.mrb[0].mxu0
    %4836 = vmatprep.mubr.bf16.mxu0 0
    %4837 = vmatmul.mubr.bf16.gmra.mrb[0].mxu0 %v3032
    %v4838 = vpop.f32.mrb[0].mxu0
    %v4839 = vadd.f32 %v4770, %v4838
    %v4840 = vpop.f32.mrb[0].mxu0
    %v4841 = vpop.f32.mrb[0].mxu0
    %v4842 = vadd.f32 %v4770, %v4841
    %v4843 = vpop.f32.mrb[0].mxu0
    %4844 = vdwg.mxu0
    %s4845 = scalar_lea.vmem %s8, 224
    %v4846 = vld [vmem:[%s4845] sm:$0xf]
    %v4847 = vld [vmem:[%s4845 + $0x4] sm:$0xf]
    %v4848 = vld [vmem:[%s4845 + $0x8] sm:$0xf]
    %v4849 = vld [vmem:[%s4845 + $0xc] sm:$0xf]
    %v4850 = vld [vmem:[%s4845 + $0x10] sm:$0xf]
    %v4851 = vld [vmem:[%s4845 + $0x14] sm:$0xf]
    %v4852 = vld [vmem:[%s4845 + $0x18] sm:$0xf]
    %v4853 = vld [vmem:[%s4845 + $0x1c] sm:$0xf]
    %s4854 = scalar_lea.vmem %s11, 7
    %v4855 = vld [vmem:[%s4854] sm:$0x1]
    %v4857 = vlaneseq
    %v4858 = vshrl.u32 %v4857, 7
    %v4859 = vsub.s32 0, %v4858
    %v4860 = vrot.slane %v4855, %v4859
    %v4870 = vunpack.c.l.b16 %v4846
    %v4871 = vunpack.c.l.b16 %v4847
    %v4872 = vunpack.c.l.b16 %v4848
    %v4873 = vunpack.c.l.b16 %v4849
    %v4874 = vunpack.c.l.b16 %v4850
    %v4875 = vunpack.c.l.b16 %v4851
    %v4876 = vunpack.c.l.b16 %v4852
    %v4877 = vunpack.c.l.b16 %v4853
    %v4878 = vpack.c.b16 %v4871, %v4870
    %v4879 = vpack.c.b16 %v4873, %v4872
    %v4880 = vpack.c.b16 %v4875, %v4874
    %v4881 = vpack.c.b16 %v4877, %v4876
    %4886 = vmatprep.subr.bf16.mxu0 0
    %4887 = vmatpush1.bf16.msra.mxu0 %v4878
    %4888 = vmatprep.subr.bf16.mxu0 0
    %4889 = vmatpush1.bf16.msra.mxu0 %v4879
    %4890 = vmatprep.subr.bf16.mxu0 0
    %4891 = vmatpush1.bf16.msra.mxu0 %v4880
    %4892 = vmatprep.subr.bf16.mxu0 0
    %4893 = vmatpush1.bf16.msra.mxu0 %v4881
    %4894 = vmatprep.subr.bf16.mxu0 0
    %4895 = vmatpush1.bf16.msra.mxu0 0
    %4896 = vmatprep.subr.bf16.mxu0 0
    %4897 = vmatpush1.bf16.msra.mxu0 0
    %4898 = vmatprep.subr.bf16.mxu0 0
    %4899 = vmatpush1.bf16.msra.mxu0 0
    %4900 = vmatprep.subr.bf16.mxu0 0
    %4901 = vmatpush1.bf16.msra.mxu0 0
    %4902 = vmatprep.subr.bf16.mxu0 0
    %4903 = vmatpush1.bf16.msra.mxu0 0
    %4904 = vmatprep.subr.bf16.mxu0 0
    %4905 = vmatpush1.bf16.msra.mxu0 0
    %4906 = vmatprep.subr.bf16.mxu0 0
    %4907 = vmatpush1.bf16.msra.mxu0 0
    %4908 = vmatprep.subr.bf16.mxu0 0
    %4909 = vmatpush1.bf16.msra.mxu0 0
    %4910 = vmatprep.subr.bf16.mxu0 0
    %4911 = vmatpush1.bf16.msra.mxu0 0
    %4912 = vmatprep.subr.bf16.mxu0 0
    %4913 = vmatpush1.bf16.msra.mxu0 0
    %4914 = vmatprep.subr.bf16.mxu0 0
    %4915 = vmatpush1.bf16.msra.mxu0 0
    %4916 = vmatprep.subr.bf16.mxu0 0
    %4917 = vmatpush1.bf16.msra.mxu0 0
    %4918 = vmatprep.mubr.bf16.mxu0 0
    %4919 = vmatmul.mubr.bf16.gmra.mrb[0].mxu0 %v3029
    %v4920 = vpop.f32.mrb[0].mxu0
    %v4921 = vadd.f32 %v4860, %v4920
    %v4922 = vpop.f32.mrb[0].mxu0
    %v4923 = vpop.f32.mrb[0].mxu0
    %v4924 = vadd.f32 %v4860, %v4923
    %v4925 = vpop.f32.mrb[0].mxu0
    %4926 = vmatprep.mubr.bf16.mxu0 0
    %4927 = vmatmul.mubr.bf16.gmra.mrb[0].mxu0 %v3032
    %v4928 = vpop.f32.mrb[0].mxu0
    %v4929 = vadd.f32 %v4860, %v4928
    %v4930 = vpop.f32.mrb[0].mxu0
    %v4931 = vpop.f32.mrb[0].mxu0
    %v4932 = vadd.f32 %v4860, %v4931
    %v4933 = vpop.f32.mrb[0].mxu0
    %4934 = vdwg.mxu0
    %v4936 = vsel %vm476, %v4741, 0
    %v4939 = vsel %vm476, %v4744, 0
    %v4942 = vsel %vm476, %v4749, 0
    %v4945 = vsel %vm476, %v4752, 0
    %v4948 = vsel %vm476, %v4831, 0
    %v4951 = vsel %vm476, %v4834, 0
    %v4954 = vsel %vm476, %v4839, 0
    %v4957 = vsel %vm476, %v4842, 0
    %4959 = vmatprep.subr.mxu0 0.0
    %4960 = vmatpush1.xpose.msra.mxu0 %v4948
    %4961 = vmatprep.subr.mxu0 0.0
    %4962 = vmatpush1.xpose.msra.mxu0 %v4951
    %4963 = vmatprep.subr.mxu0 0.0
    %4964 = vmatpush1.xpose.msra.mxu0 %v4954
    %4965 = vmatprep.subr.mxu0 0.0
    %4966 = vmatpush1.xpose.msra.mxu0 %v4957
    %4967 = vmatprep.subr.mxu0 0.0
    %4968 = vmatpush1.xpose.msra.mxu0 0.0
    %4969 = vmatprep.subr.mxu0 0.0
    %4970 = vmatpush1.xpose.msra.mxu0 0.0
    %4971 = vmatprep.subr.mxu0 0.0
    %4972 = vmatpush1.xpose.msra.mxu0 0.0
    %4973 = vmatprep.subr.mxu0 0.0
    %4974 = vmatpush1.xpose.msra.mxu0 0.0
    %4975 = vmatprep.subr.mxu0 0.0
    %4976 = vmatpush1.xpose.msra.mxu0 0.0
    %4977 = vmatprep.subr.mxu0 0.0
    %4978 = vmatpush1.xpose.msra.mxu0 0.0
    %4979 = vmatprep.subr.mxu0 0.0
    %4980 = vmatpush1.xpose.msra.mxu0 0.0
    %4981 = vmatprep.subr.mxu0 0.0
    %4982 = vmatpush1.xpose.msra.mxu0 0.0
    %4983 = vmatprep.subr.mxu0 0.0
    %4984 = vmatpush1.xpose.msra.mxu0 0.0
    %4985 = vmatprep.subr.mxu0 0.0
    %4986 = vmatpush1.xpose.msra.mxu0 0.0
    %4987 = vmatprep.subr.mxu0 0.0
    %4988 = vmatpush1.xpose.msra.mxu0 0.0
    %4989 = vmatprep.subr.mxu0 0.0
    %4990 = vmatpush1.xpose.msra.mxu0 0.0
    %4991 = vmatprep.subr.mxu0 0.0
    %4992 = vmatpush1.xpose.msra.mxu0 0.0
    %4993 = vmatprep.subr.mxu0 0.0
    %4994 = vmatpush1.xpose.msra.mxu0 0.0
    %4995 = vmatprep.subr.mxu0 0.0
    %4996 = vmatpush1.xpose.msra.mxu0 0.0
    %4997 = vmatprep.subr.mxu0 0.0
    %4998 = vmatpush1.xpose.msra.mxu0 0.0
    %4999 = vmatprep.subr.mxu0 0.0
    %5000 = vmatpush1.xpose.msra.mxu0 0.0
    %5001 = vmatprep.subr.mxu0 0.0
    %5002 = vmatpush1.xpose.msra.mxu0 0.0
    %5003 = vmatprep.subr.mxu0 0.0
    %5004 = vmatpush1.xpose.msra.mxu0 0.0
    %5005 = vmatprep.subr.mxu0 0.0
    %5006 = vmatpush1.xpose.msra.mxu0 0.0
    %5007 = vmatprep.subr.mxu0 0.0
    %5008 = vmatpush1.xpose.msra.mxu0 0.0
    %5009 = vmatprep.subr.mxu0 0.0
    %5010 = vmatpush1.xpose.msra.mxu0 0.0
    %5011 = vmatprep.subr.mxu0 0.0
    %5012 = vmatpush1.xpose.msra.mxu0 0.0
    %5013 = vmatprep.subr.mxu0 0.0
    %5014 = vmatpush1.xpose.msra.mxu0 0.0
    %5015 = vmatprep.subr.mxu0 0.0
    %5016 = vmatpush1.xpose.msra.mxu0 0.0
    %5017 = vmatprep.subr.mxu0 0.0
    %5018 = vmatpush1.xpose.msra.mxu0 0.0
    %5019 = vmatprep.subr.mxu0 0.0
    %5020 = vmatpush1.xpose.msra.mxu0 0.0
    %5021 = vmatprep.subr.mxu0 0.0
    %5022 = vmatpush1.xpose.msra.mxu0 0.0
    %5023 = vmatprep.mubr.f32.mxu0 0.0
    %5024 = vmatmul.mubr.f32.gmra.mrb[0].mxu0 %v4936
    %v5025 = vpop.f32.mrb[0].mxu0
    %v5026 = vadd.f32 0.0, %v5025
    %v5027 = vpop.f32.mrb[0].mxu0
    %5028 = vmatprep.mubr.f32.mxu0 0.0
    %5029 = vmatmul.mubr.f32.gmra.mrb[0].mxu0 %v4939
    %v5030 = vpop.f32.mrb[0].mxu0
    %v5031 = vadd.f32 0.0, %v5030
    %v5032 = vpop.f32.mrb[0].mxu0
    %5033 = vmatprep.mubr.f32.mxu0 0.0
    %5034 = vmatmul.mubr.f32.gmra.mrb[0].mxu0 %v4942
    %v5035 = vpop.f32.mrb[0].mxu0
    %v5036 = vadd.f32 0.0, %v5035
    %v5037 = vpop.f32.mrb[0].mxu0
    %5038 = vmatprep.mubr.f32.mxu0 0.0
    %5039 = vmatmul.mubr.f32.gmra.mrb[0].mxu0 %v4945
    %v5040 = vpop.f32.mrb[0].mxu0
    %v5041 = vadd.f32 0.0, %v5040
    %v5042 = vpop.f32.mrb[0].mxu0
    %5043 = vdwg.mxu0
    %v5044 = vmul.f32 %v5026, 0.25
    %v5045 = vmul.f32 %v5031, 0.25
    %v5046 = vmul.f32 %v5036, 0.25
    %v5047 = vmul.f32 %v5041, 0.25
    %v5048 = vadd.f32 %v5044, %v120
    %v5049 = vadd.f32 %v5045, %v121
    %v5050 = vadd.f32 %v5046, %v122
    %v5051 = vadd.f32 %v5047, %v123
    %v5052 = vsel %vm594, %v5048, -inf
    %5053 = vmax.xlane.f32.xlu0 %v5052
    %v5054 = vpop.xlane.xlu0 %5053
    %v5055 = vsel %vm594, %v5049, -inf
    %5056 = vmax.xlane.f32.xlu0 %v5055
    %v5057 = vpop.xlane.xlu0 %5056
    %v5058 = vsel %vm594, %v5050, -inf
    %5059 = vmax.xlane.f32.xlu0 %v5058
    %v5060 = vpop.xlane.xlu0 %5059
    %v5061 = vsel %vm594, %v5051, -inf
    %5062 = vmax.xlane.f32.xlu0 %v5061
    %v5063 = vpop.xlane.xlu0 %5062
    %v5064 = vsub.f32 %v5048, %v5054
    %v5065 = vsub.f32 %v5049, %v5057
    %v5066 = vsub.f32 %v5050, %v5060
    %v5067 = vsub.f32 %v5051, %v5063
    %v5068 = vmul.f32 %v5064, 1.442695
    %v5069 = vpow.pop %v5068
    %v5070 = vmul.f32 %v5065, 1.442695
    %v5071 = vpow.pop %v5070
    %v5072 = vmul.f32 %v5066, 1.442695
    %v5073 = vpow.pop %v5072
    %v5074 = vmul.f32 %v5067, 1.442695
    %v5075 = vpow.pop %v5074
    %v5076 = vsel %vm594, %v5069, 0.0
    %5077 = vadd.xlane.f32.xlu0 %v5076
    %v5078 = vpop.xlane.xlu0 %5077
    %v5079 = vsel %vm594, %v5071, 0.0
    %5080 = vadd.xlane.f32.xlu0 %v5079
    %v5081 = vpop.xlane.xlu0 %5080
    %v5082 = vsel %vm594, %v5073, 0.0
    %5083 = vadd.xlane.f32.xlu0 %v5082
    %v5084 = vpop.xlane.xlu0 %5083
    %v5085 = vsel %vm594, %v5075, 0.0
    %5086 = vadd.xlane.f32.xlu0 %v5085
    %v5087 = vpop.xlane.xlu0 %5086
    %v5088 = vrcp.pop %v5078
    %v5089 = vmul.f32 %v5069, %v5088
    %v5090 = vrcp.pop %v5081
    %v5091 = vmul.f32 %v5071, %v5090
    %v5092 = vrcp.pop %v5084
    %v5093 = vmul.f32 %v5073, %v5092
    %v5094 = vrcp.pop %v5087
    %v5095 = vmul.f32 %v5075, %v5094
    %v5096 = vpack.c.bf16 %v5091, %v5089
    %v5097 = vpack.c.bf16 %v5095, %v5093
    %v5098 = vpack.c.bf16 %v4924, %v4921
    %v5099 = vpack.c.bf16 %v4932, %v4929
    %v5101 = vsel %vm594, %v5096, 0
    %v5104 = vsel %vm594, %v5097, 0
    %5106 = vmatprep.subr.bf16.mxu0 0
    %5107 = vmatpush1.bf16.msra.mxu0 %v5098
    %5108 = vmatprep.subr.bf16.mxu0 0
    %5109 = vmatpush1.bf16.msra.mxu0 %v5099
    %5110 = vmatprep.subr.bf16.mxu0 0
    %5111 = vmatpush1.bf16.msra.mxu0 0
    %5112 = vmatprep.subr.bf16.mxu0 0
    %5113 = vmatpush1.bf16.msra.mxu0 0
    %5114 = vmatprep.subr.bf16.mxu0 0
    %5115 = vmatpush1.bf16.msra.mxu0 0
    %5116 = vmatprep.subr.bf16.mxu0 0
    %5117 = vmatpush1.bf16.msra.mxu0 0
    %5118 = vmatprep.subr.bf16.mxu0 0
    %5119 = vmatpush1.bf16.msra.mxu0 0
    %5120 = vmatprep.subr.bf16.mxu0 0
    %5121 = vmatpush1.bf16.msra.mxu0 0
    %5122 = vmatprep.subr.bf16.mxu0 0
    %5123 = vmatpush1.bf16.msra.mxu0 0
    %5124 = vmatprep.subr.bf16.mxu0 0
    %5125 = vmatpush1.bf16.msra.mxu0 0
    %5126 = vmatprep.subr.bf16.mxu0 0
    %5127 = vmatpush1.bf16.msra.mxu0 0
    %5128 = vmatprep.subr.bf16.mxu0 0
    %5129 = vmatpush1.bf16.msra.mxu0 0
    %5130 = vmatprep.subr.bf16.mxu0 0
    %5131 = vmatpush1.bf16.msra.mxu0 0
    %5132 = vmatprep.subr.bf16.mxu0 0
    %5133 = vmatpush1.bf16.msra.mxu0 0
    %5134 = vmatprep.subr.bf16.mxu0 0
    %5135 = vmatpush1.bf16.msra.mxu0 0
    %5136 = vmatprep.subr.bf16.mxu0 0
    %5137 = vmatpush1.bf16.msra.mxu0 0
    %5138 = vmatprep.mubr.bf16.mxu0 0
    %5139 = vmatmul.mubr.bf16.gmra.mrb[0].mxu0 %v5101
    %v5140 = vpop.f32.mrb[0].mxu0
    %v5141 = vadd.f32 0.0, %v5140
    %v5142 = vpop.f32.mrb[0].mxu0
    %v5143 = vpop.f32.mrb[0].mxu0
    %v5144 = vadd.f32 0.0, %v5143
    %v5145 = vpop.f32.mrb[0].mxu0
    %5146 = vmatprep.mubr.bf16.mxu0 0
    %5147 = vmatmul.mubr.bf16.gmra.mrb[0].mxu0 %v5104
    %v5148 = vpop.f32.mrb[0].mxu0
    %v5149 = vadd.f32 0.0, %v5148
    %v5150 = vpop.f32.mrb[0].mxu0
    %v5151 = vpop.f32.mrb[0].mxu0
    %v5152 = vadd.f32 0.0, %v5151
    %v5153 = vpop.f32.mrb[0].mxu0
    %5154 = vdwg.mxu0
    %v5155 = vpack.c.bf16 %v5144, %v5141
    %v5156 = vpack.c.bf16 %v5152, %v5149
    %s5157 = scalar_lea.vmem %s12, 56
    %v5158 = vld [vmem:[%s5157] sm:$0xf]
    %v5159 = vld [vmem:[%s5157 + $0x4] sm:$0xf]
    %v5162 = vunpack.c.l.b16 %v5158
    %v5163 = vunpack.c.l.b16 %v5159
    %v5164 = vpack.c.b16 %v5163, %v5162
    %v5167 = vsel %vm476, %v5155, 0
    %v5170 = vsel %vm476, %v5156, 0
    %5172 = vmatprep.subr.bf16.mxu0 0
    %5173 = vmatpush1.bf16.msra.mxu0 %v5164
    %5174 = vmatprep.subr.bf16.mxu0 0
    %5175 = vmatpush1.bf16.msra.mxu0 0
    %5176 = vmatprep.subr.bf16.mxu0 0
    %5177 = vmatpush1.bf16.msra.mxu0 0
    %5178 = vmatprep.subr.bf16.mxu0 0
    %5179 = vmatpush1.bf16.msra.mxu0 0
    %5180 = vmatprep.subr.bf16.mxu0 0
    %5181 = vmatpush1.bf16.msra.mxu0 0
    %5182 = vmatprep.subr.bf16.mxu0 0
    %5183 = vmatpush1.bf16.msra.mxu0 0
    %5184 = vmatprep.subr.bf16.mxu0 0
    %5185 = vmatpush1.bf16.msra.mxu0 0
    %5186 = vmatprep.subr.bf16.mxu0 0
    %5187 = vmatpush1.bf16.msra.mxu0 0
    %5188 = vmatprep.subr.bf16.mxu0 0
    %5189 = vmatpush1.bf16.msra.mxu0 0
    %5190 = vmatprep.subr.bf16.mxu0 0
    %5191 = vmatpush1.bf16.msra.mxu0 0
    %5192 = vmatprep.subr.bf16.mxu0 0
    %5193 = vmatpush1.bf16.msra.mxu0 0
    %5194 = vmatprep.subr.bf16.mxu0 0
    %5195 = vmatpush1.bf16.msra.mxu0 0
    %5196 = vmatprep.subr.bf16.mxu0 0
    %5197 = vmatpush1.bf16.msra.mxu0 0
    %5198 = vmatprep.subr.bf16.mxu0 0
    %5199 = vmatpush1.bf16.msra.mxu0 0
    %5200 = vmatprep.subr.bf16.mxu0 0
    %5201 = vmatpush1.bf16.msra.mxu0 0
    %5202 = vmatprep.subr.bf16.mxu0 0
    %5203 = vmatpush1.bf16.msra.mxu0 0
    %5204 = vmatprep.mubr.bf16.mxu0 0
    %5205 = vmatmul.mubr.bf16.gmra.mrb[0].mxu0 %v5167
    %v5206 = vpop.f32.mrb[0].mxu0
    %v5207 = vadd.f32 0.0, %v5206
    %v5208 = vpop.f32.mrb[0].mxu0
    %v5209 = vpop.f32.mrb[0].mxu0
    %v5210 = vadd.f32 0.0, %v5209
    %v5211 = vpop.f32.mrb[0].mxu0
    %5212 = vmatprep.mubr.bf16.mxu0 0
    %5213 = vmatmul.mubr.bf16.gmra.mrb[0].mxu0 %v5170
    %v5214 = vpop.f32.mrb[0].mxu0
    %v5215 = vadd.f32 0.0, %v5214
    %v5216 = vpop.f32.mrb[0].mxu0
    %v5217 = vpop.f32.mrb[0].mxu0
    %v5218 = vadd.f32 0.0, %v5217
    %v5219 = vpop.f32.mrb[0].mxu0
    %5220 = vdwg.mxu0
    %v5221 = vadd.f32 %v4661, %v5207
    %v5222 = vadd.f32 %v4662, %v5210
    %v5223 = vadd.f32 %v4663, %v5215
    %v5224 = vadd.f32 %v4664, %v5218
    %v5225 = vadd.f32 %v2905, %v5221
    %v5226 = vadd.f32 %v2906, %v5222
    %v5227 = vadd.f32 %v2907, %v5223
    %v5228 = vadd.f32 %v2908, %v5224
    %s5229 = scalar_lea.vmem %s13, 1
    %v5230 = vld [vmem:[%s5229] sm:$0x1]
    %v5232 = vlaneseq
    %v5233 = vshrl.u32 %v5232, 7
    %v5234 = vsub.s32 0, %v5233
    %v5235 = vrot.slane %v5230, %v5234
    %v5237 = vadd.f32 %v5225, %v5235
    %v5238 = vadd.f32 %v5226, %v5235
    %v5239 = vadd.f32 %v5227, %v5235
    %v5240 = vadd.f32 %v5228, %v5235
    %s5241 = scalar_lea.vmem %s14, 1
    %v5242 = vld [vmem:[%s5241] sm:$0x1]
    %s5243 = scalar_lea.vmem %s15, 1
    %v5244 = vld [vmem:[%s5243] sm:$0x1]
    %v5245 = vsel %vm130, %v5237, 0.0
    %5246 = vadd.xlane.f32.xlu0 %v5245
    %v5247 = vpop.xlane.xlu0 %5246
    %v5248 = vsel %vm130, %v5238, 0.0
    %5249 = vadd.xlane.f32.xlu0 %v5248
    %v5250 = vpop.xlane.xlu0 %5249
    %v5251 = vsel %vm130, %v5239, 0.0
    %5252 = vadd.xlane.f32.xlu0 %v5251
    %v5253 = vpop.xlane.xlu0 %5252
    %v5254 = vsel %vm130, %v5240, 0.0
    %5255 = vadd.xlane.f32.xlu0 %v5254
    %v5256 = vpop.xlane.xlu0 %5255
    %v5257 = vmul.f32 %v5247, %v143
    %v5258 = vmul.f32 %v5250, %v143
    %v5259 = vmul.f32 %v5253, %v143
    %v5260 = vmul.f32 %v5256, %v143
    %v5261 = vsub.f32 %v5237, %v5257
    %v5262 = vsub.f32 %v5238, %v5258
    %v5263 = vsub.f32 %v5239, %v5259
    %v5264 = vsub.f32 %v5240, %v5260
    %v5265 = vmul.f32 %v5261, %v5261
    %v5266 = vmul.f32 %v5262, %v5262
    %v5267 = vmul.f32 %v5263, %v5263
    %v5268 = vmul.f32 %v5264, %v5264
    %v5269 = vsel %vm130, %v5265, 0.0
    %5270 = vadd.xlane.f32.xlu0 %v5269
    %v5271 = vpop.xlane.xlu0 %5270
    %v5272 = vsel %vm130, %v5266, 0.0
    %5273 = vadd.xlane.f32.xlu0 %v5272
    %v5274 = vpop.xlane.xlu0 %5273
    %v5275 = vsel %vm130, %v5267, 0.0
    %5276 = vadd.xlane.f32.xlu0 %v5275
    %v5277 = vpop.xlane.xlu0 %5276
    %v5278 = vsel %vm130, %v5268, 0.0
    %5279 = vadd.xlane.f32.xlu0 %v5278
    %v5280 = vpop.xlane.xlu0 %5279
    %v5281 = vmul.f32 %v5271, %v143
    %v5282 = vmul.f32 %v5274, %v143
    %v5283 = vmul.f32 %v5277, %v143
    %v5284 = vmul.f32 %v5280, %v143
    %v5285 = vadd.f32 %v5281, 1e-05
    %v5286 = vadd.f32 %v5282, 1e-05
    %v5287 = vadd.f32 %v5283, 1e-05
    %v5288 = vadd.f32 %v5284, 1e-05
    %v5289 = vrsqrt.pop %v5285
    %v5290 = vrsqrt.pop %v5286
    %v5291 = vrsqrt.pop %v5287
    %v5292 = vrsqrt.pop %v5288
    %v5293 = vmul.f32 %v5261, %v5289
    %v5294 = vmul.f32 %v5262, %v5290
    %v5295 = vmul.f32 %v5263, %v5291
    %v5296 = vmul.f32 %v5264, %v5292
    %v5298 = vlaneseq
    %v5299 = vshrl.u32 %v5298, 7
    %v5300 = vsub.s32 0, %v5299
    %v5301 = vrot.slane %v5242, %v5300
    %v5303 = vmul.f32 %v5293, %v5301
    %v5304 = vmul.f32 %v5294, %v5301
    %v5305 = vmul.f32 %v5295, %v5301
    %v5306 = vmul.f32 %v5296, %v5301
    %v5308 = vlaneseq
    %v5309 = vshrl.u32 %v5308, 7
    %v5310 = vsub.s32 0, %v5309
    %v5311 = vrot.slane %v5244, %v5310
    %v5313 = vadd.f32 %v5303, %v5311
    %v5314 = vadd.f32 %v5304, %v5311
    %v5315 = vadd.f32 %v5305, %v5311
    %v5316 = vadd.f32 %v5306, %v5311
    %v5317 = vpack.c.bf16 %v5314, %v5313
    %v5318 = vpack.c.bf16 %v5316, %v5315
    %s5319 = scalar_lea.vmem %s16, 64
    %v5320 = vld [vmem:[%s5319] sm:$0xff]
    %v5321 = vld [vmem:[%s5319 + $0x8] sm:$0xff]
    %v5322 = vld [vmem:[%s5319 + $0x10] sm:$0xff]
    %v5323 = vld [vmem:[%s5319 + $0x18] sm:$0xff]
    %v5324 = vld [vmem:[%s5319 + $0x20] sm:$0xff]
    %v5325 = vld [vmem:[%s5319 + $0x28] sm:$0xff]
    %v5326 = vld [vmem:[%s5319 + $0x30] sm:$0xff]
    %v5327 = vld [vmem:[%s5319 + $0x38] sm:$0xff]
    %s5328 = scalar_lea.vmem %s17, 2
    %v5329 = vld [vmem:[%s5328] sm:$0x3]
    %v5331 = vlaneseq
    %v5332 = vshrl.u32 %v5331, 7
    %v5333 = vsub.s32 0, %v5332
    %v5334 = vrot.slane %v5329, %v5333
    %v5335 = vlaneseq
    %v5336 = vshrl.u32 %v5335, 7
    %v5337 = vsub.s32 1, %v5336
    %v5338 = vrot.slane %v5329, %v5337
    %v5349 = vunpack.c.l.b16 %v5320
    %v5350 = vunpack.c.h.b16 %v5320
    %v5351 = vunpack.c.l.b16 %v5321
    %v5352 = vunpack.c.h.b16 %v5321
    %v5353 = vunpack.c.l.b16 %v5322
    %v5354 = vunpack.c.h.b16 %v5322
    %v5355 = vunpack.c.l.b16 %v5323
    %v5356 = vunpack.c.h.b16 %v5323
    %v5357 = vunpack.c.l.b16 %v5324
    %v5358 = vunpack.c.h.b16 %v5324
    %v5359 = vunpack.c.l.b16 %v5325
    %v5360 = vunpack.c.h.b16 %v5325
    %v5361 = vunpack.c.l.b16 %v5326
    %v5362 = vunpack.c.h.b16 %v5326
    %v5363 = vunpack.c.l.b16 %v5327
    %v5364 = vunpack.c.h.b16 %v5327
    %v5365 = vpack.c.b16 %v5351, %v5349
    %v5366 = vpack.c.b16 %v5352, %v5350
    %v5367 = vpack.c.b16 %v5355, %v5353
    %v5368 = vpack.c.b16 %v5356, %v5354
    %v5369 = vpack.c.b16 %v5359, %v5357
    %v5370 = vpack.c.b16 %v5360, %v5358
    %v5371 = vpack.c.b16 %v5363, %v5361
    %v5372 = vpack.c.b16 %v5364, %v5362
    %v5382 = vsel %vm130, %v5317, 0
    %v5385 = vsel %vm130, %v5318, 0
    %5387 = vmatprep.subr.bf16.mxu0 %v5366
    %5388 = vmatpush1.bf16.msra.mxu0 %v5365
    %5389 = vmatprep.subr.bf16.mxu0 %v5368
    %5390 = vmatpush1.bf16.msra.mxu0 %v5367
    %5391 = vmatprep.subr.bf16.mxu0 %v5370
    %5392 = vmatpush1.bf16.msra.mxu0 %v5369
    %5393 = vmatprep.subr.bf16.mxu0 %v5372
    %5394 = vmatpush1.bf16.msra.mxu0 %v5371
    %5395 = vmatprep.subr.bf16.mxu0 0
    %5396 = vmatpush1.bf16.msra.mxu0 0
    %5397 = vmatprep.subr.bf16.mxu0 0
    %5398 = vmatpush1.bf16.msra.mxu0 0
    %5399 = vmatprep.subr.bf16.mxu0 0
    %5400 = vmatpush1.bf16.msra.mxu0 0
    %5401 = vmatprep.subr.bf16.mxu0 0
    %5402 = vmatpush1.bf16.msra.mxu0 0
    %5403 = vmatprep.subr.bf16.mxu0 0
    %5404 = vmatpush1.bf16.msra.mxu0 0
    %5405 = vmatprep.subr.bf16.mxu0 0
    %5406 = vmatpush1.bf16.msra.mxu0 0
    %5407 = vmatprep.subr.bf16.mxu0 0
    %5408 = vmatpush1.bf16.msra.mxu0 0
    %5409 = vmatprep.subr.bf16.mxu0 0
    %5410 = vmatpush1.bf16.msra.mxu0 0
    %5411 = vmatprep.subr.bf16.mxu0 0
    %5412 = vmatpush1.bf16.msra.mxu0 0
    %5413 = vmatprep.subr.bf16.mxu0 0
    %5414 = vmatpush1.bf16.msra.mxu0 0
    %5415 = vmatprep.subr.bf16.mxu0 0
    %5416 = vmatpush1.bf16.msra.mxu0 0
    %5417 = vmatprep.subr.bf16.mxu0 0
    %5418 = vmatpush1.bf16.msra.mxu0 0
    %5419 = vmatprep.mubr.bf16.mxu0 0
    %5420 = vmatmul.mubr.bf16.gmra.mrb[0].mxu0 %v5382
    %v5421 = vpop.f32.mrb[0].mxu0
    %v5422 = vadd.f32 %v5334, %v5421
    %v5423 = vpop.f32.mrb[0].mxu0
    %v5424 = vadd.f32 %v5338, %v5423
    %v5425 = vpop.f32.mrb[0].mxu0
    %v5426 = vadd.f32 %v5334, %v5425
    %v5427 = vpop.f32.mrb[0].mxu0
    %v5428 = vadd.f32 %v5338, %v5427
    %5429 = vmatprep.mubr.bf16.mxu0 0
    %5430 = vmatmul.mubr.bf16.gmra.mrb[0].mxu0 %v5385
    %v5431 = vpop.f32.mrb[0].mxu0
    %v5432 = vadd.f32 %v5334, %v5431
    %v5433 = vpop.f32.mrb[0].mxu0
    %v5434 = vadd.f32 %v5338, %v5433
    %v5435 = vpop.f32.mrb[0].mxu0
    %v5436 = vadd.f32 %v5334, %v5435
    %v5437 = vpop.f32.mrb[0].mxu0
    %v5438 = vadd.f32 %v5338, %v5437
    %5439 = vdwg.mxu0
    %v5440 = vmul.f32 %v5422, 1.702
    %v5441 = vmul.f32 %v5424, 1.702
    %v5442 = vmul.f32 %v5426, 1.702
    %v5443 = vmul.f32 %v5428, 1.702
    %v5444 = vmul.f32 %v5432, 1.702
    %v5445 = vmul.f32 %v5434, 1.702
    %v5446 = vmul.f32 %v5436, 1.702
    %v5447 = vmul.f32 %v5438, 1.702
    %v5448 = vxor.u32 %v5440, 2147483648
    %v5449 = vxor.u32 %v5441, 2147483648
    %v5450 = vxor.u32 %v5442, 2147483648
    %v5451 = vxor.u32 %v5443, 2147483648
    %v5452 = vxor.u32 %v5444, 2147483648
    %v5453 = vxor.u32 %v5445, 2147483648
    %v5454 = vxor.u32 %v5446, 2147483648
    %v5455 = vxor.u32 %v5447, 2147483648
    %v5456 = vmul.f32 %v5448, 1.442695
    %v5457 = vpow.pop %v5456
    %v5458 = vmul.f32 %v5449, 1.442695
    %v5459 = vpow.pop %v5458
    %v5460 = vmul.f32 %v5450, 1.442695
    %v5461 = vpow.pop %v5460
    %v5462 = vmul.f32 %v5451, 1.442695
    %v5463 = vpow.pop %v5462
    %v5464 = vmul.f32 %v5452, 1.442695
    %v5465 = vpow.pop %v5464
    %v5466 = vmul.f32 %v5453, 1.442695
    %v5467 = vpow.pop %v5466
    %v5468 = vmul.f32 %v5454, 1.442695
    %v5469 = vpow.pop %v5468
    %v5470 = vmul.f32 %v5455, 1.442695
    %v5471 = vpow.pop %v5470
    %v5472 = vadd.f32 %v5457, 1.0
    %v5473 = vadd.f32 %v5459, 1.0
    %v5474 = vadd.f32 %v5461, 1.0
    %v5475 = vadd.f32 %v5463, 1.0
    %v5476 = vadd.f32 %v5465, 1.0
    %v5477 = vadd.f32 %v5467, 1.0
    %v5478 = vadd.f32 %v5469, 1.0
    %v5479 = vadd.f32 %v5471, 1.0
    %v5480 = vrcp.pop %v5472
    %v5481 = vmul.f32 1.0, %v5480
    %v5482 = vrcp.pop %v5473
    %v5483 = vmul.f32 1.0, %v5482
    %v5484 = vrcp.pop %v5474
    %v5485 = vmul.f32 1.0, %v5484
    %v5486 = vrcp.pop %v5475
    %v5487 = vmul.f32 1.0, %v5486
    %v5488 = vrcp.pop %v5476
    %v5489 = vmul.f32 1.0, %v5488
    %v5490 = vrcp.pop %v5477
    %v5491 = vmul.f32 1.0, %v5490
    %v5492 = vrcp.pop %v5478
    %v5493 = vmul.f32 1.0, %v5492
    %v5494 = vrcp.pop %v5479
    %v5495 = vmul.f32 1.0, %v5494
    %v5496 = vmul.f32 %v5422, %v5481
    %v5497 = vmul.f32 %v5424, %v5483
    %v5498 = vmul.f32 %v5426, %v5485
    %v5499 = vmul.f32 %v5428, %v5487
    %v5500 = vmul.f32 %v5432, %v5489
    %v5501 = vmul.f32 %v5434, %v5491
    %v5502 = vmul.f32 %v5436, %v5493
    %v5503 = vmul.f32 %v5438, %v5495
    %v5504 = vpack.c.bf16 %v5498, %v5496
    %v5505 = vpack.c.bf16 %v5499, %v5497
    %v5506 = vpack.c.bf16 %v5502, %v5500
    %v5507 = vpack.c.bf16 %v5503, %v5501
    %s5508 = scalar_lea.vmem %s18, 128
    %v5509 = vld [vmem:[%s5508] sm:$0xf]
    %v5510 = vld [vmem:[%s5508 + $0x4] sm:$0xf]
    %v5511 = vld [vmem:[%s5508 + $0x8] sm:$0xf]
    %v5512 = vld [vmem:[%s5508 + $0xc] sm:$0xf]
    %v5513 = vld [vmem:[%s5508 + $0x10] sm:$0xf]
    %v5514 = vld [vmem:[%s5508 + $0x14] sm:$0xf]
    %v5515 = vld [vmem:[%s5508 + $0x18] sm:$0xf]
    %v5516 = vld [vmem:[%s5508 + $0x1c] sm:$0xf]
    %v5517 = vld [vmem:[%s5508 + $0x20] sm:$0xf]
    %v5518 = vld [vmem:[%s5508 + $0x24] sm:$0xf]
    %v5519 = vld [vmem:[%s5508 + $0x28] sm:$0xf]
    %v5520 = vld [vmem:[%s5508 + $0x2c] sm:$0xf]
    %v5521 = vld [vmem:[%s5508 + $0x30] sm:$0xf]
    %v5522 = vld [vmem:[%s5508 + $0x34] sm:$0xf]
    %v5523 = vld [vmem:[%s5508 + $0x38] sm:$0xf]
    %v5524 = vld [vmem:[%s5508 + $0x3c] sm:$0xf]
    %v5525 = vld [vmem:[%s5508 + $0x40] sm:$0xf]
    %v5526 = vld [vmem:[%s5508 + $0x44] sm:$0xf]
    %v5527 = vld [vmem:[%s5508 + $0x48] sm:$0xf]
    %v5528 = vld [vmem:[%s5508 + $0x4c] sm:$0xf]
    %v5529 = vld [vmem:[%s5508 + $0x50] sm:$0xf]
    %v5530 = vld [vmem:[%s5508 + $0x54] sm:$0xf]
    %v5531 = vld [vmem:[%s5508 + $0x58] sm:$0xf]
    %v5532 = vld [vmem:[%s5508 + $0x5c] sm:$0xf]
    %v5533 = vld [vmem:[%s5508 + $0x60] sm:$0xf]
    %v5534 = vld [vmem:[%s5508 + $0x64] sm:$0xf]
    %v5535 = vld [vmem:[%s5508 + $0x68] sm:$0xf]
    %v5536 = vld [vmem:[%s5508 + $0x6c] sm:$0xf]
    %v5537 = vld [vmem:[%s5508 + $0x70] sm:$0xf]
    %v5538 = vld [vmem:[%s5508 + $0x74] sm:$0xf]
    %v5539 = vld [vmem:[%s5508 + $0x78] sm:$0xf]
    %v5540 = vld [vmem:[%s5508 + $0x7c] sm:$0xf]
    %v5573 = vunpack.c.l.b16 %v5509
    %v5574 = vunpack.c.l.b16 %v5510
    %v5575 = vunpack.c.l.b16 %v5511
    %v5576 = vunpack.c.l.b16 %v5512
    %v5577 = vunpack.c.l.b16 %v5513
    %v5578 = vunpack.c.l.b16 %v5514
    %v5579 = vunpack.c.l.b16 %v5515
    %v5580 = vunpack.c.l.b16 %v5516
    %v5581 = vunpack.c.l.b16 %v5517
    %v5582 = vunpack.c.l.b16 %v5518
    %v5583 = vunpack.c.l.b16 %v5519
    %v5584 = vunpack.c.l.b16 %v5520
    %v5585 = vunpack.c.l.b16 %v5521
    %v5586 = vunpack.c.l.b16 %v5522
    %v5587 = vunpack.c.l.b16 %v5523
    %v5588 = vunpack.c.l.b16 %v5524
    %v5589 = vunpack.c.l.b16 %v5525
    %v5590 = vunpack.c.l.b16 %v5526
    %v5591 = vunpack.c.l.b16 %v5527
    %v5592 = vunpack.c.l.b16 %v5528
    %v5593 = vunpack.c.l.b16 %v5529
    %v5594 = vunpack.c.l.b16 %v5530
    %v5595 = vunpack.c.l.b16 %v5531
    %v5596 = vunpack.c.l.b16 %v5532
    %v5597 = vunpack.c.l.b16 %v5533
    %v5598 = vunpack.c.l.b16 %v5534
    %v5599 = vunpack.c.l.b16 %v5535
    %v5600 = vunpack.c.l.b16 %v5536
    %v5601 = vunpack.c.l.b16 %v5537
    %v5602 = vunpack.c.l.b16 %v5538
    %v5603 = vunpack.c.l.b16 %v5539
    %v5604 = vunpack.c.l.b16 %v5540
    %v5605 = vpack.c.b16 %v5574, %v5573
    %v5606 = vpack.c.b16 %v5576, %v5575
    %v5607 = vpack.c.b16 %v5578, %v5577
    %v5608 = vpack.c.b16 %v5580, %v5579
    %v5609 = vpack.c.b16 %v5582, %v5581
    %v5610 = vpack.c.b16 %v5584, %v5583
    %v5611 = vpack.c.b16 %v5586, %v5585
    %v5612 = vpack.c.b16 %v5588, %v5587
    %v5613 = vpack.c.b16 %v5590, %v5589
    %v5614 = vpack.c.b16 %v5592, %v5591
    %v5615 = vpack.c.b16 %v5594, %v5593
    %v5616 = vpack.c.b16 %v5596, %v5595
    %v5617 = vpack.c.b16 %v5598, %v5597
    %v5618 = vpack.c.b16 %v5600, %v5599
    %v5619 = vpack.c.b16 %v5602, %v5601
    %v5620 = vpack.c.b16 %v5604, %v5603
    %5637 = vmatprep.subr.bf16.mxu0 0
    %5638 = vmatpush1.bf16.msra.mxu0 %v5605
    %5639 = vmatprep.subr.bf16.mxu0 0
    %5640 = vmatpush1.bf16.msra.mxu0 %v5606
    %5641 = vmatprep.subr.bf16.mxu0 0
    %5642 = vmatpush1.bf16.msra.mxu0 %v5607
    %5643 = vmatprep.subr.bf16.mxu0 0
    %5644 = vmatpush1.bf16.msra.mxu0 %v5608
    %5645 = vmatprep.subr.bf16.mxu0 0
    %5646 = vmatpush1.bf16.msra.mxu0 %v5609
    %5647 = vmatprep.subr.bf16.mxu0 0
    %5648 = vmatpush1.bf16.msra.mxu0 %v5610
    %5649 = vmatprep.subr.bf16.mxu0 0
    %5650 = vmatpush1.bf16.msra.mxu0 %v5611
    %5651 = vmatprep.subr.bf16.mxu0 0
    %5652 = vmatpush1.bf16.msra.mxu0 %v5612
    %5653 = vmatprep.subr.bf16.mxu0 0
    %5654 = vmatpush1.bf16.msra.mxu0 %v5613
    %5655 = vmatprep.subr.bf16.mxu0 0
    %5656 = vmatpush1.bf16.msra.mxu0 %v5614
    %5657 = vmatprep.subr.bf16.mxu0 0
    %5658 = vmatpush1.bf16.msra.mxu0 %v5615
    %5659 = vmatprep.subr.bf16.mxu0 0
    %5660 = vmatpush1.bf16.msra.mxu0 %v5616
    %5661 = vmatprep.subr.bf16.mxu0 0
    %5662 = vmatpush1.bf16.msra.mxu0 %v5617
    %5663 = vmatprep.subr.bf16.mxu0 0
    %5664 = vmatpush1.bf16.msra.mxu0 %v5618
    %5665 = vmatprep.subr.bf16.mxu0 0
    %5666 = vmatpush1.bf16.msra.mxu0 %v5619
    %5667 = vmatprep.subr.bf16.mxu0 0
    %5668 = vmatpush1.bf16.msra.mxu0 %v5620
    %5669 = vmatprep.mubr.bf16.mxu0 %v5505
    %5670 = vmatmul.mubr.bf16.gmra.mrb[0].mxu0 %v5504
    %v5671 = vpop.f32.mrb[0].mxu0
    %v5672 = vadd.f32 0.0, %v5671
    %v5673 = vpop.f32.mrb[0].mxu0
    %v5674 = vpop.f32.mrb[0].mxu0
    %v5675 = vadd.f32 0.0, %v5674
    %v5676 = vpop.f32.mrb[0].mxu0
    %5677 = vmatprep.mubr.bf16.mxu0 %v5507
    %5678 = vmatmul.mubr.bf16.gmra.mrb[0].mxu0 %v5506
    %v5679 = vpop.f32.mrb[0].mxu0
    %v5680 = vadd.f32 0.0, %v5679
    %v5681 = vpop.f32.mrb[0].mxu0
    %v5682 = vpop.f32.mrb[0].mxu0
    %v5683 = vadd.f32 0.0, %v5682
    %v5684 = vpop.f32.mrb[0].mxu0
    %5685 = vdwg.mxu0
    %v5686 = vadd.f32 %v5237, %v5672
    %v5687 = vadd.f32 %v5238, %v5675
    %v5688 = vadd.f32 %v5239, %v5680
    %v5689 = vadd.f32 %v5240, %v5683
    %s5690 = scalar_lea.vmem %s19, 1
    %v5691 = vld [vmem:[%s5690] sm:$0x1]
    %v5693 = vlaneseq
    %v5694 = vshrl.u32 %v5693, 7
    %v5695 = vsub.s32 0, %v5694
    %v5696 = vrot.slane %v5691, %v5695
    %v5698 = vadd.f32 %v5686, %v5696
    %v5699 = vadd.f32 %v5687, %v5696
    %v5700 = vadd.f32 %v5688, %v5696
    %v5701 = vadd.f32 %v5689, %v5696
    %5702 = vst.msk [vmem:[#allocation2] sm:$0xff] %vm130, %v5698
    %5703 = vst.msk [vmem:[#allocation2 + $0x8] sm:$0xff] %vm130, %v5699
    %5704 = vst.msk [vmem:[#allocation2 + $0x10] sm:$0xff] %vm130, %v5700
    %5705 = vst.msk [vmem:[#allocation2 + $0x18] sm:$0xff] %vm130, %v5701
    %s5706 = sld [smem:[#allocation4]]
    %s5707 = scalar_lea.vmem [#allocation2], %s5706
    %v5708 = vld [vmem:[%s5707] sm:$0x1]
    %s5709 = sld [smem:[#allocation4 + $0x1]]
    %s5710 = scalar_lea.vmem [#allocation2], %s5709
    %v5711 = vld [vmem:[%s5710] sm:$0x1]
    %v5713 = vrot.slane %v5711, 7
    %vm5715 = vcmask 1040384
    %v5716 = vsel %vm5715, %v5708, %v5713
    %v5717 = vld [vmem:[%s20] sm:$0x1]
    %v5718 = vld [vmem:[%s21] sm:$0x1]
    %vm5719 = vcmask 517120
    %v5720 = vsel %vm5719, %v5716, 0.0
    %5721 = vadd.xlane.f32.xlu0 %v5720
    %v5722 = vpop.xlane.xlu0 %5721
    %v5723 = vmul.f32 %v5722, %v143
    %v5724 = vsub.f32 %v5716, %v5723
    %v5725 = vmul.f32 %v5724, %v5724
    %v5726 = vsel %vm5719, %v5725, 0.0
    %5727 = vadd.xlane.f32.xlu0 %v5726
    %v5728 = vpop.xlane.xlu0 %5727
    %v5729 = vmul.f32 %v5728, %v143
    %v5730 = vadd.f32 %v5729, 1e-05
    %v5731 = vrsqrt.pop %v5730
    %v5732 = vmul.f32 %v5724, %v5731
    %v5734 = vlaneseq
    %v5735 = vshrl.u32 %v5734, 7
    %v5736 = vsub.s32 0, %v5735
    %v5737 = vrot.slane %v5717, %v5736
    %v5739 = vmul.f32 %v5732, %v5737
    %v5741 = vlaneseq
    %v5742 = vshrl.u32 %v5741, 7
    %v5743 = vsub.s32 0, %v5742
    %v5744 = vrot.slane %v5718, %v5743
    %v5746 = vadd.f32 %v5739, %v5744
    %v5747 = vpack.c.bf16 %v5746, %v5746
    %v5748 = vld [vmem:[%s22] sm:$0xf]
    %v5749 = vld [vmem:[%s22 + $0x4] sm:$0xf]
    %v5750 = vld [vmem:[%s22 + $0x8] sm:$0xf]
    %v5751 = vld [vmem:[%s22 + $0xc] sm:$0xf]
    %v5752 = vld [vmem:[%s22 + $0x10] sm:$0xf]
    %v5753 = vld [vmem:[%s22 + $0x14] sm:$0xf]
    %v5754 = vld [vmem:[%s22 + $0x18] sm:$0xf]
    %v5755 = vld [vmem:[%s22 + $0x1c] sm:$0xf]
    %v5764 = vunpack.c.l.b16 %v5748
    %v5765 = vunpack.c.l.b16 %v5749
    %v5766 = vunpack.c.l.b16 %v5750
    %v5767 = vunpack.c.l.b16 %v5751
    %v5768 = vunpack.c.l.b16 %v5752
    %v5769 = vunpack.c.l.b16 %v5753
    %v5770 = vunpack.c.l.b16 %v5754
    %v5771 = vunpack.c.l.b16 %v5755
    %v5772 = vpack.c.b16 %v5765, %v5764
    %v5773 = vpack.c.b16 %v5767, %v5766
    %v5774 = vpack.c.b16 %v5769, %v5768
    %v5775 = vpack.c.b16 %v5771, %v5770
    %v5781 = vsel %vm130, %v5747, 0
    %5783 = vmatprep.subr.bf16.mxu0 0
    %5784 = vmatpush1.bf16.msra.mxu0 %v5772
    %5785 = vmatprep.subr.bf16.mxu0 0
    %5786 = vmatpush1.bf16.msra.mxu0 %v5773
    %5787 = vmatprep.subr.bf16.mxu0 0
    %5788 = vmatpush1.bf16.msra.mxu0 %v5774
    %5789 = vmatprep.subr.bf16.mxu0 0
    %5790 = vmatpush1.bf16.msra.mxu0 %v5775
    %5791 = vmatprep.subr.bf16.mxu0 0
    %5792 = vmatpush1.bf16.msra.mxu0 0
    %5793 = vmatprep.subr.bf16.mxu0 0
    %5794 = vmatpush1.bf16.msra.mxu0 0
    %5795 = vmatprep.subr.bf16.mxu0 0
    %5796 = vmatpush1.bf16.msra.mxu0 0
    %5797 = vmatprep.subr.bf16.mxu0 0
    %5798 = vmatpush1.bf16.msra.mxu0 0
    %5799 = vmatprep.subr.bf16.mxu0 0
    %5800 = vmatpush1.bf16.msra.mxu0 0
    %5801 = vmatprep.subr.bf16.mxu0 0
    %5802 = vmatpush1.bf16.msra.mxu0 0
    %5803 = vmatprep.subr.bf16.mxu0 0
    %5804 = vmatpush1.bf16.msra.mxu0 0
    %5805 = vmatprep.subr.bf16.mxu0 0
    %5806 = vmatpush1.bf16.msra.mxu0 0
    %5807 = vmatprep.subr.bf16.mxu0 0
    %5808 = vmatpush1.bf16.msra.mxu0 0
    %5809 = vmatprep.subr.bf16.mxu0 0
    %5810 = vmatpush1.bf16.msra.mxu0 0
    %5811 = vmatprep.subr.bf16.mxu0 0
    %5812 = vmatpush1.bf16.msra.mxu0 0
    %5813 = vmatprep.subr.bf16.mxu0 0
    %5814 = vmatpush1.bf16.msra.mxu0 0
    %5815 = vmatprep.mubr.bf16.mxu0 0
    %5816 = vmatmul.mubr.bf16.gmra.mrb[0].mxu0 %v5781
    %v5817 = vpop.f32.mrb[0].mxu0
    %v5818 = vadd.f32 0.0, %v5817
    %v5819 = vpop.f32.mrb[0].mxu0
    %v5820 = vpop.f32.mrb[0].mxu0
    %v5821 = vpop.f32.mrb[0].mxu0
    %5822 = vdwg.mxu0
    %v5823 = vld [vmem:[%s3] sm:$0xff]
    %v5824 = vld [vmem:[%s3 + $0x8] sm:$0xff]
    %v5827 = vcombine.high %v5823, %v5823
    %v5829 = vunpack.c.l.s4 1983009808
    %v5830 = vunpack.c.0.s8 %v5829
    %v5831 = vlaneseq
    %v5832 = vshrl.u32 %v5831, 7
    %v5833 = vsub.s32 %v5830, %v5832
    %v5834 = vrot.slane %v5823, %v5833
    %v5836 = vunpack.c.l.s4 1983009808
    %v5837 = vunpack.c.0.s8 %v5836
    %v5838 = vlaneseq
    %v5839 = vshrl.u32 %v5838, 7
    %v5840 = vsub.s32 %v5837, %v5839
    %v5841 = vrot.slane %v5827, %v5840
    %v5842 = vcombine.high %v5834, %v5834
    %v5843 = vcombine.high %v5841, %v5841
    %v5844 = vcombine.high %v5824, %v5824
    %v5846 = vunpack.c.l.s4 1983009808
    %v5847 = vunpack.c.0.s8 %v5846
    %v5848 = vlaneseq
    %v5849 = vshrl.u32 %v5848, 7
    %v5850 = vsub.s32 %v5847, %v5849
    %v5851 = vrot.slane %v5824, %v5850
    %v5853 = vunpack.c.l.s4 1983009808
    %v5854 = vunpack.c.0.s8 %v5853
    %v5855 = vlaneseq
    %v5856 = vshrl.u32 %v5855, 7
    %v5857 = vsub.s32 %v5854, %v5856
    %v5858 = vrot.slane %v5844, %v5857
    %v5859 = vcombine.high %v5851, %v5851
    %v5860 = vcombine.high %v5858, %v5858
    %v5869 = vpack.c.bf16 %v5834, %v5834
    %v5870 = vpack.c.bf16 %v5842, %v5842
    %v5871 = vpack.c.bf16 %v5841, %v5841
    %v5872 = vpack.c.bf16 %v5843, %v5843
    %v5873 = vpack.c.bf16 %v5851, %v5851
    %v5874 = vpack.c.bf16 %v5859, %v5859
    %v5875 = vpack.c.bf16 %v5858, %v5858
    %v5876 = vpack.c.bf16 %v5860, %v5860
    %v5877 = vld [vmem:[%s23] sm:$0xf]
    %v5878 = vld [vmem:[%s23 + $0x4] sm:$0xf]
    %v5879 = vld [vmem:[%s23 + $0x8] sm:$0xf]
    %v5880 = vld [vmem:[%s23 + $0xc] sm:$0xf]
    %v5881 = vld [vmem:[%s23 + $0x10] sm:$0xf]
    %v5882 = vld [vmem:[%s23 + $0x14] sm:$0xf]
    %v5883 = vld [vmem:[%s23 + $0x18] sm:$0xf]
    %v5884 = vld [vmem:[%s23 + $0x1c] sm:$0xf]
    %v5885 = vld [vmem:[%s23 + $0x20] sm:$0xf]
    %v5886 = vld [vmem:[%s23 + $0x24] sm:$0xf]
    %v5887 = vld [vmem:[%s23 + $0x28] sm:$0xf]
    %v5888 = vld [vmem:[%s23 + $0x2c] sm:$0xf]
    %v5889 = vld [vmem:[%s23 + $0x30] sm:$0xf]
    %v5890 = vld [vmem:[%s23 + $0x34] sm:$0xf]
    %v5891 = vld [vmem:[%s23 + $0x38] sm:$0xf]
    %v5892 = vld [vmem:[%s23 + $0x3c] sm:$0xf]
    %v5893 = vld [vmem:[%s23 + $0x40] sm:$0xf]
    %v5894 = vld [vmem:[%s23 + $0x44] sm:$0xf]
    %v5895 = vld [vmem:[%s23 + $0x48] sm:$0xf]
    %v5896 = vld [vmem:[%s23 + $0x4c] sm:$0xf]
    %v5897 = vld [vmem:[%s23 + $0x50] sm:$0xf]
    %v5898 = vld [vmem:[%s23 + $0x54] sm:$0xf]
    %v5899 = vld [vmem:[%s23 + $0x58] sm:$0xf]
    %v5900 = vld [vmem:[%s23 + $0x5c] sm:$0xf]
    %v5901 = vld [vmem:[%s23 + $0x60] sm:$0xf]
    %v5902 = vld [vmem:[%s23 + $0x64] sm:$0xf]
    %v5903 = vld [vmem:[%s23 + $0x68] sm:$0xf]
    %v5904 = vld [vmem:[%s23 + $0x6c] sm:$0xf]
    %v5905 = vld [vmem:[%s23 + $0x70] sm:$0xf]
    %v5906 = vld [vmem:[%s23 + $0x74] sm:$0xf]
    %v5907 = vld [vmem:[%s23 + $0x78] sm:$0xf]
    %v5908 = vld [vmem:[%s23 + $0x7c] sm:$0xf]
    %v5909 = vld [vmem:[%s23 + $0x80] sm:$0xf]
    %v5910 = vld [vmem:[%s23 + $0x84] sm:$0xf]
    %v5911 = vld [vmem:[%s23 + $0x88] sm:$0xf]
    %v5912 = vld [vmem:[%s23 + $0x8c] sm:$0xf]
    %v5913 = vld [vmem:[%s23 + $0x90] sm:$0xf]
    %v5914 = vld [vmem:[%s23 + $0x94] sm:$0xf]
    %v5915 = vld [vmem:[%s23 + $0x98] sm:$0xf]
    %v5916 = vld [vmem:[%s23 + $0x9c] sm:$0xf]
    %v5917 = vld [vmem:[%s23 + $0xa0] sm:$0xf]
    %v5918 = vld [vmem:[%s23 + $0xa4] sm:$0xf]
    %v5919 = vld [vmem:[%s23 + $0xa8] sm:$0xf]
    %v5920 = vld [vmem:[%s23 + $0xac] sm:$0xf]
    %v5921 = vld [vmem:[%s23 + $0xb0] sm:$0xf]
    %v5922 = vld [vmem:[%s23 + $0xb4] sm:$0xf]
    %v5923 = vld [vmem:[%s23 + $0xb8] sm:$0xf]
    %v5924 = vld [vmem:[%s23 + $0xbc] sm:$0xf]
    %v5925 = vld [vmem:[%s23 + $0xc0] sm:$0xf]
    %v5926 = vld [vmem:[%s23 + $0xc4] sm:$0xf]
    %v5927 = vld [vmem:[%s23 + $0xc8] sm:$0xf]
    %v5928 = vld [vmem:[%s23 + $0xcc] sm:$0xf]
    %v5929 = vld [vmem:[%s23 + $0xd0] sm:$0xf]
    %v5930 = vld [vmem:[%s23 + $0xd4] sm:$0xf]
    %v5931 = vld [vmem:[%s23 + $0xd8] sm:$0xf]
    %v5932 = vld [vmem:[%s23 + $0xdc] sm:$0xf]
    %v5933 = vld [vmem:[%s23 + $0xe0] sm:$0xf]
    %v5934 = vld [vmem:[%s23 + $0xe4] sm:$0xf]
    %v5935 = vld [vmem:[%s23 + $0xe8] sm:$0xf]
    %v5936 = vld [vmem:[%s23 + $0xec] sm:$0xf]
    %v5937 = vld [vmem:[%s23 + $0xf0] sm:$0xf]
    %v5938 = vld [vmem:[%s23 + $0xf4] sm:$0xf]
    %v5939 = vld [vmem:[%s23 + $0xf8] sm:$0xf]
    %v5940 = vld [vmem:[%s23 + $0xfc] sm:$0xf]
    %v5941 = vld [vmem:[%s23 + $0x100] sm:$0xf]
    %v5942 = vld [vmem:[%s23 + $0x104] sm:$0xf]
    %v5943 = vld [vmem:[%s23 + $0x108] sm:$0xf]
    %v5944 = vld [vmem:[%s23 + $0x10c] sm:$0xf]
    %v5945 = vld [vmem:[%s23 + $0x110] sm:$0xf]
    %v5946 = vld [vmem:[%s23 + $0x114] sm:$0xf]
    %v5947 = vld [vmem:[%s23 + $0x118] sm:$0xf]
    %v5948 = vld [vmem:[%s23 + $0x11c] sm:$0xf]
    %v5949 = vld [vmem:[%s23 + $0x120] sm:$0xf]
    %v5950 = vld [vmem:[%s23 + $0x124] sm:$0xf]
    %v5951 = vld [vmem:[%s23 + $0x128] sm:$0xf]
    %v5952 = vld [vmem:[%s23 + $0x12c] sm:$0xf]
    %v5953 = vld [vmem:[%s23 + $0x130] sm:$0xf]
    %v5954 = vld [vmem:[%s23 + $0x134] sm:$0xf]
    %v5955 = vld [vmem:[%s23 + $0x138] sm:$0xf]
    %v5956 = vld [vmem:[%s23 + $0x13c] sm:$0xf]
    %v5957 = vld [vmem:[%s23 + $0x140] sm:$0xf]
    %v5958 = vld [vmem:[%s23 + $0x144] sm:$0xf]
    %v5959 = vld [vmem:[%s23 + $0x148] sm:$0xf]
    %v5960 = vld [vmem:[%s23 + $0x14c] sm:$0xf]
    %v5961 = vld [vmem:[%s23 + $0x150] sm:$0xf]
    %v5962 = vld [vmem:[%s23 + $0x154] sm:$0xf]
    %v5963 = vld [vmem:[%s23 + $0x158] sm:$0xf]
    %v5964 = vld [vmem:[%s23 + $0x15c] sm:$0xf]
    %v5965 = vld [vmem:[%s23 + $0x160] sm:$0xf]
    %v5966 = vld [vmem:[%s23 + $0x164] sm:$0xf]
    %v5967 = vld [vmem:[%s23 + $0x168] sm:$0xf]
    %v5968 = vld [vmem:[%s23 + $0x16c] sm:$0xf]
    %v5969 = vld [vmem:[%s23 + $0x170] sm:$0xf]
    %v5970 = vld [vmem:[%s23 + $0x174] sm:$0xf]
    %v5971 = vld [vmem:[%s23 + $0x178] sm:$0xf]
    %v5972 = vld [vmem:[%s23 + $0x17c] sm:$0xf]
    %v5973 = vld [vmem:[%s23 + $0x180] sm:$0xf]
    %v5974 = vld [vmem:[%s23 + $0x184] sm:$0xf]
    %v5975 = vld [vmem:[%s23 + $0x188] sm:$0xf]
    %v5976 = vld [vmem:[%s23 + $0x18c] sm:$0xf]
    %v5977 = vld [vmem:[%s23 + $0x190] sm:$0xf]
    %v5978 = vld [vmem:[%s23 + $0x194] sm:$0xf]
    %v5979 = vld [vmem:[%s23 + $0x198] sm:$0xf]
    %v5980 = vld [vmem:[%s23 + $0x19c] sm:$0xf]
    %v5981 = vld [vmem:[%s23 + $0x1a0] sm:$0xf]
    %v5982 = vld [vmem:[%s23 + $0x1a4] sm:$0xf]
    %v5983 = vld [vmem:[%s23 + $0x1a8] sm:$0xf]
    %v5984 = vld [vmem:[%s23 + $0x1ac] sm:$0xf]
    %v5985 = vld [vmem:[%s23 + $0x1b0] sm:$0xf]
    %v5986 = vld [vmem:[%s23 + $0x1b4] sm:$0xf]
    %v5987 = vld [vmem:[%s23 + $0x1b8] sm:$0xf]
    %v5988 = vld [vmem:[%s23 + $0x1bc] sm:$0xf]
    %v5989 = vld [vmem:[%s23 + $0x1c0] sm:$0xf]
    %v5990 = vld [vmem:[%s23 + $0x1c4] sm:$0xf]
    %v5991 = vld [vmem:[%s23 + $0x1c8] sm:$0xf]
    %v5992 = vld [vmem:[%s23 + $0x1cc] sm:$0xf]
    %v5993 = vld [vmem:[%s23 + $0x1d0] sm:$0xf]
    %v5994 = vld [vmem:[%s23 + $0x1d4] sm:$0xf]
    %v5995 = vld [vmem:[%s23 + $0x1d8] sm:$0xf]
    %v5996 = vld [vmem:[%s23 + $0x1dc] sm:$0xf]
    %v5997 = vld [vmem:[%s23 + $0x1e0] sm:$0xf]
    %v5998 = vld [vmem:[%s23 + $0x1e4] sm:$0xf]
    %v5999 = vld [vmem:[%s23 + $0x1e8] sm:$0xf]
    %v6000 = vld [vmem:[%s23 + $0x1ec] sm:$0xf]
    %v6001 = vld [vmem:[%s23 + $0x1f0] sm:$0xf]
    %v6002 = vld [vmem:[%s23 + $0x1f4] sm:$0xf]
    %v6003 = vld [vmem:[%s23 + $0x1f8] sm:$0xf]
    %v6004 = vld [vmem:[%s23 + $0x1fc] sm:$0xf]
    %v6005 = vld [vmem:[%s24] sm:$0x1]
    %v6007 = vlaneseq
    %v6008 = vshrl.u32 %v6007, 7
    %v6009 = vsub.s32 0, %v6008
    %v6010 = vrot.slane %v6005, %v6009
    %v6140 = vunpack.c.l.b16 %v5877
    %v6141 = vunpack.c.l.b16 %v5878
    %v6142 = vunpack.c.l.b16 %v5879
    %v6143 = vunpack.c.l.b16 %v5880
    %v6144 = vunpack.c.l.b16 %v5881
    %v6145 = vunpack.c.l.b16 %v5882
    %v6146 = vunpack.c.l.b16 %v5883
    %v6147 = vunpack.c.l.b16 %v5884
    %v6148 = vunpack.c.l.b16 %v5885
    %v6149 = vunpack.c.l.b16 %v5886
    %v6150 = vunpack.c.l.b16 %v5887
    %v6151 = vunpack.c.l.b16 %v5888
    %v6152 = vunpack.c.l.b16 %v5889
    %v6153 = vunpack.c.l.b16 %v5890
    %v6154 = vunpack.c.l.b16 %v5891
    %v6155 = vunpack.c.l.b16 %v5892
    %v6156 = vunpack.c.l.b16 %v5893
    %v6157 = vunpack.c.l.b16 %v5894
    %v6158 = vunpack.c.l.b16 %v5895
    %v6159 = vunpack.c.l.b16 %v5896
    %v6160 = vunpack.c.l.b16 %v5897
    %v6161 = vunpack.c.l.b16 %v5898
    %v6162 = vunpack.c.l.b16 %v5899
    %v6163 = vunpack.c.l.b16 %v5900
    %v6164 = vunpack.c.l.b16 %v5901
    %v6165 = vunpack.c.l.b16 %v5902
    %v6166 = vunpack.c.l.b16 %v5903
    %v6167 = vunpack.c.l.b16 %v5904
    %v6168 = vunpack.c.l.b16 %v5905
    %v6169 = vunpack.c.l.b16 %v5906
    %v6170 = vunpack.c.l.b16 %v5907
    %v6171 = vunpack.c.l.b16 %v5908
    %v6172 = vunpack.c.l.b16 %v5909
    %v6173 = vunpack.c.l.b16 %v5910
    %v6174 = vunpack.c.l.b16 %v5911
    %v6175 = vunpack.c.l.b16 %v5912
    %v6176 = vunpack.c.l.b16 %v5913
    %v6177 = vunpack.c.l.b16 %v5914
    %v6178 = vunpack.c.l.b16 %v5915
    %v6179 = vunpack.c.l.b16 %v5916
    %v6180 = vunpack.c.l.b16 %v5917
    %v6181 = vunpack.c.l.b16 %v5918
    %v6182 = vunpack.c.l.b16 %v5919
    %v6183 = vunpack.c.l.b16 %v5920
    %v6184 = vunpack.c.l.b16 %v5921
    %v6185 = vunpack.c.l.b16 %v5922
    %v6186 = vunpack.c.l.b16 %v5923
    %v6187 = vunpack.c.l.b16 %v5924
    %v6188 = vunpack.c.l.b16 %v5925
    %v6189 = vunpack.c.l.b16 %v5926
    %v6190 = vunpack.c.l.b16 %v5927
    %v6191 = vunpack.c.l.b16 %v5928
    %v6192 = vunpack.c.l.b16 %v5929
    %v6193 = vunpack.c.l.b16 %v5930
    %v6194 = vunpack.c.l.b16 %v5931
    %v6195 = vunpack.c.l.b16 %v5932
    %v6196 = vunpack.c.l.b16 %v5933
    %v6197 = vunpack.c.l.b16 %v5934
    %v6198 = vunpack.c.l.b16 %v5935
    %v6199 = vunpack.c.l.b16 %v5936
    %v6200 = vunpack.c.l.b16 %v5937
    %v6201 = vunpack.c.l.b16 %v5938
    %v6202 = vunpack.c.l.b16 %v5939
    %v6203 = vunpack.c.l.b16 %v5940
    %v6204 = vunpack.c.l.b16 %v5941
    %v6205 = vunpack.c.l.b16 %v5942
    %v6206 = vunpack.c.l.b16 %v5943
    %v6207 = vunpack.c.l.b16 %v5944
    %v6208 = vunpack.c.l.b16 %v5945
    %v6209 = vunpack.c.l.b16 %v5946
    %v6210 = vunpack.c.l.b16 %v5947
    %v6211 = vunpack.c.l.b16 %v5948
    %v6212 = vunpack.c.l.b16 %v5949
    %v6213 = vunpack.c.l.b16 %v5950
    %v6214 = vunpack.c.l.b16 %v5951
    %v6215 = vunpack.c.l.b16 %v5952
    %v6216 = vunpack.c.l.b16 %v5953
    %v6217 = vunpack.c.l.b16 %v5954
    %v6218 = vunpack.c.l.b16 %v5955
    %v6219 = vunpack.c.l.b16 %v5956
    %v6220 = vunpack.c.l.b16 %v5957
    %v6221 = vunpack.c.l.b16 %v5958
    %v6222 = vunpack.c.l.b16 %v5959
    %v6223 = vunpack.c.l.b16 %v5960
    %v6224 = vunpack.c.l.b16 %v5961
    %v6225 = vunpack.c.l.b16 %v5962
    %v6226 = vunpack.c.l.b16 %v5963
    %v6227 = vunpack.c.l.b16 %v5964
    %v6228 = vunpack.c.l.b16 %v5965
    %v6229 = vunpack.c.l.b16 %v5966
    %v6230 = vunpack.c.l.b16 %v5967
    %v6231 = vunpack.c.l.b16 %v5968
    %v6232 = vunpack.c.l.b16 %v5969
    %v6233 = vunpack.c.l.b16 %v5970
    %v6234 = vunpack.c.l.b16 %v5971
    %v6235 = vunpack.c.l.b16 %v5972
    %v6236 = vunpack.c.l.b16 %v5973
    %v6237 = vunpack.c.l.b16 %v5974
    %v6238 = vunpack.c.l.b16 %v5975
    %v6239 = vunpack.c.l.b16 %v5976
    %v6240 = vunpack.c.l.b16 %v5977
    %v6241 = vunpack.c.l.b16 %v5978
    %v6242 = vunpack.c.l.b16 %v5979
    %v6243 = vunpack.c.l.b16 %v5980
    %v6244 = vunpack.c.l.b16 %v5981
    %v6245 = vunpack.c.l.b16 %v5982
    %v6246 = vunpack.c.l.b16 %v5983
    %v6247 = vunpack.c.l.b16 %v5984
    %v6248 = vunpack.c.l.b16 %v5985
    %v6249 = vunpack.c.l.b16 %v5986
    %v6250 = vunpack.c.l.b16 %v5987
    %v6251 = vunpack.c.l.b16 %v5988
    %v6252 = vunpack.c.l.b16 %v5989
    %v6253 = vunpack.c.l.b16 %v5990
    %v6254 = vunpack.c.l.b16 %v5991
    %v6255 = vunpack.c.l.b16 %v5992
    %v6256 = vunpack.c.l.b16 %v5993
    %v6257 = vunpack.c.l.b16 %v5994
    %v6258 = vunpack.c.l.b16 %v5995
    %v6259 = vunpack.c.l.b16 %v5996
    %v6260 = vunpack.c.l.b16 %v5997
    %v6261 = vunpack.c.l.b16 %v5998
    %v6262 = vunpack.c.l.b16 %v5999
    %v6263 = vunpack.c.l.b16 %v6000
    %v6264 = vunpack.c.l.b16 %v6001
    %v6265 = vunpack.c.l.b16 %v6002
    %v6266 = vunpack.c.l.b16 %v6003
    %v6267 = vunpack.c.l.b16 %v6004
    %v6268 = vpack.c.b16 %v6141, %v6140
    %v6269 = vpack.c.b16 %v6143, %v6142
    %v6270 = vpack.c.b16 %v6145, %v6144
    %v6271 = vpack.c.b16 %v6147, %v6146
    %v6272 = vpack.c.b16 %v6149, %v6148
    %v6273 = vpack.c.b16 %v6151, %v6150
    %v6274 = vpack.c.b16 %v6153, %v6152
    %v6275 = vpack.c.b16 %v6155, %v6154
    %v6276 = vpack.c.b16 %v6157, %v6156
    %v6277 = vpack.c.b16 %v6159, %v6158
    %v6278 = vpack.c.b16 %v6161, %v6160
    %v6279 = vpack.c.b16 %v6163, %v6162
    %v6280 = vpack.c.b16 %v6165, %v6164
    %v6281 = vpack.c.b16 %v6167, %v6166
    %v6282 = vpack.c.b16 %v6169, %v6168
    %v6283 = vpack.c.b16 %v6171, %v6170
    %v6284 = vpack.c.b16 %v6173, %v6172
    %v6285 = vpack.c.b16 %v6175, %v6174
    %v6286 = vpack.c.b16 %v6177, %v6176
    %v6287 = vpack.c.b16 %v6179, %v6178
    %v6288 = vpack.c.b16 %v6181, %v6180
    %v6289 = vpack.c.b16 %v6183, %v6182
    %v6290 = vpack.c.b16 %v6185, %v6184
    %v6291 = vpack.c.b16 %v6187, %v6186
    %v6292 = vpack.c.b16 %v6189, %v6188
    %v6293 = vpack.c.b16 %v6191, %v6190
    %v6294 = vpack.c.b16 %v6193, %v6192
    %v6295 = vpack.c.b16 %v6195, %v6194
    %v6296 = vpack.c.b16 %v6197, %v6196
    %v6297 = vpack.c.b16 %v6199, %v6198
    %v6298 = vpack.c.b16 %v6201, %v6200
    %v6299 = vpack.c.b16 %v6203, %v6202
    %v6300 = vpack.c.b16 %v6205, %v6204
    %v6301 = vpack.c.b16 %v6207, %v6206
    %v6302 = vpack.c.b16 %v6209, %v6208
    %v6303 = vpack.c.b16 %v6211, %v6210
    %v6304 = vpack.c.b16 %v6213, %v6212
    %v6305 = vpack.c.b16 %v6215, %v6214
    %v6306 = vpack.c.b16 %v6217, %v6216
    %v6307 = vpack.c.b16 %v6219, %v6218
    %v6308 = vpack.c.b16 %v6221, %v6220
    %v6309 = vpack.c.b16 %v6223, %v6222
    %v6310 = vpack.c.b16 %v6225, %v6224
    %v6311 = vpack.c.b16 %v6227, %v6226
    %v6312 = vpack.c.b16 %v6229, %v6228
    %v6313 = vpack.c.b16 %v6231, %v6230
    %v6314 = vpack.c.b16 %v6233, %v6232
    %v6315 = vpack.c.b16 %v6235, %v6234
    %v6316 = vpack.c.b16 %v6237, %v6236
    %v6317 = vpack.c.b16 %v6239, %v6238
    %v6318 = vpack.c.b16 %v6241, %v6240
    %v6319 = vpack.c.b16 %v6243, %v6242
    %v6320 = vpack.c.b16 %v6245, %v6244
    %v6321 = vpack.c.b16 %v6247, %v6246
    %v6322 = vpack.c.b16 %v6249, %v6248
    %v6323 = vpack.c.b16 %v6251, %v6250
    %v6324 = vpack.c.b16 %v6253, %v6252
    %v6325 = vpack.c.b16 %v6255, %v6254
    %v6326 = vpack.c.b16 %v6257, %v6256
    %v6327 = vpack.c.b16 %v6259, %v6258
    %v6328 = vpack.c.b16 %v6261, %v6260
    %v6329 = vpack.c.b16 %v6263, %v6262
    %v6330 = vpack.c.b16 %v6265, %v6264
    %v6331 = vpack.c.b16 %v6267, %v6266
    %6396 = vmatprep.subr.bf16.mxu0 0
    %6397 = vmatpush1.bf16.msra.mxu0 %v6268
    %6398 = vmatprep.subr.bf16.mxu0 0
    %6399 = vmatpush1.bf16.msra.mxu0 %v6269
    %6400 = vmatprep.subr.bf16.mxu0 0
    %6401 = vmatpush1.bf16.msra.mxu0 %v6270
    %6402 = vmatprep.subr.bf16.mxu0 0
    %6403 = vmatpush1.bf16.msra.mxu0 %v6271
    %6404 = vmatprep.subr.bf16.mxu0 0
    %6405 = vmatpush1.bf16.msra.mxu0 %v6272
    %6406 = vmatprep.subr.bf16.mxu0 0
    %6407 = vmatpush1.bf16.msra.mxu0 %v6273
    %6408 = vmatprep.subr.bf16.mxu0 0
    %6409 = vmatpush1.bf16.msra.mxu0 %v6274
    %6410 = vmatprep.subr.bf16.mxu0 0
    %6411 = vmatpush1.bf16.msra.mxu0 %v6275
    %6412 = vmatprep.subr.bf16.mxu0 0
    %6413 = vmatpush1.bf16.msra.mxu0 %v6276
    %6414 = vmatprep.subr.bf16.mxu0 0
    %6415 = vmatpush1.bf16.msra.mxu0 %v6277
    %6416 = vmatprep.subr.bf16.mxu0 0
    %6417 = vmatpush1.bf16.msra.mxu0 %v6278
    %6418 = vmatprep.subr.bf16.mxu0 0
    %6419 = vmatpush1.bf16.msra.mxu0 %v6279
    %6420 = vmatprep.subr.bf16.mxu0 0
    %6421 = vmatpush1.bf16.msra.mxu0 %v6280
    %6422 = vmatprep.subr.bf16.mxu0 0
    %6423 = vmatpush1.bf16.msra.mxu0 %v6281
    %6424 = vmatprep.subr.bf16.mxu0 0
    %6425 = vmatpush1.bf16.msra.mxu0 %v6282
    %6426 = vmatprep.subr.bf16.mxu0 0
    %6427 = vmatpush1.bf16.msra.mxu0 %v6283
    %6428 = vmatprep.mubr.bf16.mxu0 %v5870
    %6429 = vmatmul.mubr.bf16.gmra.mrb[0].mxu0 %v5869
    %v6430 = vpop.f32.mrb[0].mxu0
    %v6431 = vadd.f32 %v6010, %v6430
    %v6432 = vpop.f32.mrb[0].mxu0
    %v6433 = vpop.f32.mrb[0].mxu0
    %v6434 = vpop.f32.mrb[0].mxu0
    %6435 = vdwg.mxu0
    %6436 = vmatprep.subr.bf16.mxu0 0
    %6437 = vmatpush1.bf16.msra.mxu0 %v6284
    %6438 = vmatprep.subr.bf16.mxu0 0
    %6439 = vmatpush1.bf16.msra.mxu0 %v6285
    %6440 = vmatprep.subr.bf16.mxu0 0
    %6441 = vmatpush1.bf16.msra.mxu0 %v6286
    %6442 = vmatprep.subr.bf16.mxu0 0
    %6443 = vmatpush1.bf16.msra.mxu0 %v6287
    %6444 = vmatprep.subr.bf16.mxu0 0
    %6445 = vmatpush1.bf16.msra.mxu0 %v6288
    %6446 = vmatprep.subr.bf16.mxu0 0
    %6447 = vmatpush1.bf16.msra.mxu0 %v6289
    %6448 = vmatprep.subr.bf16.mxu0 0
    %6449 = vmatpush1.bf16.msra.mxu0 %v6290
    %6450 = vmatprep.subr.bf16.mxu0 0
    %6451 = vmatpush1.bf16.msra.mxu0 %v6291
    %6452 = vmatprep.subr.bf16.mxu0 0
    %6453 = vmatpush1.bf16.msra.mxu0 %v6292
    %6454 = vmatprep.subr.bf16.mxu0 0
    %6455 = vmatpush1.bf16.msra.mxu0 %v6293
    %6456 = vmatprep.subr.bf16.mxu0 0
    %6457 = vmatpush1.bf16.msra.mxu0 %v6294
    %6458 = vmatprep.subr.bf16.mxu0 0
    %6459 = vmatpush1.bf16.msra.mxu0 %v6295
    %6460 = vmatprep.subr.bf16.mxu0 0
    %6461 = vmatpush1.bf16.msra.mxu0 %v6296
    %6462 = vmatprep.subr.bf16.mxu0 0
    %6463 = vmatpush1.bf16.msra.mxu0 %v6297
    %6464 = vmatprep.subr.bf16.mxu0 0
    %6465 = vmatpush1.bf16.msra.mxu0 %v6298
    %6466 = vmatprep.subr.bf16.mxu0 0
    %6467 = vmatpush1.bf16.msra.mxu0 %v6299
    %6468 = vmatprep.mubr.bf16.mxu0 %v5872
    %6469 = vmatmul.mubr.bf16.gmra.mrb[0].mxu0 %v5871
    %v6470 = vpop.f32.mrb[0].mxu0
    %v6471 = vadd.f32 %v6431, %v6470
    %v6472 = vpop.f32.mrb[0].mxu0
    %v6473 = vpop.f32.mrb[0].mxu0
    %v6474 = vpop.f32.mrb[0].mxu0
    %6475 = vdwg.mxu0
    %6476 = vmatprep.subr.bf16.mxu0 0
    %6477 = vmatpush1.bf16.msra.mxu0 %v6300
    %6478 = vmatprep.subr.bf16.mxu0 0
    %6479 = vmatpush1.bf16.msra.mxu0 %v6301
    %6480 = vmatprep.subr.bf16.mxu0 0
    %6481 = vmatpush1.bf16.msra.mxu0 %v6302
    %6482 = vmatprep.subr.bf16.mxu0 0
    %6483 = vmatpush1.bf16.msra.mxu0 %v6303
    %6484 = vmatprep.subr.bf16.mxu0 0
    %6485 = vmatpush1.bf16.msra.mxu0 %v6304
    %6486 = vmatprep.subr.bf16.mxu0 0
    %6487 = vmatpush1.bf16.msra.mxu0 %v6305
    %6488 = vmatprep.subr.bf16.mxu0 0
    %6489 = vmatpush1.bf16.msra.mxu0 %v6306
    %6490 = vmatprep.subr.bf16.mxu0 0
    %6491 = vmatpush1.bf16.msra.mxu0 %v6307
    %6492 = vmatprep.subr.bf16.mxu0 0
    %6493 = vmatpush1.bf16.msra.mxu0 %v6308
    %6494 = vmatprep.subr.bf16.mxu0 0
    %6495 = vmatpush1.bf16.msra.mxu0 %v6309
    %6496 = vmatprep.subr.bf16.mxu0 0
    %6497 = vmatpush1.bf16.msra.mxu0 %v6310
    %6498 = vmatprep.subr.bf16.mxu0 0
    %6499 = vmatpush1.bf16.msra.mxu0 %v6311
    %6500 = vmatprep.subr.bf16.mxu0 0
    %6501 = vmatpush1.bf16.msra.mxu0 %v6312
    %6502 = vmatprep.subr.bf16.mxu0 0
    %6503 = vmatpush1.bf16.msra.mxu0 %v6313
    %6504 = vmatprep.subr.bf16.mxu0 0
    %6505 = vmatpush1.bf16.msra.mxu0 %v6314
    %6506 = vmatprep.subr.bf16.mxu0 0
    %6507 = vmatpush1.bf16.msra.mxu0 %v6315
    %6508 = vmatprep.mubr.bf16.mxu0 %v5874
    %6509 = vmatmul.mubr.bf16.gmra.mrb[0].mxu0 %v5873
    %v6510 = vpop.f32.mrb[0].mxu0
    %v6511 = vadd.f32 %v6471, %v6510
    %v6512 = vpop.f32.mrb[0].mxu0
    %v6513 = vpop.f32.mrb[0].mxu0
    %v6514 = vpop.f32.mrb[0].mxu0
    %6515 = vdwg.mxu0
    %6516 = vmatprep.subr.bf16.mxu0 0
    %6517 = vmatpush1.bf16.msra.mxu0 %v6316
    %6518 = vmatprep.subr.bf16.mxu0 0
    %6519 = vmatpush1.bf16.msra.mxu0 %v6317
    %6520 = vmatprep.subr.bf16.mxu0 0
    %6521 = vmatpush1.bf16.msra.mxu0 %v6318
    %6522 = vmatprep.subr.bf16.mxu0 0
    %6523 = vmatpush1.bf16.msra.mxu0 %v6319
    %6524 = vmatprep.subr.bf16.mxu0 0
    %6525 = vmatpush1.bf16.msra.mxu0 %v6320
    %6526 = vmatprep.subr.bf16.mxu0 0
    %6527 = vmatpush1.bf16.msra.mxu0 %v6321
    %6528 = vmatprep.subr.bf16.mxu0 0
    %6529 = vmatpush1.bf16.msra.mxu0 %v6322
    %6530 = vmatprep.subr.bf16.mxu0 0
    %6531 = vmatpush1.bf16.msra.mxu0 %v6323
    %6532 = vmatprep.subr.bf16.mxu0 0
    %6533 = vmatpush1.bf16.msra.mxu0 %v6324
    %6534 = vmatprep.subr.bf16.mxu0 0
    %6535 = vmatpush1.bf16.msra.mxu0 %v6325
    %6536 = vmatprep.subr.bf16.mxu0 0
    %6537 = vmatpush1.bf16.msra.mxu0 %v6326
    %6538 = vmatprep.subr.bf16.mxu0 0
    %6539 = vmatpush1.bf16.msra.mxu0 %v6327
    %6540 = vmatprep.subr.bf16.mxu0 0
    %6541 = vmatpush1.bf16.msra.mxu0 %v6328
    %6542 = vmatprep.subr.bf16.mxu0 0
    %6543 = vmatpush1.bf16.msra.mxu0 %v6329
    %6544 = vmatprep.subr.bf16.mxu0 0
    %6545 = vmatpush1.bf16.msra.mxu0 %v6330
    %6546 = vmatprep.subr.bf16.mxu0 0
    %6547 = vmatpush1.bf16.msra.mxu0 %v6331
    %6548 = vmatprep.mubr.bf16.mxu0 %v5876
    %6549 = vmatmul.mubr.bf16.gmra.mrb[0].mxu0 %v5875
    %v6550 = vpop.f32.mrb[0].mxu0
    %v6551 = vadd.f32 %v6511, %v6550
    %v6552 = vpop.f32.mrb[0].mxu0
    %v6553 = vpop.f32.mrb[0].mxu0
    %v6554 = vpop.f32.mrb[0].mxu0
    %6555 = vdwg.mxu0
    %v6556 = vmul.f32 %v5818, %v5818
    %v6557 = vsel %vm5719, %v6556, 0.0
    %6558 = vadd.xlane.f32.xlu0 %v6557
    %v6559 = vpop.xlane.xlu0 %6558
    %v6560 = vrsqrt.pop %v6559
    %v6561 = vmul.f32 %v5818, %v6560
    %v6562 = vmul.f32 %v6551, %v6551
    %v6563 = vsel %vm5719, %v6562, 0.0
    %6564 = vadd.xlane.f32.xlu0 %v6563
    %v6565 = vpop.xlane.xlu0 %6564
    %v6566 = vrsqrt.pop %v6565
    %v6567 = vmul.f32 %v6551, %v6566
    %s6568 = sld [smem:[#allocation3]]
    %v6569 = vstv %s6568
    %v6570 = vmul.f32 %v6569, 1.442695
    %v6571 = vpow.pop %v6570
    %v6573 = vsel %vm130, %v6567, 0
    %v6576 = vsel %vm130, %v6561, 0
    %6578 = vmatprep.subr.mxu0 0.0
    %6579 = vmatpush1.xpose.msra.mxu0 %v6576
    %6580 = vmatprep.subr.mxu0 0.0
    %6581 = vmatpush1.xpose.msra.mxu0 0.0
    %6582 = vmatprep.subr.mxu0 0.0
    %6583 = vmatpush1.xpose.msra.mxu0 0.0
    %6584 = vmatprep.subr.mxu0 0.0
    %6585 = vmatpush1.xpose.msra.mxu0 0.0
    %6586 = vmatprep.subr.mxu0 0.0
    %6587 = vmatpush1.xpose.msra.mxu0 0.0
    %6588 = vmatprep.subr.mxu0 0.0
    %6589 = vmatpush1.xpose.msra.mxu0 0.0
    %6590 = vmatprep.subr.mxu0 0.0
    %6591 = vmatpush1.xpose.msra.mxu0 0.0
    %6592 = vmatprep.subr.mxu0 0.0
    %6593 = vmatpush1.xpose.msra.mxu0 0.0
    %6594 = vmatprep.subr.mxu0 0.0
    %6595 = vmatpush1.xpose.msra.mxu0 0.0
    %6596 = vmatprep.subr.mxu0 0.0
    %6597 = vmatpush1.xpose.msra.mxu0 0.0
    %6598 = vmatprep.subr.mxu0 0.0
    %6599 = vmatpush1.xpose.msra.mxu0 0.0
    %6600 = vmatprep.subr.mxu0 0.0
    %6601 = vmatpush1.xpose.msra.mxu0 0.0
    %6602 = vmatprep.subr.mxu0 0.0
    %6603 = vmatpush1.xpose.msra.mxu0 0.0
    %6604 = vmatprep.subr.mxu0 0.0
    %6605 = vmatpush1.xpose.msra.mxu0 0.0
    %6606 = vmatprep.subr.mxu0 0.0
    %6607 = vmatpush1.xpose.msra.mxu0 0.0
    %6608 = vmatprep.subr.mxu0 0.0
    %6609 = vmatpush1.xpose.msra.mxu0 0.0
    %6610 = vmatprep.subr.mxu0 0.0
    %6611 = vmatpush1.xpose.msra.mxu0 0.0
    %6612 = vmatprep.subr.mxu0 0.0
    %6613 = vmatpush1.xpose.msra.mxu0 0.0
    %6614 = vmatprep.subr.mxu0 0.0
    %6615 = vmatpush1.xpose.msra.mxu0 0.0
    %6616 = vmatprep.subr.mxu0 0.0
    %6617 = vmatpush1.xpose.msra.mxu0 0.0
    %6618 = vmatprep.subr.mxu0 0.0
    %6619 = vmatpush1.xpose.msra.mxu0 0.0
    %6620 = vmatprep.subr.mxu0 0.0
    %6621 = vmatpush1.xpose.msra.mxu0 0.0
    %6622 = vmatprep.subr.mxu0 0.0
    %6623 = vmatpush1.xpose.msra.mxu0 0.0
    %6624 = vmatprep.subr.mxu0 0.0
    %6625 = vmatpush1.xpose.msra.mxu0 0.0
    %6626 = vmatprep.subr.mxu0 0.0
    %6627 = vmatpush1.xpose.msra.mxu0 0.0
    %6628 = vmatprep.subr.mxu0 0.0
    %6629 = vmatpush1.xpose.msra.mxu0 0.0
    %6630 = vmatprep.subr.mxu0 0.0
    %6631 = vmatpush1.xpose.msra.mxu0 0.0
    %6632 = vmatprep.subr.mxu0 0.0
    %6633 = vmatpush1.xpose.msra.mxu0 0.0
    %6634 = vmatprep.subr.mxu0 0.0
    %6635 = vmatpush1.xpose.msra.mxu0 0.0
    %6636 = vmatprep.subr.mxu0 0.0
    %6637 = vmatpush1.xpose.msra.mxu0 0.0
    %6638 = vmatprep.subr.mxu0 0.0
    %6639 = vmatpush1.xpose.msra.mxu0 0.0
    %6640 = vmatprep.subr.mxu0 0.0
    %6641 = vmatpush1.xpose.msra.mxu0 0.0
    %6642 = vmatprep.mubr.f32.mxu0 0.0
    %6643 = vmatmul.mubr.f32.gmra.mrb[0].mxu0 %v6573
    %v6644 = vpop.f32.mrb[0].mxu0
    %v6645 = vadd.f32 0.0, %v6644
    %v6646 = vpop.f32.mrb[0].mxu0
    %6647 = vdwg.mxu0
    %v6648 = vmul.f32 %v6571, %v6645
    %vm6649 = vcmask 9216
    %6650 = vst.msk [vmem:[#allocation7] sm:$0x3] %vm6649, %v6648
    // Predicated region
    $region106: #{tpu_custom_call.1} parent=1 // pred_check
      _
    $region107: #{tpu_custom_call.1} parent=1 // pred_check_branch
      %6652 = sbr.rel (0) target = $region109
    $region108: #{tpu_custom_call.1} parent=1 // pred_region
      %s6654 = ssub.s32 32, 32
      %6655 = vsyncadd [#allocation5], %s6654
      %s6657 = sshll.u32 [#allocation7], 4
      %s6658 = int_to_ptr.vmem [resolvable:$true] %s6657
      %6660 = dma.vmem_to_hbm [thread:$0]  %s6658, 32, %s25, [#allocation5]
    $region109: #{tpu_custom_call.1} parent=1 // pred_fallthru
      _
    // Predicated region
    $region110: #{tpu_custom_call.1} parent=1 // pred_check
      _
    $region111: #{tpu_custom_call.1} parent=1 // pred_check_branch
      %6662 = sbr.rel (0) target = $region113
    $region112: #{tpu_custom_call.1} parent=1 // pred_region
      %6663 = dma.done [#allocation5], 32
    $region113: #{tpu_custom_call.1} parent=1 // pred_fallthru
      _
    %6664 = vsyncpa [#allocation5], 1
    %6665 = vsyncpa [#allocation6], 1

</llo_original>
